<compile_context>
chip_gen: v7x
topology: tpu7x:2x2x1
jax: 0.10.0
libtpu: 0.0.40
codegen_flags: <defaults>
</compile_context>

<pallas_src>
import jax
import jax.numpy as jnp
from jax.experimental import pallas as pl
from jax.experimental.pallas import tpu as pltpu

# pytorch3d BlendParams default background color.
BG = (1.0, 1.0, 1.0)


def _shader_kernel(colors_ref, labels_ref, zbuf_ref,
                   img_ref, depth_ref, label_ref, human_ref,
                   labkey_ref):
    # Per (batch, row-tile) block:
    #   colors_ref: (K, 4, TH, W)   labels_ref / zbuf_ref: (K, TH, W)
    #   img_ref: (4, TH, W)  depth_ref: (TH, W)  label_ref: (TH, W) int32
    #   human_ref: (K, 4, TH, W)    labkey_ref: (K, TH, W) VMEM scratch
    K = colors_ref.shape[0]
    TH, W = depth_ref.shape

    bg0 = jnp.float32(BG[0])
    bg1 = jnp.float32(BG[1])
    bg2 = jnp.float32(BG[2])

    # ---------------------------------------------------------------------
    # Pass 1: back-to-front alpha compositing (forward() main loop).
    # While each layer's planes are hot, also precompute its "label key"
    # (rounded label, or -1 where zbuf < 0) into VMEM scratch so the O(K^2)
    # human pass below doesn't redo round/compare per (n, k) pair.
    # ---------------------------------------------------------------------
    img_r = jnp.full((TH, W), bg0, jnp.float32)
    img_g = jnp.full((TH, W), bg1, jnp.float32)
    img_b = jnp.full((TH, W), bg2, jnp.float32)
    img_a = jnp.zeros((TH, W), jnp.float32)
    depth = jnp.full((TH, W), 100.0, jnp.float32)
    comp_label = jnp.full((TH, W), jnp.float32(K), jnp.float32)

    for k in range(K - 1, -1, -1):
        la = colors_ref[k, 3]
        ld = zbuf_ref[k]
        ll = labels_ref[k]
        one_m_a = 1.0 - la
        # composite_image[..., :3] = c*a + img*(1-a); [...,3] = max(a, img_a)
        img_r = colors_ref[k, 0] * la + img_r * one_m_a
        img_g = colors_ref[k, 1] * la + img_g * one_m_a
        img_b = colors_ref[k, 2] * la + img_b * one_m_a
        img_a = jnp.maximum(la, img_a)
        # depth updated only where layer_depth > 0
        depth = jnp.where(ld > 0, ld * la + depth * one_m_a, depth)
        # label updated only where label valid (zbuf >= 0 and finite) & a > 0.5
        zvalid = ld >= 0
        take = jnp.logical_and(
            jnp.logical_and(zvalid, jnp.isfinite(ll)), la > 0.5)
        comp_label = jnp.where(take, ll, comp_label)
        # hoisted per-layer label key for the human pass
        labkey_ref[k] = jnp.where(zvalid, jnp.round(ll), jnp.float32(-1.0))

    img_ref[0] = img_r
    img_ref[1] = img_g
    img_ref[2] = img_b
    img_ref[3] = img_a
    depth_ref[...] = depth

    # composite_label > K - 0.5  ->  background (-1)
    comp_label = jnp.where(comp_label > jnp.float32(K) - 0.5,
                           jnp.float32(-1.0), comp_label)

    # ---------------------------------------------------------------------
    # Pass 2: raster_each_labeled_human + final label fixups.
    # For each label n: take the front-most layer k whose label key == n
    # (iterate k back-to-front, unconditional overwrite on hit -> the last
    # write, i.e. the smallest k, wins; no 'found' bookkeeping needed).
    # One (4, TH, W) block select per (n, k) pair.
    # ---------------------------------------------------------------------
    for n in range(K):
        fn = jnp.float32(n)
        acc = jnp.zeros((4, TH, W), jnp.float32)
        for k in range(K - 1, -1, -1):
            hit = labkey_ref[k] == fn                 # (TH, W) mask
            acc = jnp.where(hit, colors_ref[k], acc)  # broadcast over 4 planes
        a = acc[3]
        one_m = 1.0 - a
        human_ref[n, 0] = acc[0] * a + bg0 * one_m
        human_ref[n, 1] = acc[1] * a + bg1 * one_m
        human_ref[n, 2] = acc[2] * a + bg2 * one_m
        human_ref[n, 3] = a
        # fixup: pixels whose composite label is n but whose human alpha < 0.5
        bad = jnp.logical_and(comp_label == fn, a < 0.5)
        comp_label = jnp.where(bad, jnp.float32(-1.0), comp_label)

    # round + int32 cast done in-kernel (data already in vregs).
    label_ref[...] = jnp.round(comp_label).astype(jnp.int32)


def _pick_tile_h(B, H, W, K, target_bytes=20 << 20):
    """Row-tile height: multiple of 8 (or full H for tiny H), sized so the TRUE
    per-grid-step VMEM footprint (double-buffered in+out blocks + scratch)
    stays around `target_bytes` — safe inside v7x's 64 MiB with headroom.
    """
    if H <= 8:
        return H                                   # block dim == full array dim
    # true footprint per row: 2*(inputs 6K + outputs 4K+6) + labkey K, f32
    bytes_per_row = (2 * (10 * K + 6) + K) * W * 4
    budget_th = max(8, int(target_bytes // bytes_per_row) // 8 * 8)
    th_cap = min(budget_th, (H // 8) * 8)
    if B == 1:
        # keep >= 2 grid steps along the row axis so both v7x TensorCores
        # receive work even at batch 1.
        th_cap = min(th_cap, max(8, (H // 2) // 8 * 8))
    # Prefer a TH that divides H exactly (no partial tail block); otherwise
    # rely on the cdiv grid + masked partial last block.
    for th in range(th_cap, 7, -8):
        if H % th == 0:
            return th
    return th_cap


@jax.jit
def alpha_composition_shader_planar(colors, labels, zbuf):
    """Primary (zero-relayout) entry point — kernel-native layout.

    colors: (B, K, 4, H, W) f32   labels: (B, K, H, W) f32   zbuf: (B, K, H, W) f32
    Returns: composite_image (B,4,H,W), composite_depth (B,H,W),
             composite_label (B,H,W) int32, human_images (B,K,4,H,W).
    """
    B, K, C4, H, W = colors.shape
    assert C4 == 4
    assert labels.shape == (B, K, H, W) and zbuf.shape == (B, K, H, W)

    TH = _pick_tile_h(B, H, W, K)
    grid = (B, pl.cdiv(H, TH))

    out_shapes = (
        jax.ShapeDtypeStruct((B, 4, H, W), jnp.float32),       # composite image
        jax.ShapeDtypeStruct((B, H, W), jnp.float32),          # composite depth
        jax.ShapeDtypeStruct((B, H, W), jnp.int32),            # composite label
        jax.ShapeDtypeStruct((B, K, 4, H, W), jnp.float32),    # human images
    )
    in_specs = [
        pl.BlockSpec((None, K, 4, TH, W), lambda b, h: (b, 0, 0, h, 0)),
        pl.BlockSpec((None, K, TH, W), lambda b, h: (b, 0, h, 0)),
        pl.BlockSpec((None, K, TH, W), lambda b, h: (b, 0, h, 0)),
    ]
    out_specs = (
        pl.BlockSpec((None, 4, TH, W), lambda b, h: (b, 0, h, 0)),
        pl.BlockSpec((None, TH, W), lambda b, h: (b, h, 0)),
        pl.BlockSpec((None, TH, W), lambda b, h: (b, h, 0)),
        pl.BlockSpec((None, K, 4, TH, W), lambda b, h: (b, 0, 0, h, 0)),
    )

    return pl.pallas_call(
        _shader_kernel,
        out_shape=out_shapes,
        grid=grid,
        in_specs=in_specs,
        out_specs=out_specs,
        scratch_shapes=[pltpu.VMEM((K, TH, W), jnp.float32)],
        compiler_params=pltpu.CompilerParams(
            dimension_semantics=("parallel", "parallel"),
            vmem_limit_bytes=48 << 20),
    )(colors.astype(jnp.float32), labels.astype(jnp.float32),
      zbuf.astype(jnp.float32))


@jax.jit
def alpha_composition_shader(sampled, zbuf):
    """PyTorch-convention compatibility shim.

    sampled: (B, H, W, K, 5) f32 ; zbuf: (B, H, W, K) f32.
    NOTE: every transpose here is a full extra HBM pass on a BW-bound op —
    production callers should use `alpha_composition_shader_planar` directly
    (the rasterizer can emit / consumers can accept that layout).
    """
    B, H, W, K, C5 = sampled.shape
    assert C5 == 5
    colors = jnp.transpose(sampled[..., :4], (0, 3, 4, 1, 2))   # (B,K,4,H,W)
    labels = jnp.transpose(sampled[..., 4], (0, 3, 1, 2))       # (B,K,H,W)
    zb = jnp.transpose(zbuf, (0, 3, 1, 2))                      # (B,K,H,W)

    img, depth, label_i, human = alpha_composition_shader_planar(colors, labels, zb)

    composite_image = jnp.transpose(img, (0, 2, 3, 1))           # (B,H,W,4)
    human_images = jnp.transpose(human, (0, 3, 4, 1, 2))         # (B,H,W,K,4)
    return composite_image, depth, label_i, human_images


def _reference(sampled, zbuf):
    """Pure-JAX transcription of the PyTorch forward (for verification)."""
    pixel_colors = sampled[..., :4]
    B, H, W, K, _ = pixel_colors.shape
    labels_fwd = jnp.where(zbuf < 0, jnp.nan, sampled[..., 4])

    comp_img = jnp.zeros((B, H, W, 4), jnp.float32)
    comp_img = comp_img.at[..., 0].set(BG[0]).at[..., 1].set(BG[1]).at[..., 2].set(BG[2])
    comp_depth = jnp.full((B, H, W), 100.0, jnp.float32)
    comp_label = jnp.full((B, H, W), float(K), jnp.float32)
    for k in range(K - 1, -1, -1):
        lc = pixel_colors[..., k, :3]
        la = pixel_colors[..., k, 3]
        ld = zbuf[..., k]
        ll = labels_fwd[..., k]
        comp_img = comp_img.at[..., :3].set(
            lc * la[..., None] + comp_img[..., :3] * (1.0 - la[..., None]))
        comp_img = comp_img.at[..., 3].set(jnp.maximum(la, comp_img[..., 3]))
        comp_depth = jnp.where(ld > 0, ld * la + comp_depth * (1.0 - la), comp_depth)
        comp_label = jnp.where(jnp.isfinite(ll),
                               jnp.where(la > 0.5, ll, comp_label), comp_label)

    labels_int = jnp.where(zbuf < 0, -1, jnp.round(sampled[..., 4]).astype(jnp.int32))
    colors_void = jnp.concatenate(
        [pixel_colors, jnp.zeros((B, H, W, 1, 4), jnp.float32)], axis=-2)
    hum = []
    for n in range(K):
        hit = jnp.concatenate(
            [labels_int == n, jnp.ones((B, H, W, 1), bool)], axis=-1)
        first = jnp.argmax(hit, axis=-1)                        # (B, H, W)
        gathered = jnp.take_along_axis(
            colors_void, first[..., None, None], axis=-2)[..., 0, :]
        hum.append(gathered)
    human = jnp.stack(hum, axis=-2)                             # (B, H, W, K, 4)
    bg = jnp.array(BG, jnp.float32)
    h_alpha = human[..., 3:4]
    human = human.at[..., :3].set(human[..., :3] * h_alpha + bg * (1.0 - h_alpha))

    comp_label = jnp.where(comp_label > K - 0.5, -1.0, comp_label)
    for k in range(K):
        bad = (comp_label == float(k)) & (human[..., k, 3] < 0.5)
        comp_label = jnp.where(bad, -1.0, comp_label)
    return comp_img, comp_depth, jnp.round(comp_label).astype(jnp.int32), human


if __name__ == "__main__":
    B, H, W, K = 2, 16, 16, 8
    key = jax.random.PRNGKey(0)
    k1, k2, k3, k4 = jax.random.split(key, 4)

    rgb = jax.random.uniform(k1, (B, H, W, K, 3), jnp.float32)
    alpha = jax.random.uniform(k2, (B, H, W, K, 1), jnp.float32)
    labels = jax.random.randint(k3, (B, H, W, K, 1), 0, K).astype(jnp.float32)
    sampled = jnp.concatenate([rgb, alpha, labels], axis=-1)          # (B,H,W,K,5)
    zbuf = jax.random.uniform(k4, (B, H, W, K), jnp.float32, -0.5, 2.0)

    outs = alpha_composition_shader(sampled, zbuf)
    outs = jax.block_until_ready(outs)

    refs = jax.block_until_ready(_reference(sampled, zbuf))
    names = ("composite_image", "composite_depth", "composite_label", "human_images")
    for name, got, want in zip(names, outs, refs):
        assert got.shape == want.shape and got.dtype == want.dtype, name
        if jnp.issubdtype(got.dtype, jnp.integer):
            assert bool(jnp.all(got == want)), name
        else:
            assert bool(jnp.allclose(got, want, rtol=1e-5, atol=1e-5)), name

    print("KERNEL_OK")
</pallas_src>

<mosaic_0001>
module attributes {stable_mosaic.version = 11 : i64} {
  func.func @_shader_kernel(%arg0: i32, %arg1: i32, %arg2: memref<1x8x4x16x16xf32, #tpu.memory_space<vmem>>, %arg3: memref<1x8x16x16xf32, #tpu.memory_space<vmem>>, %arg4: memref<1x8x16x16xf32, #tpu.memory_space<vmem>>, %arg5: memref<1x4x16x16xf32, #tpu.memory_space<vmem>>, %arg6: memref<1x16x16xf32, #tpu.memory_space<vmem>>, %arg7: memref<1x16x16xi32, #tpu.memory_space<vmem>>, %arg8: memref<1x8x4x16x16xf32, #tpu.memory_space<vmem>>, %arg9: memref<8x16x16xf32, #tpu.memory_space<vmem>>) attributes {dimension_semantics = [#tpu.dimension_semantics<parallel>, #tpu.dimension_semantics<parallel>], iteration_bounds = array<i64: 2, 1>, scalar_prefetch = 0 : i64, scratch_operands = 1 : i64, tpu.core_type = #tpu.core_type<tc>, window_params = [{transform_indices = @transform_0, window_bounds = array<i64: 1, 8, 4, 16, 16>}, {transform_indices = @transform_1, window_bounds = array<i64: 1, 8, 16, 16>}, {transform_indices = @transform_2, window_bounds = array<i64: 1, 8, 16, 16>}, {transform_indices = @transform_3, window_bounds = array<i64: 1, 4, 16, 16>}, {transform_indices = @transform_4, window_bounds = array<i64: 1, 16, 16>}, {transform_indices = @transform_5, window_bounds = array<i64: 1, 16, 16>}, {transform_indices = @transform_6, window_bounds = array<i64: 1, 8, 4, 16, 16>}]} {
    %cst = arith.constant 1.000000e+00 : f32
    %0 = vector.broadcast %cst : f32 to vector<16x16xf32>
    %cst_0 = arith.constant 1.000000e+00 : f32
    %1 = vector.broadcast %cst_0 : f32 to vector<16x16xf32>
    %cst_1 = arith.constant 1.000000e+00 : f32
    %2 = vector.broadcast %cst_1 : f32 to vector<16x16xf32>
    %cst_2 = arith.constant 0.000000e+00 : f32
    %3 = vector.broadcast %cst_2 : f32 to vector<16x16xf32>
    %cst_3 = arith.constant 1.000000e+02 : f32
    %4 = vector.broadcast %cst_3 : f32 to vector<16x16xf32>
    %cst_4 = arith.constant 8.000000e+00 : f32
    %5 = vector.broadcast %cst_4 : f32 to vector<16x16xf32>
    %c0 = arith.constant 0 : index
    %c7 = arith.constant 7 : index
    %c3 = arith.constant 3 : index
    %c0_5 = arith.constant 0 : index
    %c0_6 = arith.constant 0 : index
    %6 = vector.load %arg2[%c0, %c7, %c3, %c0_5, %c0_6] : memref<1x8x4x16x16xf32, #tpu.memory_space<vmem>>, vector<1x1x1x16x16xf32>
    %7 = vector.shape_cast %6 : vector<1x1x1x16x16xf32> to vector<16x16xf32>
    %c0_7 = arith.constant 0 : index
    %c7_8 = arith.constant 7 : index
    %c0_9 = arith.constant 0 : index
    %c0_10 = arith.constant 0 : index
    %8 = vector.load %arg4[%c0_7, %c7_8, %c0_9, %c0_10] : memref<1x8x16x16xf32, #tpu.memory_space<vmem>>, vector<1x1x16x16xf32>
    %9 = vector.shape_cast %8 : vector<1x1x16x16xf32> to vector<16x16xf32>
    %c0_11 = arith.constant 0 : index
    %c7_12 = arith.constant 7 : index
    %c0_13 = arith.constant 0 : index
    %c0_14 = arith.constant 0 : index
    %10 = vector.load %arg3[%c0_11, %c7_12, %c0_13, %c0_14] : memref<1x8x16x16xf32, #tpu.memory_space<vmem>>, vector<1x1x16x16xf32>
    %11 = vector.shape_cast %10 : vector<1x1x16x16xf32> to vector<16x16xf32>
    %cst_15 = arith.constant 1.000000e+00 : f32
    %12 = vector.broadcast %cst_15 : f32 to vector<16x16xf32>
    %13 = arith.subf %12, %7 : vector<16x16xf32>
    %c0_16 = arith.constant 0 : index
    %c7_17 = arith.constant 7 : index
    %c0_18 = arith.constant 0 : index
    %c0_19 = arith.constant 0 : index
    %c0_20 = arith.constant 0 : index
    %14 = vector.load %arg2[%c0_16, %c7_17, %c0_18, %c0_19, %c0_20] : memref<1x8x4x16x16xf32, #tpu.memory_space<vmem>>, vector<1x1x1x16x16xf32>
    %15 = vector.shape_cast %14 : vector<1x1x1x16x16xf32> to vector<16x16xf32>
    %16 = arith.mulf %15, %7 : vector<16x16xf32>
    %17 = arith.mulf %0, %13 : vector<16x16xf32>
    %18 = arith.addf %16, %17 : vector<16x16xf32>
    %c0_21 = arith.constant 0 : index
    %c7_22 = arith.constant 7 : index
    %c1 = arith.constant 1 : index
    %c0_23 = arith.constant 0 : index
    %c0_24 = arith.constant 0 : index
    %19 = vector.load %arg2[%c0_21, %c7_22, %c1, %c0_23, %c0_24] : memref<1x8x4x16x16xf32, #tpu.memory_space<vmem>>, vector<1x1x1x16x16xf32>
    %20 = vector.shape_cast %19 : vector<1x1x1x16x16xf32> to vector<16x16xf32>
    %21 = arith.mulf %20, %7 : vector<16x16xf32>
    %22 = arith.mulf %1, %13 : vector<16x16xf32>
    %23 = arith.addf %21, %22 : vector<16x16xf32>
    %c0_25 = arith.constant 0 : index
    %c7_26 = arith.constant 7 : index
    %c2 = arith.constant 2 : index
    %c0_27 = arith.constant 0 : index
    %c0_28 = arith.constant 0 : index
    %24 = vector.load %arg2[%c0_25, %c7_26, %c2, %c0_27, %c0_28] : memref<1x8x4x16x16xf32, #tpu.memory_space<vmem>>, vector<1x1x1x16x16xf32>
    %25 = vector.shape_cast %24 : vector<1x1x1x16x16xf32> to vector<16x16xf32>
    %26 = arith.mulf %25, %7 : vector<16x16xf32>
    %27 = arith.mulf %2, %13 : vector<16x16xf32>
    %28 = arith.addf %26, %27 : vector<16x16xf32>
    %29 = arith.maximumf %7, %3 : vector<16x16xf32>
    %cst_29 = arith.constant 0.000000e+00 : f32
    %30 = vector.broadcast %cst_29 : f32 to vector<16x16xf32>
    %31 = arith.cmpf ogt, %9, %30 : vector<16x16xf32>
    %32 = arith.mulf %9, %7 : vector<16x16xf32>
    %33 = arith.mulf %4, %13 : vector<16x16xf32>
    %34 = arith.addf %32, %33 : vector<16x16xf32>
    %35 = arith.select %31, %34, %4 : vector<16x16xi1>, vector<16x16xf32>
    %cst_30 = arith.constant 0.000000e+00 : f32
    %36 = vector.broadcast %cst_30 : f32 to vector<16x16xf32>
    %37 = arith.cmpf oge, %9, %36 : vector<16x16xf32>
    %38 = tpu.weird %11 : vector<16x16xf32> -> vector<16x16xi1>
    %cst_31 = arith.constant dense<true> : vector<16x16xi1>
    %39 = arith.xori %38, %cst_31 : vector<16x16xi1>
    %40 = arith.andi %37, %39 : vector<16x16xi1>
    %cst_32 = arith.constant 5.000000e-01 : f32
    %41 = vector.broadcast %cst_32 : f32 to vector<16x16xf32>
    %42 = arith.cmpf ogt, %7, %41 : vector<16x16xf32>
    %43 = arith.andi %40, %42 : vector<16x16xi1>
    %44 = arith.select %43, %11, %5 : vector<16x16xi1>, vector<16x16xf32>
    %45 = math.roundeven %11 : vector<16x16xf32>
    %cst_33 = arith.constant -1.000000e+00 : f32
    %46 = vector.broadcast %cst_33 : f32 to vector<16x16xf32>
    %47 = arith.select %37, %45, %46 : vector<16x16xi1>, vector<16x16xf32>
    %c7_34 = arith.constant 7 : index
    %c0_35 = arith.constant 0 : index
    %c0_36 = arith.constant 0 : index
    %48 = vector.load %arg9[%c7_34, %c0_35, %c0_36] : memref<8x16x16xf32, #tpu.memory_space<vmem>>, vector<1x16x16xf32>
    %49 = vector.shape_cast %48 : vector<1x16x16xf32> to vector<16x16xf32>
    %50 = vector.shape_cast %47 : vector<16x16xf32> to vector<1x16x16xf32>
    tpu.vector_store %arg9[%c7_34, %c0_35, %c0_36], %50 {strides = array<i32>} : memref<8x16x16xf32, #tpu.memory_space<vmem>>, vector<1x16x16xf32>,
    %c0_37 = arith.constant 0 : index
    %c6 = arith.constant 6 : index
    %c3_38 = arith.constant 3 : index
    %c0_39 = arith.constant 0 : index
    %c0_40 = arith.constant 0 : index
    %51 = vector.load %arg2[%c0_37, %c6, %c3_38, %c0_39, %c0_40] : memref<1x8x4x16x16xf32, #tpu.memory_space<vmem>>, vector<1x1x1x16x16xf32>
    %52 = vector.shape_cast %51 : vector<1x1x1x16x16xf32> to vector<16x16xf32>
    %c0_41 = arith.constant 0 : index
    %c6_42 = arith.constant 6 : index
    %c0_43 = arith.constant 0 : index
    %c0_44 = arith.constant 0 : index
    %53 = vector.load %arg4[%c0_41, %c6_42, %c0_43, %c0_44] : memref<1x8x16x16xf32, #tpu.memory_space<vmem>>, vector<1x1x16x16xf32>
    %54 = vector.shape_cast %53 : vector<1x1x16x16xf32> to vector<16x16xf32>
    %c0_45 = arith.constant 0 : index
    %c6_46 = arith.constant 6 : index
    %c0_47 = arith.constant 0 : index
    %c0_48 = arith.constant 0 : index
    %55 = vector.load %arg3[%c0_45, %c6_46, %c0_47, %c0_48] : memref<1x8x16x16xf32, #tpu.memory_space<vmem>>, vector<1x1x16x16xf32>
    %56 = vector.shape_cast %55 : vector<1x1x16x16xf32> to vector<16x16xf32>
    %cst_49 = arith.constant 1.000000e+00 : f32
    %57 = vector.broadcast %cst_49 : f32 to vector<16x16xf32>
    %58 = arith.subf %57, %52 : vector<16x16xf32>
    %c0_50 = arith.constant 0 : index
    %c6_51 = arith.constant 6 : index
    %c0_52 = arith.constant 0 : index
    %c0_53 = arith.constant 0 : index
    %c0_54 = arith.constant 0 : index
    %59 = vector.load %arg2[%c0_50, %c6_51, %c0_52, %c0_53, %c0_54] : memref<1x8x4x16x16xf32, #tpu.memory_space<vmem>>, vector<1x1x1x16x16xf32>
    %60 = vector.shape_cast %59 : vector<1x1x1x16x16xf32> to vector<16x16xf32>
    %61 = arith.mulf %60, %52 : vector<16x16xf32>
    %62 = arith.mulf %18, %58 : vector<16x16xf32>
    %63 = arith.addf %61, %62 : vector<16x16xf32>
    %c0_55 = arith.constant 0 : index
    %c6_56 = arith.constant 6 : index
    %c1_57 = arith.constant 1 : index
    %c0_58 = arith.constant 0 : index
    %c0_59 = arith.constant 0 : index
    %64 = vector.load %arg2[%c0_55, %c6_56, %c1_57, %c0_58, %c0_59] : memref<1x8x4x16x16xf32, #tpu.memory_space<vmem>>, vector<1x1x1x16x16xf32>
    %65 = vector.shape_cast %64 : vector<1x1x1x16x16xf32> to vector<16x16xf32>
    %66 = arith.mulf %65, %52 : vector<16x16xf32>
    %67 = arith.mulf %23, %58 : vector<16x16xf32>
    %68 = arith.addf %66, %67 : vector<16x16xf32>
    %c0_60 = arith.constant 0 : index
    %c6_61 = arith.constant 6 : index
    %c2_62 = arith.constant 2 : index
    %c0_63 = arith.constant 0 : index
    %c0_64 = arith.constant 0 : index
    %69 = vector.load %arg2[%c0_60, %c6_61, %c2_62, %c0_63, %c0_64] : memref<1x8x4x16x16xf32, #tpu.memory_space<vmem>>, vector<1x1x1x16x16xf32>
    %70 = vector.shape_cast %69 : vector<1x1x1x16x16xf32> to vector<16x16xf32>
    %71 = arith.mulf %70, %52 : vector<16x16xf32>
    %72 = arith.mulf %28, %58 : vector<16x16xf32>
    %73 = arith.addf %71, %72 : vector<16x16xf32>
    %74 = arith.maximumf %52, %29 : vector<16x16xf32>
    %cst_65 = arith.constant 0.000000e+00 : f32
    %75 = vector.broadcast %cst_65 : f32 to vector<16x16xf32>
    %76 = arith.cmpf ogt, %54, %75 : vector<16x16xf32>
    %77 = arith.mulf %54, %52 : vector<16x16xf32>
    %78 = arith.mulf %35, %58 : vector<16x16xf32>
    %79 = arith.addf %77, %78 : vector<16x16xf32>
    %80 = arith.select %76, %79, %35 : vector<16x16xi1>, vector<16x16xf32>
    %cst_66 = arith.constant 0.000000e+00 : f32
    %81 = vector.broadcast %cst_66 : f32 to vector<16x16xf32>
    %82 = arith.cmpf oge, %54, %81 : vector<16x16xf32>
    %83 = tpu.weird %56 : vector<16x16xf32> -> vector<16x16xi1>
    %cst_67 = arith.constant dense<true> : vector<16x16xi1>
    %84 = arith.xori %83, %cst_67 : vector<16x16xi1>
    %85 = arith.andi %82, %84 : vector<16x16xi1>
    %cst_68 = arith.constant 5.000000e-01 : f32
    %86 = vector.broadcast %cst_68 : f32 to vector<16x16xf32>
    %87 = arith.cmpf ogt, %52, %86 : vector<16x16xf32>
    %88 = arith.andi %85, %87 : vector<16x16xi1>
    %89 = arith.select %88, %56, %44 : vector<16x16xi1>, vector<16x16xf32>
    %90 = math.roundeven %56 : vector<16x16xf32>
    %cst_69 = arith.constant -1.000000e+00 : f32
    %91 = vector.broadcast %cst_69 : f32 to vector<16x16xf32>
    %92 = arith.select %82, %90, %91 : vector<16x16xi1>, vector<16x16xf32>
    %c6_70 = arith.constant 6 : index
    %c0_71 = arith.constant 0 : index
    %c0_72 = arith.constant 0 : index
    %93 = vector.load %arg9[%c6_70, %c0_71, %c0_72] : memref<8x16x16xf32, #tpu.memory_space<vmem>>, vector<1x16x16xf32>
    %94 = vector.shape_cast %93 : vector<1x16x16xf32> to vector<16x16xf32>
    %95 = vector.shape_cast %92 : vector<16x16xf32> to vector<1x16x16xf32>
    tpu.vector_store %arg9[%c6_70, %c0_71, %c0_72], %95 {strides = array<i32>} : memref<8x16x16xf32, #tpu.memory_space<vmem>>, vector<1x16x16xf32>,
    %c0_73 = arith.constant 0 : index
    %c5 = arith.constant 5 : index
    %c3_74 = arith.constant 3 : index
    %c0_75 = arith.constant 0 : index
    %c0_76 = arith.constant 0 : index
    %96 = vector.load %arg2[%c0_73, %c5, %c3_74, %c0_75, %c0_76] : memref<1x8x4x16x16xf32, #tpu.memory_space<vmem>>, vector<1x1x1x16x16xf32>
    %97 = vector.shape_cast %96 : vector<1x1x1x16x16xf32> to vector<16x16xf32>
    %c0_77 = arith.constant 0 : index
    %c5_78 = arith.constant 5 : index
    %c0_79 = arith.constant 0 : index
    %c0_80 = arith.constant 0 : index
    %98 = vector.load %arg4[%c0_77, %c5_78, %c0_79, %c0_80] : memref<1x8x16x16xf32, #tpu.memory_space<vmem>>, vector<1x1x16x16xf32>
    %99 = vector.shape_cast %98 : vector<1x1x16x16xf32> to vector<16x16xf32>
    %c0_81 = arith.constant 0 : index
    %c5_82 = arith.constant 5 : index
    %c0_83 = arith.constant 0 : index
    %c0_84 = arith.constant 0 : index
    %100 = vector.load %arg3[%c0_81, %c5_82, %c0_83, %c0_84] : memref<1x8x16x16xf32, #tpu.memory_space<vmem>>, vector<1x1x16x16xf32>
    %101 = vector.shape_cast %100 : vector<1x1x16x16xf32> to vector<16x16xf32>
    %cst_85 = arith.constant 1.000000e+00 : f32
    %102 = vector.broadcast %cst_85 : f32 to vector<16x16xf32>
    %103 = arith.subf %102, %97 : vector<16x16xf32>
    %c0_86 = arith.constant 0 : index
    %c5_87 = arith.constant 5 : index
    %c0_88 = arith.constant 0 : index
    %c0_89 = arith.constant 0 : index
    %c0_90 = arith.constant 0 : index
    %104 = vector.load %arg2[%c0_86, %c5_87, %c0_88, %c0_89, %c0_90] : memref<1x8x4x16x16xf32, #tpu.memory_space<vmem>>, vector<1x1x1x16x16xf32>
    %105 = vector.shape_cast %104 : vector<1x1x1x16x16xf32> to vector<16x16xf32>
    %106 = arith.mulf %105, %97 : vector<16x16xf32>
    %107 = arith.mulf %63, %103 : vector<16x16xf32>
    %108 = arith.addf %106, %107 : vector<16x16xf32>
    %c0_91 = arith.constant 0 : index
    %c5_92 = arith.constant 5 : index
    %c1_93 = arith.constant 1 : index
    %c0_94 = arith.constant 0 : index
    %c0_95 = arith.constant 0 : index
    %109 = vector.load %arg2[%c0_91, %c5_92, %c1_93, %c0_94, %c0_95] : memref<1x8x4x16x16xf32, #tpu.memory_space<vmem>>, vector<1x1x1x16x16xf32>
    %110 = vector.shape_cast %109 : vector<1x1x1x16x16xf32> to vector<16x16xf32>
    %111 = arith.mulf %110, %97 : vector<16x16xf32>
    %112 = arith.mulf %68, %103 : vector<16x16xf32>
    %113 = arith.addf %111, %112 : vector<16x16xf32>
    %c0_96 = arith.constant 0 : index
    %c5_97 = arith.constant 5 : index
    %c2_98 = arith.constant 2 : index
    %c0_99 = arith.constant 0 : index
    %c0_100 = arith.constant 0 : index
    %114 = vector.load %arg2[%c0_96, %c5_97, %c2_98, %c0_99, %c0_100] : memref<1x8x4x16x16xf32, #tpu.memory_space<vmem>>, vector<1x1x1x16x16xf32>
    %115 = vector.shape_cast %114 : vector<1x1x1x16x16xf32> to vector<16x16xf32>
    %116 = arith.mulf %115, %97 : vector<16x16xf32>
    %117 = arith.mulf %73, %103 : vector<16x16xf32>
    %118 = arith.addf %116, %117 : vector<16x16xf32>
    %119 = arith.maximumf %97, %74 : vector<16x16xf32>
    %cst_101 = arith.constant 0.000000e+00 : f32
    %120 = vector.broadcast %cst_101 : f32 to vector<16x16xf32>
    %121 = arith.cmpf ogt, %99, %120 : vector<16x16xf32>
    %122 = arith.mulf %99, %97 : vector<16x16xf32>
    %123 = arith.mulf %80, %103 : vector<16x16xf32>
    %124 = arith.addf %122, %123 : vector<16x16xf32>
    %125 = arith.select %121, %124, %80 : vector<16x16xi1>, vector<16x16xf32>
    %cst_102 = arith.constant 0.000000e+00 : f32
    %126 = vector.broadcast %cst_102 : f32 to vector<16x16xf32>
    %127 = arith.cmpf oge, %99, %126 : vector<16x16xf32>
    %128 = tpu.weird %101 : vector<16x16xf32> -> vector<16x16xi1>
    %cst_103 = arith.constant dense<true> : vector<16x16xi1>
    %129 = arith.xori %128, %cst_103 : vector<16x16xi1>
    %130 = arith.andi %127, %129 : vector<16x16xi1>
    %cst_104 = arith.constant 5.000000e-01 : f32
    %131 = vector.broadcast %cst_104 : f32 to vector<16x16xf32>
    %132 = arith.cmpf ogt, %97, %131 : vector<16x16xf32>
    %133 = arith.andi %130, %132 : vector<16x16xi1>
    %134 = arith.select %133, %101, %89 : vector<16x16xi1>, vector<16x16xf32>
    %135 = math.roundeven %101 : vector<16x16xf32>
    %cst_105 = arith.constant -1.000000e+00 : f32
    %136 = vector.broadcast %cst_105 : f32 to vector<16x16xf32>
    %137 = arith.select %127, %135, %136 : vector<16x16xi1>, vector<16x16xf32>
    %c5_106 = arith.constant 5 : index
    %c0_107 = arith.constant 0 : index
    %c0_108 = arith.constant 0 : index
    %138 = vector.load %arg9[%c5_106, %c0_107, %c0_108] : memref<8x16x16xf32, #tpu.memory_space<vmem>>, vector<1x16x16xf32>
    %139 = vector.shape_cast %138 : vector<1x16x16xf32> to vector<16x16xf32>
    %140 = vector.shape_cast %137 : vector<16x16xf32> to vector<1x16x16xf32>
    tpu.vector_store %arg9[%c5_106, %c0_107, %c0_108], %140 {strides = array<i32>} : memref<8x16x16xf32, #tpu.memory_space<vmem>>, vector<1x16x16xf32>,
    %c0_109 = arith.constant 0 : index
    %c4 = arith.constant 4 : index
    %c3_110 = arith.constant 3 : index
    %c0_111 = arith.constant 0 : index
    %c0_112 = arith.constant 0 : index
    %141 = vector.load %arg2[%c0_109, %c4, %c3_110, %c0_111, %c0_112] : memref<1x8x4x16x16xf32, #tpu.memory_space<vmem>>, vector<1x1x1x16x16xf32>
    %142 = vector.shape_cast %141 : vector<1x1x1x16x16xf32> to vector<16x16xf32>
    %c0_113 = arith.constant 0 : index
    %c4_114 = arith.constant 4 : index
    %c0_115 = arith.constant 0 : index
    %c0_116 = arith.constant 0 : index
    %143 = vector.load %arg4[%c0_113, %c4_114, %c0_115, %c0_116] : memref<1x8x16x16xf32, #tpu.memory_space<vmem>>, vector<1x1x16x16xf32>
    %144 = vector.shape_cast %143 : vector<1x1x16x16xf32> to vector<16x16xf32>
    %c0_117 = arith.constant 0 : index
    %c4_118 = arith.constant 4 : index
    %c0_119 = arith.constant 0 : index
    %c0_120 = arith.constant 0 : index
    %145 = vector.load %arg3[%c0_117, %c4_118, %c0_119, %c0_120] : memref<1x8x16x16xf32, #tpu.memory_space<vmem>>, vector<1x1x16x16xf32>
    %146 = vector.shape_cast %145 : vector<1x1x16x16xf32> to vector<16x16xf32>
    %cst_121 = arith.constant 1.000000e+00 : f32
    %147 = vector.broadcast %cst_121 : f32 to vector<16x16xf32>
    %148 = arith.subf %147, %142 : vector<16x16xf32>
    %c0_122 = arith.constant 0 : index
    %c4_123 = arith.constant 4 : index
    %c0_124 = arith.constant 0 : index
    %c0_125 = arith.constant 0 : index
    %c0_126 = arith.constant 0 : index
    %149 = vector.load %arg2[%c0_122, %c4_123, %c0_124, %c0_125, %c0_126] : memref<1x8x4x16x16xf32, #tpu.memory_space<vmem>>, vector<1x1x1x16x16xf32>
    %150 = vector.shape_cast %149 : vector<1x1x1x16x16xf32> to vector<16x16xf32>
    %151 = arith.mulf %150, %142 : vector<16x16xf32>
    %152 = arith.mulf %108, %148 : vector<16x16xf32>
    %153 = arith.addf %151, %152 : vector<16x16xf32>
    %c0_127 = arith.constant 0 : index
    %c4_128 = arith.constant 4 : index
    %c1_129 = arith.constant 1 : index
    %c0_130 = arith.constant 0 : index
    %c0_131 = arith.constant 0 : index
    %154 = vector.load %arg2[%c0_127, %c4_128, %c1_129, %c0_130, %c0_131] : memref<1x8x4x16x16xf32, #tpu.memory_space<vmem>>, vector<1x1x1x16x16xf32>
    %155 = vector.shape_cast %154 : vector<1x1x1x16x16xf32> to vector<16x16xf32>
    %156 = arith.mulf %155, %142 : vector<16x16xf32>
    %157 = arith.mulf %113, %148 : vector<16x16xf32>
    %158 = arith.addf %156, %157 : vector<16x16xf32>
    %c0_132 = arith.constant 0 : index
    %c4_133 = arith.constant 4 : index
    %c2_134 = arith.constant 2 : index
    %c0_135 = arith.constant 0 : index
    %c0_136 = arith.constant 0 : index
    %159 = vector.load %arg2[%c0_132, %c4_133, %c2_134, %c0_135, %c0_136] : memref<1x8x4x16x16xf32, #tpu.memory_space<vmem>>, vector<1x1x1x16x16xf32>
    %160 = vector.shape_cast %159 : vector<1x1x1x16x16xf32> to vector<16x16xf32>
    %161 = arith.mulf %160, %142 : vector<16x16xf32>
    %162 = arith.mulf %118, %148 : vector<16x16xf32>
    %163 = arith.addf %161, %162 : vector<16x16xf32>
    %164 = arith.maximumf %142, %119 : vector<16x16xf32>
    %cst_137 = arith.constant 0.000000e+00 : f32
    %165 = vector.broadcast %cst_137 : f32 to vector<16x16xf32>
    %166 = arith.cmpf ogt, %144, %165 : vector<16x16xf32>
    %167 = arith.mulf %144, %142 : vector<16x16xf32>
    %168 = arith.mulf %125, %148 : vector<16x16xf32>
    %169 = arith.addf %167, %168 : vector<16x16xf32>
    %170 = arith.select %166, %169, %125 : vector<16x16xi1>, vector<16x16xf32>
    %cst_138 = arith.constant 0.000000e+00 : f32
    %171 = vector.broadcast %cst_138 : f32 to vector<16x16xf32>
    %172 = arith.cmpf oge, %144, %171 : vector<16x16xf32>
    %173 = tpu.weird %146 : vector<16x16xf32> -> vector<16x16xi1>
    %cst_139 = arith.constant dense<true> : vector<16x16xi1>
    %174 = arith.xori %173, %cst_139 : vector<16x16xi1>
    %175 = arith.andi %172, %174 : vector<16x16xi1>
    %cst_140 = arith.constant 5.000000e-01 : f32
    %176 = vector.broadcast %cst_140 : f32 to vector<16x16xf32>
    %177 = arith.cmpf ogt, %142, %176 : vector<16x16xf32>
    %178 = arith.andi %175, %177 : vector<16x16xi1>
    %179 = arith.select %178, %146, %134 : vector<16x16xi1>, vector<16x16xf32>
    %180 = math.roundeven %146 : vector<16x16xf32>
    %cst_141 = arith.constant -1.000000e+00 : f32
    %181 = vector.broadcast %cst_141 : f32 to vector<16x16xf32>
    %182 = arith.select %172, %180, %181 : vector<16x16xi1>, vector<16x16xf32>
    %c4_142 = arith.constant 4 : index
    %c0_143 = arith.constant 0 : index
    %c0_144 = arith.constant 0 : index
    %183 = vector.load %arg9[%c4_142, %c0_143, %c0_144] : memref<8x16x16xf32, #tpu.memory_space<vmem>>, vector<1x16x16xf32>
    %184 = vector.shape_cast %183 : vector<1x16x16xf32> to vector<16x16xf32>
    %185 = vector.shape_cast %182 : vector<16x16xf32> to vector<1x16x16xf32>
    tpu.vector_store %arg9[%c4_142, %c0_143, %c0_144], %185 {strides = array<i32>} : memref<8x16x16xf32, #tpu.memory_space<vmem>>, vector<1x16x16xf32>,
    %c0_145 = arith.constant 0 : index
    %c3_146 = arith.constant 3 : index
    %c3_147 = arith.constant 3 : index
    %c0_148 = arith.constant 0 : index
    %c0_149 = arith.constant 0 : index
    %186 = vector.load %arg2[%c0_145, %c3_146, %c3_147, %c0_148, %c0_149] : memref<1x8x4x16x16xf32, #tpu.memory_space<vmem>>, vector<1x1x1x16x16xf32>
    %187 = vector.shape_cast %186 : vector<1x1x1x16x16xf32> to vector<16x16xf32>
    %c0_150 = arith.constant 0 : index
    %c3_151 = arith.constant 3 : index
    %c0_152 = arith.constant 0 : index
    %c0_153 = arith.constant 0 : index
    %188 = vector.load %arg4[%c0_150, %c3_151, %c0_152, %c0_153] : memref<1x8x16x16xf32, #tpu.memory_space<vmem>>, vector<1x1x16x16xf32>
    %189 = vector.shape_cast %188 : vector<1x1x16x16xf32> to vector<16x16xf32>
    %c0_154 = arith.constant 0 : index
    %c3_155 = arith.constant 3 : index
    %c0_156 = arith.constant 0 : index
    %c0_157 = arith.constant 0 : index
    %190 = vector.load %arg3[%c0_154, %c3_155, %c0_156, %c0_157] : memref<1x8x16x16xf32, #tpu.memory_space<vmem>>, vector<1x1x16x16xf32>
    %191 = vector.shape_cast %190 : vector<1x1x16x16xf32> to vector<16x16xf32>
    %cst_158 = arith.constant 1.000000e+00 : f32
    %192 = vector.broadcast %cst_158 : f32 to vector<16x16xf32>
    %193 = arith.subf %192, %187 : vector<16x16xf32>
    %c0_159 = arith.constant 0 : index
    %c3_160 = arith.constant 3 : index
    %c0_161 = arith.constant 0 : index
    %c0_162 = arith.constant 0 : index
    %c0_163 = arith.constant 0 : index
    %194 = vector.load %arg2[%c0_159, %c3_160, %c0_161, %c0_162, %c0_163] : memref<1x8x4x16x16xf32, #tpu.memory_space<vmem>>, vector<1x1x1x16x16xf32>
    %195 = vector.shape_cast %194 : vector<1x1x1x16x16xf32> to vector<16x16xf32>
    %196 = arith.mulf %195, %187 : vector<16x16xf32>
    %197 = arith.mulf %153, %193 : vector<16x16xf32>
    %198 = arith.addf %196, %197 : vector<16x16xf32>
    %c0_164 = arith.constant 0 : index
    %c3_165 = arith.constant 3 : index
    %c1_166 = arith.constant 1 : index
    %c0_167 = arith.constant 0 : index
    %c0_168 = arith.constant 0 : index
    %199 = vector.load %arg2[%c0_164, %c3_165, %c1_166, %c0_167, %c0_168] : memref<1x8x4x16x16xf32, #tpu.memory_space<vmem>>, vector<1x1x1x16x16xf32>
    %200 = vector.shape_cast %199 : vector<1x1x1x16x16xf32> to vector<16x16xf32>
    %201 = arith.mulf %200, %187 : vector<16x16xf32>
    %202 = arith.mulf %158, %193 : vector<16x16xf32>
    %203 = arith.addf %201, %202 : vector<16x16xf32>
    %c0_169 = arith.constant 0 : index
    %c3_170 = arith.constant 3 : index
    %c2_171 = arith.constant 2 : index
    %c0_172 = arith.constant 0 : index
    %c0_173 = arith.constant 0 : index
    %204 = vector.load %arg2[%c0_169, %c3_170, %c2_171, %c0_172, %c0_173] : memref<1x8x4x16x16xf32, #tpu.memory_space<vmem>>, vector<1x1x1x16x16xf32>
    %205 = vector.shape_cast %204 : vector<1x1x1x16x16xf32> to vector<16x16xf32>
    %206 = arith.mulf %205, %187 : vector<16x16xf32>
    %207 = arith.mulf %163, %193 : vector<16x16xf32>
    %208 = arith.addf %206, %207 : vector<16x16xf32>
    %209 = arith.maximumf %187, %164 : vector<16x16xf32>
    %cst_174 = arith.constant 0.000000e+00 : f32
    %210 = vector.broadcast %cst_174 : f32 to vector<16x16xf32>
    %211 = arith.cmpf ogt, %189, %210 : vector<16x16xf32>
    %212 = arith.mulf %189, %187 : vector<16x16xf32>
    %213 = arith.mulf %170, %193 : vector<16x16xf32>
    %214 = arith.addf %212, %213 : vector<16x16xf32>
    %215 = arith.select %211, %214, %170 : vector<16x16xi1>, vector<16x16xf32>
    %cst_175 = arith.constant 0.000000e+00 : f32
    %216 = vector.broadcast %cst_175 : f32 to vector<16x16xf32>
    %217 = arith.cmpf oge, %189, %216 : vector<16x16xf32>
    %218 = tpu.weird %191 : vector<16x16xf32> -> vector<16x16xi1>
    %cst_176 = arith.constant dense<true> : vector<16x16xi1>
    %219 = arith.xori %218, %cst_176 : vector<16x16xi1>
    %220 = arith.andi %217, %219 : vector<16x16xi1>
    %cst_177 = arith.constant 5.000000e-01 : f32
    %221 = vector.broadcast %cst_177 : f32 to vector<16x16xf32>
    %222 = arith.cmpf ogt, %187, %221 : vector<16x16xf32>
    %223 = arith.andi %220, %222 : vector<16x16xi1>
    %224 = arith.select %223, %191, %179 : vector<16x16xi1>, vector<16x16xf32>
    %225 = math.roundeven %191 : vector<16x16xf32>
    %cst_178 = arith.constant -1.000000e+00 : f32
    %226 = vector.broadcast %cst_178 : f32 to vector<16x16xf32>
    %227 = arith.select %217, %225, %226 : vector<16x16xi1>, vector<16x16xf32>
    %c3_179 = arith.constant 3 : index
    %c0_180 = arith.constant 0 : index
    %c0_181 = arith.constant 0 : index
    %228 = vector.load %arg9[%c3_179, %c0_180, %c0_181] : memref<8x16x16xf32, #tpu.memory_space<vmem>>, vector<1x16x16xf32>
    %229 = vector.shape_cast %228 : vector<1x16x16xf32> to vector<16x16xf32>
    %230 = vector.shape_cast %227 : vector<16x16xf32> to vector<1x16x16xf32>
    tpu.vector_store %arg9[%c3_179, %c0_180, %c0_181], %230 {strides = array<i32>} : memref<8x16x16xf32, #tpu.memory_space<vmem>>, vector<1x16x16xf32>,
    %c0_182 = arith.constant 0 : index
    %c2_183 = arith.constant 2 : index
    %c3_184 = arith.constant 3 : index
    %c0_185 = arith.constant 0 : index
    %c0_186 = arith.constant 0 : index
    %231 = vector.load %arg2[%c0_182, %c2_183, %c3_184, %c0_185, %c0_186] : memref<1x8x4x16x16xf32, #tpu.memory_space<vmem>>, vector<1x1x1x16x16xf32>
    %232 = vector.shape_cast %231 : vector<1x1x1x16x16xf32> to vector<16x16xf32>
    %c0_187 = arith.constant 0 : index
    %c2_188 = arith.constant 2 : index
    %c0_189 = arith.constant 0 : index
    %c0_190 = arith.constant 0 : index
    %233 = vector.load %arg4[%c0_187, %c2_188, %c0_189, %c0_190] : memref<1x8x16x16xf32, #tpu.memory_space<vmem>>, vector<1x1x16x16xf32>
    %234 = vector.shape_cast %233 : vector<1x1x16x16xf32> to vector<16x16xf32>
    %c0_191 = arith.constant 0 : index
    %c2_192 = arith.constant 2 : index
    %c0_193 = arith.constant 0 : index
    %c0_194 = arith.constant 0 : index
    %235 = vector.load %arg3[%c0_191, %c2_192, %c0_193, %c0_194] : memref<1x8x16x16xf32, #tpu.memory_space<vmem>>, vector<1x1x16x16xf32>
    %236 = vector.shape_cast %235 : vector<1x1x16x16xf32> to vector<16x16xf32>
    %cst_195 = arith.constant 1.000000e+00 : f32
    %237 = vector.broadcast %cst_195 : f32 to vector<16x16xf32>
    %238 = arith.subf %237, %232 : vector<16x16xf32>
    %c0_196 = arith.constant 0 : index
    %c2_197 = arith.constant 2 : index
    %c0_198 = arith.constant 0 : index
    %c0_199 = arith.constant 0 : index
    %c0_200 = arith.constant 0 : index
    %239 = vector.load %arg2[%c0_196, %c2_197, %c0_198, %c0_199, %c0_200] : memref<1x8x4x16x16xf32, #tpu.memory_space<vmem>>, vector<1x1x1x16x16xf32>
    %240 = vector.shape_cast %239 : vector<1x1x1x16x16xf32> to vector<16x16xf32>
    %241 = arith.mulf %240, %232 : vector<16x16xf32>
    %242 = arith.mulf %198, %238 : vector<16x16xf32>
    %243 = arith.addf %241, %242 : vector<16x16xf32>
    %c0_201 = arith.constant 0 : index
    %c2_202 = arith.constant 2 : index
    %c1_203 = arith.constant 1 : index
    %c0_204 = arith.constant 0 : index
    %c0_205 = arith.constant 0 : index
    %244 = vector.load %arg2[%c0_201, %c2_202, %c1_203, %c0_204, %c0_205] : memref<1x8x4x16x16xf32, #tpu.memory_space<vmem>>, vector<1x1x1x16x16xf32>
    %245 = vector.shape_cast %244 : vector<1x1x1x16x16xf32> to vector<16x16xf32>
    %246 = arith.mulf %245, %232 : vector<16x16xf32>
    %247 = arith.mulf %203, %238 : vector<16x16xf32>
    %248 = arith.addf %246, %247 : vector<16x16xf32>
    %c0_206 = arith.constant 0 : index
    %c2_207 = arith.constant 2 : index
    %c2_208 = arith.constant 2 : index
    %c0_209 = arith.constant 0 : index
    %c0_210 = arith.constant 0 : index
    %249 = vector.load %arg2[%c0_206, %c2_207, %c2_208, %c0_209, %c0_210] : memref<1x8x4x16x16xf32, #tpu.memory_space<vmem>>, vector<1x1x1x16x16xf32>
    %250 = vector.shape_cast %249 : vector<1x1x1x16x16xf32> to vector<16x16xf32>
    %251 = arith.mulf %250, %232 : vector<16x16xf32>
    %252 = arith.mulf %208, %238 : vector<16x16xf32>
    %253 = arith.addf %251, %252 : vector<16x16xf32>
    %254 = arith.maximumf %232, %209 : vector<16x16xf32>
    %cst_211 = arith.constant 0.000000e+00 : f32
    %255 = vector.broadcast %cst_211 : f32 to vector<16x16xf32>
    %256 = arith.cmpf ogt, %234, %255 : vector<16x16xf32>
    %257 = arith.mulf %234, %232 : vector<16x16xf32>
    %258 = arith.mulf %215, %238 : vector<16x16xf32>
    %259 = arith.addf %257, %258 : vector<16x16xf32>
    %260 = arith.select %256, %259, %215 : vector<16x16xi1>, vector<16x16xf32>
    %cst_212 = arith.constant 0.000000e+00 : f32
    %261 = vector.broadcast %cst_212 : f32 to vector<16x16xf32>
    %262 = arith.cmpf oge, %234, %261 : vector<16x16xf32>
    %263 = tpu.weird %236 : vector<16x16xf32> -> vector<16x16xi1>
    %cst_213 = arith.constant dense<true> : vector<16x16xi1>
    %264 = arith.xori %263, %cst_213 : vector<16x16xi1>
    %265 = arith.andi %262, %264 : vector<16x16xi1>
    %cst_214 = arith.constant 5.000000e-01 : f32
    %266 = vector.broadcast %cst_214 : f32 to vector<16x16xf32>
    %267 = arith.cmpf ogt, %232, %266 : vector<16x16xf32>
    %268 = arith.andi %265, %267 : vector<16x16xi1>
    %269 = arith.select %268, %236, %224 : vector<16x16xi1>, vector<16x16xf32>
    %270 = math.roundeven %236 : vector<16x16xf32>
    %cst_215 = arith.constant -1.000000e+00 : f32
    %271 = vector.broadcast %cst_215 : f32 to vector<16x16xf32>
    %272 = arith.select %262, %270, %271 : vector<16x16xi1>, vector<16x16xf32>
    %c2_216 = arith.constant 2 : index
    %c0_217 = arith.constant 0 : index
    %c0_218 = arith.constant 0 : index
    %273 = vector.load %arg9[%c2_216, %c0_217, %c0_218] : memref<8x16x16xf32, #tpu.memory_space<vmem>>, vector<1x16x16xf32>
    %274 = vector.shape_cast %273 : vector<1x16x16xf32> to vector<16x16xf32>
    %275 = vector.shape_cast %272 : vector<16x16xf32> to vector<1x16x16xf32>
    tpu.vector_store %arg9[%c2_216, %c0_217, %c0_218], %275 {strides = array<i32>} : memref<8x16x16xf32, #tpu.memory_space<vmem>>, vector<1x16x16xf32>,
    %c0_219 = arith.constant 0 : index
    %c1_220 = arith.constant 1 : index
    %c3_221 = arith.constant 3 : index
    %c0_222 = arith.constant 0 : index
    %c0_223 = arith.constant 0 : index
    %276 = vector.load %arg2[%c0_219, %c1_220, %c3_221, %c0_222, %c0_223] : memref<1x8x4x16x16xf32, #tpu.memory_space<vmem>>, vector<1x1x1x16x16xf32>
    %277 = vector.shape_cast %276 : vector<1x1x1x16x16xf32> to vector<16x16xf32>
    %c0_224 = arith.constant 0 : index
    %c1_225 = arith.constant 1 : index
    %c0_226 = arith.constant 0 : index
    %c0_227 = arith.constant 0 : index
    %278 = vector.load %arg4[%c0_224, %c1_225, %c0_226, %c0_227] : memref<1x8x16x16xf32, #tpu.memory_space<vmem>>, vector<1x1x16x16xf32>
    %279 = vector.shape_cast %278 : vector<1x1x16x16xf32> to vector<16x16xf32>
    %c0_228 = arith.constant 0 : index
    %c1_229 = arith.constant 1 : index
    %c0_230 = arith.constant 0 : index
    %c0_231 = arith.constant 0 : index
    %280 = vector.load %arg3[%c0_228, %c1_229, %c0_230, %c0_231] : memref<1x8x16x16xf32, #tpu.memory_space<vmem>>, vector<1x1x16x16xf32>
    %281 = vector.shape_cast %280 : vector<1x1x16x16xf32> to vector<16x16xf32>
    %cst_232 = arith.constant 1.000000e+00 : f32
    %282 = vector.broadcast %cst_232 : f32 to vector<16x16xf32>
    %283 = arith.subf %282, %277 : vector<16x16xf32>
    %c0_233 = arith.constant 0 : index
    %c1_234 = arith.constant 1 : index
    %c0_235 = arith.constant 0 : index
    %c0_236 = arith.constant 0 : index
    %c0_237 = arith.constant 0 : index
    %284 = vector.load %arg2[%c0_233, %c1_234, %c0_235, %c0_236, %c0_237] : memref<1x8x4x16x16xf32, #tpu.memory_space<vmem>>, vector<1x1x1x16x16xf32>
    %285 = vector.shape_cast %284 : vector<1x1x1x16x16xf32> to vector<16x16xf32>
    %286 = arith.mulf %285, %277 : vector<16x16xf32>
    %287 = arith.mulf %243, %283 : vector<16x16xf32>
    %288 = arith.addf %286, %287 : vector<16x16xf32>
    %c0_238 = arith.constant 0 : index
    %c1_239 = arith.constant 1 : index
    %c1_240 = arith.constant 1 : index
    %c0_241 = arith.constant 0 : index
    %c0_242 = arith.constant 0 : index
    %289 = vector.load %arg2[%c0_238, %c1_239, %c1_240, %c0_241, %c0_242] : memref<1x8x4x16x16xf32, #tpu.memory_space<vmem>>, vector<1x1x1x16x16xf32>
    %290 = vector.shape_cast %289 : vector<1x1x1x16x16xf32> to vector<16x16xf32>
    %291 = arith.mulf %290, %277 : vector<16x16xf32>
    %292 = arith.mulf %248, %283 : vector<16x16xf32>
    %293 = arith.addf %291, %292 : vector<16x16xf32>
    %c0_243 = arith.constant 0 : index
    %c1_244 = arith.constant 1 : index
    %c2_245 = arith.constant 2 : index
    %c0_246 = arith.constant 0 : index
    %c0_247 = arith.constant 0 : index
    %294 = vector.load %arg2[%c0_243, %c1_244, %c2_245, %c0_246, %c0_247] : memref<1x8x4x16x16xf32, #tpu.memory_space<vmem>>, vector<1x1x1x16x16xf32>
    %295 = vector.shape_cast %294 : vector<1x1x1x16x16xf32> to vector<16x16xf32>
    %296 = arith.mulf %295, %277 : vector<16x16xf32>
    %297 = arith.mulf %253, %283 : vector<16x16xf32>
    %298 = arith.addf %296, %297 : vector<16x16xf32>
    %299 = arith.maximumf %277, %254 : vector<16x16xf32>
    %cst_248 = arith.constant 0.000000e+00 : f32
    %300 = vector.broadcast %cst_248 : f32 to vector<16x16xf32>
    %301 = arith.cmpf ogt, %279, %300 : vector<16x16xf32>
    %302 = arith.mulf %279, %277 : vector<16x16xf32>
    %303 = arith.mulf %260, %283 : vector<16x16xf32>
    %304 = arith.addf %302, %303 : vector<16x16xf32>
    %305 = arith.select %301, %304, %260 : vector<16x16xi1>, vector<16x16xf32>
    %cst_249 = arith.constant 0.000000e+00 : f32
    %306 = vector.broadcast %cst_249 : f32 to vector<16x16xf32>
    %307 = arith.cmpf oge, %279, %306 : vector<16x16xf32>
    %308 = tpu.weird %281 : vector<16x16xf32> -> vector<16x16xi1>
    %cst_250 = arith.constant dense<true> : vector<16x16xi1>
    %309 = arith.xori %308, %cst_250 : vector<16x16xi1>
    %310 = arith.andi %307, %309 : vector<16x16xi1>
    %cst_251 = arith.constant 5.000000e-01 : f32
    %311 = vector.broadcast %cst_251 : f32 to vector<16x16xf32>
    %312 = arith.cmpf ogt, %277, %311 : vector<16x16xf32>
    %313 = arith.andi %310, %312 : vector<16x16xi1>
    %314 = arith.select %313, %281, %269 : vector<16x16xi1>, vector<16x16xf32>
    %315 = math.roundeven %281 : vector<16x16xf32>
    %cst_252 = arith.constant -1.000000e+00 : f32
    %316 = vector.broadcast %cst_252 : f32 to vector<16x16xf32>
    %317 = arith.select %307, %315, %316 : vector<16x16xi1>, vector<16x16xf32>
    %c1_253 = arith.constant 1 : index
    %c0_254 = arith.constant 0 : index
    %c0_255 = arith.constant 0 : index
    %318 = vector.load %arg9[%c1_253, %c0_254, %c0_255] : memref<8x16x16xf32, #tpu.memory_space<vmem>>, vector<1x16x16xf32>
    %319 = vector.shape_cast %318 : vector<1x16x16xf32> to vector<16x16xf32>
    %320 = vector.shape_cast %317 : vector<16x16xf32> to vector<1x16x16xf32>
    tpu.vector_store %arg9[%c1_253, %c0_254, %c0_255], %320 {strides = array<i32>} : memref<8x16x16xf32, #tpu.memory_space<vmem>>, vector<1x16x16xf32>,
    %c0_256 = arith.constant 0 : index
    %c0_257 = arith.constant 0 : index
    %c3_258 = arith.constant 3 : index
    %c0_259 = arith.constant 0 : index
    %c0_260 = arith.constant 0 : index
    %321 = vector.load %arg2[%c0_256, %c0_257, %c3_258, %c0_259, %c0_260] : memref<1x8x4x16x16xf32, #tpu.memory_space<vmem>>, vector<1x1x1x16x16xf32>
    %322 = vector.shape_cast %321 : vector<1x1x1x16x16xf32> to vector<16x16xf32>
    %c0_261 = arith.constant 0 : index
    %c0_262 = arith.constant 0 : index
    %c0_263 = arith.constant 0 : index
    %c0_264 = arith.constant 0 : index
    %323 = vector.load %arg4[%c0_261, %c0_262, %c0_263, %c0_264] : memref<1x8x16x16xf32, #tpu.memory_space<vmem>>, vector<1x1x16x16xf32>
    %324 = vector.shape_cast %323 : vector<1x1x16x16xf32> to vector<16x16xf32>
    %c0_265 = arith.constant 0 : index
    %c0_266 = arith.constant 0 : index
    %c0_267 = arith.constant 0 : index
    %c0_268 = arith.constant 0 : index
    %325 = vector.load %arg3[%c0_265, %c0_266, %c0_267, %c0_268] : memref<1x8x16x16xf32, #tpu.memory_space<vmem>>, vector<1x1x16x16xf32>
    %326 = vector.shape_cast %325 : vector<1x1x16x16xf32> to vector<16x16xf32>
    %cst_269 = arith.constant 1.000000e+00 : f32
    %327 = vector.broadcast %cst_269 : f32 to vector<16x16xf32>
    %328 = arith.subf %327, %322 : vector<16x16xf32>
    %c0_270 = arith.constant 0 : index
    %c0_271 = arith.constant 0 : index
    %c0_272 = arith.constant 0 : index
    %c0_273 = arith.constant 0 : index
    %c0_274 = arith.constant 0 : index
    %329 = vector.load %arg2[%c0_270, %c0_271, %c0_272, %c0_273, %c0_274] : memref<1x8x4x16x16xf32, #tpu.memory_space<vmem>>, vector<1x1x1x16x16xf32>
    %330 = vector.shape_cast %329 : vector<1x1x1x16x16xf32> to vector<16x16xf32>
    %331 = arith.mulf %330, %322 : vector<16x16xf32>
    %332 = arith.mulf %288, %328 : vector<16x16xf32>
    %333 = arith.addf %331, %332 : vector<16x16xf32>
    %c0_275 = arith.constant 0 : index
    %c0_276 = arith.constant 0 : index
    %c1_277 = arith.constant 1 : index
    %c0_278 = arith.constant 0 : index
    %c0_279 = arith.constant 0 : index
    %334 = vector.load %arg2[%c0_275, %c0_276, %c1_277, %c0_278, %c0_279] : memref<1x8x4x16x16xf32, #tpu.memory_space<vmem>>, vector<1x1x1x16x16xf32>
    %335 = vector.shape_cast %334 : vector<1x1x1x16x16xf32> to vector<16x16xf32>
    %336 = arith.mulf %335, %322 : vector<16x16xf32>
    %337 = arith.mulf %293, %328 : vector<16x16xf32>
    %338 = arith.addf %336, %337 : vector<16x16xf32>
    %c0_280 = arith.constant 0 : index
    %c0_281 = arith.constant 0 : index
    %c2_282 = arith.constant 2 : index
    %c0_283 = arith.constant 0 : index
    %c0_284 = arith.constant 0 : index
    %339 = vector.load %arg2[%c0_280, %c0_281, %c2_282, %c0_283, %c0_284] : memref<1x8x4x16x16xf32, #tpu.memory_space<vmem>>, vector<1x1x1x16x16xf32>
    %340 = vector.shape_cast %339 : vector<1x1x1x16x16xf32> to vector<16x16xf32>
    %341 = arith.mulf %340, %322 : vector<16x16xf32>
    %342 = arith.mulf %298, %328 : vector<16x16xf32>
    %343 = arith.addf %341, %342 : vector<16x16xf32>
    %344 = arith.maximumf %322, %299 : vector<16x16xf32>
    %cst_285 = arith.constant 0.000000e+00 : f32
    %345 = vector.broadcast %cst_285 : f32 to vector<16x16xf32>
    %346 = arith.cmpf ogt, %324, %345 : vector<16x16xf32>
    %347 = arith.mulf %324, %322 : vector<16x16xf32>
    %348 = arith.mulf %305, %328 : vector<16x16xf32>
    %349 = arith.addf %347, %348 : vector<16x16xf32>
    %350 = arith.select %346, %349, %305 : vector<16x16xi1>, vector<16x16xf32>
    %cst_286 = arith.constant 0.000000e+00 : f32
    %351 = vector.broadcast %cst_286 : f32 to vector<16x16xf32>
    %352 = arith.cmpf oge, %324, %351 : vector<16x16xf32>
    %353 = tpu.weird %326 : vector<16x16xf32> -> vector<16x16xi1>
    %cst_287 = arith.constant dense<true> : vector<16x16xi1>
    %354 = arith.xori %353, %cst_287 : vector<16x16xi1>
    %355 = arith.andi %352, %354 : vector<16x16xi1>
    %cst_288 = arith.constant 5.000000e-01 : f32
    %356 = vector.broadcast %cst_288 : f32 to vector<16x16xf32>
    %357 = arith.cmpf ogt, %322, %356 : vector<16x16xf32>
    %358 = arith.andi %355, %357 : vector<16x16xi1>
    %359 = arith.select %358, %326, %314 : vector<16x16xi1>, vector<16x16xf32>
    %360 = math.roundeven %326 : vector<16x16xf32>
    %cst_289 = arith.constant -1.000000e+00 : f32
    %361 = vector.broadcast %cst_289 : f32 to vector<16x16xf32>
    %362 = arith.select %352, %360, %361 : vector<16x16xi1>, vector<16x16xf32>
    %c0_290 = arith.constant 0 : index
    %c0_291 = arith.constant 0 : index
    %c0_292 = arith.constant 0 : index
    %363 = vector.load %arg9[%c0_290, %c0_291, %c0_292] : memref<8x16x16xf32, #tpu.memory_space<vmem>>, vector<1x16x16xf32>
    %364 = vector.shape_cast %363 : vector<1x16x16xf32> to vector<16x16xf32>
    %365 = vector.shape_cast %362 : vector<16x16xf32> to vector<1x16x16xf32>
    tpu.vector_store %arg9[%c0_290, %c0_291, %c0_292], %365 {strides = array<i32>} : memref<8x16x16xf32, #tpu.memory_space<vmem>>, vector<1x16x16xf32>,
    %c0_293 = arith.constant 0 : index
    %c0_294 = arith.constant 0 : index
    %c0_295 = arith.constant 0 : index
    %c0_296 = arith.constant 0 : index
    %366 = vector.load %arg5[%c0_293, %c0_294, %c0_295, %c0_296] : memref<1x4x16x16xf32, #tpu.memory_space<vmem>>, vector<1x1x16x16xf32>
    %367 = vector.shape_cast %366 : vector<1x1x16x16xf32> to vector<16x16xf32>
    %368 = vector.shape_cast %333 : vector<16x16xf32> to vector<1x1x16x16xf32>
    tpu.vector_store %arg5[%c0_293, %c0_294, %c0_295, %c0_296], %368 {strides = array<i32>} : memref<1x4x16x16xf32, #tpu.memory_space<vmem>>, vector<1x1x16x16xf32>,
    %c0_297 = arith.constant 0 : index
    %c1_298 = arith.constant 1 : index
    %c0_299 = arith.constant 0 : index
    %c0_300 = arith.constant 0 : index
    %369 = vector.load %arg5[%c0_297, %c1_298, %c0_299, %c0_300] : memref<1x4x16x16xf32, #tpu.memory_space<vmem>>, vector<1x1x16x16xf32>
    %370 = vector.shape_cast %369 : vector<1x1x16x16xf32> to vector<16x16xf32>
    %371 = vector.shape_cast %338 : vector<16x16xf32> to vector<1x1x16x16xf32>
    tpu.vector_store %arg5[%c0_297, %c1_298, %c0_299, %c0_300], %371 {strides = array<i32>} : memref<1x4x16x16xf32, #tpu.memory_space<vmem>>, vector<1x1x16x16xf32>,
    %c0_301 = arith.constant 0 : index
    %c2_302 = arith.constant 2 : index
    %c0_303 = arith.constant 0 : index
    %c0_304 = arith.constant 0 : index
    %372 = vector.load %arg5[%c0_301, %c2_302, %c0_303, %c0_304] : memref<1x4x16x16xf32, #tpu.memory_space<vmem>>, vector<1x1x16x16xf32>
    %373 = vector.shape_cast %372 : vector<1x1x16x16xf32> to vector<16x16xf32>
    %374 = vector.shape_cast %343 : vector<16x16xf32> to vector<1x1x16x16xf32>
    tpu.vector_store %arg5[%c0_301, %c2_302, %c0_303, %c0_304], %374 {strides = array<i32>} : memref<1x4x16x16xf32, #tpu.memory_space<vmem>>, vector<1x1x16x16xf32>,
    %c0_305 = arith.constant 0 : index
    %c3_306 = arith.constant 3 : index
    %c0_307 = arith.constant 0 : index
    %c0_308 = arith.constant 0 : index
    %375 = vector.load %arg5[%c0_305, %c3_306, %c0_307, %c0_308] : memref<1x4x16x16xf32, #tpu.memory_space<vmem>>, vector<1x1x16x16xf32>
    %376 = vector.shape_cast %375 : vector<1x1x16x16xf32> to vector<16x16xf32>
    %377 = vector.shape_cast %344 : vector<16x16xf32> to vector<1x1x16x16xf32>
    tpu.vector_store %arg5[%c0_305, %c3_306, %c0_307, %c0_308], %377 {strides = array<i32>} : memref<1x4x16x16xf32, #tpu.memory_space<vmem>>, vector<1x1x16x16xf32>,
    %c0_309 = arith.constant 0 : index
    %c0_310 = arith.constant 0 : index
    %c0_311 = arith.constant 0 : index
    %378 = vector.load %arg6[%c0_309, %c0_310, %c0_311] : memref<1x16x16xf32, #tpu.memory_space<vmem>>, vector<1x16x16xf32>
    %379 = vector.shape_cast %378 : vector<1x16x16xf32> to vector<16x16xf32>
    %380 = vector.shape_cast %350 : vector<16x16xf32> to vector<1x16x16xf32>
    tpu.vector_store %arg6[%c0_309, %c0_310, %c0_311], %380 {strides = array<i32>} : memref<1x16x16xf32, #tpu.memory_space<vmem>>, vector<1x16x16xf32>,
    %cst_312 = arith.constant 8.000000e+00 : f32
    %cst_313 = arith.constant 5.000000e-01 : f32
    %381 = arith.subf %cst_312, %cst_313 : f32
    %382 = vector.broadcast %381 : f32 to vector<16x16xf32>
    %383 = arith.cmpf ogt, %359, %382 : vector<16x16xf32>
    %cst_314 = arith.constant -1.000000e+00 : f32
    %384 = vector.broadcast %cst_314 : f32 to vector<16x16xf32>
    %385 = arith.select %383, %384, %359 : vector<16x16xi1>, vector<16x16xf32>
    %cst_315 = arith.constant 0.000000e+00 : f32
    %386 = vector.broadcast %cst_315 : f32 to vector<4x16x16xf32>
    %c7_316 = arith.constant 7 : index
    %c0_317 = arith.constant 0 : index
    %c0_318 = arith.constant 0 : index
    %387 = vector.load %arg9[%c7_316, %c0_317, %c0_318] : memref<8x16x16xf32, #tpu.memory_space<vmem>>, vector<1x16x16xf32>
    %388 = vector.shape_cast %387 : vector<1x16x16xf32> to vector<16x16xf32>
    %cst_319 = arith.constant 0.000000e+00 : f32
    %389 = vector.broadcast %cst_319 : f32 to vector<16x16xf32>
    %390 = arith.cmpf oeq, %388, %389 : vector<16x16xf32>
    %c0_320 = arith.constant 0 : index
    %c7_321 = arith.constant 7 : index
    %c0_322 = arith.constant 0 : index
    %c0_323 = arith.constant 0 : index
    %c0_324 = arith.constant 0 : index
    %391 = vector.load %arg2[%c0_320, %c7_321, %c0_322, %c0_323, %c0_324] : memref<1x8x4x16x16xf32, #tpu.memory_space<vmem>>, vector<1x1x4x16x16xf32>
    %392 = vector.shape_cast %391 : vector<1x1x4x16x16xf32> to vector<4x16x16xf32>
    %393 = vector.shape_cast %390 : vector<16x16xi1> to vector<1x16x16xi1>
    %394 = vector.broadcast %393 : vector<1x16x16xi1> to vector<4x16x16xi1>
    %395 = arith.select %394, %392, %386 : vector<4x16x16xi1>, vector<4x16x16xf32>
    %c6_325 = arith.constant 6 : index
    %c0_326 = arith.constant 0 : index
    %c0_327 = arith.constant 0 : index
    %396 = vector.load %arg9[%c6_325, %c0_326, %c0_327] : memref<8x16x16xf32, #tpu.memory_space<vmem>>, vector<1x16x16xf32>
    %397 = vector.shape_cast %396 : vector<1x16x16xf32> to vector<16x16xf32>
    %cst_328 = arith.constant 0.000000e+00 : f32
    %398 = vector.broadcast %cst_328 : f32 to vector<16x16xf32>
    %399 = arith.cmpf oeq, %397, %398 : vector<16x16xf32>
    %c0_329 = arith.constant 0 : index
    %c6_330 = arith.constant 6 : index
    %c0_331 = arith.constant 0 : index
    %c0_332 = arith.constant 0 : index
    %c0_333 = arith.constant 0 : index
    %400 = vector.load %arg2[%c0_329, %c6_330, %c0_331, %c0_332, %c0_333] : memref<1x8x4x16x16xf32, #tpu.memory_space<vmem>>, vector<1x1x4x16x16xf32>
    %401 = vector.shape_cast %400 : vector<1x1x4x16x16xf32> to vector<4x16x16xf32>
    %402 = vector.shape_cast %399 : vector<16x16xi1> to vector<1x16x16xi1>
    %403 = vector.broadcast %402 : vector<1x16x16xi1> to vector<4x16x16xi1>
    %404 = arith.select %403, %401, %395 : vector<4x16x16xi1>, vector<4x16x16xf32>
    %c5_334 = arith.constant 5 : index
    %c0_335 = arith.constant 0 : index
    %c0_336 = arith.constant 0 : index
    %405 = vector.load %arg9[%c5_334, %c0_335, %c0_336] : memref<8x16x16xf32, #tpu.memory_space<vmem>>, vector<1x16x16xf32>
    %406 = vector.shape_cast %405 : vector<1x16x16xf32> to vector<16x16xf32>
    %cst_337 = arith.constant 0.000000e+00 : f32
    %407 = vector.broadcast %cst_337 : f32 to vector<16x16xf32>
    %408 = arith.cmpf oeq, %406, %407 : vector<16x16xf32>
    %c0_338 = arith.constant 0 : index
    %c5_339 = arith.constant 5 : index
    %c0_340 = arith.constant 0 : index
    %c0_341 = arith.constant 0 : index
    %c0_342 = arith.constant 0 : index
    %409 = vector.load %arg2[%c0_338, %c5_339, %c0_340, %c0_341, %c0_342] : memref<1x8x4x16x16xf32, #tpu.memory_space<vmem>>, vector<1x1x4x16x16xf32>
    %410 = vector.shape_cast %409 : vector<1x1x4x16x16xf32> to vector<4x16x16xf32>
    %411 = vector.shape_cast %408 : vector<16x16xi1> to vector<1x16x16xi1>
    %412 = vector.broadcast %411 : vector<1x16x16xi1> to vector<4x16x16xi1>
    %413 = arith.select %412, %410, %404 : vector<4x16x16xi1>, vector<4x16x16xf32>
    %c4_343 = arith.constant 4 : index
    %c0_344 = arith.constant 0 : index
    %c0_345 = arith.constant 0 : index
    %414 = vector.load %arg9[%c4_343, %c0_344, %c0_345] : memref<8x16x16xf32, #tpu.memory_space<vmem>>, vector<1x16x16xf32>
    %415 = vector.shape_cast %414 : vector<1x16x16xf32> to vector<16x16xf32>
    %cst_346 = arith.constant 0.000000e+00 : f32
    %416 = vector.broadcast %cst_346 : f32 to vector<16x16xf32>
    %417 = arith.cmpf oeq, %415, %416 : vector<16x16xf32>
    %c0_347 = arith.constant 0 : index
    %c4_348 = arith.constant 4 : index
    %c0_349 = arith.constant 0 : index
    %c0_350 = arith.constant 0 : index
    %c0_351 = arith.constant 0 : index
    %418 = vector.load %arg2[%c0_347, %c4_348, %c0_349, %c0_350, %c0_351] : memref<1x8x4x16x16xf32, #tpu.memory_space<vmem>>, vector<1x1x4x16x16xf32>
    %419 = vector.shape_cast %418 : vector<1x1x4x16x16xf32> to vector<4x16x16xf32>
    %420 = vector.shape_cast %417 : vector<16x16xi1> to vector<1x16x16xi1>
    %421 = vector.broadcast %420 : vector<1x16x16xi1> to vector<4x16x16xi1>
    %422 = arith.select %421, %419, %413 : vector<4x16x16xi1>, vector<4x16x16xf32>
    %c3_352 = arith.constant 3 : index
    %c0_353 = arith.constant 0 : index
    %c0_354 = arith.constant 0 : index
    %423 = vector.load %arg9[%c3_352, %c0_353, %c0_354] : memref<8x16x16xf32, #tpu.memory_space<vmem>>, vector<1x16x16xf32>
    %424 = vector.shape_cast %423 : vector<1x16x16xf32> to vector<16x16xf32>
    %cst_355 = arith.constant 0.000000e+00 : f32
    %425 = vector.broadcast %cst_355 : f32 to vector<16x16xf32>
    %426 = arith.cmpf oeq, %424, %425 : vector<16x16xf32>
    %c0_356 = arith.constant 0 : index
    %c3_357 = arith.constant 3 : index
    %c0_358 = arith.constant 0 : index
    %c0_359 = arith.constant 0 : index
    %c0_360 = arith.constant 0 : index
    %427 = vector.load %arg2[%c0_356, %c3_357, %c0_358, %c0_359, %c0_360] : memref<1x8x4x16x16xf32, #tpu.memory_space<vmem>>, vector<1x1x4x16x16xf32>
    %428 = vector.shape_cast %427 : vector<1x1x4x16x16xf32> to vector<4x16x16xf32>
    %429 = vector.shape_cast %426 : vector<16x16xi1> to vector<1x16x16xi1>
    %430 = vector.broadcast %429 : vector<1x16x16xi1> to vector<4x16x16xi1>
    %431 = arith.select %430, %428, %422 : vector<4x16x16xi1>, vector<4x16x16xf32>
    %c2_361 = arith.constant 2 : index
    %c0_362 = arith.constant 0 : index
    %c0_363 = arith.constant 0 : index
    %432 = vector.load %arg9[%c2_361, %c0_362, %c0_363] : memref<8x16x16xf32, #tpu.memory_space<vmem>>, vector<1x16x16xf32>
    %433 = vector.shape_cast %432 : vector<1x16x16xf32> to vector<16x16xf32>
    %cst_364 = arith.constant 0.000000e+00 : f32
    %434 = vector.broadcast %cst_364 : f32 to vector<16x16xf32>
    %435 = arith.cmpf oeq, %433, %434 : vector<16x16xf32>
    %c0_365 = arith.constant 0 : index
    %c2_366 = arith.constant 2 : index
    %c0_367 = arith.constant 0 : index
    %c0_368 = arith.constant 0 : index
    %c0_369 = arith.constant 0 : index
    %436 = vector.load %arg2[%c0_365, %c2_366, %c0_367, %c0_368, %c0_369] : memref<1x8x4x16x16xf32, #tpu.memory_space<vmem>>, vector<1x1x4x16x16xf32>
    %437 = vector.shape_cast %436 : vector<1x1x4x16x16xf32> to vector<4x16x16xf32>
    %438 = vector.shape_cast %435 : vector<16x16xi1> to vector<1x16x16xi1>
    %439 = vector.broadcast %438 : vector<1x16x16xi1> to vector<4x16x16xi1>
    %440 = arith.select %439, %437, %431 : vector<4x16x16xi1>, vector<4x16x16xf32>
    %c1_370 = arith.constant 1 : index
    %c0_371 = arith.constant 0 : index
    %c0_372 = arith.constant 0 : index
    %441 = vector.load %arg9[%c1_370, %c0_371, %c0_372] : memref<8x16x16xf32, #tpu.memory_space<vmem>>, vector<1x16x16xf32>
    %442 = vector.shape_cast %441 : vector<1x16x16xf32> to vector<16x16xf32>
    %cst_373 = arith.constant 0.000000e+00 : f32
    %443 = vector.broadcast %cst_373 : f32 to vector<16x16xf32>
    %444 = arith.cmpf oeq, %442, %443 : vector<16x16xf32>
    %c0_374 = arith.constant 0 : index
    %c1_375 = arith.constant 1 : index
    %c0_376 = arith.constant 0 : index
    %c0_377 = arith.constant 0 : index
    %c0_378 = arith.constant 0 : index
    %445 = vector.load %arg2[%c0_374, %c1_375, %c0_376, %c0_377, %c0_378] : memref<1x8x4x16x16xf32, #tpu.memory_space<vmem>>, vector<1x1x4x16x16xf32>
    %446 = vector.shape_cast %445 : vector<1x1x4x16x16xf32> to vector<4x16x16xf32>
    %447 = vector.shape_cast %444 : vector<16x16xi1> to vector<1x16x16xi1>
    %448 = vector.broadcast %447 : vector<1x16x16xi1> to vector<4x16x16xi1>
    %449 = arith.select %448, %446, %440 : vector<4x16x16xi1>, vector<4x16x16xf32>
    %c0_379 = arith.constant 0 : index
    %c0_380 = arith.constant 0 : index
    %c0_381 = arith.constant 0 : index
    %450 = vector.load %arg9[%c0_379, %c0_380, %c0_381] : memref<8x16x16xf32, #tpu.memory_space<vmem>>, vector<1x16x16xf32>
    %451 = vector.shape_cast %450 : vector<1x16x16xf32> to vector<16x16xf32>
    %cst_382 = arith.constant 0.000000e+00 : f32
    %452 = vector.broadcast %cst_382 : f32 to vector<16x16xf32>
    %453 = arith.cmpf oeq, %451, %452 : vector<16x16xf32>
    %c0_383 = arith.constant 0 : index
    %c0_384 = arith.constant 0 : index
    %c0_385 = arith.constant 0 : index
    %c0_386 = arith.constant 0 : index
    %c0_387 = arith.constant 0 : index
    %454 = vector.load %arg2[%c0_383, %c0_384, %c0_385, %c0_386, %c0_387] : memref<1x8x4x16x16xf32, #tpu.memory_space<vmem>>, vector<1x1x4x16x16xf32>
    %455 = vector.shape_cast %454 : vector<1x1x4x16x16xf32> to vector<4x16x16xf32>
    %456 = vector.shape_cast %453 : vector<16x16xi1> to vector<1x16x16xi1>
    %457 = vector.broadcast %456 : vector<1x16x16xi1> to vector<4x16x16xi1>
    %458 = arith.select %457, %455, %449 : vector<4x16x16xi1>, vector<4x16x16xf32>
    %459 = vector.extract_strided_slice %458 {offsets = [3, 0, 0], sizes = [1, 16, 16], strides = [1, 1, 1]} : vector<4x16x16xf32> to vector<1x16x16xf32>
    %460 = vector.shape_cast %459 : vector<1x16x16xf32> to vector<16x16xf32>
    %cst_388 = arith.constant 1.000000e+00 : f32
    %461 = vector.broadcast %cst_388 : f32 to vector<16x16xf32>
    %462 = arith.subf %461, %460 : vector<16x16xf32>
    %463 = vector.extract_strided_slice %458 {offsets = [0, 0, 0], sizes = [1, 16, 16], strides = [1, 1, 1]} : vector<4x16x16xf32> to vector<1x16x16xf32>
    %464 = vector.shape_cast %463 : vector<1x16x16xf32> to vector<16x16xf32>
    %465 = arith.mulf %464, %460 : vector<16x16xf32>
    %cst_389 = arith.constant 1.000000e+00 : f32
    %466 = vector.broadcast %cst_389 : f32 to vector<16x16xf32>
    %467 = arith.mulf %466, %462 : vector<16x16xf32>
    %468 = arith.addf %465, %467 : vector<16x16xf32>
    %c0_390 = arith.constant 0 : index
    %c0_391 = arith.constant 0 : index
    %c0_392 = arith.constant 0 : index
    %c0_393 = arith.constant 0 : index
    %c0_394 = arith.constant 0 : index
    %469 = vector.load %arg8[%c0_390, %c0_391, %c0_392, %c0_393, %c0_394] : memref<1x8x4x16x16xf32, #tpu.memory_space<vmem>>, vector<1x1x1x16x16xf32>
    %470 = vector.shape_cast %469 : vector<1x1x1x16x16xf32> to vector<16x16xf32>
    %471 = vector.shape_cast %468 : vector<16x16xf32> to vector<1x1x1x16x16xf32>
    tpu.vector_store %arg8[%c0_390, %c0_391, %c0_392, %c0_393, %c0_394], %471 {strides = array<i32>} : memref<1x8x4x16x16xf32, #tpu.memory_space<vmem>>, vector<1x1x1x16x16xf32>,
    %472 = vector.extract_strided_slice %458 {offsets = [1, 0, 0], sizes = [1, 16, 16], strides = [1, 1, 1]} : vector<4x16x16xf32> to vector<1x16x16xf32>
    %473 = vector.shape_cast %472 : vector<1x16x16xf32> to vector<16x16xf32>
    %474 = arith.mulf %473, %460 : vector<16x16xf32>
    %cst_395 = arith.constant 1.000000e+00 : f32
    %475 = vector.broadcast %cst_395 : f32 to vector<16x16xf32>
    %476 = arith.mulf %475, %462 : vector<16x16xf32>
    %477 = arith.addf %474, %476 : vector<16x16xf32>
    %c0_396 = arith.constant 0 : index
    %c0_397 = arith.constant 0 : index
    %c1_398 = arith.constant 1 : index
    %c0_399 = arith.constant 0 : index
    %c0_400 = arith.constant 0 : index
    %478 = vector.load %arg8[%c0_396, %c0_397, %c1_398, %c0_399, %c0_400] : memref<1x8x4x16x16xf32, #tpu.memory_space<vmem>>, vector<1x1x1x16x16xf32>
    %479 = vector.shape_cast %478 : vector<1x1x1x16x16xf32> to vector<16x16xf32>
    %480 = vector.shape_cast %477 : vector<16x16xf32> to vector<1x1x1x16x16xf32>
    tpu.vector_store %arg8[%c0_396, %c0_397, %c1_398, %c0_399, %c0_400], %480 {strides = array<i32>} : memref<1x8x4x16x16xf32, #tpu.memory_space<vmem>>, vector<1x1x1x16x16xf32>,
    %481 = vector.extract_strided_slice %458 {offsets = [2, 0, 0], sizes = [1, 16, 16], strides = [1, 1, 1]} : vector<4x16x16xf32> to vector<1x16x16xf32>
    %482 = vector.shape_cast %481 : vector<1x16x16xf32> to vector<16x16xf32>
    %483 = arith.mulf %482, %460 : vector<16x16xf32>
    %cst_401 = arith.constant 1.000000e+00 : f32
    %484 = vector.broadcast %cst_401 : f32 to vector<16x16xf32>
    %485 = arith.mulf %484, %462 : vector<16x16xf32>
    %486 = arith.addf %483, %485 : vector<16x16xf32>
    %c0_402 = arith.constant 0 : index
    %c0_403 = arith.constant 0 : index
    %c2_404 = arith.constant 2 : index
    %c0_405 = arith.constant 0 : index
    %c0_406 = arith.constant 0 : index
    %487 = vector.load %arg8[%c0_402, %c0_403, %c2_404, %c0_405, %c0_406] : memref<1x8x4x16x16xf32, #tpu.memory_space<vmem>>, vector<1x1x1x16x16xf32>
    %488 = vector.shape_cast %487 : vector<1x1x1x16x16xf32> to vector<16x16xf32>
    %489 = vector.shape_cast %486 : vector<16x16xf32> to vector<1x1x1x16x16xf32>
    tpu.vector_store %arg8[%c0_402, %c0_403, %c2_404, %c0_405, %c0_406], %489 {strides = array<i32>} : memref<1x8x4x16x16xf32, #tpu.memory_space<vmem>>, vector<1x1x1x16x16xf32>,
    %c0_407 = arith.constant 0 : index
    %c0_408 = arith.constant 0 : index
    %c3_409 = arith.constant 3 : index
    %c0_410 = arith.constant 0 : index
    %c0_411 = arith.constant 0 : index
    %490 = vector.load %arg8[%c0_407, %c0_408, %c3_409, %c0_410, %c0_411] : memref<1x8x4x16x16xf32, #tpu.memory_space<vmem>>, vector<1x1x1x16x16xf32>
    %491 = vector.shape_cast %490 : vector<1x1x1x16x16xf32> to vector<16x16xf32>
    %492 = vector.shape_cast %460 : vector<16x16xf32> to vector<1x1x1x16x16xf32>
    tpu.vector_store %arg8[%c0_407, %c0_408, %c3_409, %c0_410, %c0_411], %492 {strides = array<i32>} : memref<1x8x4x16x16xf32, #tpu.memory_space<vmem>>, vector<1x1x1x16x16xf32>,
    %cst_412 = arith.constant 0.000000e+00 : f32
    %493 = vector.broadcast %cst_412 : f32 to vector<16x16xf32>
    %494 = arith.cmpf oeq, %385, %493 : vector<16x16xf32>
    %cst_413 = arith.constant 5.000000e-01 : f32
    %495 = vector.broadcast %cst_413 : f32 to vector<16x16xf32>
    %496 = arith.cmpf olt, %460, %495 : vector<16x16xf32>
    %497 = arith.andi %494, %496 : vector<16x16xi1>
    %cst_414 = arith.constant -1.000000e+00 : f32
    %498 = vector.broadcast %cst_414 : f32 to vector<16x16xf32>
    %499 = arith.select %497, %498, %385 : vector<16x16xi1>, vector<16x16xf32>
    %cst_415 = arith.constant 0.000000e+00 : f32
    %500 = vector.broadcast %cst_415 : f32 to vector<4x16x16xf32>
    %c7_416 = arith.constant 7 : index
    %c0_417 = arith.constant 0 : index
    %c0_418 = arith.constant 0 : index
    %501 = vector.load %arg9[%c7_416, %c0_417, %c0_418] : memref<8x16x16xf32, #tpu.memory_space<vmem>>, vector<1x16x16xf32>
    %502 = vector.shape_cast %501 : vector<1x16x16xf32> to vector<16x16xf32>
    %cst_419 = arith.constant 1.000000e+00 : f32
    %503 = vector.broadcast %cst_419 : f32 to vector<16x16xf32>
    %504 = arith.cmpf oeq, %502, %503 : vector<16x16xf32>
    %c0_420 = arith.constant 0 : index
    %c7_421 = arith.constant 7 : index
    %c0_422 = arith.constant 0 : index
    %c0_423 = arith.constant 0 : index
    %c0_424 = arith.constant 0 : index
    %505 = vector.load %arg2[%c0_420, %c7_421, %c0_422, %c0_423, %c0_424] : memref<1x8x4x16x16xf32, #tpu.memory_space<vmem>>, vector<1x1x4x16x16xf32>
    %506 = vector.shape_cast %505 : vector<1x1x4x16x16xf32> to vector<4x16x16xf32>
    %507 = vector.shape_cast %504 : vector<16x16xi1> to vector<1x16x16xi1>
    %508 = vector.broadcast %507 : vector<1x16x16xi1> to vector<4x16x16xi1>
    %509 = arith.select %508, %506, %500 : vector<4x16x16xi1>, vector<4x16x16xf32>
    %c6_425 = arith.constant 6 : index
    %c0_426 = arith.constant 0 : index
    %c0_427 = arith.constant 0 : index
    %510 = vector.load %arg9[%c6_425, %c0_426, %c0_427] : memref<8x16x16xf32, #tpu.memory_space<vmem>>, vector<1x16x16xf32>
    %511 = vector.shape_cast %510 : vector<1x16x16xf32> to vector<16x16xf32>
    %cst_428 = arith.constant 1.000000e+00 : f32
    %512 = vector.broadcast %cst_428 : f32 to vector<16x16xf32>
    %513 = arith.cmpf oeq, %511, %512 : vector<16x16xf32>
    %c0_429 = arith.constant 0 : index
    %c6_430 = arith.constant 6 : index
    %c0_431 = arith.constant 0 : index
    %c0_432 = arith.constant 0 : index
    %c0_433 = arith.constant 0 : index
    %514 = vector.load %arg2[%c0_429, %c6_430, %c0_431, %c0_432, %c0_433] : memref<1x8x4x16x16xf32, #tpu.memory_space<vmem>>, vector<1x1x4x16x16xf32>
    %515 = vector.shape_cast %514 : vector<1x1x4x16x16xf32> to vector<4x16x16xf32>
    %516 = vector.shape_cast %513 : vector<16x16xi1> to vector<1x16x16xi1>
    %517 = vector.broadcast %516 : vector<1x16x16xi1> to vector<4x16x16xi1>
    %518 = arith.select %517, %515, %509 : vector<4x16x16xi1>, vector<4x16x16xf32>
    %c5_434 = arith.constant 5 : index
    %c0_435 = arith.constant 0 : index
    %c0_436 = arith.constant 0 : index
    %519 = vector.load %arg9[%c5_434, %c0_435, %c0_436] : memref<8x16x16xf32, #tpu.memory_space<vmem>>, vector<1x16x16xf32>
    %520 = vector.shape_cast %519 : vector<1x16x16xf32> to vector<16x16xf32>
    %cst_437 = arith.constant 1.000000e+00 : f32
    %521 = vector.broadcast %cst_437 : f32 to vector<16x16xf32>
    %522 = arith.cmpf oeq, %520, %521 : vector<16x16xf32>
    %c0_438 = arith.constant 0 : index
    %c5_439 = arith.constant 5 : index
    %c0_440 = arith.constant 0 : index
    %c0_441 = arith.constant 0 : index
    %c0_442 = arith.constant 0 : index
    %523 = vector.load %arg2[%c0_438, %c5_439, %c0_440, %c0_441, %c0_442] : memref<1x8x4x16x16xf32, #tpu.memory_space<vmem>>, vector<1x1x4x16x16xf32>
    %524 = vector.shape_cast %523 : vector<1x1x4x16x16xf32> to vector<4x16x16xf32>
    %525 = vector.shape_cast %522 : vector<16x16xi1> to vector<1x16x16xi1>
    %526 = vector.broadcast %525 : vector<1x16x16xi1> to vector<4x16x16xi1>
    %527 = arith.select %526, %524, %518 : vector<4x16x16xi1>, vector<4x16x16xf32>
    %c4_443 = arith.constant 4 : index
    %c0_444 = arith.constant 0 : index
    %c0_445 = arith.constant 0 : index
    %528 = vector.load %arg9[%c4_443, %c0_444, %c0_445] : memref<8x16x16xf32, #tpu.memory_space<vmem>>, vector<1x16x16xf32>
    %529 = vector.shape_cast %528 : vector<1x16x16xf32> to vector<16x16xf32>
    %cst_446 = arith.constant 1.000000e+00 : f32
    %530 = vector.broadcast %cst_446 : f32 to vector<16x16xf32>
    %531 = arith.cmpf oeq, %529, %530 : vector<16x16xf32>
    %c0_447 = arith.constant 0 : index
    %c4_448 = arith.constant 4 : index
    %c0_449 = arith.constant 0 : index
    %c0_450 = arith.constant 0 : index
    %c0_451 = arith.constant 0 : index
    %532 = vector.load %arg2[%c0_447, %c4_448, %c0_449, %c0_450, %c0_451] : memref<1x8x4x16x16xf32, #tpu.memory_space<vmem>>, vector<1x1x4x16x16xf32>
    %533 = vector.shape_cast %532 : vector<1x1x4x16x16xf32> to vector<4x16x16xf32>
    %534 = vector.shape_cast %531 : vector<16x16xi1> to vector<1x16x16xi1>
    %535 = vector.broadcast %534 : vector<1x16x16xi1> to vector<4x16x16xi1>
    %536 = arith.select %535, %533, %527 : vector<4x16x16xi1>, vector<4x16x16xf32>
    %c3_452 = arith.constant 3 : index
    %c0_453 = arith.constant 0 : index
    %c0_454 = arith.constant 0 : index
    %537 = vector.load %arg9[%c3_452, %c0_453, %c0_454] : memref<8x16x16xf32, #tpu.memory_space<vmem>>, vector<1x16x16xf32>
    %538 = vector.shape_cast %537 : vector<1x16x16xf32> to vector<16x16xf32>
    %cst_455 = arith.constant 1.000000e+00 : f32
    %539 = vector.broadcast %cst_455 : f32 to vector<16x16xf32>
    %540 = arith.cmpf oeq, %538, %539 : vector<16x16xf32>
    %c0_456 = arith.constant 0 : index
    %c3_457 = arith.constant 3 : index
    %c0_458 = arith.constant 0 : index
    %c0_459 = arith.constant 0 : index
    %c0_460 = arith.constant 0 : index
    %541 = vector.load %arg2[%c0_456, %c3_457, %c0_458, %c0_459, %c0_460] : memref<1x8x4x16x16xf32, #tpu.memory_space<vmem>>, vector<1x1x4x16x16xf32>
    %542 = vector.shape_cast %541 : vector<1x1x4x16x16xf32> to vector<4x16x16xf32>
    %543 = vector.shape_cast %540 : vector<16x16xi1> to vector<1x16x16xi1>
    %544 = vector.broadcast %543 : vector<1x16x16xi1> to vector<4x16x16xi1>
    %545 = arith.select %544, %542, %536 : vector<4x16x16xi1>, vector<4x16x16xf32>
    %c2_461 = arith.constant 2 : index
    %c0_462 = arith.constant 0 : index
    %c0_463 = arith.constant 0 : index
    %546 = vector.load %arg9[%c2_461, %c0_462, %c0_463] : memref<8x16x16xf32, #tpu.memory_space<vmem>>, vector<1x16x16xf32>
    %547 = vector.shape_cast %546 : vector<1x16x16xf32> to vector<16x16xf32>
    %cst_464 = arith.constant 1.000000e+00 : f32
    %548 = vector.broadcast %cst_464 : f32 to vector<16x16xf32>
    %549 = arith.cmpf oeq, %547, %548 : vector<16x16xf32>
    %c0_465 = arith.constant 0 : index
    %c2_466 = arith.constant 2 : index
    %c0_467 = arith.constant 0 : index
    %c0_468 = arith.constant 0 : index
    %c0_469 = arith.constant 0 : index
    %550 = vector.load %arg2[%c0_465, %c2_466, %c0_467, %c0_468, %c0_469] : memref<1x8x4x16x16xf32, #tpu.memory_space<vmem>>, vector<1x1x4x16x16xf32>
    %551 = vector.shape_cast %550 : vector<1x1x4x16x16xf32> to vector<4x16x16xf32>
    %552 = vector.shape_cast %549 : vector<16x16xi1> to vector<1x16x16xi1>
    %553 = vector.broadcast %552 : vector<1x16x16xi1> to vector<4x16x16xi1>
    %554 = arith.select %553, %551, %545 : vector<4x16x16xi1>, vector<4x16x16xf32>
    %c1_470 = arith.constant 1 : index
    %c0_471 = arith.constant 0 : index
    %c0_472 = arith.constant 0 : index
    %555 = vector.load %arg9[%c1_470, %c0_471, %c0_472] : memref<8x16x16xf32, #tpu.memory_space<vmem>>, vector<1x16x16xf32>
    %556 = vector.shape_cast %555 : vector<1x16x16xf32> to vector<16x16xf32>
    %cst_473 = arith.constant 1.000000e+00 : f32
    %557 = vector.broadcast %cst_473 : f32 to vector<16x16xf32>
    %558 = arith.cmpf oeq, %556, %557 : vector<16x16xf32>
    %c0_474 = arith.constant 0 : index
    %c1_475 = arith.constant 1 : index
    %c0_476 = arith.constant 0 : index
    %c0_477 = arith.constant 0 : index
    %c0_478 = arith.constant 0 : index
    %559 = vector.load %arg2[%c0_474, %c1_475, %c0_476, %c0_477, %c0_478] : memref<1x8x4x16x16xf32, #tpu.memory_space<vmem>>, vector<1x1x4x16x16xf32>
    %560 = vector.shape_cast %559 : vector<1x1x4x16x16xf32> to vector<4x16x16xf32>
    %561 = vector.shape_cast %558 : vector<16x16xi1> to vector<1x16x16xi1>
    %562 = vector.broadcast %561 : vector<1x16x16xi1> to vector<4x16x16xi1>
    %563 = arith.select %562, %560, %554 : vector<4x16x16xi1>, vector<4x16x16xf32>
    %c0_479 = arith.constant 0 : index
    %c0_480 = arith.constant 0 : index
    %c0_481 = arith.constant 0 : index
    %564 = vector.load %arg9[%c0_479, %c0_480, %c0_481] : memref<8x16x16xf32, #tpu.memory_space<vmem>>, vector<1x16x16xf32>
    %565 = vector.shape_cast %564 : vector<1x16x16xf32> to vector<16x16xf32>
    %cst_482 = arith.constant 1.000000e+00 : f32
    %566 = vector.broadcast %cst_482 : f32 to vector<16x16xf32>
    %567 = arith.cmpf oeq, %565, %566 : vector<16x16xf32>
    %c0_483 = arith.constant 0 : index
    %c0_484 = arith.constant 0 : index
    %c0_485 = arith.constant 0 : index
    %c0_486 = arith.constant 0 : index
    %c0_487 = arith.constant 0 : index
    %568 = vector.load %arg2[%c0_483, %c0_484, %c0_485, %c0_486, %c0_487] : memref<1x8x4x16x16xf32, #tpu.memory_space<vmem>>, vector<1x1x4x16x16xf32>
    %569 = vector.shape_cast %568 : vector<1x1x4x16x16xf32> to vector<4x16x16xf32>
    %570 = vector.shape_cast %567 : vector<16x16xi1> to vector<1x16x16xi1>
    %571 = vector.broadcast %570 : vector<1x16x16xi1> to vector<4x16x16xi1>
    %572 = arith.select %571, %569, %563 : vector<4x16x16xi1>, vector<4x16x16xf32>
    %573 = vector.extract_strided_slice %572 {offsets = [3, 0, 0], sizes = [1, 16, 16], strides = [1, 1, 1]} : vector<4x16x16xf32> to vector<1x16x16xf32>
    %574 = vector.shape_cast %573 : vector<1x16x16xf32> to vector<16x16xf32>
    %cst_488 = arith.constant 1.000000e+00 : f32
    %575 = vector.broadcast %cst_488 : f32 to vector<16x16xf32>
    %576 = arith.subf %575, %574 : vector<16x16xf32>
    %577 = vector.extract_strided_slice %572 {offsets = [0, 0, 0], sizes = [1, 16, 16], strides = [1, 1, 1]} : vector<4x16x16xf32> to vector<1x16x16xf32>
    %578 = vector.shape_cast %577 : vector<1x16x16xf32> to vector<16x16xf32>
    %579 = arith.mulf %578, %574 : vector<16x16xf32>
    %cst_489 = arith.constant 1.000000e+00 : f32
    %580 = vector.broadcast %cst_489 : f32 to vector<16x16xf32>
    %581 = arith.mulf %580, %576 : vector<16x16xf32>
    %582 = arith.addf %579, %581 : vector<16x16xf32>
    %c0_490 = arith.constant 0 : index
    %c1_491 = arith.constant 1 : index
    %c0_492 = arith.constant 0 : index
    %c0_493 = arith.constant 0 : index
    %c0_494 = arith.constant 0 : index
    %583 = vector.load %arg8[%c0_490, %c1_491, %c0_492, %c0_493, %c0_494] : memref<1x8x4x16x16xf32, #tpu.memory_space<vmem>>, vector<1x1x1x16x16xf32>
    %584 = vector.shape_cast %583 : vector<1x1x1x16x16xf32> to vector<16x16xf32>
    %585 = vector.shape_cast %582 : vector<16x16xf32> to vector<1x1x1x16x16xf32>
    tpu.vector_store %arg8[%c0_490, %c1_491, %c0_492, %c0_493, %c0_494], %585 {strides = array<i32>} : memref<1x8x4x16x16xf32, #tpu.memory_space<vmem>>, vector<1x1x1x16x16xf32>,
    %586 = vector.extract_strided_slice %572 {offsets = [1, 0, 0], sizes = [1, 16, 16], strides = [1, 1, 1]} : vector<4x16x16xf32> to vector<1x16x16xf32>
    %587 = vector.shape_cast %586 : vector<1x16x16xf32> to vector<16x16xf32>
    %588 = arith.mulf %587, %574 : vector<16x16xf32>
    %cst_495 = arith.constant 1.000000e+00 : f32
    %589 = vector.broadcast %cst_495 : f32 to vector<16x16xf32>
    %590 = arith.mulf %589, %576 : vector<16x16xf32>
    %591 = arith.addf %588, %590 : vector<16x16xf32>
    %c0_496 = arith.constant 0 : index
    %c1_497 = arith.constant 1 : index
    %c1_498 = arith.constant 1 : index
    %c0_499 = arith.constant 0 : index
    %c0_500 = arith.constant 0 : index
    %592 = vector.load %arg8[%c0_496, %c1_497, %c1_498, %c0_499, %c0_500] : memref<1x8x4x16x16xf32, #tpu.memory_space<vmem>>, vector<1x1x1x16x16xf32>
    %593 = vector.shape_cast %592 : vector<1x1x1x16x16xf32> to vector<16x16xf32>
    %594 = vector.shape_cast %591 : vector<16x16xf32> to vector<1x1x1x16x16xf32>
    tpu.vector_store %arg8[%c0_496, %c1_497, %c1_498, %c0_499, %c0_500], %594 {strides = array<i32>} : memref<1x8x4x16x16xf32, #tpu.memory_space<vmem>>, vector<1x1x1x16x16xf32>,
    %595 = vector.extract_strided_slice %572 {offsets = [2, 0, 0], sizes = [1, 16, 16], strides = [1, 1, 1]} : vector<4x16x16xf32> to vector<1x16x16xf32>
    %596 = vector.shape_cast %595 : vector<1x16x16xf32> to vector<16x16xf32>
    %597 = arith.mulf %596, %574 : vector<16x16xf32>
    %cst_501 = arith.constant 1.000000e+00 : f32
    %598 = vector.broadcast %cst_501 : f32 to vector<16x16xf32>
    %599 = arith.mulf %598, %576 : vector<16x16xf32>
    %600 = arith.addf %597, %599 : vector<16x16xf32>
    %c0_502 = arith.constant 0 : index
    %c1_503 = arith.constant 1 : index
    %c2_504 = arith.constant 2 : index
    %c0_505 = arith.constant 0 : index
    %c0_506 = arith.constant 0 : index
    %601 = vector.load %arg8[%c0_502, %c1_503, %c2_504, %c0_505, %c0_506] : memref<1x8x4x16x16xf32, #tpu.memory_space<vmem>>, vector<1x1x1x16x16xf32>
    %602 = vector.shape_cast %601 : vector<1x1x1x16x16xf32> to vector<16x16xf32>
    %603 = vector.shape_cast %600 : vector<16x16xf32> to vector<1x1x1x16x16xf32>
    tpu.vector_store %arg8[%c0_502, %c1_503, %c2_504, %c0_505, %c0_506], %603 {strides = array<i32>} : memref<1x8x4x16x16xf32, #tpu.memory_space<vmem>>, vector<1x1x1x16x16xf32>,
    %c0_507 = arith.constant 0 : index
    %c1_508 = arith.constant 1 : index
    %c3_509 = arith.constant 3 : index
    %c0_510 = arith.constant 0 : index
    %c0_511 = arith.constant 0 : index
    %604 = vector.load %arg8[%c0_507, %c1_508, %c3_509, %c0_510, %c0_511] : memref<1x8x4x16x16xf32, #tpu.memory_space<vmem>>, vector<1x1x1x16x16xf32>
    %605 = vector.shape_cast %604 : vector<1x1x1x16x16xf32> to vector<16x16xf32>
    %606 = vector.shape_cast %574 : vector<16x16xf32> to vector<1x1x1x16x16xf32>
    tpu.vector_store %arg8[%c0_507, %c1_508, %c3_509, %c0_510, %c0_511], %606 {strides = array<i32>} : memref<1x8x4x16x16xf32, #tpu.memory_space<vmem>>, vector<1x1x1x16x16xf32>,
    %cst_512 = arith.constant 1.000000e+00 : f32
    %607 = vector.broadcast %cst_512 : f32 to vector<16x16xf32>
    %608 = arith.cmpf oeq, %499, %607 : vector<16x16xf32>
    %cst_513 = arith.constant 5.000000e-01 : f32
    %609 = vector.broadcast %cst_513 : f32 to vector<16x16xf32>
    %610 = arith.cmpf olt, %574, %609 : vector<16x16xf32>
    %611 = arith.andi %608, %610 : vector<16x16xi1>
    %cst_514 = arith.constant -1.000000e+00 : f32
    %612 = vector.broadcast %cst_514 : f32 to vector<16x16xf32>
    %613 = arith.select %611, %612, %499 : vector<16x16xi1>, vector<16x16xf32>
    %cst_515 = arith.constant 0.000000e+00 : f32
    %614 = vector.broadcast %cst_515 : f32 to vector<4x16x16xf32>
    %c7_516 = arith.constant 7 : index
    %c0_517 = arith.constant 0 : index
    %c0_518 = arith.constant 0 : index
    %615 = vector.load %arg9[%c7_516, %c0_517, %c0_518] : memref<8x16x16xf32, #tpu.memory_space<vmem>>, vector<1x16x16xf32>
    %616 = vector.shape_cast %615 : vector<1x16x16xf32> to vector<16x16xf32>
    %cst_519 = arith.constant 2.000000e+00 : f32
    %617 = vector.broadcast %cst_519 : f32 to vector<16x16xf32>
    %618 = arith.cmpf oeq, %616, %617 : vector<16x16xf32>
    %c0_520 = arith.constant 0 : index
    %c7_521 = arith.constant 7 : index
    %c0_522 = arith.constant 0 : index
    %c0_523 = arith.constant 0 : index
    %c0_524 = arith.constant 0 : index
    %619 = vector.load %arg2[%c0_520, %c7_521, %c0_522, %c0_523, %c0_524] : memref<1x8x4x16x16xf32, #tpu.memory_space<vmem>>, vector<1x1x4x16x16xf32>
    %620 = vector.shape_cast %619 : vector<1x1x4x16x16xf32> to vector<4x16x16xf32>
    %621 = vector.shape_cast %618 : vector<16x16xi1> to vector<1x16x16xi1>
    %622 = vector.broadcast %621 : vector<1x16x16xi1> to vector<4x16x16xi1>
    %623 = arith.select %622, %620, %614 : vector<4x16x16xi1>, vector<4x16x16xf32>
    %c6_525 = arith.constant 6 : index
    %c0_526 = arith.constant 0 : index
    %c0_527 = arith.constant 0 : index
    %624 = vector.load %arg9[%c6_525, %c0_526, %c0_527] : memref<8x16x16xf32, #tpu.memory_space<vmem>>, vector<1x16x16xf32>
    %625 = vector.shape_cast %624 : vector<1x16x16xf32> to vector<16x16xf32>
    %cst_528 = arith.constant 2.000000e+00 : f32
    %626 = vector.broadcast %cst_528 : f32 to vector<16x16xf32>
    %627 = arith.cmpf oeq, %625, %626 : vector<16x16xf32>
    %c0_529 = arith.constant 0 : index
    %c6_530 = arith.constant 6 : index
    %c0_531 = arith.constant 0 : index
    %c0_532 = arith.constant 0 : index
    %c0_533 = arith.constant 0 : index
    %628 = vector.load %arg2[%c0_529, %c6_530, %c0_531, %c0_532, %c0_533] : memref<1x8x4x16x16xf32, #tpu.memory_space<vmem>>, vector<1x1x4x16x16xf32>
    %629 = vector.shape_cast %628 : vector<1x1x4x16x16xf32> to vector<4x16x16xf32>
    %630 = vector.shape_cast %627 : vector<16x16xi1> to vector<1x16x16xi1>
    %631 = vector.broadcast %630 : vector<1x16x16xi1> to vector<4x16x16xi1>
    %632 = arith.select %631, %629, %623 : vector<4x16x16xi1>, vector<4x16x16xf32>
    %c5_534 = arith.constant 5 : index
    %c0_535 = arith.constant 0 : index
    %c0_536 = arith.constant 0 : index
    %633 = vector.load %arg9[%c5_534, %c0_535, %c0_536] : memref<8x16x16xf32, #tpu.memory_space<vmem>>, vector<1x16x16xf32>
    %634 = vector.shape_cast %633 : vector<1x16x16xf32> to vector<16x16xf32>
    %cst_537 = arith.constant 2.000000e+00 : f32
    %635 = vector.broadcast %cst_537 : f32 to vector<16x16xf32>
    %636 = arith.cmpf oeq, %634, %635 : vector<16x16xf32>
    %c0_538 = arith.constant 0 : index
    %c5_539 = arith.constant 5 : index
    %c0_540 = arith.constant 0 : index
    %c0_541 = arith.constant 0 : index
    %c0_542 = arith.constant 0 : index
    %637 = vector.load %arg2[%c0_538, %c5_539, %c0_540, %c0_541, %c0_542] : memref<1x8x4x16x16xf32, #tpu.memory_space<vmem>>, vector<1x1x4x16x16xf32>
    %638 = vector.shape_cast %637 : vector<1x1x4x16x16xf32> to vector<4x16x16xf32>
    %639 = vector.shape_cast %636 : vector<16x16xi1> to vector<1x16x16xi1>
    %640 = vector.broadcast %639 : vector<1x16x16xi1> to vector<4x16x16xi1>
    %641 = arith.select %640, %638, %632 : vector<4x16x16xi1>, vector<4x16x16xf32>
    %c4_543 = arith.constant 4 : index
    %c0_544 = arith.constant 0 : index
    %c0_545 = arith.constant 0 : index
    %642 = vector.load %arg9[%c4_543, %c0_544, %c0_545] : memref<8x16x16xf32, #tpu.memory_space<vmem>>, vector<1x16x16xf32>
    %643 = vector.shape_cast %642 : vector<1x16x16xf32> to vector<16x16xf32>
    %cst_546 = arith.constant 2.000000e+00 : f32
    %644 = vector.broadcast %cst_546 : f32 to vector<16x16xf32>
    %645 = arith.cmpf oeq, %643, %644 : vector<16x16xf32>
    %c0_547 = arith.constant 0 : index
    %c4_548 = arith.constant 4 : index
    %c0_549 = arith.constant 0 : index
    %c0_550 = arith.constant 0 : index
    %c0_551 = arith.constant 0 : index
    %646 = vector.load %arg2[%c0_547, %c4_548, %c0_549, %c0_550, %c0_551] : memref<1x8x4x16x16xf32, #tpu.memory_space<vmem>>, vector<1x1x4x16x16xf32>
    %647 = vector.shape_cast %646 : vector<1x1x4x16x16xf32> to vector<4x16x16xf32>
    %648 = vector.shape_cast %645 : vector<16x16xi1> to vector<1x16x16xi1>
    %649 = vector.broadcast %648 : vector<1x16x16xi1> to vector<4x16x16xi1>
    %650 = arith.select %649, %647, %641 : vector<4x16x16xi1>, vector<4x16x16xf32>
    %c3_552 = arith.constant 3 : index
    %c0_553 = arith.constant 0 : index
    %c0_554 = arith.constant 0 : index
    %651 = vector.load %arg9[%c3_552, %c0_553, %c0_554] : memref<8x16x16xf32, #tpu.memory_space<vmem>>, vector<1x16x16xf32>
    %652 = vector.shape_cast %651 : vector<1x16x16xf32> to vector<16x16xf32>
    %cst_555 = arith.constant 2.000000e+00 : f32
    %653 = vector.broadcast %cst_555 : f32 to vector<16x16xf32>
    %654 = arith.cmpf oeq, %652, %653 : vector<16x16xf32>
    %c0_556 = arith.constant 0 : index
    %c3_557 = arith.constant 3 : index
    %c0_558 = arith.constant 0 : index
    %c0_559 = arith.constant 0 : index
    %c0_560 = arith.constant 0 : index
    %655 = vector.load %arg2[%c0_556, %c3_557, %c0_558, %c0_559, %c0_560] : memref<1x8x4x16x16xf32, #tpu.memory_space<vmem>>, vector<1x1x4x16x16xf32>
    %656 = vector.shape_cast %655 : vector<1x1x4x16x16xf32> to vector<4x16x16xf32>
    %657 = vector.shape_cast %654 : vector<16x16xi1> to vector<1x16x16xi1>
    %658 = vector.broadcast %657 : vector<1x16x16xi1> to vector<4x16x16xi1>
    %659 = arith.select %658, %656, %650 : vector<4x16x16xi1>, vector<4x16x16xf32>
    %c2_561 = arith.constant 2 : index
    %c0_562 = arith.constant 0 : index
    %c0_563 = arith.constant 0 : index
    %660 = vector.load %arg9[%c2_561, %c0_562, %c0_563] : memref<8x16x16xf32, #tpu.memory_space<vmem>>, vector<1x16x16xf32>
    %661 = vector.shape_cast %660 : vector<1x16x16xf32> to vector<16x16xf32>
    %cst_564 = arith.constant 2.000000e+00 : f32
    %662 = vector.broadcast %cst_564 : f32 to vector<16x16xf32>
    %663 = arith.cmpf oeq, %661, %662 : vector<16x16xf32>
    %c0_565 = arith.constant 0 : index
    %c2_566 = arith.constant 2 : index
    %c0_567 = arith.constant 0 : index
    %c0_568 = arith.constant 0 : index
    %c0_569 = arith.constant 0 : index
    %664 = vector.load %arg2[%c0_565, %c2_566, %c0_567, %c0_568, %c0_569] : memref<1x8x4x16x16xf32, #tpu.memory_space<vmem>>, vector<1x1x4x16x16xf32>
    %665 = vector.shape_cast %664 : vector<1x1x4x16x16xf32> to vector<4x16x16xf32>
    %666 = vector.shape_cast %663 : vector<16x16xi1> to vector<1x16x16xi1>
    %667 = vector.broadcast %666 : vector<1x16x16xi1> to vector<4x16x16xi1>
    %668 = arith.select %667, %665, %659 : vector<4x16x16xi1>, vector<4x16x16xf32>
    %c1_570 = arith.constant 1 : index
    %c0_571 = arith.constant 0 : index
    %c0_572 = arith.constant 0 : index
    %669 = vector.load %arg9[%c1_570, %c0_571, %c0_572] : memref<8x16x16xf32, #tpu.memory_space<vmem>>, vector<1x16x16xf32>
    %670 = vector.shape_cast %669 : vector<1x16x16xf32> to vector<16x16xf32>
    %cst_573 = arith.constant 2.000000e+00 : f32
    %671 = vector.broadcast %cst_573 : f32 to vector<16x16xf32>
    %672 = arith.cmpf oeq, %670, %671 : vector<16x16xf32>
    %c0_574 = arith.constant 0 : index
    %c1_575 = arith.constant 1 : index
    %c0_576 = arith.constant 0 : index
    %c0_577 = arith.constant 0 : index
    %c0_578 = arith.constant 0 : index
    %673 = vector.load %arg2[%c0_574, %c1_575, %c0_576, %c0_577, %c0_578] : memref<1x8x4x16x16xf32, #tpu.memory_space<vmem>>, vector<1x1x4x16x16xf32>
    %674 = vector.shape_cast %673 : vector<1x1x4x16x16xf32> to vector<4x16x16xf32>
    %675 = vector.shape_cast %672 : vector<16x16xi1> to vector<1x16x16xi1>
    %676 = vector.broadcast %675 : vector<1x16x16xi1> to vector<4x16x16xi1>
    %677 = arith.select %676, %674, %668 : vector<4x16x16xi1>, vector<4x16x16xf32>
    %c0_579 = arith.constant 0 : index
    %c0_580 = arith.constant 0 : index
    %c0_581 = arith.constant 0 : index
    %678 = vector.load %arg9[%c0_579, %c0_580, %c0_581] : memref<8x16x16xf32, #tpu.memory_space<vmem>>, vector<1x16x16xf32>
    %679 = vector.shape_cast %678 : vector<1x16x16xf32> to vector<16x16xf32>
    %cst_582 = arith.constant 2.000000e+00 : f32
    %680 = vector.broadcast %cst_582 : f32 to vector<16x16xf32>
    %681 = arith.cmpf oeq, %679, %680 : vector<16x16xf32>
    %c0_583 = arith.constant 0 : index
    %c0_584 = arith.constant 0 : index
    %c0_585 = arith.constant 0 : index
    %c0_586 = arith.constant 0 : index
    %c0_587 = arith.constant 0 : index
    %682 = vector.load %arg2[%c0_583, %c0_584, %c0_585, %c0_586, %c0_587] : memref<1x8x4x16x16xf32, #tpu.memory_space<vmem>>, vector<1x1x4x16x16xf32>
    %683 = vector.shape_cast %682 : vector<1x1x4x16x16xf32> to vector<4x16x16xf32>
    %684 = vector.shape_cast %681 : vector<16x16xi1> to vector<1x16x16xi1>
    %685 = vector.broadcast %684 : vector<1x16x16xi1> to vector<4x16x16xi1>
    %686 = arith.select %685, %683, %677 : vector<4x16x16xi1>, vector<4x16x16xf32>
    %687 = vector.extract_strided_slice %686 {offsets = [3, 0, 0], sizes = [1, 16, 16], strides = [1, 1, 1]} : vector<4x16x16xf32> to vector<1x16x16xf32>
    %688 = vector.shape_cast %687 : vector<1x16x16xf32> to vector<16x16xf32>
    %cst_588 = arith.constant 1.000000e+00 : f32
    %689 = vector.broadcast %cst_588 : f32 to vector<16x16xf32>
    %690 = arith.subf %689, %688 : vector<16x16xf32>
    %691 = vector.extract_strided_slice %686 {offsets = [0, 0, 0], sizes = [1, 16, 16], strides = [1, 1, 1]} : vector<4x16x16xf32> to vector<1x16x16xf32>
    %692 = vector.shape_cast %691 : vector<1x16x16xf32> to vector<16x16xf32>
    %693 = arith.mulf %692, %688 : vector<16x16xf32>
    %cst_589 = arith.constant 1.000000e+00 : f32
    %694 = vector.broadcast %cst_589 : f32 to vector<16x16xf32>
    %695 = arith.mulf %694, %690 : vector<16x16xf32>
    %696 = arith.addf %693, %695 : vector<16x16xf32>
    %c0_590 = arith.constant 0 : index
    %c2_591 = arith.constant 2 : index
    %c0_592 = arith.constant 0 : index
    %c0_593 = arith.constant 0 : index
    %c0_594 = arith.constant 0 : index
    %697 = vector.load %arg8[%c0_590, %c2_591, %c0_592, %c0_593, %c0_594] : memref<1x8x4x16x16xf32, #tpu.memory_space<vmem>>, vector<1x1x1x16x16xf32>
    %698 = vector.shape_cast %697 : vector<1x1x1x16x16xf32> to vector<16x16xf32>
    %699 = vector.shape_cast %696 : vector<16x16xf32> to vector<1x1x1x16x16xf32>
    tpu.vector_store %arg8[%c0_590, %c2_591, %c0_592, %c0_593, %c0_594], %699 {strides = array<i32>} : memref<1x8x4x16x16xf32, #tpu.memory_space<vmem>>, vector<1x1x1x16x16xf32>,
    %700 = vector.extract_strided_slice %686 {offsets = [1, 0, 0], sizes = [1, 16, 16], strides = [1, 1, 1]} : vector<4x16x16xf32> to vector<1x16x16xf32>
    %701 = vector.shape_cast %700 : vector<1x16x16xf32> to vector<16x16xf32>
    %702 = arith.mulf %701, %688 : vector<16x16xf32>
    %cst_595 = arith.constant 1.000000e+00 : f32
    %703 = vector.broadcast %cst_595 : f32 to vector<16x16xf32>
    %704 = arith.mulf %703, %690 : vector<16x16xf32>
    %705 = arith.addf %702, %704 : vector<16x16xf32>
    %c0_596 = arith.constant 0 : index
    %c2_597 = arith.constant 2 : index
    %c1_598 = arith.constant 1 : index
    %c0_599 = arith.constant 0 : index
    %c0_600 = arith.constant 0 : index
    %706 = vector.load %arg8[%c0_596, %c2_597, %c1_598, %c0_599, %c0_600] : memref<1x8x4x16x16xf32, #tpu.memory_space<vmem>>, vector<1x1x1x16x16xf32>
    %707 = vector.shape_cast %706 : vector<1x1x1x16x16xf32> to vector<16x16xf32>
    %708 = vector.shape_cast %705 : vector<16x16xf32> to vector<1x1x1x16x16xf32>
    tpu.vector_store %arg8[%c0_596, %c2_597, %c1_598, %c0_599, %c0_600], %708 {strides = array<i32>} : memref<1x8x4x16x16xf32, #tpu.memory_space<vmem>>, vector<1x1x1x16x16xf32>,
    %709 = vector.extract_strided_slice %686 {offsets = [2, 0, 0], sizes = [1, 16, 16], strides = [1, 1, 1]} : vector<4x16x16xf32> to vector<1x16x16xf32>
    %710 = vector.shape_cast %709 : vector<1x16x16xf32> to vector<16x16xf32>
    %711 = arith.mulf %710, %688 : vector<16x16xf32>
    %cst_601 = arith.constant 1.000000e+00 : f32
    %712 = vector.broadcast %cst_601 : f32 to vector<16x16xf32>
    %713 = arith.mulf %712, %690 : vector<16x16xf32>
    %714 = arith.addf %711, %713 : vector<16x16xf32>
    %c0_602 = arith.constant 0 : index
    %c2_603 = arith.constant 2 : index
    %c2_604 = arith.constant 2 : index
    %c0_605 = arith.constant 0 : index
    %c0_606 = arith.constant 0 : index
    %715 = vector.load %arg8[%c0_602, %c2_603, %c2_604, %c0_605, %c0_606] : memref<1x8x4x16x16xf32, #tpu.memory_space<vmem>>, vector<1x1x1x16x16xf32>
    %716 = vector.shape_cast %715 : vector<1x1x1x16x16xf32> to vector<16x16xf32>
    %717 = vector.shape_cast %714 : vector<16x16xf32> to vector<1x1x1x16x16xf32>
    tpu.vector_store %arg8[%c0_602, %c2_603, %c2_604, %c0_605, %c0_606], %717 {strides = array<i32>} : memref<1x8x4x16x16xf32, #tpu.memory_space<vmem>>, vector<1x1x1x16x16xf32>,
    %c0_607 = arith.constant 0 : index
    %c2_608 = arith.constant 2 : index
    %c3_609 = arith.constant 3 : index
    %c0_610 = arith.constant 0 : index
    %c0_611 = arith.constant 0 : index
    %718 = vector.load %arg8[%c0_607, %c2_608, %c3_609, %c0_610, %c0_611] : memref<1x8x4x16x16xf32, #tpu.memory_space<vmem>>, vector<1x1x1x16x16xf32>
    %719 = vector.shape_cast %718 : vector<1x1x1x16x16xf32> to vector<16x16xf32>
    %720 = vector.shape_cast %688 : vector<16x16xf32> to vector<1x1x1x16x16xf32>
    tpu.vector_store %arg8[%c0_607, %c2_608, %c3_609, %c0_610, %c0_611], %720 {strides = array<i32>} : memref<1x8x4x16x16xf32, #tpu.memory_space<vmem>>, vector<1x1x1x16x16xf32>,
    %cst_612 = arith.constant 2.000000e+00 : f32
    %721 = vector.broadcast %cst_612 : f32 to vector<16x16xf32>
    %722 = arith.cmpf oeq, %613, %721 : vector<16x16xf32>
    %cst_613 = arith.constant 5.000000e-01 : f32
    %723 = vector.broadcast %cst_613 : f32 to vector<16x16xf32>
    %724 = arith.cmpf olt, %688, %723 : vector<16x16xf32>
    %725 = arith.andi %722, %724 : vector<16x16xi1>
    %cst_614 = arith.constant -1.000000e+00 : f32
    %726 = vector.broadcast %cst_614 : f32 to vector<16x16xf32>
    %727 = arith.select %725, %726, %613 : vector<16x16xi1>, vector<16x16xf32>
    %cst_615 = arith.constant 0.000000e+00 : f32
    %728 = vector.broadcast %cst_615 : f32 to vector<4x16x16xf32>
    %c7_616 = arith.constant 7 : index
    %c0_617 = arith.constant 0 : index
    %c0_618 = arith.constant 0 : index
    %729 = vector.load %arg9[%c7_616, %c0_617, %c0_618] : memref<8x16x16xf32, #tpu.memory_space<vmem>>, vector<1x16x16xf32>
    %730 = vector.shape_cast %729 : vector<1x16x16xf32> to vector<16x16xf32>
    %cst_619 = arith.constant 3.000000e+00 : f32
    %731 = vector.broadcast %cst_619 : f32 to vector<16x16xf32>
    %732 = arith.cmpf oeq, %730, %731 : vector<16x16xf32>
    %c0_620 = arith.constant 0 : index
    %c7_621 = arith.constant 7 : index
    %c0_622 = arith.constant 0 : index
    %c0_623 = arith.constant 0 : index
    %c0_624 = arith.constant 0 : index
    %733 = vector.load %arg2[%c0_620, %c7_621, %c0_622, %c0_623, %c0_624] : memref<1x8x4x16x16xf32, #tpu.memory_space<vmem>>, vector<1x1x4x16x16xf32>
    %734 = vector.shape_cast %733 : vector<1x1x4x16x16xf32> to vector<4x16x16xf32>
    %735 = vector.shape_cast %732 : vector<16x16xi1> to vector<1x16x16xi1>
    %736 = vector.broadcast %735 : vector<1x16x16xi1> to vector<4x16x16xi1>
    %737 = arith.select %736, %734, %728 : vector<4x16x16xi1>, vector<4x16x16xf32>
    %c6_625 = arith.constant 6 : index
    %c0_626 = arith.constant 0 : index
    %c0_627 = arith.constant 0 : index
    %738 = vector.load %arg9[%c6_625, %c0_626, %c0_627] : memref<8x16x16xf32, #tpu.memory_space<vmem>>, vector<1x16x16xf32>
    %739 = vector.shape_cast %738 : vector<1x16x16xf32> to vector<16x16xf32>
    %cst_628 = arith.constant 3.000000e+00 : f32
    %740 = vector.broadcast %cst_628 : f32 to vector<16x16xf32>
    %741 = arith.cmpf oeq, %739, %740 : vector<16x16xf32>
    %c0_629 = arith.constant 0 : index
    %c6_630 = arith.constant 6 : index
    %c0_631 = arith.constant 0 : index
    %c0_632 = arith.constant 0 : index
    %c0_633 = arith.constant 0 : index
    %742 = vector.load %arg2[%c0_629, %c6_630, %c0_631, %c0_632, %c0_633] : memref<1x8x4x16x16xf32, #tpu.memory_space<vmem>>, vector<1x1x4x16x16xf32>
    %743 = vector.shape_cast %742 : vector<1x1x4x16x16xf32> to vector<4x16x16xf32>
    %744 = vector.shape_cast %741 : vector<16x16xi1> to vector<1x16x16xi1>
    %745 = vector.broadcast %744 : vector<1x16x16xi1> to vector<4x16x16xi1>
    %746 = arith.select %745, %743, %737 : vector<4x16x16xi1>, vector<4x16x16xf32>
    %c5_634 = arith.constant 5 : index
    %c0_635 = arith.constant 0 : index
    %c0_636 = arith.constant 0 : index
    %747 = vector.load %arg9[%c5_634, %c0_635, %c0_636] : memref<8x16x16xf32, #tpu.memory_space<vmem>>, vector<1x16x16xf32>
    %748 = vector.shape_cast %747 : vector<1x16x16xf32> to vector<16x16xf32>
    %cst_637 = arith.constant 3.000000e+00 : f32
    %749 = vector.broadcast %cst_637 : f32 to vector<16x16xf32>
    %750 = arith.cmpf oeq, %748, %749 : vector<16x16xf32>
    %c0_638 = arith.constant 0 : index
    %c5_639 = arith.constant 5 : index
    %c0_640 = arith.constant 0 : index
    %c0_641 = arith.constant 0 : index
    %c0_642 = arith.constant 0 : index
    %751 = vector.load %arg2[%c0_638, %c5_639, %c0_640, %c0_641, %c0_642] : memref<1x8x4x16x16xf32, #tpu.memory_space<vmem>>, vector<1x1x4x16x16xf32>
    %752 = vector.shape_cast %751 : vector<1x1x4x16x16xf32> to vector<4x16x16xf32>
    %753 = vector.shape_cast %750 : vector<16x16xi1> to vector<1x16x16xi1>
    %754 = vector.broadcast %753 : vector<1x16x16xi1> to vector<4x16x16xi1>
    %755 = arith.select %754, %752, %746 : vector<4x16x16xi1>, vector<4x16x16xf32>
    %c4_643 = arith.constant 4 : index
    %c0_644 = arith.constant 0 : index
    %c0_645 = arith.constant 0 : index
    %756 = vector.load %arg9[%c4_643, %c0_644, %c0_645] : memref<8x16x16xf32, #tpu.memory_space<vmem>>, vector<1x16x16xf32>
    %757 = vector.shape_cast %756 : vector<1x16x16xf32> to vector<16x16xf32>
    %cst_646 = arith.constant 3.000000e+00 : f32
    %758 = vector.broadcast %cst_646 : f32 to vector<16x16xf32>
    %759 = arith.cmpf oeq, %757, %758 : vector<16x16xf32>
    %c0_647 = arith.constant 0 : index
    %c4_648 = arith.constant 4 : index
    %c0_649 = arith.constant 0 : index
    %c0_650 = arith.constant 0 : index
    %c0_651 = arith.constant 0 : index
    %760 = vector.load %arg2[%c0_647, %c4_648, %c0_649, %c0_650, %c0_651] : memref<1x8x4x16x16xf32, #tpu.memory_space<vmem>>, vector<1x1x4x16x16xf32>
    %761 = vector.shape_cast %760 : vector<1x1x4x16x16xf32> to vector<4x16x16xf32>
    %762 = vector.shape_cast %759 : vector<16x16xi1> to vector<1x16x16xi1>
    %763 = vector.broadcast %762 : vector<1x16x16xi1> to vector<4x16x16xi1>
    %764 = arith.select %763, %761, %755 : vector<4x16x16xi1>, vector<4x16x16xf32>
    %c3_652 = arith.constant 3 : index
    %c0_653 = arith.constant 0 : index
    %c0_654 = arith.constant 0 : index
    %765 = vector.load %arg9[%c3_652, %c0_653, %c0_654] : memref<8x16x16xf32, #tpu.memory_space<vmem>>, vector<1x16x16xf32>
    %766 = vector.shape_cast %765 : vector<1x16x16xf32> to vector<16x16xf32>
    %cst_655 = arith.constant 3.000000e+00 : f32
    %767 = vector.broadcast %cst_655 : f32 to vector<16x16xf32>
    %768 = arith.cmpf oeq, %766, %767 : vector<16x16xf32>
    %c0_656 = arith.constant 0 : index
    %c3_657 = arith.constant 3 : index
    %c0_658 = arith.constant 0 : index
    %c0_659 = arith.constant 0 : index
    %c0_660 = arith.constant 0 : index
    %769 = vector.load %arg2[%c0_656, %c3_657, %c0_658, %c0_659, %c0_660] : memref<1x8x4x16x16xf32, #tpu.memory_space<vmem>>, vector<1x1x4x16x16xf32>
    %770 = vector.shape_cast %769 : vector<1x1x4x16x16xf32> to vector<4x16x16xf32>
    %771 = vector.shape_cast %768 : vector<16x16xi1> to vector<1x16x16xi1>
    %772 = vector.broadcast %771 : vector<1x16x16xi1> to vector<4x16x16xi1>
    %773 = arith.select %772, %770, %764 : vector<4x16x16xi1>, vector<4x16x16xf32>
    %c2_661 = arith.constant 2 : index
    %c0_662 = arith.constant 0 : index
    %c0_663 = arith.constant 0 : index
    %774 = vector.load %arg9[%c2_661, %c0_662, %c0_663] : memref<8x16x16xf32, #tpu.memory_space<vmem>>, vector<1x16x16xf32>
    %775 = vector.shape_cast %774 : vector<1x16x16xf32> to vector<16x16xf32>
    %cst_664 = arith.constant 3.000000e+00 : f32
    %776 = vector.broadcast %cst_664 : f32 to vector<16x16xf32>
    %777 = arith.cmpf oeq, %775, %776 : vector<16x16xf32>
    %c0_665 = arith.constant 0 : index
    %c2_666 = arith.constant 2 : index
    %c0_667 = arith.constant 0 : index
    %c0_668 = arith.constant 0 : index
    %c0_669 = arith.constant 0 : index
    %778 = vector.load %arg2[%c0_665, %c2_666, %c0_667, %c0_668, %c0_669] : memref<1x8x4x16x16xf32, #tpu.memory_space<vmem>>, vector<1x1x4x16x16xf32>
    %779 = vector.shape_cast %778 : vector<1x1x4x16x16xf32> to vector<4x16x16xf32>
    %780 = vector.shape_cast %777 : vector<16x16xi1> to vector<1x16x16xi1>
    %781 = vector.broadcast %780 : vector<1x16x16xi1> to vector<4x16x16xi1>
    %782 = arith.select %781, %779, %773 : vector<4x16x16xi1>, vector<4x16x16xf32>
    %c1_670 = arith.constant 1 : index
    %c0_671 = arith.constant 0 : index
    %c0_672 = arith.constant 0 : index
    %783 = vector.load %arg9[%c1_670, %c0_671, %c0_672] : memref<8x16x16xf32, #tpu.memory_space<vmem>>, vector<1x16x16xf32>
    %784 = vector.shape_cast %783 : vector<1x16x16xf32> to vector<16x16xf32>
    %cst_673 = arith.constant 3.000000e+00 : f32
    %785 = vector.broadcast %cst_673 : f32 to vector<16x16xf32>
    %786 = arith.cmpf oeq, %784, %785 : vector<16x16xf32>
    %c0_674 = arith.constant 0 : index
    %c1_675 = arith.constant 1 : index
    %c0_676 = arith.constant 0 : index
    %c0_677 = arith.constant 0 : index
    %c0_678 = arith.constant 0 : index
    %787 = vector.load %arg2[%c0_674, %c1_675, %c0_676, %c0_677, %c0_678] : memref<1x8x4x16x16xf32, #tpu.memory_space<vmem>>, vector<1x1x4x16x16xf32>
    %788 = vector.shape_cast %787 : vector<1x1x4x16x16xf32> to vector<4x16x16xf32>
    %789 = vector.shape_cast %786 : vector<16x16xi1> to vector<1x16x16xi1>
    %790 = vector.broadcast %789 : vector<1x16x16xi1> to vector<4x16x16xi1>
    %791 = arith.select %790, %788, %782 : vector<4x16x16xi1>, vector<4x16x16xf32>
    %c0_679 = arith.constant 0 : index
    %c0_680 = arith.constant 0 : index
    %c0_681 = arith.constant 0 : index
    %792 = vector.load %arg9[%c0_679, %c0_680, %c0_681] : memref<8x16x16xf32, #tpu.memory_space<vmem>>, vector<1x16x16xf32>
    %793 = vector.shape_cast %792 : vector<1x16x16xf32> to vector<16x16xf32>
    %cst_682 = arith.constant 3.000000e+00 : f32
    %794 = vector.broadcast %cst_682 : f32 to vector<16x16xf32>
    %795 = arith.cmpf oeq, %793, %794 : vector<16x16xf32>
    %c0_683 = arith.constant 0 : index
    %c0_684 = arith.constant 0 : index
    %c0_685 = arith.constant 0 : index
    %c0_686 = arith.constant 0 : index
    %c0_687 = arith.constant 0 : index
    %796 = vector.load %arg2[%c0_683, %c0_684, %c0_685, %c0_686, %c0_687] : memref<1x8x4x16x16xf32, #tpu.memory_space<vmem>>, vector<1x1x4x16x16xf32>
    %797 = vector.shape_cast %796 : vector<1x1x4x16x16xf32> to vector<4x16x16xf32>
    %798 = vector.shape_cast %795 : vector<16x16xi1> to vector<1x16x16xi1>
    %799 = vector.broadcast %798 : vector<1x16x16xi1> to vector<4x16x16xi1>
    %800 = arith.select %799, %797, %791 : vector<4x16x16xi1>, vector<4x16x16xf32>
    %801 = vector.extract_strided_slice %800 {offsets = [3, 0, 0], sizes = [1, 16, 16], strides = [1, 1, 1]} : vector<4x16x16xf32> to vector<1x16x16xf32>
    %802 = vector.shape_cast %801 : vector<1x16x16xf32> to vector<16x16xf32>
    %cst_688 = arith.constant 1.000000e+00 : f32
    %803 = vector.broadcast %cst_688 : f32 to vector<16x16xf32>
    %804 = arith.subf %803, %802 : vector<16x16xf32>
    %805 = vector.extract_strided_slice %800 {offsets = [0, 0, 0], sizes = [1, 16, 16], strides = [1, 1, 1]} : vector<4x16x16xf32> to vector<1x16x16xf32>
    %806 = vector.shape_cast %805 : vector<1x16x16xf32> to vector<16x16xf32>
    %807 = arith.mulf %806, %802 : vector<16x16xf32>
    %cst_689 = arith.constant 1.000000e+00 : f32
    %808 = vector.broadcast %cst_689 : f32 to vector<16x16xf32>
    %809 = arith.mulf %808, %804 : vector<16x16xf32>
    %810 = arith.addf %807, %809 : vector<16x16xf32>
    %c0_690 = arith.constant 0 : index
    %c3_691 = arith.constant 3 : index
    %c0_692 = arith.constant 0 : index
    %c0_693 = arith.constant 0 : index
    %c0_694 = arith.constant 0 : index
    %811 = vector.load %arg8[%c0_690, %c3_691, %c0_692, %c0_693, %c0_694] : memref<1x8x4x16x16xf32, #tpu.memory_space<vmem>>, vector<1x1x1x16x16xf32>
    %812 = vector.shape_cast %811 : vector<1x1x1x16x16xf32> to vector<16x16xf32>
    %813 = vector.shape_cast %810 : vector<16x16xf32> to vector<1x1x1x16x16xf32>
    tpu.vector_store %arg8[%c0_690, %c3_691, %c0_692, %c0_693, %c0_694], %813 {strides = array<i32>} : memref<1x8x4x16x16xf32, #tpu.memory_space<vmem>>, vector<1x1x1x16x16xf32>,
    %814 = vector.extract_strided_slice %800 {offsets = [1, 0, 0], sizes = [1, 16, 16], strides = [1, 1, 1]} : vector<4x16x16xf32> to vector<1x16x16xf32>
    %815 = vector.shape_cast %814 : vector<1x16x16xf32> to vector<16x16xf32>
    %816 = arith.mulf %815, %802 : vector<16x16xf32>
    %cst_695 = arith.constant 1.000000e+00 : f32
    %817 = vector.broadcast %cst_695 : f32 to vector<16x16xf32>
    %818 = arith.mulf %817, %804 : vector<16x16xf32>
    %819 = arith.addf %816, %818 : vector<16x16xf32>
    %c0_696 = arith.constant 0 : index
    %c3_697 = arith.constant 3 : index
    %c1_698 = arith.constant 1 : index
    %c0_699 = arith.constant 0 : index
    %c0_700 = arith.constant 0 : index
    %820 = vector.load %arg8[%c0_696, %c3_697, %c1_698, %c0_699, %c0_700] : memref<1x8x4x16x16xf32, #tpu.memory_space<vmem>>, vector<1x1x1x16x16xf32>
    %821 = vector.shape_cast %820 : vector<1x1x1x16x16xf32> to vector<16x16xf32>
    %822 = vector.shape_cast %819 : vector<16x16xf32> to vector<1x1x1x16x16xf32>
    tpu.vector_store %arg8[%c0_696, %c3_697, %c1_698, %c0_699, %c0_700], %822 {strides = array<i32>} : memref<1x8x4x16x16xf32, #tpu.memory_space<vmem>>, vector<1x1x1x16x16xf32>,
    %823 = vector.extract_strided_slice %800 {offsets = [2, 0, 0], sizes = [1, 16, 16], strides = [1, 1, 1]} : vector<4x16x16xf32> to vector<1x16x16xf32>
    %824 = vector.shape_cast %823 : vector<1x16x16xf32> to vector<16x16xf32>
    %825 = arith.mulf %824, %802 : vector<16x16xf32>
    %cst_701 = arith.constant 1.000000e+00 : f32
    %826 = vector.broadcast %cst_701 : f32 to vector<16x16xf32>
    %827 = arith.mulf %826, %804 : vector<16x16xf32>
    %828 = arith.addf %825, %827 : vector<16x16xf32>
    %c0_702 = arith.constant 0 : index
    %c3_703 = arith.constant 3 : index
    %c2_704 = arith.constant 2 : index
    %c0_705 = arith.constant 0 : index
    %c0_706 = arith.constant 0 : index
    %829 = vector.load %arg8[%c0_702, %c3_703, %c2_704, %c0_705, %c0_706] : memref<1x8x4x16x16xf32, #tpu.memory_space<vmem>>, vector<1x1x1x16x16xf32>
    %830 = vector.shape_cast %829 : vector<1x1x1x16x16xf32> to vector<16x16xf32>
    %831 = vector.shape_cast %828 : vector<16x16xf32> to vector<1x1x1x16x16xf32>
    tpu.vector_store %arg8[%c0_702, %c3_703, %c2_704, %c0_705, %c0_706], %831 {strides = array<i32>} : memref<1x8x4x16x16xf32, #tpu.memory_space<vmem>>, vector<1x1x1x16x16xf32>,
    %c0_707 = arith.constant 0 : index
    %c3_708 = arith.constant 3 : index
    %c3_709 = arith.constant 3 : index
    %c0_710 = arith.constant 0 : index
    %c0_711 = arith.constant 0 : index
    %832 = vector.load %arg8[%c0_707, %c3_708, %c3_709, %c0_710, %c0_711] : memref<1x8x4x16x16xf32, #tpu.memory_space<vmem>>, vector<1x1x1x16x16xf32>
    %833 = vector.shape_cast %832 : vector<1x1x1x16x16xf32> to vector<16x16xf32>
    %834 = vector.shape_cast %802 : vector<16x16xf32> to vector<1x1x1x16x16xf32>
    tpu.vector_store %arg8[%c0_707, %c3_708, %c3_709, %c0_710, %c0_711], %834 {strides = array<i32>} : memref<1x8x4x16x16xf32, #tpu.memory_space<vmem>>, vector<1x1x1x16x16xf32>,
    %cst_712 = arith.constant 3.000000e+00 : f32
    %835 = vector.broadcast %cst_712 : f32 to vector<16x16xf32>
    %836 = arith.cmpf oeq, %727, %835 : vector<16x16xf32>
    %cst_713 = arith.constant 5.000000e-01 : f32
    %837 = vector.broadcast %cst_713 : f32 to vector<16x16xf32>
    %838 = arith.cmpf olt, %802, %837 : vector<16x16xf32>
    %839 = arith.andi %836, %838 : vector<16x16xi1>
    %cst_714 = arith.constant -1.000000e+00 : f32
    %840 = vector.broadcast %cst_714 : f32 to vector<16x16xf32>
    %841 = arith.select %839, %840, %727 : vector<16x16xi1>, vector<16x16xf32>
    %cst_715 = arith.constant 0.000000e+00 : f32
    %842 = vector.broadcast %cst_715 : f32 to vector<4x16x16xf32>
    %c7_716 = arith.constant 7 : index
    %c0_717 = arith.constant 0 : index
    %c0_718 = arith.constant 0 : index
    %843 = vector.load %arg9[%c7_716, %c0_717, %c0_718] : memref<8x16x16xf32, #tpu.memory_space<vmem>>, vector<1x16x16xf32>
    %844 = vector.shape_cast %843 : vector<1x16x16xf32> to vector<16x16xf32>
    %cst_719 = arith.constant 4.000000e+00 : f32
    %845 = vector.broadcast %cst_719 : f32 to vector<16x16xf32>
    %846 = arith.cmpf oeq, %844, %845 : vector<16x16xf32>
    %c0_720 = arith.constant 0 : index
    %c7_721 = arith.constant 7 : index
    %c0_722 = arith.constant 0 : index
    %c0_723 = arith.constant 0 : index
    %c0_724 = arith.constant 0 : index
    %847 = vector.load %arg2[%c0_720, %c7_721, %c0_722, %c0_723, %c0_724] : memref<1x8x4x16x16xf32, #tpu.memory_space<vmem>>, vector<1x1x4x16x16xf32>
    %848 = vector.shape_cast %847 : vector<1x1x4x16x16xf32> to vector<4x16x16xf32>
    %849 = vector.shape_cast %846 : vector<16x16xi1> to vector<1x16x16xi1>
    %850 = vector.broadcast %849 : vector<1x16x16xi1> to vector<4x16x16xi1>
    %851 = arith.select %850, %848, %842 : vector<4x16x16xi1>, vector<4x16x16xf32>
    %c6_725 = arith.constant 6 : index
    %c0_726 = arith.constant 0 : index
    %c0_727 = arith.constant 0 : index
    %852 = vector.load %arg9[%c6_725, %c0_726, %c0_727] : memref<8x16x16xf32, #tpu.memory_space<vmem>>, vector<1x16x16xf32>
    %853 = vector.shape_cast %852 : vector<1x16x16xf32> to vector<16x16xf32>
    %cst_728 = arith.constant 4.000000e+00 : f32
    %854 = vector.broadcast %cst_728 : f32 to vector<16x16xf32>
    %855 = arith.cmpf oeq, %853, %854 : vector<16x16xf32>
    %c0_729 = arith.constant 0 : index
    %c6_730 = arith.constant 6 : index
    %c0_731 = arith.constant 0 : index
    %c0_732 = arith.constant 0 : index
    %c0_733 = arith.constant 0 : index
    %856 = vector.load %arg2[%c0_729, %c6_730, %c0_731, %c0_732, %c0_733] : memref<1x8x4x16x16xf32, #tpu.memory_space<vmem>>, vector<1x1x4x16x16xf32>
    %857 = vector.shape_cast %856 : vector<1x1x4x16x16xf32> to vector<4x16x16xf32>
    %858 = vector.shape_cast %855 : vector<16x16xi1> to vector<1x16x16xi1>
    %859 = vector.broadcast %858 : vector<1x16x16xi1> to vector<4x16x16xi1>
    %860 = arith.select %859, %857, %851 : vector<4x16x16xi1>, vector<4x16x16xf32>
    %c5_734 = arith.constant 5 : index
    %c0_735 = arith.constant 0 : index
    %c0_736 = arith.constant 0 : index
    %861 = vector.load %arg9[%c5_734, %c0_735, %c0_736] : memref<8x16x16xf32, #tpu.memory_space<vmem>>, vector<1x16x16xf32>
    %862 = vector.shape_cast %861 : vector<1x16x16xf32> to vector<16x16xf32>
    %cst_737 = arith.constant 4.000000e+00 : f32
    %863 = vector.broadcast %cst_737 : f32 to vector<16x16xf32>
    %864 = arith.cmpf oeq, %862, %863 : vector<16x16xf32>
    %c0_738 = arith.constant 0 : index
    %c5_739 = arith.constant 5 : index
    %c0_740 = arith.constant 0 : index
    %c0_741 = arith.constant 0 : index
    %c0_742 = arith.constant 0 : index
    %865 = vector.load %arg2[%c0_738, %c5_739, %c0_740, %c0_741, %c0_742] : memref<1x8x4x16x16xf32, #tpu.memory_space<vmem>>, vector<1x1x4x16x16xf32>
    %866 = vector.shape_cast %865 : vector<1x1x4x16x16xf32> to vector<4x16x16xf32>
    %867 = vector.shape_cast %864 : vector<16x16xi1> to vector<1x16x16xi1>
    %868 = vector.broadcast %867 : vector<1x16x16xi1> to vector<4x16x16xi1>
    %869 = arith.select %868, %866, %860 : vector<4x16x16xi1>, vector<4x16x16xf32>
    %c4_743 = arith.constant 4 : index
    %c0_744 = arith.constant 0 : index
    %c0_745 = arith.constant 0 : index
    %870 = vector.load %arg9[%c4_743, %c0_744, %c0_745] : memref<8x16x16xf32, #tpu.memory_space<vmem>>, vector<1x16x16xf32>
    %871 = vector.shape_cast %870 : vector<1x16x16xf32> to vector<16x16xf32>
    %cst_746 = arith.constant 4.000000e+00 : f32
    %872 = vector.broadcast %cst_746 : f32 to vector<16x16xf32>
    %873 = arith.cmpf oeq, %871, %872 : vector<16x16xf32>
    %c0_747 = arith.constant 0 : index
    %c4_748 = arith.constant 4 : index
    %c0_749 = arith.constant 0 : index
    %c0_750 = arith.constant 0 : index
    %c0_751 = arith.constant 0 : index
    %874 = vector.load %arg2[%c0_747, %c4_748, %c0_749, %c0_750, %c0_751] : memref<1x8x4x16x16xf32, #tpu.memory_space<vmem>>, vector<1x1x4x16x16xf32>
    %875 = vector.shape_cast %874 : vector<1x1x4x16x16xf32> to vector<4x16x16xf32>
    %876 = vector.shape_cast %873 : vector<16x16xi1> to vector<1x16x16xi1>
    %877 = vector.broadcast %876 : vector<1x16x16xi1> to vector<4x16x16xi1>
    %878 = arith.select %877, %875, %869 : vector<4x16x16xi1>, vector<4x16x16xf32>
    %c3_752 = arith.constant 3 : index
    %c0_753 = arith.constant 0 : index
    %c0_754 = arith.constant 0 : index
    %879 = vector.load %arg9[%c3_752, %c0_753, %c0_754] : memref<8x16x16xf32, #tpu.memory_space<vmem>>, vector<1x16x16xf32>
    %880 = vector.shape_cast %879 : vector<1x16x16xf32> to vector<16x16xf32>
    %cst_755 = arith.constant 4.000000e+00 : f32
    %881 = vector.broadcast %cst_755 : f32 to vector<16x16xf32>
    %882 = arith.cmpf oeq, %880, %881 : vector<16x16xf32>
    %c0_756 = arith.constant 0 : index
    %c3_757 = arith.constant 3 : index
    %c0_758 = arith.constant 0 : index
    %c0_759 = arith.constant 0 : index
    %c0_760 = arith.constant 0 : index
    %883 = vector.load %arg2[%c0_756, %c3_757, %c0_758, %c0_759, %c0_760] : memref<1x8x4x16x16xf32, #tpu.memory_space<vmem>>, vector<1x1x4x16x16xf32>
    %884 = vector.shape_cast %883 : vector<1x1x4x16x16xf32> to vector<4x16x16xf32>
    %885 = vector.shape_cast %882 : vector<16x16xi1> to vector<1x16x16xi1>
    %886 = vector.broadcast %885 : vector<1x16x16xi1> to vector<4x16x16xi1>
    %887 = arith.select %886, %884, %878 : vector<4x16x16xi1>, vector<4x16x16xf32>
    %c2_761 = arith.constant 2 : index
    %c0_762 = arith.constant 0 : index
    %c0_763 = arith.constant 0 : index
    %888 = vector.load %arg9[%c2_761, %c0_762, %c0_763] : memref<8x16x16xf32, #tpu.memory_space<vmem>>, vector<1x16x16xf32>
    %889 = vector.shape_cast %888 : vector<1x16x16xf32> to vector<16x16xf32>
    %cst_764 = arith.constant 4.000000e+00 : f32
    %890 = vector.broadcast %cst_764 : f32 to vector<16x16xf32>
    %891 = arith.cmpf oeq, %889, %890 : vector<16x16xf32>
    %c0_765 = arith.constant 0 : index
    %c2_766 = arith.constant 2 : index
    %c0_767 = arith.constant 0 : index
    %c0_768 = arith.constant 0 : index
    %c0_769 = arith.constant 0 : index
    %892 = vector.load %arg2[%c0_765, %c2_766, %c0_767, %c0_768, %c0_769] : memref<1x8x4x16x16xf32, #tpu.memory_space<vmem>>, vector<1x1x4x16x16xf32>
    %893 = vector.shape_cast %892 : vector<1x1x4x16x16xf32> to vector<4x16x16xf32>
    %894 = vector.shape_cast %891 : vector<16x16xi1> to vector<1x16x16xi1>
    %895 = vector.broadcast %894 : vector<1x16x16xi1> to vector<4x16x16xi1>
    %896 = arith.select %895, %893, %887 : vector<4x16x16xi1>, vector<4x16x16xf32>
    %c1_770 = arith.constant 1 : index
    %c0_771 = arith.constant 0 : index
    %c0_772 = arith.constant 0 : index
    %897 = vector.load %arg9[%c1_770, %c0_771, %c0_772] : memref<8x16x16xf32, #tpu.memory_space<vmem>>, vector<1x16x16xf32>
    %898 = vector.shape_cast %897 : vector<1x16x16xf32> to vector<16x16xf32>
    %cst_773 = arith.constant 4.000000e+00 : f32
    %899 = vector.broadcast %cst_773 : f32 to vector<16x16xf32>
    %900 = arith.cmpf oeq, %898, %899 : vector<16x16xf32>
    %c0_774 = arith.constant 0 : index
    %c1_775 = arith.constant 1 : index
    %c0_776 = arith.constant 0 : index
    %c0_777 = arith.constant 0 : index
    %c0_778 = arith.constant 0 : index
    %901 = vector.load %arg2[%c0_774, %c1_775, %c0_776, %c0_777, %c0_778] : memref<1x8x4x16x16xf32, #tpu.memory_space<vmem>>, vector<1x1x4x16x16xf32>
    %902 = vector.shape_cast %901 : vector<1x1x4x16x16xf32> to vector<4x16x16xf32>
    %903 = vector.shape_cast %900 : vector<16x16xi1> to vector<1x16x16xi1>
    %904 = vector.broadcast %903 : vector<1x16x16xi1> to vector<4x16x16xi1>
    %905 = arith.select %904, %902, %896 : vector<4x16x16xi1>, vector<4x16x16xf32>
    %c0_779 = arith.constant 0 : index
    %c0_780 = arith.constant 0 : index
    %c0_781 = arith.constant 0 : index
    %906 = vector.load %arg9[%c0_779, %c0_780, %c0_781] : memref<8x16x16xf32, #tpu.memory_space<vmem>>, vector<1x16x16xf32>
    %907 = vector.shape_cast %906 : vector<1x16x16xf32> to vector<16x16xf32>
    %cst_782 = arith.constant 4.000000e+00 : f32
    %908 = vector.broadcast %cst_782 : f32 to vector<16x16xf32>
    %909 = arith.cmpf oeq, %907, %908 : vector<16x16xf32>
    %c0_783 = arith.constant 0 : index
    %c0_784 = arith.constant 0 : index
    %c0_785 = arith.constant 0 : index
    %c0_786 = arith.constant 0 : index
    %c0_787 = arith.constant 0 : index
    %910 = vector.load %arg2[%c0_783, %c0_784, %c0_785, %c0_786, %c0_787] : memref<1x8x4x16x16xf32, #tpu.memory_space<vmem>>, vector<1x1x4x16x16xf32>
    %911 = vector.shape_cast %910 : vector<1x1x4x16x16xf32> to vector<4x16x16xf32>
    %912 = vector.shape_cast %909 : vector<16x16xi1> to vector<1x16x16xi1>
    %913 = vector.broadcast %912 : vector<1x16x16xi1> to vector<4x16x16xi1>
    %914 = arith.select %913, %911, %905 : vector<4x16x16xi1>, vector<4x16x16xf32>
    %915 = vector.extract_strided_slice %914 {offsets = [3, 0, 0], sizes = [1, 16, 16], strides = [1, 1, 1]} : vector<4x16x16xf32> to vector<1x16x16xf32>
    %916 = vector.shape_cast %915 : vector<1x16x16xf32> to vector<16x16xf32>
    %cst_788 = arith.constant 1.000000e+00 : f32
    %917 = vector.broadcast %cst_788 : f32 to vector<16x16xf32>
    %918 = arith.subf %917, %916 : vector<16x16xf32>
    %919 = vector.extract_strided_slice %914 {offsets = [0, 0, 0], sizes = [1, 16, 16], strides = [1, 1, 1]} : vector<4x16x16xf32> to vector<1x16x16xf32>
    %920 = vector.shape_cast %919 : vector<1x16x16xf32> to vector<16x16xf32>
    %921 = arith.mulf %920, %916 : vector<16x16xf32>
    %cst_789 = arith.constant 1.000000e+00 : f32
    %922 = vector.broadcast %cst_789 : f32 to vector<16x16xf32>
    %923 = arith.mulf %922, %918 : vector<16x16xf32>
    %924 = arith.addf %921, %923 : vector<16x16xf32>
    %c0_790 = arith.constant 0 : index
    %c4_791 = arith.constant 4 : index
    %c0_792 = arith.constant 0 : index
    %c0_793 = arith.constant 0 : index
    %c0_794 = arith.constant 0 : index
    %925 = vector.load %arg8[%c0_790, %c4_791, %c0_792, %c0_793, %c0_794] : memref<1x8x4x16x16xf32, #tpu.memory_space<vmem>>, vector<1x1x1x16x16xf32>
    %926 = vector.shape_cast %925 : vector<1x1x1x16x16xf32> to vector<16x16xf32>
    %927 = vector.shape_cast %924 : vector<16x16xf32> to vector<1x1x1x16x16xf32>
    tpu.vector_store %arg8[%c0_790, %c4_791, %c0_792, %c0_793, %c0_794], %927 {strides = array<i32>} : memref<1x8x4x16x16xf32, #tpu.memory_space<vmem>>, vector<1x1x1x16x16xf32>,
    %928 = vector.extract_strided_slice %914 {offsets = [1, 0, 0], sizes = [1, 16, 16], strides = [1, 1, 1]} : vector<4x16x16xf32> to vector<1x16x16xf32>
    %929 = vector.shape_cast %928 : vector<1x16x16xf32> to vector<16x16xf32>
    %930 = arith.mulf %929, %916 : vector<16x16xf32>
    %cst_795 = arith.constant 1.000000e+00 : f32
    %931 = vector.broadcast %cst_795 : f32 to vector<16x16xf32>
    %932 = arith.mulf %931, %918 : vector<16x16xf32>
    %933 = arith.addf %930, %932 : vector<16x16xf32>
    %c0_796 = arith.constant 0 : index
    %c4_797 = arith.constant 4 : index
    %c1_798 = arith.constant 1 : index
    %c0_799 = arith.constant 0 : index
    %c0_800 = arith.constant 0 : index
    %934 = vector.load %arg8[%c0_796, %c4_797, %c1_798, %c0_799, %c0_800] : memref<1x8x4x16x16xf32, #tpu.memory_space<vmem>>, vector<1x1x1x16x16xf32>
    %935 = vector.shape_cast %934 : vector<1x1x1x16x16xf32> to vector<16x16xf32>
    %936 = vector.shape_cast %933 : vector<16x16xf32> to vector<1x1x1x16x16xf32>
    tpu.vector_store %arg8[%c0_796, %c4_797, %c1_798, %c0_799, %c0_800], %936 {strides = array<i32>} : memref<1x8x4x16x16xf32, #tpu.memory_space<vmem>>, vector<1x1x1x16x16xf32>,
    %937 = vector.extract_strided_slice %914 {offsets = [2, 0, 0], sizes = [1, 16, 16], strides = [1, 1, 1]} : vector<4x16x16xf32> to vector<1x16x16xf32>
    %938 = vector.shape_cast %937 : vector<1x16x16xf32> to vector<16x16xf32>
    %939 = arith.mulf %938, %916 : vector<16x16xf32>
    %cst_801 = arith.constant 1.000000e+00 : f32
    %940 = vector.broadcast %cst_801 : f32 to vector<16x16xf32>
    %941 = arith.mulf %940, %918 : vector<16x16xf32>
    %942 = arith.addf %939, %941 : vector<16x16xf32>
    %c0_802 = arith.constant 0 : index
    %c4_803 = arith.constant 4 : index
    %c2_804 = arith.constant 2 : index
    %c0_805 = arith.constant 0 : index
    %c0_806 = arith.constant 0 : index
    %943 = vector.load %arg8[%c0_802, %c4_803, %c2_804, %c0_805, %c0_806] : memref<1x8x4x16x16xf32, #tpu.memory_space<vmem>>, vector<1x1x1x16x16xf32>
    %944 = vector.shape_cast %943 : vector<1x1x1x16x16xf32> to vector<16x16xf32>
    %945 = vector.shape_cast %942 : vector<16x16xf32> to vector<1x1x1x16x16xf32>
    tpu.vector_store %arg8[%c0_802, %c4_803, %c2_804, %c0_805, %c0_806], %945 {strides = array<i32>} : memref<1x8x4x16x16xf32, #tpu.memory_space<vmem>>, vector<1x1x1x16x16xf32>,
    %c0_807 = arith.constant 0 : index
    %c4_808 = arith.constant 4 : index
    %c3_809 = arith.constant 3 : index
    %c0_810 = arith.constant 0 : index
    %c0_811 = arith.constant 0 : index
    %946 = vector.load %arg8[%c0_807, %c4_808, %c3_809, %c0_810, %c0_811] : memref<1x8x4x16x16xf32, #tpu.memory_space<vmem>>, vector<1x1x1x16x16xf32>
    %947 = vector.shape_cast %946 : vector<1x1x1x16x16xf32> to vector<16x16xf32>
    %948 = vector.shape_cast %916 : vector<16x16xf32> to vector<1x1x1x16x16xf32>
    tpu.vector_store %arg8[%c0_807, %c4_808, %c3_809, %c0_810, %c0_811], %948 {strides = array<i32>} : memref<1x8x4x16x16xf32, #tpu.memory_space<vmem>>, vector<1x1x1x16x16xf32>,
    %cst_812 = arith.constant 4.000000e+00 : f32
    %949 = vector.broadcast %cst_812 : f32 to vector<16x16xf32>
    %950 = arith.cmpf oeq, %841, %949 : vector<16x16xf32>
    %cst_813 = arith.constant 5.000000e-01 : f32
    %951 = vector.broadcast %cst_813 : f32 to vector<16x16xf32>
    %952 = arith.cmpf olt, %916, %951 : vector<16x16xf32>
    %953 = arith.andi %950, %952 : vector<16x16xi1>
    %cst_814 = arith.constant -1.000000e+00 : f32
    %954 = vector.broadcast %cst_814 : f32 to vector<16x16xf32>
    %955 = arith.select %953, %954, %841 : vector<16x16xi1>, vector<16x16xf32>
    %cst_815 = arith.constant 0.000000e+00 : f32
    %956 = vector.broadcast %cst_815 : f32 to vector<4x16x16xf32>
    %c7_816 = arith.constant 7 : index
    %c0_817 = arith.constant 0 : index
    %c0_818 = arith.constant 0 : index
    %957 = vector.load %arg9[%c7_816, %c0_817, %c0_818] : memref<8x16x16xf32, #tpu.memory_space<vmem>>, vector<1x16x16xf32>
    %958 = vector.shape_cast %957 : vector<1x16x16xf32> to vector<16x16xf32>
    %cst_819 = arith.constant 5.000000e+00 : f32
    %959 = vector.broadcast %cst_819 : f32 to vector<16x16xf32>
    %960 = arith.cmpf oeq, %958, %959 : vector<16x16xf32>
    %c0_820 = arith.constant 0 : index
    %c7_821 = arith.constant 7 : index
    %c0_822 = arith.constant 0 : index
    %c0_823 = arith.constant 0 : index
    %c0_824 = arith.constant 0 : index
    %961 = vector.load %arg2[%c0_820, %c7_821, %c0_822, %c0_823, %c0_824] : memref<1x8x4x16x16xf32, #tpu.memory_space<vmem>>, vector<1x1x4x16x16xf32>
    %962 = vector.shape_cast %961 : vector<1x1x4x16x16xf32> to vector<4x16x16xf32>
    %963 = vector.shape_cast %960 : vector<16x16xi1> to vector<1x16x16xi1>
    %964 = vector.broadcast %963 : vector<1x16x16xi1> to vector<4x16x16xi1>
    %965 = arith.select %964, %962, %956 : vector<4x16x16xi1>, vector<4x16x16xf32>
    %c6_825 = arith.constant 6 : index
    %c0_826 = arith.constant 0 : index
    %c0_827 = arith.constant 0 : index
    %966 = vector.load %arg9[%c6_825, %c0_826, %c0_827] : memref<8x16x16xf32, #tpu.memory_space<vmem>>, vector<1x16x16xf32>
    %967 = vector.shape_cast %966 : vector<1x16x16xf32> to vector<16x16xf32>
    %cst_828 = arith.constant 5.000000e+00 : f32
    %968 = vector.broadcast %cst_828 : f32 to vector<16x16xf32>
    %969 = arith.cmpf oeq, %967, %968 : vector<16x16xf32>
    %c0_829 = arith.constant 0 : index
    %c6_830 = arith.constant 6 : index
    %c0_831 = arith.constant 0 : index
    %c0_832 = arith.constant 0 : index
    %c0_833 = arith.constant 0 : index
    %970 = vector.load %arg2[%c0_829, %c6_830, %c0_831, %c0_832, %c0_833] : memref<1x8x4x16x16xf32, #tpu.memory_space<vmem>>, vector<1x1x4x16x16xf32>
    %971 = vector.shape_cast %970 : vector<1x1x4x16x16xf32> to vector<4x16x16xf32>
    %972 = vector.shape_cast %969 : vector<16x16xi1> to vector<1x16x16xi1>
    %973 = vector.broadcast %972 : vector<1x16x16xi1> to vector<4x16x16xi1>
    %974 = arith.select %973, %971, %965 : vector<4x16x16xi1>, vector<4x16x16xf32>
    %c5_834 = arith.constant 5 : index
    %c0_835 = arith.constant 0 : index
    %c0_836 = arith.constant 0 : index
    %975 = vector.load %arg9[%c5_834, %c0_835, %c0_836] : memref<8x16x16xf32, #tpu.memory_space<vmem>>, vector<1x16x16xf32>
    %976 = vector.shape_cast %975 : vector<1x16x16xf32> to vector<16x16xf32>
    %cst_837 = arith.constant 5.000000e+00 : f32
    %977 = vector.broadcast %cst_837 : f32 to vector<16x16xf32>
    %978 = arith.cmpf oeq, %976, %977 : vector<16x16xf32>
    %c0_838 = arith.constant 0 : index
    %c5_839 = arith.constant 5 : index
    %c0_840 = arith.constant 0 : index
    %c0_841 = arith.constant 0 : index
    %c0_842 = arith.constant 0 : index
    %979 = vector.load %arg2[%c0_838, %c5_839, %c0_840, %c0_841, %c0_842] : memref<1x8x4x16x16xf32, #tpu.memory_space<vmem>>, vector<1x1x4x16x16xf32>
    %980 = vector.shape_cast %979 : vector<1x1x4x16x16xf32> to vector<4x16x16xf32>
    %981 = vector.shape_cast %978 : vector<16x16xi1> to vector<1x16x16xi1>
    %982 = vector.broadcast %981 : vector<1x16x16xi1> to vector<4x16x16xi1>
    %983 = arith.select %982, %980, %974 : vector<4x16x16xi1>, vector<4x16x16xf32>
    %c4_843 = arith.constant 4 : index
    %c0_844 = arith.constant 0 : index
    %c0_845 = arith.constant 0 : index
    %984 = vector.load %arg9[%c4_843, %c0_844, %c0_845] : memref<8x16x16xf32, #tpu.memory_space<vmem>>, vector<1x16x16xf32>
    %985 = vector.shape_cast %984 : vector<1x16x16xf32> to vector<16x16xf32>
    %cst_846 = arith.constant 5.000000e+00 : f32
    %986 = vector.broadcast %cst_846 : f32 to vector<16x16xf32>
    %987 = arith.cmpf oeq, %985, %986 : vector<16x16xf32>
    %c0_847 = arith.constant 0 : index
    %c4_848 = arith.constant 4 : index
    %c0_849 = arith.constant 0 : index
    %c0_850 = arith.constant 0 : index
    %c0_851 = arith.constant 0 : index
    %988 = vector.load %arg2[%c0_847, %c4_848, %c0_849, %c0_850, %c0_851] : memref<1x8x4x16x16xf32, #tpu.memory_space<vmem>>, vector<1x1x4x16x16xf32>
    %989 = vector.shape_cast %988 : vector<1x1x4x16x16xf32> to vector<4x16x16xf32>
    %990 = vector.shape_cast %987 : vector<16x16xi1> to vector<1x16x16xi1>
    %991 = vector.broadcast %990 : vector<1x16x16xi1> to vector<4x16x16xi1>
    %992 = arith.select %991, %989, %983 : vector<4x16x16xi1>, vector<4x16x16xf32>
    %c3_852 = arith.constant 3 : index
    %c0_853 = arith.constant 0 : index
    %c0_854 = arith.constant 0 : index
    %993 = vector.load %arg9[%c3_852, %c0_853, %c0_854] : memref<8x16x16xf32, #tpu.memory_space<vmem>>, vector<1x16x16xf32>
    %994 = vector.shape_cast %993 : vector<1x16x16xf32> to vector<16x16xf32>
    %cst_855 = arith.constant 5.000000e+00 : f32
    %995 = vector.broadcast %cst_855 : f32 to vector<16x16xf32>
    %996 = arith.cmpf oeq, %994, %995 : vector<16x16xf32>
    %c0_856 = arith.constant 0 : index
    %c3_857 = arith.constant 3 : index
    %c0_858 = arith.constant 0 : index
    %c0_859 = arith.constant 0 : index
    %c0_860 = arith.constant 0 : index
    %997 = vector.load %arg2[%c0_856, %c3_857, %c0_858, %c0_859, %c0_860] : memref<1x8x4x16x16xf32, #tpu.memory_space<vmem>>, vector<1x1x4x16x16xf32>
    %998 = vector.shape_cast %997 : vector<1x1x4x16x16xf32> to vector<4x16x16xf32>
    %999 = vector.shape_cast %996 : vector<16x16xi1> to vector<1x16x16xi1>
    %1000 = vector.broadcast %999 : vector<1x16x16xi1> to vector<4x16x16xi1>
    %1001 = arith.select %1000, %998, %992 : vector<4x16x16xi1>, vector<4x16x16xf32>
    %c2_861 = arith.constant 2 : index
    %c0_862 = arith.constant 0 : index
    %c0_863 = arith.constant 0 : index
    %1002 = vector.load %arg9[%c2_861, %c0_862, %c0_863] : memref<8x16x16xf32, #tpu.memory_space<vmem>>, vector<1x16x16xf32>
    %1003 = vector.shape_cast %1002 : vector<1x16x16xf32> to vector<16x16xf32>
    %cst_864 = arith.constant 5.000000e+00 : f32
    %1004 = vector.broadcast %cst_864 : f32 to vector<16x16xf32>
    %1005 = arith.cmpf oeq, %1003, %1004 : vector<16x16xf32>
    %c0_865 = arith.constant 0 : index
    %c2_866 = arith.constant 2 : index
    %c0_867 = arith.constant 0 : index
    %c0_868 = arith.constant 0 : index
    %c0_869 = arith.constant 0 : index
    %1006 = vector.load %arg2[%c0_865, %c2_866, %c0_867, %c0_868, %c0_869] : memref<1x8x4x16x16xf32, #tpu.memory_space<vmem>>, vector<1x1x4x16x16xf32>
    %1007 = vector.shape_cast %1006 : vector<1x1x4x16x16xf32> to vector<4x16x16xf32>
    %1008 = vector.shape_cast %1005 : vector<16x16xi1> to vector<1x16x16xi1>
    %1009 = vector.broadcast %1008 : vector<1x16x16xi1> to vector<4x16x16xi1>
    %1010 = arith.select %1009, %1007, %1001 : vector<4x16x16xi1>, vector<4x16x16xf32>
    %c1_870 = arith.constant 1 : index
    %c0_871 = arith.constant 0 : index
    %c0_872 = arith.constant 0 : index
    %1011 = vector.load %arg9[%c1_870, %c0_871, %c0_872] : memref<8x16x16xf32, #tpu.memory_space<vmem>>, vector<1x16x16xf32>
    %1012 = vector.shape_cast %1011 : vector<1x16x16xf32> to vector<16x16xf32>
    %cst_873 = arith.constant 5.000000e+00 : f32
    %1013 = vector.broadcast %cst_873 : f32 to vector<16x16xf32>
    %1014 = arith.cmpf oeq, %1012, %1013 : vector<16x16xf32>
    %c0_874 = arith.constant 0 : index
    %c1_875 = arith.constant 1 : index
    %c0_876 = arith.constant 0 : index
    %c0_877 = arith.constant 0 : index
    %c0_878 = arith.constant 0 : index
    %1015 = vector.load %arg2[%c0_874, %c1_875, %c0_876, %c0_877, %c0_878] : memref<1x8x4x16x16xf32, #tpu.memory_space<vmem>>, vector<1x1x4x16x16xf32>
    %1016 = vector.shape_cast %1015 : vector<1x1x4x16x16xf32> to vector<4x16x16xf32>
    %1017 = vector.shape_cast %1014 : vector<16x16xi1> to vector<1x16x16xi1>
    %1018 = vector.broadcast %1017 : vector<1x16x16xi1> to vector<4x16x16xi1>
    %1019 = arith.select %1018, %1016, %1010 : vector<4x16x16xi1>, vector<4x16x16xf32>
    %c0_879 = arith.constant 0 : index
    %c0_880 = arith.constant 0 : index
    %c0_881 = arith.constant 0 : index
    %1020 = vector.load %arg9[%c0_879, %c0_880, %c0_881] : memref<8x16x16xf32, #tpu.memory_space<vmem>>, vector<1x16x16xf32>
    %1021 = vector.shape_cast %1020 : vector<1x16x16xf32> to vector<16x16xf32>
    %cst_882 = arith.constant 5.000000e+00 : f32
    %1022 = vector.broadcast %cst_882 : f32 to vector<16x16xf32>
    %1023 = arith.cmpf oeq, %1021, %1022 : vector<16x16xf32>
    %c0_883 = arith.constant 0 : index
    %c0_884 = arith.constant 0 : index
    %c0_885 = arith.constant 0 : index
    %c0_886 = arith.constant 0 : index
    %c0_887 = arith.constant 0 : index
    %1024 = vector.load %arg2[%c0_883, %c0_884, %c0_885, %c0_886, %c0_887] : memref<1x8x4x16x16xf32, #tpu.memory_space<vmem>>, vector<1x1x4x16x16xf32>
    %1025 = vector.shape_cast %1024 : vector<1x1x4x16x16xf32> to vector<4x16x16xf32>
    %1026 = vector.shape_cast %1023 : vector<16x16xi1> to vector<1x16x16xi1>
    %1027 = vector.broadcast %1026 : vector<1x16x16xi1> to vector<4x16x16xi1>
    %1028 = arith.select %1027, %1025, %1019 : vector<4x16x16xi1>, vector<4x16x16xf32>
    %1029 = vector.extract_strided_slice %1028 {offsets = [3, 0, 0], sizes = [1, 16, 16], strides = [1, 1, 1]} : vector<4x16x16xf32> to vector<1x16x16xf32>
    %1030 = vector.shape_cast %1029 : vector<1x16x16xf32> to vector<16x16xf32>
    %cst_888 = arith.constant 1.000000e+00 : f32
    %1031 = vector.broadcast %cst_888 : f32 to vector<16x16xf32>
    %1032 = arith.subf %1031, %1030 : vector<16x16xf32>
    %1033 = vector.extract_strided_slice %1028 {offsets = [0, 0, 0], sizes = [1, 16, 16], strides = [1, 1, 1]} : vector<4x16x16xf32> to vector<1x16x16xf32>
    %1034 = vector.shape_cast %1033 : vector<1x16x16xf32> to vector<16x16xf32>
    %1035 = arith.mulf %1034, %1030 : vector<16x16xf32>
    %cst_889 = arith.constant 1.000000e+00 : f32
    %1036 = vector.broadcast %cst_889 : f32 to vector<16x16xf32>
    %1037 = arith.mulf %1036, %1032 : vector<16x16xf32>
    %1038 = arith.addf %1035, %1037 : vector<16x16xf32>
    %c0_890 = arith.constant 0 : index
    %c5_891 = arith.constant 5 : index
    %c0_892 = arith.constant 0 : index
    %c0_893 = arith.constant 0 : index
    %c0_894 = arith.constant 0 : index
    %1039 = vector.load %arg8[%c0_890, %c5_891, %c0_892, %c0_893, %c0_894] : memref<1x8x4x16x16xf32, #tpu.memory_space<vmem>>, vector<1x1x1x16x16xf32>
    %1040 = vector.shape_cast %1039 : vector<1x1x1x16x16xf32> to vector<16x16xf32>
    %1041 = vector.shape_cast %1038 : vector<16x16xf32> to vector<1x1x1x16x16xf32>
    tpu.vector_store %arg8[%c0_890, %c5_891, %c0_892, %c0_893, %c0_894], %1041 {strides = array<i32>} : memref<1x8x4x16x16xf32, #tpu.memory_space<vmem>>, vector<1x1x1x16x16xf32>,
    %1042 = vector.extract_strided_slice %1028 {offsets = [1, 0, 0], sizes = [1, 16, 16], strides = [1, 1, 1]} : vector<4x16x16xf32> to vector<1x16x16xf32>
    %1043 = vector.shape_cast %1042 : vector<1x16x16xf32> to vector<16x16xf32>
    %1044 = arith.mulf %1043, %1030 : vector<16x16xf32>
    %cst_895 = arith.constant 1.000000e+00 : f32
    %1045 = vector.broadcast %cst_895 : f32 to vector<16x16xf32>
    %1046 = arith.mulf %1045, %1032 : vector<16x16xf32>
    %1047 = arith.addf %1044, %1046 : vector<16x16xf32>
    %c0_896 = arith.constant 0 : index
    %c5_897 = arith.constant 5 : index
    %c1_898 = arith.constant 1 : index
    %c0_899 = arith.constant 0 : index
    %c0_900 = arith.constant 0 : index
    %1048 = vector.load %arg8[%c0_896, %c5_897, %c1_898, %c0_899, %c0_900] : memref<1x8x4x16x16xf32, #tpu.memory_space<vmem>>, vector<1x1x1x16x16xf32>
    %1049 = vector.shape_cast %1048 : vector<1x1x1x16x16xf32> to vector<16x16xf32>
    %1050 = vector.shape_cast %1047 : vector<16x16xf32> to vector<1x1x1x16x16xf32>
    tpu.vector_store %arg8[%c0_896, %c5_897, %c1_898, %c0_899, %c0_900], %1050 {strides = array<i32>} : memref<1x8x4x16x16xf32, #tpu.memory_space<vmem>>, vector<1x1x1x16x16xf32>,
    %1051 = vector.extract_strided_slice %1028 {offsets = [2, 0, 0], sizes = [1, 16, 16], strides = [1, 1, 1]} : vector<4x16x16xf32> to vector<1x16x16xf32>
    %1052 = vector.shape_cast %1051 : vector<1x16x16xf32> to vector<16x16xf32>
    %1053 = arith.mulf %1052, %1030 : vector<16x16xf32>
    %cst_901 = arith.constant 1.000000e+00 : f32
    %1054 = vector.broadcast %cst_901 : f32 to vector<16x16xf32>
    %1055 = arith.mulf %1054, %1032 : vector<16x16xf32>
    %1056 = arith.addf %1053, %1055 : vector<16x16xf32>
    %c0_902 = arith.constant 0 : index
    %c5_903 = arith.constant 5 : index
    %c2_904 = arith.constant 2 : index
    %c0_905 = arith.constant 0 : index
    %c0_906 = arith.constant 0 : index
    %1057 = vector.load %arg8[%c0_902, %c5_903, %c2_904, %c0_905, %c0_906] : memref<1x8x4x16x16xf32, #tpu.memory_space<vmem>>, vector<1x1x1x16x16xf32>
    %1058 = vector.shape_cast %1057 : vector<1x1x1x16x16xf32> to vector<16x16xf32>
    %1059 = vector.shape_cast %1056 : vector<16x16xf32> to vector<1x1x1x16x16xf32>
    tpu.vector_store %arg8[%c0_902, %c5_903, %c2_904, %c0_905, %c0_906], %1059 {strides = array<i32>} : memref<1x8x4x16x16xf32, #tpu.memory_space<vmem>>, vector<1x1x1x16x16xf32>,
    %c0_907 = arith.constant 0 : index
    %c5_908 = arith.constant 5 : index
    %c3_909 = arith.constant 3 : index
    %c0_910 = arith.constant 0 : index
    %c0_911 = arith.constant 0 : index
    %1060 = vector.load %arg8[%c0_907, %c5_908, %c3_909, %c0_910, %c0_911] : memref<1x8x4x16x16xf32, #tpu.memory_space<vmem>>, vector<1x1x1x16x16xf32>
    %1061 = vector.shape_cast %1060 : vector<1x1x1x16x16xf32> to vector<16x16xf32>
    %1062 = vector.shape_cast %1030 : vector<16x16xf32> to vector<1x1x1x16x16xf32>
    tpu.vector_store %arg8[%c0_907, %c5_908, %c3_909, %c0_910, %c0_911], %1062 {strides = array<i32>} : memref<1x8x4x16x16xf32, #tpu.memory_space<vmem>>, vector<1x1x1x16x16xf32>,
    %cst_912 = arith.constant 5.000000e+00 : f32
    %1063 = vector.broadcast %cst_912 : f32 to vector<16x16xf32>
    %1064 = arith.cmpf oeq, %955, %1063 : vector<16x16xf32>
    %cst_913 = arith.constant 5.000000e-01 : f32
    %1065 = vector.broadcast %cst_913 : f32 to vector<16x16xf32>
    %1066 = arith.cmpf olt, %1030, %1065 : vector<16x16xf32>
    %1067 = arith.andi %1064, %1066 : vector<16x16xi1>
    %cst_914 = arith.constant -1.000000e+00 : f32
    %1068 = vector.broadcast %cst_914 : f32 to vector<16x16xf32>
    %1069 = arith.select %1067, %1068, %955 : vector<16x16xi1>, vector<16x16xf32>
    %cst_915 = arith.constant 0.000000e+00 : f32
    %1070 = vector.broadcast %cst_915 : f32 to vector<4x16x16xf32>
    %c7_916 = arith.constant 7 : index
    %c0_917 = arith.constant 0 : index
    %c0_918 = arith.constant 0 : index
    %1071 = vector.load %arg9[%c7_916, %c0_917, %c0_918] : memref<8x16x16xf32, #tpu.memory_space<vmem>>, vector<1x16x16xf32>
    %1072 = vector.shape_cast %1071 : vector<1x16x16xf32> to vector<16x16xf32>
    %cst_919 = arith.constant 6.000000e+00 : f32
    %1073 = vector.broadcast %cst_919 : f32 to vector<16x16xf32>
    %1074 = arith.cmpf oeq, %1072, %1073 : vector<16x16xf32>
    %c0_920 = arith.constant 0 : index
    %c7_921 = arith.constant 7 : index
    %c0_922 = arith.constant 0 : index
    %c0_923 = arith.constant 0 : index
    %c0_924 = arith.constant 0 : index
    %1075 = vector.load %arg2[%c0_920, %c7_921, %c0_922, %c0_923, %c0_924] : memref<1x8x4x16x16xf32, #tpu.memory_space<vmem>>, vector<1x1x4x16x16xf32>
    %1076 = vector.shape_cast %1075 : vector<1x1x4x16x16xf32> to vector<4x16x16xf32>
    %1077 = vector.shape_cast %1074 : vector<16x16xi1> to vector<1x16x16xi1>
    %1078 = vector.broadcast %1077 : vector<1x16x16xi1> to vector<4x16x16xi1>
    %1079 = arith.select %1078, %1076, %1070 : vector<4x16x16xi1>, vector<4x16x16xf32>
    %c6_925 = arith.constant 6 : index
    %c0_926 = arith.constant 0 : index
    %c0_927 = arith.constant 0 : index
    %1080 = vector.load %arg9[%c6_925, %c0_926, %c0_927] : memref<8x16x16xf32, #tpu.memory_space<vmem>>, vector<1x16x16xf32>
    %1081 = vector.shape_cast %1080 : vector<1x16x16xf32> to vector<16x16xf32>
    %cst_928 = arith.constant 6.000000e+00 : f32
    %1082 = vector.broadcast %cst_928 : f32 to vector<16x16xf32>
    %1083 = arith.cmpf oeq, %1081, %1082 : vector<16x16xf32>
    %c0_929 = arith.constant 0 : index
    %c6_930 = arith.constant 6 : index
    %c0_931 = arith.constant 0 : index
    %c0_932 = arith.constant 0 : index
    %c0_933 = arith.constant 0 : index
    %1084 = vector.load %arg2[%c0_929, %c6_930, %c0_931, %c0_932, %c0_933] : memref<1x8x4x16x16xf32, #tpu.memory_space<vmem>>, vector<1x1x4x16x16xf32>
    %1085 = vector.shape_cast %1084 : vector<1x1x4x16x16xf32> to vector<4x16x16xf32>
    %1086 = vector.shape_cast %1083 : vector<16x16xi1> to vector<1x16x16xi1>
    %1087 = vector.broadcast %1086 : vector<1x16x16xi1> to vector<4x16x16xi1>
    %1088 = arith.select %1087, %1085, %1079 : vector<4x16x16xi1>, vector<4x16x16xf32>
    %c5_934 = arith.constant 5 : index
    %c0_935 = arith.constant 0 : index
    %c0_936 = arith.constant 0 : index
    %1089 = vector.load %arg9[%c5_934, %c0_935, %c0_936] : memref<8x16x16xf32, #tpu.memory_space<vmem>>, vector<1x16x16xf32>
    %1090 = vector.shape_cast %1089 : vector<1x16x16xf32> to vector<16x16xf32>
    %cst_937 = arith.constant 6.000000e+00 : f32
    %1091 = vector.broadcast %cst_937 : f32 to vector<16x16xf32>
    %1092 = arith.cmpf oeq, %1090, %1091 : vector<16x16xf32>
    %c0_938 = arith.constant 0 : index
    %c5_939 = arith.constant 5 : index
    %c0_940 = arith.constant 0 : index
    %c0_941 = arith.constant 0 : index
    %c0_942 = arith.constant 0 : index
    %1093 = vector.load %arg2[%c0_938, %c5_939, %c0_940, %c0_941, %c0_942] : memref<1x8x4x16x16xf32, #tpu.memory_space<vmem>>, vector<1x1x4x16x16xf32>
    %1094 = vector.shape_cast %1093 : vector<1x1x4x16x16xf32> to vector<4x16x16xf32>
    %1095 = vector.shape_cast %1092 : vector<16x16xi1> to vector<1x16x16xi1>
    %1096 = vector.broadcast %1095 : vector<1x16x16xi1> to vector<4x16x16xi1>
    %1097 = arith.select %1096, %1094, %1088 : vector<4x16x16xi1>, vector<4x16x16xf32>
    %c4_943 = arith.constant 4 : index
    %c0_944 = arith.constant 0 : index
    %c0_945 = arith.constant 0 : index
    %1098 = vector.load %arg9[%c4_943, %c0_944, %c0_945] : memref<8x16x16xf32, #tpu.memory_space<vmem>>, vector<1x16x16xf32>
    %1099 = vector.shape_cast %1098 : vector<1x16x16xf32> to vector<16x16xf32>
    %cst_946 = arith.constant 6.000000e+00 : f32
    %1100 = vector.broadcast %cst_946 : f32 to vector<16x16xf32>
    %1101 = arith.cmpf oeq, %1099, %1100 : vector<16x16xf32>
    %c0_947 = arith.constant 0 : index
    %c4_948 = arith.constant 4 : index
    %c0_949 = arith.constant 0 : index
    %c0_950 = arith.constant 0 : index
    %c0_951 = arith.constant 0 : index
    %1102 = vector.load %arg2[%c0_947, %c4_948, %c0_949, %c0_950, %c0_951] : memref<1x8x4x16x16xf32, #tpu.memory_space<vmem>>, vector<1x1x4x16x16xf32>
    %1103 = vector.shape_cast %1102 : vector<1x1x4x16x16xf32> to vector<4x16x16xf32>
    %1104 = vector.shape_cast %1101 : vector<16x16xi1> to vector<1x16x16xi1>
    %1105 = vector.broadcast %1104 : vector<1x16x16xi1> to vector<4x16x16xi1>
    %1106 = arith.select %1105, %1103, %1097 : vector<4x16x16xi1>, vector<4x16x16xf32>
    %c3_952 = arith.constant 3 : index
    %c0_953 = arith.constant 0 : index
    %c0_954 = arith.constant 0 : index
    %1107 = vector.load %arg9[%c3_952, %c0_953, %c0_954] : memref<8x16x16xf32, #tpu.memory_space<vmem>>, vector<1x16x16xf32>
    %1108 = vector.shape_cast %1107 : vector<1x16x16xf32> to vector<16x16xf32>
    %cst_955 = arith.constant 6.000000e+00 : f32
    %1109 = vector.broadcast %cst_955 : f32 to vector<16x16xf32>
    %1110 = arith.cmpf oeq, %1108, %1109 : vector<16x16xf32>
    %c0_956 = arith.constant 0 : index
    %c3_957 = arith.constant 3 : index
    %c0_958 = arith.constant 0 : index
    %c0_959 = arith.constant 0 : index
    %c0_960 = arith.constant 0 : index
    %1111 = vector.load %arg2[%c0_956, %c3_957, %c0_958, %c0_959, %c0_960] : memref<1x8x4x16x16xf32, #tpu.memory_space<vmem>>, vector<1x1x4x16x16xf32>
    %1112 = vector.shape_cast %1111 : vector<1x1x4x16x16xf32> to vector<4x16x16xf32>
    %1113 = vector.shape_cast %1110 : vector<16x16xi1> to vector<1x16x16xi1>
    %1114 = vector.broadcast %1113 : vector<1x16x16xi1> to vector<4x16x16xi1>
    %1115 = arith.select %1114, %1112, %1106 : vector<4x16x16xi1>, vector<4x16x16xf32>
    %c2_961 = arith.constant 2 : index
    %c0_962 = arith.constant 0 : index
    %c0_963 = arith.constant 0 : index
    %1116 = vector.load %arg9[%c2_961, %c0_962, %c0_963] : memref<8x16x16xf32, #tpu.memory_space<vmem>>, vector<1x16x16xf32>
    %1117 = vector.shape_cast %1116 : vector<1x16x16xf32> to vector<16x16xf32>
    %cst_964 = arith.constant 6.000000e+00 : f32
    %1118 = vector.broadcast %cst_964 : f32 to vector<16x16xf32>
    %1119 = arith.cmpf oeq, %1117, %1118 : vector<16x16xf32>
    %c0_965 = arith.constant 0 : index
    %c2_966 = arith.constant 2 : index
    %c0_967 = arith.constant 0 : index
    %c0_968 = arith.constant 0 : index
    %c0_969 = arith.constant 0 : index
    %1120 = vector.load %arg2[%c0_965, %c2_966, %c0_967, %c0_968, %c0_969] : memref<1x8x4x16x16xf32, #tpu.memory_space<vmem>>, vector<1x1x4x16x16xf32>
    %1121 = vector.shape_cast %1120 : vector<1x1x4x16x16xf32> to vector<4x16x16xf32>
    %1122 = vector.shape_cast %1119 : vector<16x16xi1> to vector<1x16x16xi1>
    %1123 = vector.broadcast %1122 : vector<1x16x16xi1> to vector<4x16x16xi1>
    %1124 = arith.select %1123, %1121, %1115 : vector<4x16x16xi1>, vector<4x16x16xf32>
    %c1_970 = arith.constant 1 : index
    %c0_971 = arith.constant 0 : index
    %c0_972 = arith.constant 0 : index
    %1125 = vector.load %arg9[%c1_970, %c0_971, %c0_972] : memref<8x16x16xf32, #tpu.memory_space<vmem>>, vector<1x16x16xf32>
    %1126 = vector.shape_cast %1125 : vector<1x16x16xf32> to vector<16x16xf32>
    %cst_973 = arith.constant 6.000000e+00 : f32
    %1127 = vector.broadcast %cst_973 : f32 to vector<16x16xf32>
    %1128 = arith.cmpf oeq, %1126, %1127 : vector<16x16xf32>
    %c0_974 = arith.constant 0 : index
    %c1_975 = arith.constant 1 : index
    %c0_976 = arith.constant 0 : index
    %c0_977 = arith.constant 0 : index
    %c0_978 = arith.constant 0 : index
    %1129 = vector.load %arg2[%c0_974, %c1_975, %c0_976, %c0_977, %c0_978] : memref<1x8x4x16x16xf32, #tpu.memory_space<vmem>>, vector<1x1x4x16x16xf32>
    %1130 = vector.shape_cast %1129 : vector<1x1x4x16x16xf32> to vector<4x16x16xf32>
    %1131 = vector.shape_cast %1128 : vector<16x16xi1> to vector<1x16x16xi1>
    %1132 = vector.broadcast %1131 : vector<1x16x16xi1> to vector<4x16x16xi1>
    %1133 = arith.select %1132, %1130, %1124 : vector<4x16x16xi1>, vector<4x16x16xf32>
    %c0_979 = arith.constant 0 : index
    %c0_980 = arith.constant 0 : index
    %c0_981 = arith.constant 0 : index
    %1134 = vector.load %arg9[%c0_979, %c0_980, %c0_981] : memref<8x16x16xf32, #tpu.memory_space<vmem>>, vector<1x16x16xf32>
    %1135 = vector.shape_cast %1134 : vector<1x16x16xf32> to vector<16x16xf32>
    %cst_982 = arith.constant 6.000000e+00 : f32
    %1136 = vector.broadcast %cst_982 : f32 to vector<16x16xf32>
    %1137 = arith.cmpf oeq, %1135, %1136 : vector<16x16xf32>
    %c0_983 = arith.constant 0 : index
    %c0_984 = arith.constant 0 : index
    %c0_985 = arith.constant 0 : index
    %c0_986 = arith.constant 0 : index
    %c0_987 = arith.constant 0 : index
    %1138 = vector.load %arg2[%c0_983, %c0_984, %c0_985, %c0_986, %c0_987] : memref<1x8x4x16x16xf32, #tpu.memory_space<vmem>>, vector<1x1x4x16x16xf32>
    %1139 = vector.shape_cast %1138 : vector<1x1x4x16x16xf32> to vector<4x16x16xf32>
    %1140 = vector.shape_cast %1137 : vector<16x16xi1> to vector<1x16x16xi1>
    %1141 = vector.broadcast %1140 : vector<1x16x16xi1> to vector<4x16x16xi1>
    %1142 = arith.select %1141, %1139, %1133 : vector<4x16x16xi1>, vector<4x16x16xf32>
    %1143 = vector.extract_strided_slice %1142 {offsets = [3, 0, 0], sizes = [1, 16, 16], strides = [1, 1, 1]} : vector<4x16x16xf32> to vector<1x16x16xf32>
    %1144 = vector.shape_cast %1143 : vector<1x16x16xf32> to vector<16x16xf32>
    %cst_988 = arith.constant 1.000000e+00 : f32
    %1145 = vector.broadcast %cst_988 : f32 to vector<16x16xf32>
    %1146 = arith.subf %1145, %1144 : vector<16x16xf32>
    %1147 = vector.extract_strided_slice %1142 {offsets = [0, 0, 0], sizes = [1, 16, 16], strides = [1, 1, 1]} : vector<4x16x16xf32> to vector<1x16x16xf32>
    %1148 = vector.shape_cast %1147 : vector<1x16x16xf32> to vector<16x16xf32>
    %1149 = arith.mulf %1148, %1144 : vector<16x16xf32>
    %cst_989 = arith.constant 1.000000e+00 : f32
    %1150 = vector.broadcast %cst_989 : f32 to vector<16x16xf32>
    %1151 = arith.mulf %1150, %1146 : vector<16x16xf32>
    %1152 = arith.addf %1149, %1151 : vector<16x16xf32>
    %c0_990 = arith.constant 0 : index
    %c6_991 = arith.constant 6 : index
    %c0_992 = arith.constant 0 : index
    %c0_993 = arith.constant 0 : index
    %c0_994 = arith.constant 0 : index
    %1153 = vector.load %arg8[%c0_990, %c6_991, %c0_992, %c0_993, %c0_994] : memref<1x8x4x16x16xf32, #tpu.memory_space<vmem>>, vector<1x1x1x16x16xf32>
    %1154 = vector.shape_cast %1153 : vector<1x1x1x16x16xf32> to vector<16x16xf32>
    %1155 = vector.shape_cast %1152 : vector<16x16xf32> to vector<1x1x1x16x16xf32>
    tpu.vector_store %arg8[%c0_990, %c6_991, %c0_992, %c0_993, %c0_994], %1155 {strides = array<i32>} : memref<1x8x4x16x16xf32, #tpu.memory_space<vmem>>, vector<1x1x1x16x16xf32>,
    %1156 = vector.extract_strided_slice %1142 {offsets = [1, 0, 0], sizes = [1, 16, 16], strides = [1, 1, 1]} : vector<4x16x16xf32> to vector<1x16x16xf32>
    %1157 = vector.shape_cast %1156 : vector<1x16x16xf32> to vector<16x16xf32>
    %1158 = arith.mulf %1157, %1144 : vector<16x16xf32>
    %cst_995 = arith.constant 1.000000e+00 : f32
    %1159 = vector.broadcast %cst_995 : f32 to vector<16x16xf32>
    %1160 = arith.mulf %1159, %1146 : vector<16x16xf32>
    %1161 = arith.addf %1158, %1160 : vector<16x16xf32>
    %c0_996 = arith.constant 0 : index
    %c6_997 = arith.constant 6 : index
    %c1_998 = arith.constant 1 : index
    %c0_999 = arith.constant 0 : index
    %c0_1000 = arith.constant 0 : index
    %1162 = vector.load %arg8[%c0_996, %c6_997, %c1_998, %c0_999, %c0_1000] : memref<1x8x4x16x16xf32, #tpu.memory_space<vmem>>, vector<1x1x1x16x16xf32>
    %1163 = vector.shape_cast %1162 : vector<1x1x1x16x16xf32> to vector<16x16xf32>
    %1164 = vector.shape_cast %1161 : vector<16x16xf32> to vector<1x1x1x16x16xf32>
    tpu.vector_store %arg8[%c0_996, %c6_997, %c1_998, %c0_999, %c0_1000], %1164 {strides = array<i32>} : memref<1x8x4x16x16xf32, #tpu.memory_space<vmem>>, vector<1x1x1x16x16xf32>,
    %1165 = vector.extract_strided_slice %1142 {offsets = [2, 0, 0], sizes = [1, 16, 16], strides = [1, 1, 1]} : vector<4x16x16xf32> to vector<1x16x16xf32>
    %1166 = vector.shape_cast %1165 : vector<1x16x16xf32> to vector<16x16xf32>
    %1167 = arith.mulf %1166, %1144 : vector<16x16xf32>
    %cst_1001 = arith.constant 1.000000e+00 : f32
    %1168 = vector.broadcast %cst_1001 : f32 to vector<16x16xf32>
    %1169 = arith.mulf %1168, %1146 : vector<16x16xf32>
    %1170 = arith.addf %1167, %1169 : vector<16x16xf32>
    %c0_1002 = arith.constant 0 : index
    %c6_1003 = arith.constant 6 : index
    %c2_1004 = arith.constant 2 : index
    %c0_1005 = arith.constant 0 : index
    %c0_1006 = arith.constant 0 : index
    %1171 = vector.load %arg8[%c0_1002, %c6_1003, %c2_1004, %c0_1005, %c0_1006] : memref<1x8x4x16x16xf32, #tpu.memory_space<vmem>>, vector<1x1x1x16x16xf32>
    %1172 = vector.shape_cast %1171 : vector<1x1x1x16x16xf32> to vector<16x16xf32>
    %1173 = vector.shape_cast %1170 : vector<16x16xf32> to vector<1x1x1x16x16xf32>
    tpu.vector_store %arg8[%c0_1002, %c6_1003, %c2_1004, %c0_1005, %c0_1006], %1173 {strides = array<i32>} : memref<1x8x4x16x16xf32, #tpu.memory_space<vmem>>, vector<1x1x1x16x16xf32>,
    %c0_1007 = arith.constant 0 : index
    %c6_1008 = arith.constant 6 : index
    %c3_1009 = arith.constant 3 : index
    %c0_1010 = arith.constant 0 : index
    %c0_1011 = arith.constant 0 : index
    %1174 = vector.load %arg8[%c0_1007, %c6_1008, %c3_1009, %c0_1010, %c0_1011] : memref<1x8x4x16x16xf32, #tpu.memory_space<vmem>>, vector<1x1x1x16x16xf32>
    %1175 = vector.shape_cast %1174 : vector<1x1x1x16x16xf32> to vector<16x16xf32>
    %1176 = vector.shape_cast %1144 : vector<16x16xf32> to vector<1x1x1x16x16xf32>
    tpu.vector_store %arg8[%c0_1007, %c6_1008, %c3_1009, %c0_1010, %c0_1011], %1176 {strides = array<i32>} : memref<1x8x4x16x16xf32, #tpu.memory_space<vmem>>, vector<1x1x1x16x16xf32>,
    %cst_1012 = arith.constant 6.000000e+00 : f32
    %1177 = vector.broadcast %cst_1012 : f32 to vector<16x16xf32>
    %1178 = arith.cmpf oeq, %1069, %1177 : vector<16x16xf32>
    %cst_1013 = arith.constant 5.000000e-01 : f32
    %1179 = vector.broadcast %cst_1013 : f32 to vector<16x16xf32>
    %1180 = arith.cmpf olt, %1144, %1179 : vector<16x16xf32>
    %1181 = arith.andi %1178, %1180 : vector<16x16xi1>
    %cst_1014 = arith.constant -1.000000e+00 : f32
    %1182 = vector.broadcast %cst_1014 : f32 to vector<16x16xf32>
    %1183 = arith.select %1181, %1182, %1069 : vector<16x16xi1>, vector<16x16xf32>
    %cst_1015 = arith.constant 0.000000e+00 : f32
    %1184 = vector.broadcast %cst_1015 : f32 to vector<4x16x16xf32>
    %c7_1016 = arith.constant 7 : index
    %c0_1017 = arith.constant 0 : index
    %c0_1018 = arith.constant 0 : index
    %1185 = vector.load %arg9[%c7_1016, %c0_1017, %c0_1018] : memref<8x16x16xf32, #tpu.memory_space<vmem>>, vector<1x16x16xf32>
    %1186 = vector.shape_cast %1185 : vector<1x16x16xf32> to vector<16x16xf32>
    %cst_1019 = arith.constant 7.000000e+00 : f32
    %1187 = vector.broadcast %cst_1019 : f32 to vector<16x16xf32>
    %1188 = arith.cmpf oeq, %1186, %1187 : vector<16x16xf32>
    %c0_1020 = arith.constant 0 : index
    %c7_1021 = arith.constant 7 : index
    %c0_1022 = arith.constant 0 : index
    %c0_1023 = arith.constant 0 : index
    %c0_1024 = arith.constant 0 : index
    %1189 = vector.load %arg2[%c0_1020, %c7_1021, %c0_1022, %c0_1023, %c0_1024] : memref<1x8x4x16x16xf32, #tpu.memory_space<vmem>>, vector<1x1x4x16x16xf32>
    %1190 = vector.shape_cast %1189 : vector<1x1x4x16x16xf32> to vector<4x16x16xf32>
    %1191 = vector.shape_cast %1188 : vector<16x16xi1> to vector<1x16x16xi1>
    %1192 = vector.broadcast %1191 : vector<1x16x16xi1> to vector<4x16x16xi1>
    %1193 = arith.select %1192, %1190, %1184 : vector<4x16x16xi1>, vector<4x16x16xf32>
    %c6_1025 = arith.constant 6 : index
    %c0_1026 = arith.constant 0 : index
    %c0_1027 = arith.constant 0 : index
    %1194 = vector.load %arg9[%c6_1025, %c0_1026, %c0_1027] : memref<8x16x16xf32, #tpu.memory_space<vmem>>, vector<1x16x16xf32>
    %1195 = vector.shape_cast %1194 : vector<1x16x16xf32> to vector<16x16xf32>
    %cst_1028 = arith.constant 7.000000e+00 : f32
    %1196 = vector.broadcast %cst_1028 : f32 to vector<16x16xf32>
    %1197 = arith.cmpf oeq, %1195, %1196 : vector<16x16xf32>
    %c0_1029 = arith.constant 0 : index
    %c6_1030 = arith.constant 6 : index
    %c0_1031 = arith.constant 0 : index
    %c0_1032 = arith.constant 0 : index
    %c0_1033 = arith.constant 0 : index
    %1198 = vector.load %arg2[%c0_1029, %c6_1030, %c0_1031, %c0_1032, %c0_1033] : memref<1x8x4x16x16xf32, #tpu.memory_space<vmem>>, vector<1x1x4x16x16xf32>
    %1199 = vector.shape_cast %1198 : vector<1x1x4x16x16xf32> to vector<4x16x16xf32>
    %1200 = vector.shape_cast %1197 : vector<16x16xi1> to vector<1x16x16xi1>
    %1201 = vector.broadcast %1200 : vector<1x16x16xi1> to vector<4x16x16xi1>
    %1202 = arith.select %1201, %1199, %1193 : vector<4x16x16xi1>, vector<4x16x16xf32>
    %c5_1034 = arith.constant 5 : index
    %c0_1035 = arith.constant 0 : index
    %c0_1036 = arith.constant 0 : index
    %1203 = vector.load %arg9[%c5_1034, %c0_1035, %c0_1036] : memref<8x16x16xf32, #tpu.memory_space<vmem>>, vector<1x16x16xf32>
    %1204 = vector.shape_cast %1203 : vector<1x16x16xf32> to vector<16x16xf32>
    %cst_1037 = arith.constant 7.000000e+00 : f32
    %1205 = vector.broadcast %cst_1037 : f32 to vector<16x16xf32>
    %1206 = arith.cmpf oeq, %1204, %1205 : vector<16x16xf32>
    %c0_1038 = arith.constant 0 : index
    %c5_1039 = arith.constant 5 : index
    %c0_1040 = arith.constant 0 : index
    %c0_1041 = arith.constant 0 : index
    %c0_1042 = arith.constant 0 : index
    %1207 = vector.load %arg2[%c0_1038, %c5_1039, %c0_1040, %c0_1041, %c0_1042] : memref<1x8x4x16x16xf32, #tpu.memory_space<vmem>>, vector<1x1x4x16x16xf32>
    %1208 = vector.shape_cast %1207 : vector<1x1x4x16x16xf32> to vector<4x16x16xf32>
    %1209 = vector.shape_cast %1206 : vector<16x16xi1> to vector<1x16x16xi1>
    %1210 = vector.broadcast %1209 : vector<1x16x16xi1> to vector<4x16x16xi1>
    %1211 = arith.select %1210, %1208, %1202 : vector<4x16x16xi1>, vector<4x16x16xf32>
    %c4_1043 = arith.constant 4 : index
    %c0_1044 = arith.constant 0 : index
    %c0_1045 = arith.constant 0 : index
    %1212 = vector.load %arg9[%c4_1043, %c0_1044, %c0_1045] : memref<8x16x16xf32, #tpu.memory_space<vmem>>, vector<1x16x16xf32>
    %1213 = vector.shape_cast %1212 : vector<1x16x16xf32> to vector<16x16xf32>
    %cst_1046 = arith.constant 7.000000e+00 : f32
    %1214 = vector.broadcast %cst_1046 : f32 to vector<16x16xf32>
    %1215 = arith.cmpf oeq, %1213, %1214 : vector<16x16xf32>
    %c0_1047 = arith.constant 0 : index
    %c4_1048 = arith.constant 4 : index
    %c0_1049 = arith.constant 0 : index
    %c0_1050 = arith.constant 0 : index
    %c0_1051 = arith.constant 0 : index
    %1216 = vector.load %arg2[%c0_1047, %c4_1048, %c0_1049, %c0_1050, %c0_1051] : memref<1x8x4x16x16xf32, #tpu.memory_space<vmem>>, vector<1x1x4x16x16xf32>
    %1217 = vector.shape_cast %1216 : vector<1x1x4x16x16xf32> to vector<4x16x16xf32>
    %1218 = vector.shape_cast %1215 : vector<16x16xi1> to vector<1x16x16xi1>
    %1219 = vector.broadcast %1218 : vector<1x16x16xi1> to vector<4x16x16xi1>
    %1220 = arith.select %1219, %1217, %1211 : vector<4x16x16xi1>, vector<4x16x16xf32>
    %c3_1052 = arith.constant 3 : index
    %c0_1053 = arith.constant 0 : index
    %c0_1054 = arith.constant 0 : index
    %1221 = vector.load %arg9[%c3_1052, %c0_1053, %c0_1054] : memref<8x16x16xf32, #tpu.memory_space<vmem>>, vector<1x16x16xf32>
    %1222 = vector.shape_cast %1221 : vector<1x16x16xf32> to vector<16x16xf32>
    %cst_1055 = arith.constant 7.000000e+00 : f32
    %1223 = vector.broadcast %cst_1055 : f32 to vector<16x16xf32>
    %1224 = arith.cmpf oeq, %1222, %1223 : vector<16x16xf32>
    %c0_1056 = arith.constant 0 : index
    %c3_1057 = arith.constant 3 : index
    %c0_1058 = arith.constant 0 : index
    %c0_1059 = arith.constant 0 : index
    %c0_1060 = arith.constant 0 : index
    %1225 = vector.load %arg2[%c0_1056, %c3_1057, %c0_1058, %c0_1059, %c0_1060] : memref<1x8x4x16x16xf32, #tpu.memory_space<vmem>>, vector<1x1x4x16x16xf32>
    %1226 = vector.shape_cast %1225 : vector<1x1x4x16x16xf32> to vector<4x16x16xf32>
    %1227 = vector.shape_cast %1224 : vector<16x16xi1> to vector<1x16x16xi1>
    %1228 = vector.broadcast %1227 : vector<1x16x16xi1> to vector<4x16x16xi1>
    %1229 = arith.select %1228, %1226, %1220 : vector<4x16x16xi1>, vector<4x16x16xf32>
    %c2_1061 = arith.constant 2 : index
    %c0_1062 = arith.constant 0 : index
    %c0_1063 = arith.constant 0 : index
    %1230 = vector.load %arg9[%c2_1061, %c0_1062, %c0_1063] : memref<8x16x16xf32, #tpu.memory_space<vmem>>, vector<1x16x16xf32>
    %1231 = vector.shape_cast %1230 : vector<1x16x16xf32> to vector<16x16xf32>
    %cst_1064 = arith.constant 7.000000e+00 : f32
    %1232 = vector.broadcast %cst_1064 : f32 to vector<16x16xf32>
    %1233 = arith.cmpf oeq, %1231, %1232 : vector<16x16xf32>
    %c0_1065 = arith.constant 0 : index
    %c2_1066 = arith.constant 2 : index
    %c0_1067 = arith.constant 0 : index
    %c0_1068 = arith.constant 0 : index
    %c0_1069 = arith.constant 0 : index
    %1234 = vector.load %arg2[%c0_1065, %c2_1066, %c0_1067, %c0_1068, %c0_1069] : memref<1x8x4x16x16xf32, #tpu.memory_space<vmem>>, vector<1x1x4x16x16xf32>
    %1235 = vector.shape_cast %1234 : vector<1x1x4x16x16xf32> to vector<4x16x16xf32>
    %1236 = vector.shape_cast %1233 : vector<16x16xi1> to vector<1x16x16xi1>
    %1237 = vector.broadcast %1236 : vector<1x16x16xi1> to vector<4x16x16xi1>
    %1238 = arith.select %1237, %1235, %1229 : vector<4x16x16xi1>, vector<4x16x16xf32>
    %c1_1070 = arith.constant 1 : index
    %c0_1071 = arith.constant 0 : index
    %c0_1072 = arith.constant 0 : index
    %1239 = vector.load %arg9[%c1_1070, %c0_1071, %c0_1072] : memref<8x16x16xf32, #tpu.memory_space<vmem>>, vector<1x16x16xf32>
    %1240 = vector.shape_cast %1239 : vector<1x16x16xf32> to vector<16x16xf32>
    %cst_1073 = arith.constant 7.000000e+00 : f32
    %1241 = vector.broadcast %cst_1073 : f32 to vector<16x16xf32>
    %1242 = arith.cmpf oeq, %1240, %1241 : vector<16x16xf32>
    %c0_1074 = arith.constant 0 : index
    %c1_1075 = arith.constant 1 : index
    %c0_1076 = arith.constant 0 : index
    %c0_1077 = arith.constant 0 : index
    %c0_1078 = arith.constant 0 : index
    %1243 = vector.load %arg2[%c0_1074, %c1_1075, %c0_1076, %c0_1077, %c0_1078] : memref<1x8x4x16x16xf32, #tpu.memory_space<vmem>>, vector<1x1x4x16x16xf32>
    %1244 = vector.shape_cast %1243 : vector<1x1x4x16x16xf32> to vector<4x16x16xf32>
    %1245 = vector.shape_cast %1242 : vector<16x16xi1> to vector<1x16x16xi1>
    %1246 = vector.broadcast %1245 : vector<1x16x16xi1> to vector<4x16x16xi1>
    %1247 = arith.select %1246, %1244, %1238 : vector<4x16x16xi1>, vector<4x16x16xf32>
    %c0_1079 = arith.constant 0 : index
    %c0_1080 = arith.constant 0 : index
    %c0_1081 = arith.constant 0 : index
    %1248 = vector.load %arg9[%c0_1079, %c0_1080, %c0_1081] : memref<8x16x16xf32, #tpu.memory_space<vmem>>, vector<1x16x16xf32>
    %1249 = vector.shape_cast %1248 : vector<1x16x16xf32> to vector<16x16xf32>
    %cst_1082 = arith.constant 7.000000e+00 : f32
    %1250 = vector.broadcast %cst_1082 : f32 to vector<16x16xf32>
    %1251 = arith.cmpf oeq, %1249, %1250 : vector<16x16xf32>
    %c0_1083 = arith.constant 0 : index
    %c0_1084 = arith.constant 0 : index
    %c0_1085 = arith.constant 0 : index
    %c0_1086 = arith.constant 0 : index
    %c0_1087 = arith.constant 0 : index
    %1252 = vector.load %arg2[%c0_1083, %c0_1084, %c0_1085, %c0_1086, %c0_1087] : memref<1x8x4x16x16xf32, #tpu.memory_space<vmem>>, vector<1x1x4x16x16xf32>
    %1253 = vector.shape_cast %1252 : vector<1x1x4x16x16xf32> to vector<4x16x16xf32>
    %1254 = vector.shape_cast %1251 : vector<16x16xi1> to vector<1x16x16xi1>
    %1255 = vector.broadcast %1254 : vector<1x16x16xi1> to vector<4x16x16xi1>
    %1256 = arith.select %1255, %1253, %1247 : vector<4x16x16xi1>, vector<4x16x16xf32>
    %1257 = vector.extract_strided_slice %1256 {offsets = [3, 0, 0], sizes = [1, 16, 16], strides = [1, 1, 1]} : vector<4x16x16xf32> to vector<1x16x16xf32>
    %1258 = vector.shape_cast %1257 : vector<1x16x16xf32> to vector<16x16xf32>
    %cst_1088 = arith.constant 1.000000e+00 : f32
    %1259 = vector.broadcast %cst_1088 : f32 to vector<16x16xf32>
    %1260 = arith.subf %1259, %1258 : vector<16x16xf32>
    %1261 = vector.extract_strided_slice %1256 {offsets = [0, 0, 0], sizes = [1, 16, 16], strides = [1, 1, 1]} : vector<4x16x16xf32> to vector<1x16x16xf32>
    %1262 = vector.shape_cast %1261 : vector<1x16x16xf32> to vector<16x16xf32>
    %1263 = arith.mulf %1262, %1258 : vector<16x16xf32>
    %cst_1089 = arith.constant 1.000000e+00 : f32
    %1264 = vector.broadcast %cst_1089 : f32 to vector<16x16xf32>
    %1265 = arith.mulf %1264, %1260 : vector<16x16xf32>
    %1266 = arith.addf %1263, %1265 : vector<16x16xf32>
    %c0_1090 = arith.constant 0 : index
    %c7_1091 = arith.constant 7 : index
    %c0_1092 = arith.constant 0 : index
    %c0_1093 = arith.constant 0 : index
    %c0_1094 = arith.constant 0 : index
    %1267 = vector.load %arg8[%c0_1090, %c7_1091, %c0_1092, %c0_1093, %c0_1094] : memref<1x8x4x16x16xf32, #tpu.memory_space<vmem>>, vector<1x1x1x16x16xf32>
    %1268 = vector.shape_cast %1267 : vector<1x1x1x16x16xf32> to vector<16x16xf32>
    %1269 = vector.shape_cast %1266 : vector<16x16xf32> to vector<1x1x1x16x16xf32>
    tpu.vector_store %arg8[%c0_1090, %c7_1091, %c0_1092, %c0_1093, %c0_1094], %1269 {strides = array<i32>} : memref<1x8x4x16x16xf32, #tpu.memory_space<vmem>>, vector<1x1x1x16x16xf32>,
    %1270 = vector.extract_strided_slice %1256 {offsets = [1, 0, 0], sizes = [1, 16, 16], strides = [1, 1, 1]} : vector<4x16x16xf32> to vector<1x16x16xf32>
    %1271 = vector.shape_cast %1270 : vector<1x16x16xf32> to vector<16x16xf32>
    %1272 = arith.mulf %1271, %1258 : vector<16x16xf32>
    %cst_1095 = arith.constant 1.000000e+00 : f32
    %1273 = vector.broadcast %cst_1095 : f32 to vector<16x16xf32>
    %1274 = arith.mulf %1273, %1260 : vector<16x16xf32>
    %1275 = arith.addf %1272, %1274 : vector<16x16xf32>
    %c0_1096 = arith.constant 0 : index
    %c7_1097 = arith.constant 7 : index
    %c1_1098 = arith.constant 1 : index
    %c0_1099 = arith.constant 0 : index
    %c0_1100 = arith.constant 0 : index
    %1276 = vector.load %arg8[%c0_1096, %c7_1097, %c1_1098, %c0_1099, %c0_1100] : memref<1x8x4x16x16xf32, #tpu.memory_space<vmem>>, vector<1x1x1x16x16xf32>
    %1277 = vector.shape_cast %1276 : vector<1x1x1x16x16xf32> to vector<16x16xf32>
    %1278 = vector.shape_cast %1275 : vector<16x16xf32> to vector<1x1x1x16x16xf32>
    tpu.vector_store %arg8[%c0_1096, %c7_1097, %c1_1098, %c0_1099, %c0_1100], %1278 {strides = array<i32>} : memref<1x8x4x16x16xf32, #tpu.memory_space<vmem>>, vector<1x1x1x16x16xf32>,
    %1279 = vector.extract_strided_slice %1256 {offsets = [2, 0, 0], sizes = [1, 16, 16], strides = [1, 1, 1]} : vector<4x16x16xf32> to vector<1x16x16xf32>
    %1280 = vector.shape_cast %1279 : vector<1x16x16xf32> to vector<16x16xf32>
    %1281 = arith.mulf %1280, %1258 : vector<16x16xf32>
    %cst_1101 = arith.constant 1.000000e+00 : f32
    %1282 = vector.broadcast %cst_1101 : f32 to vector<16x16xf32>
    %1283 = arith.mulf %1282, %1260 : vector<16x16xf32>
    %1284 = arith.addf %1281, %1283 : vector<16x16xf32>
    %c0_1102 = arith.constant 0 : index
    %c7_1103 = arith.constant 7 : index
    %c2_1104 = arith.constant 2 : index
    %c0_1105 = arith.constant 0 : index
    %c0_1106 = arith.constant 0 : index
    %1285 = vector.load %arg8[%c0_1102, %c7_1103, %c2_1104, %c0_1105, %c0_1106] : memref<1x8x4x16x16xf32, #tpu.memory_space<vmem>>, vector<1x1x1x16x16xf32>
    %1286 = vector.shape_cast %1285 : vector<1x1x1x16x16xf32> to vector<16x16xf32>
    %1287 = vector.shape_cast %1284 : vector<16x16xf32> to vector<1x1x1x16x16xf32>
    tpu.vector_store %arg8[%c0_1102, %c7_1103, %c2_1104, %c0_1105, %c0_1106], %1287 {strides = array<i32>} : memref<1x8x4x16x16xf32, #tpu.memory_space<vmem>>, vector<1x1x1x16x16xf32>,
    %c0_1107 = arith.constant 0 : index
    %c7_1108 = arith.constant 7 : index
    %c3_1109 = arith.constant 3 : index
    %c0_1110 = arith.constant 0 : index
    %c0_1111 = arith.constant 0 : index
    %1288 = vector.load %arg8[%c0_1107, %c7_1108, %c3_1109, %c0_1110, %c0_1111] : memref<1x8x4x16x16xf32, #tpu.memory_space<vmem>>, vector<1x1x1x16x16xf32>
    %1289 = vector.shape_cast %1288 : vector<1x1x1x16x16xf32> to vector<16x16xf32>
    %1290 = vector.shape_cast %1258 : vector<16x16xf32> to vector<1x1x1x16x16xf32>
    tpu.vector_store %arg8[%c0_1107, %c7_1108, %c3_1109, %c0_1110, %c0_1111], %1290 {strides = array<i32>} : memref<1x8x4x16x16xf32, #tpu.memory_space<vmem>>, vector<1x1x1x16x16xf32>,
    %cst_1112 = arith.constant 7.000000e+00 : f32
    %1291 = vector.broadcast %cst_1112 : f32 to vector<16x16xf32>
    %1292 = arith.cmpf oeq, %1183, %1291 : vector<16x16xf32>
    %cst_1113 = arith.constant 5.000000e-01 : f32
    %1293 = vector.broadcast %cst_1113 : f32 to vector<16x16xf32>
    %1294 = arith.cmpf olt, %1258, %1293 : vector<16x16xf32>
    %1295 = arith.andi %1292, %1294 : vector<16x16xi1>
    %cst_1114 = arith.constant -1.000000e+00 : f32
    %1296 = vector.broadcast %cst_1114 : f32 to vector<16x16xf32>
    %1297 = arith.select %1295, %1296, %1183 : vector<16x16xi1>, vector<16x16xf32>
    %1298 = math.roundeven %1297 : vector<16x16xf32>
    %1299 = arith.fptosi %1298 : vector<16x16xf32> to vector<16x16xi32>
    %c0_1115 = arith.constant 0 : index
    %c0_1116 = arith.constant 0 : index
    %c0_1117 = arith.constant 0 : index
    %1300 = vector.load %arg7[%c0_1115, %c0_1116, %c0_1117] : memref<1x16x16xi32, #tpu.memory_space<vmem>>, vector<1x16x16xi32>
    %1301 = vector.shape_cast %1300 : vector<1x16x16xi32> to vector<16x16xi32>
    %1302 = vector.shape_cast %1299 : vector<16x16xi32> to vector<1x16x16xi32>
    tpu.vector_store %arg7[%c0_1115, %c0_1116, %c0_1117], %1302 {strides = array<i32>} : memref<1x16x16xi32, #tpu.memory_space<vmem>>, vector<1x16x16xi32>,
    return
  }
  func.func @transform_0(%arg0: i32, %arg1: i32) -> (i32, i32, i32, i32, i32) {
    %c0_i32 = arith.constant 0 : i32
    %c0_i32_0 = arith.constant 0 : i32
    %c0_i32_1 = arith.constant 0 : i32
    %c0_i32_2 = arith.constant 0 : i32
    return %arg0, %c0_i32, %c0_i32_0, %arg1, %c0_i32_1 : i32, i32, i32, i32, i32
  }
  func.func @transform_1(%arg0: i32, %arg1: i32) -> (i32, i32, i32, i32) {
    %c0_i32 = arith.constant 0 : i32
    %c0_i32_0 = arith.constant 0 : i32
    %c0_i32_1 = arith.constant 0 : i32
    return %arg0, %c0_i32, %arg1, %c0_i32_0 : i32, i32, i32, i32
  }
  func.func @transform_2(%arg0: i32, %arg1: i32) -> (i32, i32, i32, i32) {
    %c0_i32 = arith.constant 0 : i32
    %c0_i32_0 = arith.constant 0 : i32
    %c0_i32_1 = arith.constant 0 : i32
    return %arg0, %c0_i32, %arg1, %c0_i32_0 : i32, i32, i32, i32
  }
  func.func @transform_3(%arg0: i32, %arg1: i32) -> (i32, i32, i32, i32) {
    %c0_i32 = arith.constant 0 : i32
    %c0_i32_0 = arith.constant 0 : i32
    %c0_i32_1 = arith.constant 0 : i32
    return %arg0, %c0_i32, %arg1, %c0_i32_0 : i32, i32, i32, i32
  }
  func.func @transform_4(%arg0: i32, %arg1: i32) -> (i32, i32, i32) {
    %c0_i32 = arith.constant 0 : i32
    %c0_i32_0 = arith.constant 0 : i32
    return %arg0, %arg1, %c0_i32 : i32, i32, i32
  }
  func.func @transform_5(%arg0: i32, %arg1: i32) -> (i32, i32, i32) {
    %c0_i32 = arith.constant 0 : i32
    %c0_i32_0 = arith.constant 0 : i32
    return %arg0, %arg1, %c0_i32 : i32, i32, i32
  }
  func.func @transform_6(%arg0: i32, %arg1: i32) -> (i32, i32, i32, i32, i32) {
    %c0_i32 = arith.constant 0 : i32
    %c0_i32_0 = arith.constant 0 : i32
    %c0_i32_1 = arith.constant 0 : i32
    %c0_i32_2 = arith.constant 0 : i32
    return %arg0, %c0_i32, %c0_i32_0, %arg1, %c0_i32_1 : i32, i32, i32, i32, i32
  }
}

</mosaic_0001>

<llo_original>
// kernel: alpha_composition_shader_planar.1
$region0: #{alpha_composition_shader_planar.1}
  #allocation0 [shape = 'u32[]', space=smem, size = 0x4, offset = 0x4, fixed_abs, tag = 'smem constant byte address 0x4 - core index']
  #allocation1 [shape = 'u32[144,128]{1,0:T(1,128)}', space=vmem, size = 0x12000, scoped, tag = 'internal scratch']
  #allocation2 [shape = 'f32[8,16,16]{2,1,0:T(8,128)}', space=vmem, size = 0x10000, scoped, tag = 'scratch operand']
  %s0 = inlined_call_operand.hbm [shape: f32[2,8,4,16,16], index: 0, kind: input, shape index: {}]
  %s1 = inlined_call_operand.hbm [shape: f32[2,8,16,16], index: 1, kind: input, shape index: {}]
  %s2 = inlined_call_operand.hbm [shape: f32[2,8,16,16], index: 2, kind: input, shape index: {}]
  %s3 = inlined_call_operand.hbm [shape: f32[2,4,16,16], index: 3, kind: output, shape index: {0}]
  %s4 = inlined_call_operand.hbm [shape: f32[2,16,16], index: 4, kind: output, shape index: {1}]
  %s5 = inlined_call_operand.hbm [shape: s32[2,16,16], index: 5, kind: output, shape index: {2}]
  %s6 = inlined_call_operand.hbm [shape: f32[2,8,4,16,16], index: 6, kind: output, shape index: {3}]
  %7 = xla_tuple %s3, %s4, %s5, %s6
  %s8 = sld [smem:[#allocation0]]
  $region81: #{alpha_composition_shader_planar.1} parent=0
    _
  %s10 = ssub.s32 1, %s8
  %s11 = scalar_select 0, %s10, %s8
  $region1: #{alpha_composition_shader_planar.1} parent=0
    #allocation3 [shape = 'u8[524288]{0}', space=vmem, size = 0x80000, scoped, tag = 'input window, operand 0']
    #allocation4 [shape = 's32[2]{0}', space=sflag, size = 0x8, scoped, tag = 'scoped memory for alpha_composition_shader_planar.1']
    #allocation5 [shape = 's32[2]{0}', space=sflag, size = 0x8, scoped, tag = 'scoped memory for alpha_composition_shader_planar.1']
    #allocation6 [shape = 'u8[131072]{0}', space=vmem, size = 0x20000, scoped, tag = 'input window, operand 1']
    #allocation7 [shape = 's32[2]{0}', space=sflag, size = 0x8, scoped, tag = 'scoped memory for alpha_composition_shader_planar.1']
    #allocation8 [shape = 'u8[131072]{0}', space=vmem, size = 0x20000, scoped, tag = 'input window, operand 2']
    #allocation9 [shape = 'u8[65536]{0}', space=vmem, size = 0x10000, scoped, tag = 'output window, operand 0']
    #allocation10 [shape = 'u8[16384]{0}', space=vmem, size = 0x4000, scoped, tag = 'output window, operand 1']
    #allocation11 [shape = 's32[2]{0}', space=sflag, size = 0x8, scoped, tag = 'scoped memory for alpha_composition_shader_planar.1']
    #allocation12 [shape = 'u8[16384]{0}', space=vmem, size = 0x4000, scoped, tag = 'output window, operand 2']
    #allocation13 [shape = 'u8[524288]{0}', space=vmem, size = 0x80000, scoped, tag = 'output window, operand 3']
    #allocation14 [shape = 's32[2]{0}', space=sflag, size = 0x8, scoped, tag = 'scoped memory for alpha_composition_shader_planar.1']
    %12 = vsyncpa [#allocation4], 0
    %s13 = scalar_lea.sflag [#allocation4], 1
    %14 = vsyncpa %s13, 0
    %15 = vsyncpa [#allocation7], 0
    %s16 = scalar_lea.sflag [#allocation7], 1
    %17 = vsyncpa %s16, 0
    %18 = vsyncpa [#allocation5], 0
    %s19 = scalar_lea.sflag [#allocation5], 1
    %20 = vsyncpa %s19, 0
    %21 = vsyncpa [#allocation11], 0
    %s22 = scalar_lea.sflag [#allocation11], 1
    %23 = vsyncpa %s22, 0
    %24 = vsyncpa [#allocation14], 0
    %s25 = scalar_lea.sflag [#allocation14], 1
    %26 = vsyncpa %s25, 0
    loop: start=0, step=1, limit=4
    $region2: #{alpha_composition_shader_planar.1} parent=1 // loop_pre_header
      _
    $region3: #{alpha_composition_shader_planar.1} parent=1 // loop_header
      %s28 = sphi 0, %s32
      %p29 = scmp.ge.s32.totalorder %s28, 4
      %s35 = sphi 0, %s47
      %s36 = sphi 0, %s43
      %s37 = sphi 0, %s35
      %s38 = sphi 0, %s36
      %s39 = sphi 0, %s37
      %s40 = sphi 0, %s38
      %s52 = sphi 0, %s54
      %s55 = sphi 0, %s52
      %s56 = sphi 0, %s55
      %s72 = sphi 0, %s56
      %s80 = sphi 0, %s82
      %s83 = sphi 0, %s80
      %s84 = sphi 0, %s83
      %s100 = sphi 0, %s84
      %s108 = sphi 0, %s110
      %s111 = sphi 0, %s108
      %s112 = sphi 0, %s111
      %s128 = sphi 0, %s112
      %s136 = sphi 0, %s138
      %s139 = sphi 0, %s136
      %s140 = sphi 0, %s139
      %s156 = sphi 0, %s140
      %s164 = sphi 0, %s166
      %s167 = sphi 0, %s164
      %s168 = sphi 0, %s167
      %s184 = sphi 0, %s168
      %s192 = sphi 0, %s194
      %s195 = sphi 0, %s192
      %s196 = sphi 0, %s195
      %s212 = sphi 0, %s196
      %s220 = sphi 0, %s222
      %s223 = sphi 0, %s220
      %s224 = sphi 0, %s223
      %s240 = sphi 0, %s224
    $region4: #{alpha_composition_shader_planar.1} parent=1 // loop_header_branch
      %31 = sbr.rel (%p29) target = $region8
    $region5: #{alpha_composition_shader_planar.1} parent=1 // loop_body
      %s33 = ssub.s32 %s28, 1
      %s34 = ssub.s32 %s28, 2
      %s41 = sadd.s32 1, %s36
      %p42 = scmp.ge.s32.totalorder %s41, 1
      %s43 = scalar_select %p42, 0, %s41
      %s44 = sadd.s32 1, %s35
      %s45 = scalar_select %p42, %s44, %s35
      %p46 = scmp.ge.s32.totalorder %s45, 2
      %s47 = scalar_select %p46, 0, %s45
      %s48 = ssub.s32 %s35, %s47
      %s49 = ssub.s32 %s36, %s43
      %s50 = sor.u32 %s48, %s49
      %p51 = scmp.eq.s32.totalorder %s50, 0
      %s53 = sadd.s32 %s52, 1
      %s54 = scalar_select %p51, %s52, %s53
      %p57 = pneg %p51
      %p58 = scmp.eq.s32.totalorder %s28, 1
      %p59 = por %p57, %p58
      %p60 = scmp.ne.s32.totalorder %s52, %s55
      %p61 = scmp.eq.s32.totalorder %s28, 0
      %p62 = por %p60, %p61
      %p63 = scmp.ne.s32.totalorder %s52, %s55
      %p64 = scmp.eq.s32.totalorder %s33, 1
      %p65 = por %p63, %p64
      %p66 = scmp.ne.s32.totalorder %s55, %s56
      %p67 = scmp.eq.s32.totalorder %s33, 0
      %p68 = por %p66, %p67
      %p69 = scmp.ne.s32.totalorder %s55, %s56
      %p70 = scmp.eq.s32.totalorder %s34, 1
      %p71 = por %p69, %p70
      %p73 = scmp.ne.s32.totalorder %s56, %s72
      %p74 = scmp.eq.s32.totalorder %s34, 0
      %p75 = por %p73, %p74
      %s76 = ssub.s32 %s35, %s47
      %s77 = ssub.s32 %s36, %s43
      %s78 = sor.u32 %s76, %s77
      %p79 = scmp.eq.s32.totalorder %s78, 0
      %s81 = sadd.s32 %s80, 1
      %s82 = scalar_select %p79, %s80, %s81
      %p85 = pneg %p79
      %p86 = scmp.eq.s32.totalorder %s28, 1
      %p87 = por %p85, %p86
      %p88 = scmp.ne.s32.totalorder %s80, %s83
      %p89 = scmp.eq.s32.totalorder %s28, 0
      %p90 = por %p88, %p89
      %p91 = scmp.ne.s32.totalorder %s80, %s83
      %p92 = scmp.eq.s32.totalorder %s33, 1
      %p93 = por %p91, %p92
      %p94 = scmp.ne.s32.totalorder %s83, %s84
      %p95 = scmp.eq.s32.totalorder %s33, 0
      %p96 = por %p94, %p95
      %p97 = scmp.ne.s32.totalorder %s83, %s84
      %p98 = scmp.eq.s32.totalorder %s34, 1
      %p99 = por %p97, %p98
      %p101 = scmp.ne.s32.totalorder %s84, %s100
      %p102 = scmp.eq.s32.totalorder %s34, 0
      %p103 = por %p101, %p102
      %s104 = ssub.s32 %s35, %s47
      %s105 = ssub.s32 %s36, %s43
      %s106 = sor.u32 %s104, %s105
      %p107 = scmp.eq.s32.totalorder %s106, 0
      %s109 = sadd.s32 %s108, 1
      %s110 = scalar_select %p107, %s108, %s109
      %p113 = pneg %p107
      %p114 = scmp.eq.s32.totalorder %s28, 1
      %p115 = por %p113, %p114
      %p116 = scmp.ne.s32.totalorder %s108, %s111
      %p117 = scmp.eq.s32.totalorder %s28, 0
      %p118 = por %p116, %p117
      %p119 = scmp.ne.s32.totalorder %s108, %s111
      %p120 = scmp.eq.s32.totalorder %s33, 1
      %p121 = por %p119, %p120
      %p122 = scmp.ne.s32.totalorder %s111, %s112
      %p123 = scmp.eq.s32.totalorder %s33, 0
      %p124 = por %p122, %p123
      %p125 = scmp.ne.s32.totalorder %s111, %s112
      %p126 = scmp.eq.s32.totalorder %s34, 1
      %p127 = por %p125, %p126
      %p129 = scmp.ne.s32.totalorder %s112, %s128
      %p130 = scmp.eq.s32.totalorder %s34, 0
      %p131 = por %p129, %p130
      %s132 = ssub.s32 %s35, %s47
      %s133 = ssub.s32 %s36, %s43
      %s134 = sor.u32 %s132, %s133
      %p135 = scmp.eq.s32.totalorder %s134, 0
      %s137 = sadd.s32 %s136, 1
      %s138 = scalar_select %p135, %s136, %s137
      %p141 = pneg %p135
      %p142 = scmp.eq.s32.totalorder %s28, 1
      %p143 = por %p141, %p142
      %p144 = scmp.ne.s32.totalorder %s136, %s139
      %p145 = scmp.eq.s32.totalorder %s28, 0
      %p146 = por %p144, %p145
      %p147 = scmp.ne.s32.totalorder %s136, %s139
      %p148 = scmp.eq.s32.totalorder %s33, 1
      %p149 = por %p147, %p148
      %p150 = scmp.ne.s32.totalorder %s139, %s140
      %p151 = scmp.eq.s32.totalorder %s33, 0
      %p152 = por %p150, %p151
      %p153 = scmp.ne.s32.totalorder %s139, %s140
      %p154 = scmp.eq.s32.totalorder %s34, 1
      %p155 = por %p153, %p154
      %p157 = scmp.ne.s32.totalorder %s140, %s156
      %p158 = scmp.eq.s32.totalorder %s34, 0
      %p159 = por %p157, %p158
      %s160 = ssub.s32 %s35, %s47
      %s161 = ssub.s32 %s36, %s43
      %s162 = sor.u32 %s160, %s161
      %p163 = scmp.eq.s32.totalorder %s162, 0
      %s165 = sadd.s32 %s164, 1
      %s166 = scalar_select %p163, %s164, %s165
      %p169 = pneg %p163
      %p170 = scmp.eq.s32.totalorder %s28, 1
      %p171 = por %p169, %p170
      %p172 = scmp.ne.s32.totalorder %s164, %s167
      %p173 = scmp.eq.s32.totalorder %s28, 0
      %p174 = por %p172, %p173
      %p175 = scmp.ne.s32.totalorder %s164, %s167
      %p176 = scmp.eq.s32.totalorder %s33, 1
      %p177 = por %p175, %p176
      %p178 = scmp.ne.s32.totalorder %s167, %s168
      %p179 = scmp.eq.s32.totalorder %s33, 0
      %p180 = por %p178, %p179
      %p181 = scmp.ne.s32.totalorder %s167, %s168
      %p182 = scmp.eq.s32.totalorder %s34, 1
      %p183 = por %p181, %p182
      %p185 = scmp.ne.s32.totalorder %s168, %s184
      %p186 = scmp.eq.s32.totalorder %s34, 0
      %p187 = por %p185, %p186
      %s188 = ssub.s32 %s35, %s47
      %s189 = ssub.s32 %s36, %s43
      %s190 = sor.u32 %s188, %s189
      %p191 = scmp.eq.s32.totalorder %s190, 0
      %s193 = sadd.s32 %s192, 1
      %s194 = scalar_select %p191, %s192, %s193
      %p197 = pneg %p191
      %p198 = scmp.eq.s32.totalorder %s28, 1
      %p199 = por %p197, %p198
      %p200 = scmp.ne.s32.totalorder %s192, %s195
      %p201 = scmp.eq.s32.totalorder %s28, 0
      %p202 = por %p200, %p201
      %p203 = scmp.ne.s32.totalorder %s192, %s195
      %p204 = scmp.eq.s32.totalorder %s33, 1
      %p205 = por %p203, %p204
      %p206 = scmp.ne.s32.totalorder %s195, %s196
      %p207 = scmp.eq.s32.totalorder %s33, 0
      %p208 = por %p206, %p207
      %p209 = scmp.ne.s32.totalorder %s195, %s196
      %p210 = scmp.eq.s32.totalorder %s34, 1
      %p211 = por %p209, %p210
      %p213 = scmp.ne.s32.totalorder %s196, %s212
      %p214 = scmp.eq.s32.totalorder %s34, 0
      %p215 = por %p213, %p214
      %s216 = ssub.s32 %s35, %s47
      %s217 = ssub.s32 %s36, %s43
      %s218 = sor.u32 %s216, %s217
      %p219 = scmp.eq.s32.totalorder %s218, 0
      %s221 = sadd.s32 %s220, 1
      %s222 = scalar_select %p219, %s220, %s221
      %p225 = pneg %p219
      %p226 = scmp.eq.s32.totalorder %s28, 1
      %p227 = por %p225, %p226
      %p228 = scmp.ne.s32.totalorder %s220, %s223
      %p229 = scmp.eq.s32.totalorder %s28, 0
      %p230 = por %p228, %p229
      %p231 = scmp.ne.s32.totalorder %s220, %s223
      %p232 = scmp.eq.s32.totalorder %s33, 1
      %p233 = por %p231, %p232
      %p234 = scmp.ne.s32.totalorder %s223, %s224
      %p235 = scmp.eq.s32.totalorder %s33, 0
      %p236 = por %p234, %p235
      %p237 = scmp.ne.s32.totalorder %s223, %s224
      %p238 = scmp.eq.s32.totalorder %s34, 1
      %p239 = por %p237, %p238
      %p241 = scmp.ne.s32.totalorder %s224, %s240
      %p242 = scmp.eq.s32.totalorder %s34, 0
      %p243 = por %p241, %p242
      %p244 = scmp.le.s32.totalorder 1, %s28
      %p245 = scmp.lt.s32.totalorder %s28, 3
      %p246 = pnand %p244, %p245
      %p247 = pneg %p246
      // Predicated region
      $region9: #{alpha_composition_shader_planar.1} parent=5 // pred_check
        _
      $region10: #{alpha_composition_shader_planar.1} parent=5 // pred_check_branch
        %249 = sbr.rel (%p246) target = $region12
      $region11: #{alpha_composition_shader_planar.1} parent=5 // pred_region
        %s250 = ssub.s32 %s28, 1
      $region12: #{alpha_composition_shader_planar.1} parent=5 // pred_fallthru
        _
      %p251 = scmp.lt.s32.totalorder %s28, 2
      // Predicated region
      $region13: #{alpha_composition_shader_planar.1} parent=5 // pred_check
        %p252 = pneg %p251
      $region14: #{alpha_composition_shader_planar.1} parent=5 // pred_check_branch
        %254 = sbr.rel (%p252) target = $region16
      $region15: #{alpha_composition_shader_planar.1} parent=5 // pred_region
        // Predicated region
        $region17: #{alpha_composition_shader_planar.1} parent=15 // pred_check
          %p255 = pneg %p62
        $region18: #{alpha_composition_shader_planar.1} parent=15 // pred_check_branch
          %257 = sbr.rel (%p255) target = $region20
        $region19: #{alpha_composition_shader_planar.1} parent=15 // pred_region
          %s258 = sand.u32 %s52, 1
          %s259 = scalar_lea.sflag [#allocation4], %s258
          %s260 = sand.u32 %s52, 1
          %s261 = smul.addr %s260, 512
          %s262 = scalar_lea.vmem [#allocation3], %s261
          %s263 = smul.u32 2, %s36
          %s265 = ssub.s32 8192, 8192
          %266 = vsyncadd %s259, %s265
          %s267 = smul.addr %s35, 64
          %s268 = sadd.s32 %s263, %s267
          %s269 = smul.addr %s268, 128
          %s270 = scalar_lea.hbm %s0, %s269
          %s271 = sshll.u32 %s262, 4
          %s272 = int_to_ptr.vmem [resolvable:$true] %s271
          %277 = dma.hbm_to_vmem [thread:$0]  %s270, 8192, %s272, %s259, 128, 128, 8
        $region20: #{alpha_composition_shader_planar.1} parent=15 // pred_fallthru
          _
        // Predicated region
        $region21: #{alpha_composition_shader_planar.1} parent=15 // pred_check
          %p278 = pneg %p90
        $region22: #{alpha_composition_shader_planar.1} parent=15 // pred_check_branch
          %280 = sbr.rel (%p278) target = $region24
        $region23: #{alpha_composition_shader_planar.1} parent=15 // pred_region
          %s281 = sand.u32 %s28, 1
          %s282 = scalar_lea.sflag [#allocation7], %s281
          %s283 = sand.u32 %s80, 1
          %s284 = smul.addr %s283, 128
          %s285 = scalar_lea.vmem [#allocation6], %s284
          %s286 = smul.u32 2, %s36
          %s288 = ssub.s32 2048, 2048
          %289 = vsyncadd %s282, %s288
          %s290 = smul.addr %s35, 16
          %s291 = sadd.s32 %s286, %s290
          %s292 = smul.addr %s291, 128
          %s293 = scalar_lea.hbm %s1, %s292
          %s294 = sshll.u32 %s285, 4
          %s295 = int_to_ptr.vmem [resolvable:$true] %s294
          %300 = dma.hbm_to_vmem [thread:$0]  %s293, 2048, %s295, %s282, 128, 128, 8
        $region24: #{alpha_composition_shader_planar.1} parent=15 // pred_fallthru
          _
        // Predicated region
        $region25: #{alpha_composition_shader_planar.1} parent=15 // pred_check
          %p301 = pneg %p118
        $region26: #{alpha_composition_shader_planar.1} parent=15 // pred_check_branch
          %303 = sbr.rel (%p301) target = $region28
        $region27: #{alpha_composition_shader_planar.1} parent=15 // pred_region
          %s304 = sand.u32 %s28, 1
          %s305 = scalar_lea.sflag [#allocation7], %s304
          %s306 = sand.u32 %s108, 1
          %s307 = smul.addr %s306, 128
          %s308 = scalar_lea.vmem [#allocation8], %s307
          %s309 = smul.u32 2, %s36
          %s311 = ssub.s32 2048, 2048
          %312 = vsyncadd %s305, %s311
          %s313 = smul.addr %s35, 16
          %s314 = sadd.s32 %s309, %s313
          %s315 = smul.addr %s314, 128
          %s316 = scalar_lea.hbm %s2, %s315
          %s317 = sshll.u32 %s308, 4
          %s318 = int_to_ptr.vmem [resolvable:$true] %s317
          %323 = dma.hbm_to_vmem [thread:$0]  %s316, 2048, %s318, %s305, 128, 128, 8
        $region28: #{alpha_composition_shader_planar.1} parent=15 // pred_fallthru
          _
      $region16: #{alpha_composition_shader_planar.1} parent=5 // pred_fallthru
        _
      %p324 = scmp.le.s32.totalorder 1, %s28
      %p325 = scmp.lt.s32.totalorder %s28, 3
      %p326 = pnand %p324, %p325
      %p327 = pneg %p326
      // Predicated region
      $region29: #{alpha_composition_shader_planar.1} parent=5 // pred_check
        _
      $region30: #{alpha_composition_shader_planar.1} parent=5 // pred_check_branch
        %329 = sbr.rel (%p326) target = $region32
      $region31: #{alpha_composition_shader_planar.1} parent=5 // pred_region
        %s330 = ssub.s32 %s28, 1
        %s331 = sand.u32 %s55, 1
        %s332 = scalar_lea.sflag [#allocation4], %s331
        %s333 = sand.u32 %s55, 1
        %s334 = smul.addr %s333, 512
        %s335 = scalar_lea.vmem [#allocation3], %s334
        // Predicated region
        $region33: #{alpha_composition_shader_planar.1} parent=31 // pred_check
          %p336 = pneg %p68
        $region34: #{alpha_composition_shader_planar.1} parent=31 // pred_check_branch
          %338 = sbr.rel (%p336) target = $region36
        $region35: #{alpha_composition_shader_planar.1} parent=31 // pred_region
          %339 = dma.done %s332, 8192
        $region36: #{alpha_composition_shader_planar.1} parent=31 // pred_fallthru
          _
        %s340 = sand.u32 %s33, 1
        %s341 = scalar_lea.sflag [#allocation7], %s340
        %s342 = sand.u32 %s83, 1
        %s343 = smul.addr %s342, 128
        %s344 = scalar_lea.vmem [#allocation6], %s343
        // Predicated region
        $region37: #{alpha_composition_shader_planar.1} parent=31 // pred_check
          %p345 = pneg %p96
        $region38: #{alpha_composition_shader_planar.1} parent=31 // pred_check_branch
          %347 = sbr.rel (%p345) target = $region40
        $region39: #{alpha_composition_shader_planar.1} parent=31 // pred_region
          %348 = dma.done %s341, 2048
        $region40: #{alpha_composition_shader_planar.1} parent=31 // pred_fallthru
          _
        %s349 = sand.u32 %s33, 1
        %s350 = scalar_lea.sflag [#allocation7], %s349
        %s351 = sand.u32 %s111, 1
        %s352 = smul.addr %s351, 128
        %s353 = scalar_lea.vmem [#allocation8], %s352
        // Predicated region
        $region41: #{alpha_composition_shader_planar.1} parent=31 // pred_check
          %p354 = pneg %p124
        $region42: #{alpha_composition_shader_planar.1} parent=31 // pred_check_branch
          %356 = sbr.rel (%p354) target = $region44
        $region43: #{alpha_composition_shader_planar.1} parent=31 // pred_region
          %357 = dma.done %s350, 2048
        $region44: #{alpha_composition_shader_planar.1} parent=31 // pred_fallthru
          _
        %s358 = sand.u32 %s55, 1
        %s359 = scalar_lea.sflag [#allocation4], %s358
        %s360 = sand.u32 %s55, 1
        %s361 = smul.addr %s360, 512
        %s362 = scalar_lea.vmem [#allocation3], %s361
        %p363 = pneg %p68
        %p364 = pneg %p65
        %s365 = sand.u32 %s33, 1
        %s366 = scalar_lea.sflag [#allocation7], %s365
        %s367 = sand.u32 %s83, 1
        %s368 = smul.addr %s367, 128
        %s369 = scalar_lea.vmem [#allocation6], %s368
        %p370 = pneg %p96
        %p371 = pneg %p93
        %s372 = sand.u32 %s33, 1
        %s373 = scalar_lea.sflag [#allocation7], %s372
        %s374 = sand.u32 %s111, 1
        %s375 = smul.addr %s374, 128
        %s376 = scalar_lea.vmem [#allocation8], %s375
        %p377 = pneg %p124
        %p378 = pneg %p121
        %p379 = pneg %p152
        %p380 = pneg %p149
        %s381 = sand.u32 %s139, 1
        %s382 = scalar_lea.sflag [#allocation5], %s381
        %s383 = sand.u32 %s139, 1
        %s384 = smul.addr %s383, 64
        %s385 = scalar_lea.vmem [#allocation9], %s384
        %p386 = pneg %p180
        %p387 = pneg %p177
        %s388 = sand.u32 %s33, 1
        %s389 = scalar_lea.sflag [#allocation11], %s388
        %s390 = sand.u32 %s167, 1
        %s391 = smul.addr %s390, 16
        %s392 = scalar_lea.vmem [#allocation10], %s391
        %p393 = pneg %p208
        %p394 = pneg %p205
        %s395 = sand.u32 %s33, 1
        %s396 = scalar_lea.sflag [#allocation11], %s395
        %s397 = sand.u32 %s195, 1
        %s398 = smul.addr %s397, 16
        %s399 = scalar_lea.vmem [#allocation12], %s398
        %p400 = pneg %p236
        %p401 = pneg %p233
        %s402 = sand.u32 %s223, 1
        %s403 = scalar_lea.sflag [#allocation14], %s402
        %s404 = sand.u32 %s223, 1
        %s405 = smul.addr %s404, 512
        %s406 = scalar_lea.vmem [#allocation13], %s405
        %s407 = smul.u32 2, %s38
        %s408 = smul.u32 2, %s38
        %s409 = smul.u32 2, %s38
        %s410 = smul.u32 2, %s38
        %s411 = smul.u32 2, %s38
        %s412 = smul.u32 2, %s38
        %s413 = smul.u32 2, %s38
        %s414 = scalar_lea.vmem %s335, 496 [#allocation3]
        %v415 = vld [vmem:[%s414] sm:$0xff]
        %v416 = vld [vmem:[%s414 + $0x8] sm:$0xff]
        %s417 = scalar_lea.vmem %s353, 112 [#allocation8]
        %v418 = vld [vmem:[%s417] sm:$0xff]
        %v419 = vld [vmem:[%s417 + $0x8] sm:$0xff]
        %s420 = scalar_lea.vmem %s344, 112 [#allocation6]
        %v421 = vld [vmem:[%s420] sm:$0xff]
        %v422 = vld [vmem:[%s420 + $0x8] sm:$0xff]
        %v423 = vsub.f32 1.0, %v415
        %v424 = vsub.f32 1.0, %v416
        %s425 = scalar_lea.vmem %s335, 448 [#allocation3]
        %v426 = vld [vmem:[%s425] sm:$0xff]
        %v427 = vld [vmem:[%s425 + $0x8] sm:$0xff]
        %v428 = vmul.f32 %v426, %v415
        %v429 = vmul.f32 %v427, %v416
        %v430 = vadd.f32 %v428, %v423
        %v431 = vadd.f32 %v429, %v424
        %s432 = scalar_lea.vmem %s335, 464 [#allocation3]
        %v433 = vld [vmem:[%s432] sm:$0xff]
        %v434 = vld [vmem:[%s432 + $0x8] sm:$0xff]
        %v435 = vmul.f32 %v433, %v415
        %v436 = vmul.f32 %v434, %v416
        %v437 = vadd.f32 %v435, %v423
        %v438 = vadd.f32 %v436, %v424
        %s439 = scalar_lea.vmem %s335, 480 [#allocation3]
        %v440 = vld [vmem:[%s439] sm:$0xff]
        %v441 = vld [vmem:[%s439 + $0x8] sm:$0xff]
        %v442 = vmul.f32 %v440, %v415
        %v443 = vmul.f32 %v441, %v416
        %v444 = vadd.f32 %v442, %v423
        %v445 = vadd.f32 %v443, %v424
        %v446 = vmax.f32 %v415, 0.0
        %v447 = vmax.f32 %v416, 0.0
        %vm448 = vcmp.gt.f32.partialorder %v418, 0.0
        %vm449 = vcmp.gt.f32.partialorder %v419, 0.0
        %v450 = vmul.f32 %v418, %v415
        %v451 = vmul.f32 %v419, %v416
        %v452 = vmul.f32 %v423, 100.0
        %v453 = vmul.f32 %v424, 100.0
        %v454 = vadd.f32 %v450, %v452
        %v455 = vadd.f32 %v451, %v453
        %v456 = vsel %vm448, %v454, 100.0
        %v457 = vsel %vm449, %v455, 100.0
        %vm458 = vcmp.ge.f32.partialorder %v418, 0.0
        %vm459 = vcmp.ge.f32.partialorder %v419, 0.0
        %vm460 = vweird.f32 %v421
        %vm461 = vweird.f32 %v422
        %vm462 = vmxor %vm460, 1
        %vm463 = vmxor %vm461, 1
        %vm464 = vmand %vm458, %vm462
        %vm465 = vmand %vm459, %vm463
        %vm466 = vcmp.gt.f32.partialorder %v415, 0.5
        %vm467 = vcmp.gt.f32.partialorder %v416, 0.5
        %vm468 = vmand %vm464, %vm466
        %vm469 = vmand %vm465, %vm467
        %v470 = vsel %vm468, %v421, 8.0
        %v471 = vsel %vm469, %v422, 8.0
        %v472 = vround.ne.pseudo %v421
        %v473 = vround.ne.pseudo %v422
        %v474 = vsel %vm458, %v472, -1.0
        %v475 = vsel %vm459, %v473, -1.0
        %s476 = scalar_lea.vmem [#allocation2], 112
        %vm477 = vcmask 130048
        %478 = vst.msk [vmem:[%s476] sm:$0xff] %vm477, %v474
        %479 = vst.msk [vmem:[%s476 + $0x8] sm:$0xff] %vm477, %v475
        %s480 = scalar_lea.vmem %s335, 432 [#allocation3]
        %v481 = vld [vmem:[%s480] sm:$0xff]
        %v482 = vld [vmem:[%s480 + $0x8] sm:$0xff]
        %s483 = scalar_lea.vmem %s353, 96 [#allocation8]
        %v484 = vld [vmem:[%s483] sm:$0xff]
        %v485 = vld [vmem:[%s483 + $0x8] sm:$0xff]
        %s486 = scalar_lea.vmem %s344, 96 [#allocation6]
        %v487 = vld [vmem:[%s486] sm:$0xff]
        %v488 = vld [vmem:[%s486 + $0x8] sm:$0xff]
        %v489 = vsub.f32 1.0, %v481
        %v490 = vsub.f32 1.0, %v482
        %s491 = scalar_lea.vmem %s335, 384 [#allocation3]
        %v492 = vld [vmem:[%s491] sm:$0xff]
        %v493 = vld [vmem:[%s491 + $0x8] sm:$0xff]
        %v494 = vmul.f32 %v492, %v481
        %v495 = vmul.f32 %v493, %v482
        %v496 = vmul.f32 %v430, %v489
        %v497 = vmul.f32 %v431, %v490
        %v498 = vadd.f32 %v494, %v496
        %v499 = vadd.f32 %v495, %v497
        %s500 = scalar_lea.vmem %s335, 400 [#allocation3]
        %v501 = vld [vmem:[%s500] sm:$0xff]
        %v502 = vld [vmem:[%s500 + $0x8] sm:$0xff]
        %v503 = vmul.f32 %v501, %v481
        %v504 = vmul.f32 %v502, %v482
        %v505 = vmul.f32 %v437, %v489
        %v506 = vmul.f32 %v438, %v490
        %v507 = vadd.f32 %v503, %v505
        %v508 = vadd.f32 %v504, %v506
        %s509 = scalar_lea.vmem %s335, 416 [#allocation3]
        %v510 = vld [vmem:[%s509] sm:$0xff]
        %v511 = vld [vmem:[%s509 + $0x8] sm:$0xff]
        %v512 = vmul.f32 %v510, %v481
        %v513 = vmul.f32 %v511, %v482
        %v514 = vmul.f32 %v444, %v489
        %v515 = vmul.f32 %v445, %v490
        %v516 = vadd.f32 %v512, %v514
        %v517 = vadd.f32 %v513, %v515
        %v518 = vmax.f32 %v481, %v446
        %v519 = vmax.f32 %v482, %v447
        %vm520 = vcmp.gt.f32.partialorder %v484, 0.0
        %vm521 = vcmp.gt.f32.partialorder %v485, 0.0
        %v522 = vmul.f32 %v484, %v481
        %v523 = vmul.f32 %v485, %v482
        %v524 = vmul.f32 %v456, %v489
        %v525 = vmul.f32 %v457, %v490
        %v526 = vadd.f32 %v522, %v524
        %v527 = vadd.f32 %v523, %v525
        %v528 = vsel %vm520, %v526, %v456
        %v529 = vsel %vm521, %v527, %v457
        %vm530 = vcmp.ge.f32.partialorder %v484, 0.0
        %vm531 = vcmp.ge.f32.partialorder %v485, 0.0
        %vm532 = vweird.f32 %v487
        %vm533 = vweird.f32 %v488
        %vm534 = vmxor %vm532, 1
        %vm535 = vmxor %vm533, 1
        %vm536 = vmand %vm530, %vm534
        %vm537 = vmand %vm531, %vm535
        %vm538 = vcmp.gt.f32.partialorder %v481, 0.5
        %vm539 = vcmp.gt.f32.partialorder %v482, 0.5
        %vm540 = vmand %vm536, %vm538
        %vm541 = vmand %vm537, %vm539
        %v542 = vsel %vm540, %v487, %v470
        %v543 = vsel %vm541, %v488, %v471
        %v544 = vround.ne.pseudo %v487
        %v545 = vround.ne.pseudo %v488
        %v546 = vsel %vm530, %v544, -1.0
        %v547 = vsel %vm531, %v545, -1.0
        %s548 = scalar_lea.vmem [#allocation2], 96
        %549 = vst.msk [vmem:[%s548] sm:$0xff] %vm477, %v546
        %550 = vst.msk [vmem:[%s548 + $0x8] sm:$0xff] %vm477, %v547
        %s551 = scalar_lea.vmem %s335, 368 [#allocation3]
        %v552 = vld [vmem:[%s551] sm:$0xff]
        %v553 = vld [vmem:[%s551 + $0x8] sm:$0xff]
        %s554 = scalar_lea.vmem %s353, 80 [#allocation8]
        %v555 = vld [vmem:[%s554] sm:$0xff]
        %v556 = vld [vmem:[%s554 + $0x8] sm:$0xff]
        %s557 = scalar_lea.vmem %s344, 80 [#allocation6]
        %v558 = vld [vmem:[%s557] sm:$0xff]
        %v559 = vld [vmem:[%s557 + $0x8] sm:$0xff]
        %v560 = vsub.f32 1.0, %v552
        %v561 = vsub.f32 1.0, %v553
        %s562 = scalar_lea.vmem %s335, 320 [#allocation3]
        %v563 = vld [vmem:[%s562] sm:$0xff]
        %v564 = vld [vmem:[%s562 + $0x8] sm:$0xff]
        %v565 = vmul.f32 %v563, %v552
        %v566 = vmul.f32 %v564, %v553
        %v567 = vmul.f32 %v498, %v560
        %v568 = vmul.f32 %v499, %v561
        %v569 = vadd.f32 %v565, %v567
        %v570 = vadd.f32 %v566, %v568
        %s571 = scalar_lea.vmem %s335, 336 [#allocation3]
        %v572 = vld [vmem:[%s571] sm:$0xff]
        %v573 = vld [vmem:[%s571 + $0x8] sm:$0xff]
        %v574 = vmul.f32 %v572, %v552
        %v575 = vmul.f32 %v573, %v553
        %v576 = vmul.f32 %v507, %v560
        %v577 = vmul.f32 %v508, %v561
        %v578 = vadd.f32 %v574, %v576
        %v579 = vadd.f32 %v575, %v577
        %s580 = scalar_lea.vmem %s335, 352 [#allocation3]
        %v581 = vld [vmem:[%s580] sm:$0xff]
        %v582 = vld [vmem:[%s580 + $0x8] sm:$0xff]
        %v583 = vmul.f32 %v581, %v552
        %v584 = vmul.f32 %v582, %v553
        %v585 = vmul.f32 %v516, %v560
        %v586 = vmul.f32 %v517, %v561
        %v587 = vadd.f32 %v583, %v585
        %v588 = vadd.f32 %v584, %v586
        %v589 = vmax.f32 %v552, %v518
        %v590 = vmax.f32 %v553, %v519
        %vm591 = vcmp.gt.f32.partialorder %v555, 0.0
        %vm592 = vcmp.gt.f32.partialorder %v556, 0.0
        %v593 = vmul.f32 %v555, %v552
        %v594 = vmul.f32 %v556, %v553
        %v595 = vmul.f32 %v528, %v560
        %v596 = vmul.f32 %v529, %v561
        %v597 = vadd.f32 %v593, %v595
        %v598 = vadd.f32 %v594, %v596
        %v599 = vsel %vm591, %v597, %v528
        %v600 = vsel %vm592, %v598, %v529
        %vm601 = vcmp.ge.f32.partialorder %v555, 0.0
        %vm602 = vcmp.ge.f32.partialorder %v556, 0.0
        %vm603 = vweird.f32 %v558
        %vm604 = vweird.f32 %v559
        %vm605 = vmxor %vm603, 1
        %vm606 = vmxor %vm604, 1
        %vm607 = vmand %vm601, %vm605
        %vm608 = vmand %vm602, %vm606
        %vm609 = vcmp.gt.f32.partialorder %v552, 0.5
        %vm610 = vcmp.gt.f32.partialorder %v553, 0.5
        %vm611 = vmand %vm607, %vm609
        %vm612 = vmand %vm608, %vm610
        %v613 = vsel %vm611, %v558, %v542
        %v614 = vsel %vm612, %v559, %v543
        %v615 = vround.ne.pseudo %v558
        %v616 = vround.ne.pseudo %v559
        %v617 = vsel %vm601, %v615, -1.0
        %v618 = vsel %vm602, %v616, -1.0
        %s619 = scalar_lea.vmem [#allocation2], 80
        %620 = vst.msk [vmem:[%s619] sm:$0xff] %vm477, %v617
        %621 = vst.msk [vmem:[%s619 + $0x8] sm:$0xff] %vm477, %v618
        %s622 = scalar_lea.vmem %s335, 304 [#allocation3]
        %v623 = vld [vmem:[%s622] sm:$0xff]
        %v624 = vld [vmem:[%s622 + $0x8] sm:$0xff]
        %s625 = scalar_lea.vmem %s353, 64 [#allocation8]
        %v626 = vld [vmem:[%s625] sm:$0xff]
        %v627 = vld [vmem:[%s625 + $0x8] sm:$0xff]
        %s628 = scalar_lea.vmem %s344, 64 [#allocation6]
        %v629 = vld [vmem:[%s628] sm:$0xff]
        %v630 = vld [vmem:[%s628 + $0x8] sm:$0xff]
        %v631 = vsub.f32 1.0, %v623
        %v632 = vsub.f32 1.0, %v624
        %s633 = scalar_lea.vmem %s335, 256 [#allocation3]
        %v634 = vld [vmem:[%s633] sm:$0xff]
        %v635 = vld [vmem:[%s633 + $0x8] sm:$0xff]
        %v636 = vmul.f32 %v634, %v623
        %v637 = vmul.f32 %v635, %v624
        %v638 = vmul.f32 %v569, %v631
        %v639 = vmul.f32 %v570, %v632
        %v640 = vadd.f32 %v636, %v638
        %v641 = vadd.f32 %v637, %v639
        %s642 = scalar_lea.vmem %s335, 272 [#allocation3]
        %v643 = vld [vmem:[%s642] sm:$0xff]
        %v644 = vld [vmem:[%s642 + $0x8] sm:$0xff]
        %v645 = vmul.f32 %v643, %v623
        %v646 = vmul.f32 %v644, %v624
        %v647 = vmul.f32 %v578, %v631
        %v648 = vmul.f32 %v579, %v632
        %v649 = vadd.f32 %v645, %v647
        %v650 = vadd.f32 %v646, %v648
        %s651 = scalar_lea.vmem %s335, 288 [#allocation3]
        %v652 = vld [vmem:[%s651] sm:$0xff]
        %v653 = vld [vmem:[%s651 + $0x8] sm:$0xff]
        %v654 = vmul.f32 %v652, %v623
        %v655 = vmul.f32 %v653, %v624
        %v656 = vmul.f32 %v587, %v631
        %v657 = vmul.f32 %v588, %v632
        %v658 = vadd.f32 %v654, %v656
        %v659 = vadd.f32 %v655, %v657
        %v660 = vmax.f32 %v623, %v589
        %v661 = vmax.f32 %v624, %v590
        %vm662 = vcmp.gt.f32.partialorder %v626, 0.0
        %vm663 = vcmp.gt.f32.partialorder %v627, 0.0
        %v664 = vmul.f32 %v626, %v623
        %v665 = vmul.f32 %v627, %v624
        %v666 = vmul.f32 %v599, %v631
        %v667 = vmul.f32 %v600, %v632
        %v668 = vadd.f32 %v664, %v666
        %v669 = vadd.f32 %v665, %v667
        %v670 = vsel %vm662, %v668, %v599
        %v671 = vsel %vm663, %v669, %v600
        %vm672 = vcmp.ge.f32.partialorder %v626, 0.0
        %vm673 = vcmp.ge.f32.partialorder %v627, 0.0
        %vm674 = vweird.f32 %v629
        %vm675 = vweird.f32 %v630
        %vm676 = vmxor %vm674, 1
        %vm677 = vmxor %vm675, 1
        %vm678 = vmand %vm672, %vm676
        %vm679 = vmand %vm673, %vm677
        %vm680 = vcmp.gt.f32.partialorder %v623, 0.5
        %vm681 = vcmp.gt.f32.partialorder %v624, 0.5
        %vm682 = vmand %vm678, %vm680
        %vm683 = vmand %vm679, %vm681
        %v684 = vsel %vm682, %v629, %v613
        %v685 = vsel %vm683, %v630, %v614
        %v686 = vround.ne.pseudo %v629
        %v687 = vround.ne.pseudo %v630
        %v688 = vsel %vm672, %v686, -1.0
        %v689 = vsel %vm673, %v687, -1.0
        %s690 = scalar_lea.vmem [#allocation2], 64
        %691 = vst.msk [vmem:[%s690] sm:$0xff] %vm477, %v688
        %692 = vst.msk [vmem:[%s690 + $0x8] sm:$0xff] %vm477, %v689
        %s693 = scalar_lea.vmem %s335, 240 [#allocation3]
        %v694 = vld [vmem:[%s693] sm:$0xff]
        %v695 = vld [vmem:[%s693 + $0x8] sm:$0xff]
        %s696 = scalar_lea.vmem %s353, 48 [#allocation8]
        %v697 = vld [vmem:[%s696] sm:$0xff]
        %v698 = vld [vmem:[%s696 + $0x8] sm:$0xff]
        %s699 = scalar_lea.vmem %s344, 48 [#allocation6]
        %v700 = vld [vmem:[%s699] sm:$0xff]
        %v701 = vld [vmem:[%s699 + $0x8] sm:$0xff]
        %v702 = vsub.f32 1.0, %v694
        %v703 = vsub.f32 1.0, %v695
        %s704 = scalar_lea.vmem %s335, 192 [#allocation3]
        %v705 = vld [vmem:[%s704] sm:$0xff]
        %v706 = vld [vmem:[%s704 + $0x8] sm:$0xff]
        %v707 = vmul.f32 %v705, %v694
        %v708 = vmul.f32 %v706, %v695
        %v709 = vmul.f32 %v640, %v702
        %v710 = vmul.f32 %v641, %v703
        %v711 = vadd.f32 %v707, %v709
        %v712 = vadd.f32 %v708, %v710
        %s713 = scalar_lea.vmem %s335, 208 [#allocation3]
        %v714 = vld [vmem:[%s713] sm:$0xff]
        %v715 = vld [vmem:[%s713 + $0x8] sm:$0xff]
        %v716 = vmul.f32 %v714, %v694
        %v717 = vmul.f32 %v715, %v695
        %v718 = vmul.f32 %v649, %v702
        %v719 = vmul.f32 %v650, %v703
        %v720 = vadd.f32 %v716, %v718
        %v721 = vadd.f32 %v717, %v719
        %s722 = scalar_lea.vmem %s335, 224 [#allocation3]
        %v723 = vld [vmem:[%s722] sm:$0xff]
        %v724 = vld [vmem:[%s722 + $0x8] sm:$0xff]
        %v725 = vmul.f32 %v723, %v694
        %v726 = vmul.f32 %v724, %v695
        %v727 = vmul.f32 %v658, %v702
        %v728 = vmul.f32 %v659, %v703
        %v729 = vadd.f32 %v725, %v727
        %v730 = vadd.f32 %v726, %v728
        %v731 = vmax.f32 %v694, %v660
        %v732 = vmax.f32 %v695, %v661
        %vm733 = vcmp.gt.f32.partialorder %v697, 0.0
        %vm734 = vcmp.gt.f32.partialorder %v698, 0.0
        %v735 = vmul.f32 %v697, %v694
        %v736 = vmul.f32 %v698, %v695
        %v737 = vmul.f32 %v670, %v702
        %v738 = vmul.f32 %v671, %v703
        %v739 = vadd.f32 %v735, %v737
        %v740 = vadd.f32 %v736, %v738
        %v741 = vsel %vm733, %v739, %v670
        %v742 = vsel %vm734, %v740, %v671
        %vm743 = vcmp.ge.f32.partialorder %v697, 0.0
        %vm744 = vcmp.ge.f32.partialorder %v698, 0.0
        %vm745 = vweird.f32 %v700
        %vm746 = vweird.f32 %v701
        %vm747 = vmxor %vm745, 1
        %vm748 = vmxor %vm746, 1
        %vm749 = vmand %vm743, %vm747
        %vm750 = vmand %vm744, %vm748
        %vm751 = vcmp.gt.f32.partialorder %v694, 0.5
        %vm752 = vcmp.gt.f32.partialorder %v695, 0.5
        %vm753 = vmand %vm749, %vm751
        %vm754 = vmand %vm750, %vm752
        %v755 = vsel %vm753, %v700, %v684
        %v756 = vsel %vm754, %v701, %v685
        %v757 = vround.ne.pseudo %v700
        %v758 = vround.ne.pseudo %v701
        %v759 = vsel %vm743, %v757, -1.0
        %v760 = vsel %vm744, %v758, -1.0
        %s761 = scalar_lea.vmem [#allocation2], 48
        %762 = vst.msk [vmem:[%s761] sm:$0xff] %vm477, %v759
        %763 = vst.msk [vmem:[%s761 + $0x8] sm:$0xff] %vm477, %v760
        %s764 = scalar_lea.vmem %s335, 176 [#allocation3]
        %v765 = vld [vmem:[%s764] sm:$0xff]
        %v766 = vld [vmem:[%s764 + $0x8] sm:$0xff]
        %s767 = scalar_lea.vmem %s353, 32 [#allocation8]
        %v768 = vld [vmem:[%s767] sm:$0xff]
        %v769 = vld [vmem:[%s767 + $0x8] sm:$0xff]
        %s770 = scalar_lea.vmem %s344, 32 [#allocation6]
        %v771 = vld [vmem:[%s770] sm:$0xff]
        %v772 = vld [vmem:[%s770 + $0x8] sm:$0xff]
        %v773 = vsub.f32 1.0, %v765
        %v774 = vsub.f32 1.0, %v766
        %s775 = scalar_lea.vmem %s335, 128 [#allocation3]
        %v776 = vld [vmem:[%s775] sm:$0xff]
        %v777 = vld [vmem:[%s775 + $0x8] sm:$0xff]
        %v778 = vmul.f32 %v776, %v765
        %v779 = vmul.f32 %v777, %v766
        %v780 = vmul.f32 %v711, %v773
        %v781 = vmul.f32 %v712, %v774
        %v782 = vadd.f32 %v778, %v780
        %v783 = vadd.f32 %v779, %v781
        %s784 = scalar_lea.vmem %s335, 144 [#allocation3]
        %v785 = vld [vmem:[%s784] sm:$0xff]
        %v786 = vld [vmem:[%s784 + $0x8] sm:$0xff]
        %v787 = vmul.f32 %v785, %v765
        %v788 = vmul.f32 %v786, %v766
        %v789 = vmul.f32 %v720, %v773
        %v790 = vmul.f32 %v721, %v774
        %v791 = vadd.f32 %v787, %v789
        %v792 = vadd.f32 %v788, %v790
        %s793 = scalar_lea.vmem %s335, 160 [#allocation3]
        %v794 = vld [vmem:[%s793] sm:$0xff]
        %v795 = vld [vmem:[%s793 + $0x8] sm:$0xff]
        %v796 = vmul.f32 %v794, %v765
        %v797 = vmul.f32 %v795, %v766
        %v798 = vmul.f32 %v729, %v773
        %v799 = vmul.f32 %v730, %v774
        %v800 = vadd.f32 %v796, %v798
        %v801 = vadd.f32 %v797, %v799
        %v802 = vmax.f32 %v765, %v731
        %v803 = vmax.f32 %v766, %v732
        %vm804 = vcmp.gt.f32.partialorder %v768, 0.0
        %vm805 = vcmp.gt.f32.partialorder %v769, 0.0
        %v806 = vmul.f32 %v768, %v765
        %v807 = vmul.f32 %v769, %v766
        %v808 = vmul.f32 %v741, %v773
        %v809 = vmul.f32 %v742, %v774
        %v810 = vadd.f32 %v806, %v808
        %v811 = vadd.f32 %v807, %v809
        %v812 = vsel %vm804, %v810, %v741
        %v813 = vsel %vm805, %v811, %v742
        %vm814 = vcmp.ge.f32.partialorder %v768, 0.0
        %vm815 = vcmp.ge.f32.partialorder %v769, 0.0
        %vm816 = vweird.f32 %v771
        %vm817 = vweird.f32 %v772
        %vm818 = vmxor %vm816, 1
        %vm819 = vmxor %vm817, 1
        %vm820 = vmand %vm814, %vm818
        %vm821 = vmand %vm815, %vm819
        %vm822 = vcmp.gt.f32.partialorder %v765, 0.5
        %vm823 = vcmp.gt.f32.partialorder %v766, 0.5
        %vm824 = vmand %vm820, %vm822
        %vm825 = vmand %vm821, %vm823
        %v826 = vsel %vm824, %v771, %v755
        %v827 = vsel %vm825, %v772, %v756
        %v828 = vround.ne.pseudo %v771
        %v829 = vround.ne.pseudo %v772
        %v830 = vsel %vm814, %v828, -1.0
        %v831 = vsel %vm815, %v829, -1.0
        %s832 = scalar_lea.vmem [#allocation2], 32
        %833 = vst.msk [vmem:[%s832] sm:$0xff] %vm477, %v830
        %834 = vst.msk [vmem:[%s832 + $0x8] sm:$0xff] %vm477, %v831
        %s835 = scalar_lea.vmem %s335, 112 [#allocation3]
        %v836 = vld [vmem:[%s835] sm:$0xff]
        %v837 = vld [vmem:[%s835 + $0x8] sm:$0xff]
        %s838 = scalar_lea.vmem %s353, 16 [#allocation8]
        %v839 = vld [vmem:[%s838] sm:$0xff]
        %v840 = vld [vmem:[%s838 + $0x8] sm:$0xff]
        %s841 = scalar_lea.vmem %s344, 16 [#allocation6]
        %v842 = vld [vmem:[%s841] sm:$0xff]
        %v843 = vld [vmem:[%s841 + $0x8] sm:$0xff]
        %v844 = vsub.f32 1.0, %v836
        %v845 = vsub.f32 1.0, %v837
        %s846 = scalar_lea.vmem %s335, 64 [#allocation3]
        %v847 = vld [vmem:[%s846] sm:$0xff]
        %v848 = vld [vmem:[%s846 + $0x8] sm:$0xff]
        %v849 = vmul.f32 %v847, %v836
        %v850 = vmul.f32 %v848, %v837
        %v851 = vmul.f32 %v782, %v844
        %v852 = vmul.f32 %v783, %v845
        %v853 = vadd.f32 %v849, %v851
        %v854 = vadd.f32 %v850, %v852
        %s855 = scalar_lea.vmem %s335, 80 [#allocation3]
        %v856 = vld [vmem:[%s855] sm:$0xff]
        %v857 = vld [vmem:[%s855 + $0x8] sm:$0xff]
        %v858 = vmul.f32 %v856, %v836
        %v859 = vmul.f32 %v857, %v837
        %v860 = vmul.f32 %v791, %v844
        %v861 = vmul.f32 %v792, %v845
        %v862 = vadd.f32 %v858, %v860
        %v863 = vadd.f32 %v859, %v861
        %s864 = scalar_lea.vmem %s335, 96 [#allocation3]
        %v865 = vld [vmem:[%s864] sm:$0xff]
        %v866 = vld [vmem:[%s864 + $0x8] sm:$0xff]
        %v867 = vmul.f32 %v865, %v836
        %v868 = vmul.f32 %v866, %v837
        %v869 = vmul.f32 %v800, %v844
        %v870 = vmul.f32 %v801, %v845
        %v871 = vadd.f32 %v867, %v869
        %v872 = vadd.f32 %v868, %v870
        %v873 = vmax.f32 %v836, %v802
        %v874 = vmax.f32 %v837, %v803
        %vm875 = vcmp.gt.f32.partialorder %v839, 0.0
        %vm876 = vcmp.gt.f32.partialorder %v840, 0.0
        %v877 = vmul.f32 %v839, %v836
        %v878 = vmul.f32 %v840, %v837
        %v879 = vmul.f32 %v812, %v844
        %v880 = vmul.f32 %v813, %v845
        %v881 = vadd.f32 %v877, %v879
        %v882 = vadd.f32 %v878, %v880
        %v883 = vsel %vm875, %v881, %v812
        %v884 = vsel %vm876, %v882, %v813
        %vm885 = vcmp.ge.f32.partialorder %v839, 0.0
        %vm886 = vcmp.ge.f32.partialorder %v840, 0.0
        %vm887 = vweird.f32 %v842
        %vm888 = vweird.f32 %v843
        %vm889 = vmxor %vm887, 1
        %vm890 = vmxor %vm888, 1
        %vm891 = vmand %vm885, %vm889
        %vm892 = vmand %vm886, %vm890
        %vm893 = vcmp.gt.f32.partialorder %v836, 0.5
        %vm894 = vcmp.gt.f32.partialorder %v837, 0.5
        %vm895 = vmand %vm891, %vm893
        %vm896 = vmand %vm892, %vm894
        %v897 = vsel %vm895, %v842, %v826
        %v898 = vsel %vm896, %v843, %v827
        %v899 = vround.ne.pseudo %v842
        %v900 = vround.ne.pseudo %v843
        %v901 = vsel %vm885, %v899, -1.0
        %v902 = vsel %vm886, %v900, -1.0
        %s903 = scalar_lea.vmem [#allocation2], 16
        %904 = vst.msk [vmem:[%s903] sm:$0xff] %vm477, %v901
        %905 = vst.msk [vmem:[%s903 + $0x8] sm:$0xff] %vm477, %v902
        %s906 = scalar_lea.vmem %s335, 48 [#allocation3]
        %v907 = vld [vmem:[%s906] sm:$0xff]
        %v908 = vld [vmem:[%s906 + $0x8] sm:$0xff]
        %v909 = vld [vmem:[%s353] sm:$0xff]
        %v910 = vld [vmem:[%s353 + $0x8] sm:$0xff]
        %v911 = vld [vmem:[%s344] sm:$0xff]
        %v912 = vld [vmem:[%s344 + $0x8] sm:$0xff]
        %v913 = vsub.f32 1.0, %v907
        %v914 = vsub.f32 1.0, %v908
        %v915 = vld [vmem:[%s335] sm:$0xff]
        %v916 = vld [vmem:[%s335 + $0x8] sm:$0xff]
        %v917 = vmul.f32 %v915, %v907
        %v918 = vmul.f32 %v916, %v908
        %v919 = vmul.f32 %v853, %v913
        %v920 = vmul.f32 %v854, %v914
        %v921 = vadd.f32 %v917, %v919
        %v922 = vadd.f32 %v918, %v920
        %s923 = scalar_lea.vmem %s335, 16 [#allocation3]
        %v924 = vld [vmem:[%s923] sm:$0xff]
        %v925 = vld [vmem:[%s923 + $0x8] sm:$0xff]
        %v926 = vmul.f32 %v924, %v907
        %v927 = vmul.f32 %v925, %v908
        %v928 = vmul.f32 %v862, %v913
        %v929 = vmul.f32 %v863, %v914
        %v930 = vadd.f32 %v926, %v928
        %v931 = vadd.f32 %v927, %v929
        %s932 = scalar_lea.vmem %s335, 32 [#allocation3]
        %v933 = vld [vmem:[%s932] sm:$0xff]
        %v934 = vld [vmem:[%s932 + $0x8] sm:$0xff]
        %v935 = vmul.f32 %v933, %v907
        %v936 = vmul.f32 %v934, %v908
        %v937 = vmul.f32 %v871, %v913
        %v938 = vmul.f32 %v872, %v914
        %v939 = vadd.f32 %v935, %v937
        %v940 = vadd.f32 %v936, %v938
        %v941 = vmax.f32 %v907, %v873
        %v942 = vmax.f32 %v908, %v874
        %vm943 = vcmp.gt.f32.partialorder %v909, 0.0
        %vm944 = vcmp.gt.f32.partialorder %v910, 0.0
        %v945 = vmul.f32 %v909, %v907
        %v946 = vmul.f32 %v910, %v908
        %v947 = vmul.f32 %v883, %v913
        %v948 = vmul.f32 %v884, %v914
        %v949 = vadd.f32 %v945, %v947
        %v950 = vadd.f32 %v946, %v948
        %v951 = vsel %vm943, %v949, %v883
        %v952 = vsel %vm944, %v950, %v884
        %vm953 = vcmp.ge.f32.partialorder %v909, 0.0
        %vm954 = vcmp.ge.f32.partialorder %v910, 0.0
        %vm955 = vweird.f32 %v911
        %vm956 = vweird.f32 %v912
        %vm957 = vmxor %vm955, 1
        %vm958 = vmxor %vm956, 1
        %vm959 = vmand %vm953, %vm957
        %vm960 = vmand %vm954, %vm958
        %vm961 = vcmp.gt.f32.partialorder %v907, 0.5
        %vm962 = vcmp.gt.f32.partialorder %v908, 0.5
        %vm963 = vmand %vm959, %vm961
        %vm964 = vmand %vm960, %vm962
        %v965 = vsel %vm963, %v911, %v897
        %v966 = vsel %vm964, %v912, %v898
        %v967 = vround.ne.pseudo %v911
        %v968 = vround.ne.pseudo %v912
        %v969 = vsel %vm953, %v967, -1.0
        %v970 = vsel %vm954, %v968, -1.0
        %971 = vst.msk [vmem:[#allocation2] sm:$0xff] %vm477, %v969
        %972 = vst.msk [vmem:[#allocation2 + $0x8] sm:$0xff] %vm477, %v970
        %973 = vst.msk [vmem:[%s385] sm:$0xff] %vm477, %v921
        %974 = vst.msk [vmem:[%s385 + $0x8] sm:$0xff] %vm477, %v922
        %s975 = scalar_lea.vmem %s385, 16 [#allocation9]
        %976 = vst.msk [vmem:[%s975] sm:$0xff] %vm477, %v930
        %977 = vst.msk [vmem:[%s975 + $0x8] sm:$0xff] %vm477, %v931
        %s978 = scalar_lea.vmem %s385, 32 [#allocation9]
        %979 = vst.msk [vmem:[%s978] sm:$0xff] %vm477, %v939
        %980 = vst.msk [vmem:[%s978 + $0x8] sm:$0xff] %vm477, %v940
        %s981 = scalar_lea.vmem %s385, 48 [#allocation9]
        %982 = vst.msk [vmem:[%s981] sm:$0xff] %vm477, %v941
        %983 = vst.msk [vmem:[%s981 + $0x8] sm:$0xff] %vm477, %v942
        %984 = vst.msk [vmem:[%s392] sm:$0xff] %vm477, %v951
        %985 = vst.msk [vmem:[%s392 + $0x8] sm:$0xff] %vm477, %v952
        %vm986 = vcmp.gt.f32.partialorder %v965, 7.5
        %vm987 = vcmp.gt.f32.partialorder %v966, 7.5
        %v988 = vsel %vm986, -1.0, %v965
        %v989 = vsel %vm987, -1.0, %v966
        %v990 = vld [vmem:[%s476] sm:$0xff]
        %v991 = vld [vmem:[%s476 + $0x8] sm:$0xff]
        %vm992 = vcmp.eq.f32.partialorder %v990, 0.0
        %vm993 = vcmp.eq.f32.partialorder %v991, 0.0
        %v994 = vld [vmem:[%s425] sm:$0xff]
        %v995 = vld [vmem:[%s425 + $0x8] sm:$0xff]
        %v996 = vld [vmem:[%s425 + $0x10] sm:$0xff]
        %v997 = vld [vmem:[%s425 + $0x18] sm:$0xff]
        %v998 = vld [vmem:[%s425 + $0x20] sm:$0xff]
        %v999 = vld [vmem:[%s425 + $0x28] sm:$0xff]
        %v1000 = vld [vmem:[%s425 + $0x30] sm:$0xff]
        %v1001 = vld [vmem:[%s425 + $0x38] sm:$0xff]
        %v1002 = vsel %vm992, 1, 0
        %v1003 = vsel %vm993, 1, 0
        %vm1004 = vcmp.eq.s32.totalorder %v1002, 1
        %vm1005 = vcmp.eq.s32.totalorder %v1003, 1
        %v1006 = vsel %vm1004, %v994, 0.0
        %v1007 = vsel %vm1005, %v995, 0.0
        %v1008 = vsel %vm1004, %v996, 0.0
        %v1009 = vsel %vm1005, %v997, 0.0
        %v1010 = vsel %vm1004, %v998, 0.0
        %v1011 = vsel %vm1005, %v999, 0.0
        %v1012 = vsel %vm1004, %v1000, 0.0
        %v1013 = vsel %vm1005, %v1001, 0.0
        %v1014 = vld [vmem:[%s548] sm:$0xff]
        %v1015 = vld [vmem:[%s548 + $0x8] sm:$0xff]
        %vm1016 = vcmp.eq.f32.partialorder %v1014, 0.0
        %vm1017 = vcmp.eq.f32.partialorder %v1015, 0.0
        %v1018 = vld [vmem:[%s491] sm:$0xff]
        %v1019 = vld [vmem:[%s491 + $0x8] sm:$0xff]
        %v1020 = vld [vmem:[%s491 + $0x10] sm:$0xff]
        %v1021 = vld [vmem:[%s491 + $0x18] sm:$0xff]
        %v1022 = vld [vmem:[%s491 + $0x20] sm:$0xff]
        %v1023 = vld [vmem:[%s491 + $0x28] sm:$0xff]
        %v1024 = vld [vmem:[%s491 + $0x30] sm:$0xff]
        %v1025 = vld [vmem:[%s491 + $0x38] sm:$0xff]
        %v1026 = vsel %vm1016, 1, 0
        %v1027 = vsel %vm1017, 1, 0
        %vm1028 = vcmp.eq.s32.totalorder %v1026, 1
        %vm1029 = vcmp.eq.s32.totalorder %v1027, 1
        %v1030 = vsel %vm1028, %v1018, %v1006
        %v1031 = vsel %vm1029, %v1019, %v1007
        %v1032 = vsel %vm1028, %v1020, %v1008
        %v1033 = vsel %vm1029, %v1021, %v1009
        %v1034 = vsel %vm1028, %v1022, %v1010
        %v1035 = vsel %vm1029, %v1023, %v1011
        %v1036 = vsel %vm1028, %v1024, %v1012
        %v1037 = vsel %vm1029, %v1025, %v1013
        %v1038 = vld [vmem:[%s619] sm:$0xff]
        %v1039 = vld [vmem:[%s619 + $0x8] sm:$0xff]
        %vm1040 = vcmp.eq.f32.partialorder %v1038, 0.0
        %vm1041 = vcmp.eq.f32.partialorder %v1039, 0.0
        %v1042 = vld [vmem:[%s562] sm:$0xff]
        %v1043 = vld [vmem:[%s562 + $0x8] sm:$0xff]
        %v1044 = vld [vmem:[%s562 + $0x10] sm:$0xff]
        %v1045 = vld [vmem:[%s562 + $0x18] sm:$0xff]
        %v1046 = vld [vmem:[%s562 + $0x20] sm:$0xff]
        %v1047 = vld [vmem:[%s562 + $0x28] sm:$0xff]
        %v1048 = vld [vmem:[%s562 + $0x30] sm:$0xff]
        %v1049 = vld [vmem:[%s562 + $0x38] sm:$0xff]
        %v1050 = vsel %vm1040, 1, 0
        %v1051 = vsel %vm1041, 1, 0
        %vm1052 = vcmp.eq.s32.totalorder %v1050, 1
        %vm1053 = vcmp.eq.s32.totalorder %v1051, 1
        %v1054 = vsel %vm1052, %v1042, %v1030
        %v1055 = vsel %vm1053, %v1043, %v1031
        %v1056 = vsel %vm1052, %v1044, %v1032
        %v1057 = vsel %vm1053, %v1045, %v1033
        %v1058 = vsel %vm1052, %v1046, %v1034
        %v1059 = vsel %vm1053, %v1047, %v1035
        %v1060 = vsel %vm1052, %v1048, %v1036
        %v1061 = vsel %vm1053, %v1049, %v1037
        %v1062 = vld [vmem:[%s690] sm:$0xff]
        %v1063 = vld [vmem:[%s690 + $0x8] sm:$0xff]
        %vm1064 = vcmp.eq.f32.partialorder %v1062, 0.0
        %vm1065 = vcmp.eq.f32.partialorder %v1063, 0.0
        %v1066 = vld [vmem:[%s633] sm:$0xff]
        %v1067 = vld [vmem:[%s633 + $0x8] sm:$0xff]
        %v1068 = vld [vmem:[%s633 + $0x10] sm:$0xff]
        %v1069 = vld [vmem:[%s633 + $0x18] sm:$0xff]
        %v1070 = vld [vmem:[%s633 + $0x20] sm:$0xff]
        %v1071 = vld [vmem:[%s633 + $0x28] sm:$0xff]
        %v1072 = vld [vmem:[%s633 + $0x30] sm:$0xff]
        %v1073 = vld [vmem:[%s633 + $0x38] sm:$0xff]
        %v1074 = vsel %vm1064, 1, 0
        %v1075 = vsel %vm1065, 1, 0
        %vm1076 = vcmp.eq.s32.totalorder %v1074, 1
        %vm1077 = vcmp.eq.s32.totalorder %v1075, 1
        %v1078 = vsel %vm1076, %v1066, %v1054
        %v1079 = vsel %vm1077, %v1067, %v1055
        %v1080 = vsel %vm1076, %v1068, %v1056
        %v1081 = vsel %vm1077, %v1069, %v1057
        %v1082 = vsel %vm1076, %v1070, %v1058
        %v1083 = vsel %vm1077, %v1071, %v1059
        %v1084 = vsel %vm1076, %v1072, %v1060
        %v1085 = vsel %vm1077, %v1073, %v1061
        %v1086 = vld [vmem:[%s761] sm:$0xff]
        %v1087 = vld [vmem:[%s761 + $0x8] sm:$0xff]
        %vm1088 = vcmp.eq.f32.partialorder %v1086, 0.0
        %vm1089 = vcmp.eq.f32.partialorder %v1087, 0.0
        %v1090 = vld [vmem:[%s704] sm:$0xff]
        %v1091 = vld [vmem:[%s704 + $0x8] sm:$0xff]
        %v1092 = vld [vmem:[%s704 + $0x10] sm:$0xff]
        %v1093 = vld [vmem:[%s704 + $0x18] sm:$0xff]
        %v1094 = vld [vmem:[%s704 + $0x20] sm:$0xff]
        %v1095 = vld [vmem:[%s704 + $0x28] sm:$0xff]
        %v1096 = vld [vmem:[%s704 + $0x30] sm:$0xff]
        %v1097 = vld [vmem:[%s704 + $0x38] sm:$0xff]
        %v1098 = vsel %vm1088, 1, 0
        %v1099 = vsel %vm1089, 1, 0
        %vm1100 = vcmp.eq.s32.totalorder %v1098, 1
        %vm1101 = vcmp.eq.s32.totalorder %v1099, 1
        %v1102 = vsel %vm1100, %v1090, %v1078
        %v1103 = vsel %vm1101, %v1091, %v1079
        %v1104 = vsel %vm1100, %v1092, %v1080
        %v1105 = vsel %vm1101, %v1093, %v1081
        %v1106 = vsel %vm1100, %v1094, %v1082
        %v1107 = vsel %vm1101, %v1095, %v1083
        %v1108 = vsel %vm1100, %v1096, %v1084
        %v1109 = vsel %vm1101, %v1097, %v1085
        %v1110 = vld [vmem:[%s832] sm:$0xff]
        %v1111 = vld [vmem:[%s832 + $0x8] sm:$0xff]
        %vm1112 = vcmp.eq.f32.partialorder %v1110, 0.0
        %vm1113 = vcmp.eq.f32.partialorder %v1111, 0.0
        %v1114 = vld [vmem:[%s775] sm:$0xff]
        %v1115 = vld [vmem:[%s775 + $0x8] sm:$0xff]
        %v1116 = vld [vmem:[%s775 + $0x10] sm:$0xff]
        %v1117 = vld [vmem:[%s775 + $0x18] sm:$0xff]
        %v1118 = vld [vmem:[%s775 + $0x20] sm:$0xff]
        %v1119 = vld [vmem:[%s775 + $0x28] sm:$0xff]
        %v1120 = vld [vmem:[%s775 + $0x30] sm:$0xff]
        %v1121 = vld [vmem:[%s775 + $0x38] sm:$0xff]
        %v1122 = vsel %vm1112, 1, 0
        %v1123 = vsel %vm1113, 1, 0
        %vm1124 = vcmp.eq.s32.totalorder %v1122, 1
        %vm1125 = vcmp.eq.s32.totalorder %v1123, 1
        %v1126 = vsel %vm1124, %v1114, %v1102
        %v1127 = vsel %vm1125, %v1115, %v1103
        %v1128 = vsel %vm1124, %v1116, %v1104
        %v1129 = vsel %vm1125, %v1117, %v1105
        %v1130 = vsel %vm1124, %v1118, %v1106
        %v1131 = vsel %vm1125, %v1119, %v1107
        %v1132 = vsel %vm1124, %v1120, %v1108
        %v1133 = vsel %vm1125, %v1121, %v1109
        %v1134 = vld [vmem:[%s903] sm:$0xff]
        %v1135 = vld [vmem:[%s903 + $0x8] sm:$0xff]
        %vm1136 = vcmp.eq.f32.partialorder %v1134, 0.0
        %vm1137 = vcmp.eq.f32.partialorder %v1135, 0.0
        %v1138 = vld [vmem:[%s846] sm:$0xff]
        %v1139 = vld [vmem:[%s846 + $0x8] sm:$0xff]
        %v1140 = vld [vmem:[%s846 + $0x10] sm:$0xff]
        %v1141 = vld [vmem:[%s846 + $0x18] sm:$0xff]
        %v1142 = vld [vmem:[%s846 + $0x20] sm:$0xff]
        %v1143 = vld [vmem:[%s846 + $0x28] sm:$0xff]
        %v1144 = vld [vmem:[%s846 + $0x30] sm:$0xff]
        %v1145 = vld [vmem:[%s846 + $0x38] sm:$0xff]
        %v1146 = vsel %vm1136, 1, 0
        %v1147 = vsel %vm1137, 1, 0
        %vm1148 = vcmp.eq.s32.totalorder %v1146, 1
        %vm1149 = vcmp.eq.s32.totalorder %v1147, 1
        %v1150 = vsel %vm1148, %v1138, %v1126
        %v1151 = vsel %vm1149, %v1139, %v1127
        %v1152 = vsel %vm1148, %v1140, %v1128
        %v1153 = vsel %vm1149, %v1141, %v1129
        %v1154 = vsel %vm1148, %v1142, %v1130
        %v1155 = vsel %vm1149, %v1143, %v1131
        %v1156 = vsel %vm1148, %v1144, %v1132
        %v1157 = vsel %vm1149, %v1145, %v1133
        %v1158 = vld [vmem:[#allocation2] sm:$0xff]
        %v1159 = vld [vmem:[#allocation2 + $0x8] sm:$0xff]
        %vm1160 = vcmp.eq.f32.partialorder %v1158, 0.0
        %vm1161 = vcmp.eq.f32.partialorder %v1159, 0.0
        %v1162 = vld [vmem:[%s335] sm:$0xff]
        %v1163 = vld [vmem:[%s335 + $0x8] sm:$0xff]
        %v1164 = vld [vmem:[%s335 + $0x10] sm:$0xff]
        %v1165 = vld [vmem:[%s335 + $0x18] sm:$0xff]
        %v1166 = vld [vmem:[%s335 + $0x20] sm:$0xff]
        %v1167 = vld [vmem:[%s335 + $0x28] sm:$0xff]
        %v1168 = vld [vmem:[%s335 + $0x30] sm:$0xff]
        %v1169 = vld [vmem:[%s335 + $0x38] sm:$0xff]
        %v1170 = vsel %vm1160, 1, 0
        %v1171 = vsel %vm1161, 1, 0
        %vm1172 = vcmp.eq.s32.totalorder %v1170, 1
        %vm1173 = vcmp.eq.s32.totalorder %v1171, 1
        %v1174 = vsel %vm1172, %v1162, %v1150
        %v1175 = vsel %vm1173, %v1163, %v1151
        %v1176 = vsel %vm1172, %v1164, %v1152
        %v1177 = vsel %vm1173, %v1165, %v1153
        %v1178 = vsel %vm1172, %v1166, %v1154
        %v1179 = vsel %vm1173, %v1167, %v1155
        %v1180 = vsel %vm1172, %v1168, %v1156
        %v1181 = vsel %vm1173, %v1169, %v1157
        %v1182 = vsub.f32 1.0, %v1180
        %v1183 = vsub.f32 1.0, %v1181
        %v1184 = vmul.f32 %v1174, %v1180
        %v1185 = vmul.f32 %v1175, %v1181
        %v1186 = vadd.f32 %v1184, %v1182
        %v1187 = vadd.f32 %v1185, %v1183
        %1188 = vst.msk [vmem:[%s406] sm:$0xff] %vm477, %v1186
        %1189 = vst.msk [vmem:[%s406 + $0x8] sm:$0xff] %vm477, %v1187
        %v1190 = vmul.f32 %v1176, %v1180
        %v1191 = vmul.f32 %v1177, %v1181
        %v1192 = vadd.f32 %v1190, %v1182
        %v1193 = vadd.f32 %v1191, %v1183
        %s1194 = scalar_lea.vmem %s406, 16 [#allocation13]
        %1195 = vst.msk [vmem:[%s1194] sm:$0xff] %vm477, %v1192
        %1196 = vst.msk [vmem:[%s1194 + $0x8] sm:$0xff] %vm477, %v1193
        %v1197 = vmul.f32 %v1178, %v1180
        %v1198 = vmul.f32 %v1179, %v1181
        %v1199 = vadd.f32 %v1197, %v1182
        %v1200 = vadd.f32 %v1198, %v1183
        %s1201 = scalar_lea.vmem %s406, 32 [#allocation13]
        %1202 = vst.msk [vmem:[%s1201] sm:$0xff] %vm477, %v1199
        %1203 = vst.msk [vmem:[%s1201 + $0x8] sm:$0xff] %vm477, %v1200
        %s1204 = scalar_lea.vmem %s406, 48 [#allocation13]
        %1205 = vst.msk [vmem:[%s1204] sm:$0xff] %vm477, %v1180
        %1206 = vst.msk [vmem:[%s1204 + $0x8] sm:$0xff] %vm477, %v1181
        %vm1207 = vcmp.eq.f32.partialorder %v988, 0.0
        %vm1208 = vcmp.eq.f32.partialorder %v989, 0.0
        %vm1209 = vcmp.lt.f32.partialorder %v1180, 0.5
        %vm1210 = vcmp.lt.f32.partialorder %v1181, 0.5
        %vm1211 = vmand %vm1207, %vm1209
        %vm1212 = vmand %vm1208, %vm1210
        %v1213 = vsel %vm1211, -1.0, %v988
        %v1214 = vsel %vm1212, -1.0, %v989
        %v1215 = vld [vmem:[%s476] sm:$0xff]
        %v1216 = vld [vmem:[%s476 + $0x8] sm:$0xff]
        %vm1217 = vcmp.eq.f32.partialorder %v1215, 1.0
        %vm1218 = vcmp.eq.f32.partialorder %v1216, 1.0
        %v1219 = vld [vmem:[%s425] sm:$0xff]
        %v1220 = vld [vmem:[%s425 + $0x8] sm:$0xff]
        %v1221 = vld [vmem:[%s425 + $0x10] sm:$0xff]
        %v1222 = vld [vmem:[%s425 + $0x18] sm:$0xff]
        %v1223 = vld [vmem:[%s425 + $0x20] sm:$0xff]
        %v1224 = vld [vmem:[%s425 + $0x28] sm:$0xff]
        %v1225 = vld [vmem:[%s425 + $0x30] sm:$0xff]
        %v1226 = vld [vmem:[%s425 + $0x38] sm:$0xff]
        %v1227 = vsel %vm1217, 1, 0
        %v1228 = vsel %vm1218, 1, 0
        %vm1229 = vcmp.eq.s32.totalorder %v1227, 1
        %vm1230 = vcmp.eq.s32.totalorder %v1228, 1
        %v1231 = vsel %vm1229, %v1219, 0.0
        %v1232 = vsel %vm1230, %v1220, 0.0
        %v1233 = vsel %vm1229, %v1221, 0.0
        %v1234 = vsel %vm1230, %v1222, 0.0
        %v1235 = vsel %vm1229, %v1223, 0.0
        %v1236 = vsel %vm1230, %v1224, 0.0
        %v1237 = vsel %vm1229, %v1225, 0.0
        %v1238 = vsel %vm1230, %v1226, 0.0
        %v1239 = vld [vmem:[%s548] sm:$0xff]
        %v1240 = vld [vmem:[%s548 + $0x8] sm:$0xff]
        %vm1241 = vcmp.eq.f32.partialorder %v1239, 1.0
        %vm1242 = vcmp.eq.f32.partialorder %v1240, 1.0
        %v1243 = vld [vmem:[%s491] sm:$0xff]
        %v1244 = vld [vmem:[%s491 + $0x8] sm:$0xff]
        %v1245 = vld [vmem:[%s491 + $0x10] sm:$0xff]
        %v1246 = vld [vmem:[%s491 + $0x18] sm:$0xff]
        %v1247 = vld [vmem:[%s491 + $0x20] sm:$0xff]
        %v1248 = vld [vmem:[%s491 + $0x28] sm:$0xff]
        %v1249 = vld [vmem:[%s491 + $0x30] sm:$0xff]
        %v1250 = vld [vmem:[%s491 + $0x38] sm:$0xff]
        %v1251 = vsel %vm1241, 1, 0
        %v1252 = vsel %vm1242, 1, 0
        %vm1253 = vcmp.eq.s32.totalorder %v1251, 1
        %vm1254 = vcmp.eq.s32.totalorder %v1252, 1
        %v1255 = vsel %vm1253, %v1243, %v1231
        %v1256 = vsel %vm1254, %v1244, %v1232
        %v1257 = vsel %vm1253, %v1245, %v1233
        %v1258 = vsel %vm1254, %v1246, %v1234
        %v1259 = vsel %vm1253, %v1247, %v1235
        %v1260 = vsel %vm1254, %v1248, %v1236
        %v1261 = vsel %vm1253, %v1249, %v1237
        %v1262 = vsel %vm1254, %v1250, %v1238
        %v1263 = vld [vmem:[%s619] sm:$0xff]
        %v1264 = vld [vmem:[%s619 + $0x8] sm:$0xff]
        %vm1265 = vcmp.eq.f32.partialorder %v1263, 1.0
        %vm1266 = vcmp.eq.f32.partialorder %v1264, 1.0
        %v1267 = vld [vmem:[%s562] sm:$0xff]
        %v1268 = vld [vmem:[%s562 + $0x8] sm:$0xff]
        %v1269 = vld [vmem:[%s562 + $0x10] sm:$0xff]
        %v1270 = vld [vmem:[%s562 + $0x18] sm:$0xff]
        %v1271 = vld [vmem:[%s562 + $0x20] sm:$0xff]
        %v1272 = vld [vmem:[%s562 + $0x28] sm:$0xff]
        %v1273 = vld [vmem:[%s562 + $0x30] sm:$0xff]
        %v1274 = vld [vmem:[%s562 + $0x38] sm:$0xff]
        %v1275 = vsel %vm1265, 1, 0
        %v1276 = vsel %vm1266, 1, 0
        %vm1277 = vcmp.eq.s32.totalorder %v1275, 1
        %vm1278 = vcmp.eq.s32.totalorder %v1276, 1
        %v1279 = vsel %vm1277, %v1267, %v1255
        %v1280 = vsel %vm1278, %v1268, %v1256
        %v1281 = vsel %vm1277, %v1269, %v1257
        %v1282 = vsel %vm1278, %v1270, %v1258
        %v1283 = vsel %vm1277, %v1271, %v1259
        %v1284 = vsel %vm1278, %v1272, %v1260
        %v1285 = vsel %vm1277, %v1273, %v1261
        %v1286 = vsel %vm1278, %v1274, %v1262
        %v1287 = vld [vmem:[%s690] sm:$0xff]
        %v1288 = vld [vmem:[%s690 + $0x8] sm:$0xff]
        %vm1289 = vcmp.eq.f32.partialorder %v1287, 1.0
        %vm1290 = vcmp.eq.f32.partialorder %v1288, 1.0
        %v1291 = vld [vmem:[%s633] sm:$0xff]
        %v1292 = vld [vmem:[%s633 + $0x8] sm:$0xff]
        %v1293 = vld [vmem:[%s633 + $0x10] sm:$0xff]
        %v1294 = vld [vmem:[%s633 + $0x18] sm:$0xff]
        %v1295 = vld [vmem:[%s633 + $0x20] sm:$0xff]
        %v1296 = vld [vmem:[%s633 + $0x28] sm:$0xff]
        %v1297 = vld [vmem:[%s633 + $0x30] sm:$0xff]
        %v1298 = vld [vmem:[%s633 + $0x38] sm:$0xff]
        %v1299 = vsel %vm1289, 1, 0
        %v1300 = vsel %vm1290, 1, 0
        %vm1301 = vcmp.eq.s32.totalorder %v1299, 1
        %vm1302 = vcmp.eq.s32.totalorder %v1300, 1
        %v1303 = vsel %vm1301, %v1291, %v1279
        %v1304 = vsel %vm1302, %v1292, %v1280
        %v1305 = vsel %vm1301, %v1293, %v1281
        %v1306 = vsel %vm1302, %v1294, %v1282
        %v1307 = vsel %vm1301, %v1295, %v1283
        %v1308 = vsel %vm1302, %v1296, %v1284
        %v1309 = vsel %vm1301, %v1297, %v1285
        %v1310 = vsel %vm1302, %v1298, %v1286
        %v1311 = vld [vmem:[%s761] sm:$0xff]
        %v1312 = vld [vmem:[%s761 + $0x8] sm:$0xff]
        %vm1313 = vcmp.eq.f32.partialorder %v1311, 1.0
        %vm1314 = vcmp.eq.f32.partialorder %v1312, 1.0
        %v1315 = vld [vmem:[%s704] sm:$0xff]
        %v1316 = vld [vmem:[%s704 + $0x8] sm:$0xff]
        %v1317 = vld [vmem:[%s704 + $0x10] sm:$0xff]
        %v1318 = vld [vmem:[%s704 + $0x18] sm:$0xff]
        %v1319 = vld [vmem:[%s704 + $0x20] sm:$0xff]
        %v1320 = vld [vmem:[%s704 + $0x28] sm:$0xff]
        %v1321 = vld [vmem:[%s704 + $0x30] sm:$0xff]
        %v1322 = vld [vmem:[%s704 + $0x38] sm:$0xff]
        %v1323 = vsel %vm1313, 1, 0
        %v1324 = vsel %vm1314, 1, 0
        %vm1325 = vcmp.eq.s32.totalorder %v1323, 1
        %vm1326 = vcmp.eq.s32.totalorder %v1324, 1
        %v1327 = vsel %vm1325, %v1315, %v1303
        %v1328 = vsel %vm1326, %v1316, %v1304
        %v1329 = vsel %vm1325, %v1317, %v1305
        %v1330 = vsel %vm1326, %v1318, %v1306
        %v1331 = vsel %vm1325, %v1319, %v1307
        %v1332 = vsel %vm1326, %v1320, %v1308
        %v1333 = vsel %vm1325, %v1321, %v1309
        %v1334 = vsel %vm1326, %v1322, %v1310
        %v1335 = vld [vmem:[%s832] sm:$0xff]
        %v1336 = vld [vmem:[%s832 + $0x8] sm:$0xff]
        %vm1337 = vcmp.eq.f32.partialorder %v1335, 1.0
        %vm1338 = vcmp.eq.f32.partialorder %v1336, 1.0
        %v1339 = vld [vmem:[%s775] sm:$0xff]
        %v1340 = vld [vmem:[%s775 + $0x8] sm:$0xff]
        %v1341 = vld [vmem:[%s775 + $0x10] sm:$0xff]
        %v1342 = vld [vmem:[%s775 + $0x18] sm:$0xff]
        %v1343 = vld [vmem:[%s775 + $0x20] sm:$0xff]
        %v1344 = vld [vmem:[%s775 + $0x28] sm:$0xff]
        %v1345 = vld [vmem:[%s775 + $0x30] sm:$0xff]
        %v1346 = vld [vmem:[%s775 + $0x38] sm:$0xff]
        %v1347 = vsel %vm1337, 1, 0
        %v1348 = vsel %vm1338, 1, 0
        %vm1349 = vcmp.eq.s32.totalorder %v1347, 1
        %vm1350 = vcmp.eq.s32.totalorder %v1348, 1
        %v1351 = vsel %vm1349, %v1339, %v1327
        %v1352 = vsel %vm1350, %v1340, %v1328
        %v1353 = vsel %vm1349, %v1341, %v1329
        %v1354 = vsel %vm1350, %v1342, %v1330
        %v1355 = vsel %vm1349, %v1343, %v1331
        %v1356 = vsel %vm1350, %v1344, %v1332
        %v1357 = vsel %vm1349, %v1345, %v1333
        %v1358 = vsel %vm1350, %v1346, %v1334
        %v1359 = vld [vmem:[%s903] sm:$0xff]
        %v1360 = vld [vmem:[%s903 + $0x8] sm:$0xff]
        %vm1361 = vcmp.eq.f32.partialorder %v1359, 1.0
        %vm1362 = vcmp.eq.f32.partialorder %v1360, 1.0
        %v1363 = vld [vmem:[%s846] sm:$0xff]
        %v1364 = vld [vmem:[%s846 + $0x8] sm:$0xff]
        %v1365 = vld [vmem:[%s846 + $0x10] sm:$0xff]
        %v1366 = vld [vmem:[%s846 + $0x18] sm:$0xff]
        %v1367 = vld [vmem:[%s846 + $0x20] sm:$0xff]
        %v1368 = vld [vmem:[%s846 + $0x28] sm:$0xff]
        %v1369 = vld [vmem:[%s846 + $0x30] sm:$0xff]
        %v1370 = vld [vmem:[%s846 + $0x38] sm:$0xff]
        %v1371 = vsel %vm1361, 1, 0
        %v1372 = vsel %vm1362, 1, 0
        %vm1373 = vcmp.eq.s32.totalorder %v1371, 1
        %vm1374 = vcmp.eq.s32.totalorder %v1372, 1
        %v1375 = vsel %vm1373, %v1363, %v1351
        %v1376 = vsel %vm1374, %v1364, %v1352
        %v1377 = vsel %vm1373, %v1365, %v1353
        %v1378 = vsel %vm1374, %v1366, %v1354
        %v1379 = vsel %vm1373, %v1367, %v1355
        %v1380 = vsel %vm1374, %v1368, %v1356
        %v1381 = vsel %vm1373, %v1369, %v1357
        %v1382 = vsel %vm1374, %v1370, %v1358
        %v1383 = vld [vmem:[#allocation2] sm:$0xff]
        %v1384 = vld [vmem:[#allocation2 + $0x8] sm:$0xff]
        %vm1385 = vcmp.eq.f32.partialorder %v1383, 1.0
        %vm1386 = vcmp.eq.f32.partialorder %v1384, 1.0
        %v1387 = vld [vmem:[%s335] sm:$0xff]
        %v1388 = vld [vmem:[%s335 + $0x8] sm:$0xff]
        %v1389 = vld [vmem:[%s335 + $0x10] sm:$0xff]
        %v1390 = vld [vmem:[%s335 + $0x18] sm:$0xff]
        %v1391 = vld [vmem:[%s335 + $0x20] sm:$0xff]
        %v1392 = vld [vmem:[%s335 + $0x28] sm:$0xff]
        %v1393 = vld [vmem:[%s335 + $0x30] sm:$0xff]
        %v1394 = vld [vmem:[%s335 + $0x38] sm:$0xff]
        %v1395 = vsel %vm1385, 1, 0
        %v1396 = vsel %vm1386, 1, 0
        %vm1397 = vcmp.eq.s32.totalorder %v1395, 1
        %vm1398 = vcmp.eq.s32.totalorder %v1396, 1
        %v1399 = vsel %vm1397, %v1387, %v1375
        %v1400 = vsel %vm1398, %v1388, %v1376
        %v1401 = vsel %vm1397, %v1389, %v1377
        %v1402 = vsel %vm1398, %v1390, %v1378
        %v1403 = vsel %vm1397, %v1391, %v1379
        %v1404 = vsel %vm1398, %v1392, %v1380
        %v1405 = vsel %vm1397, %v1393, %v1381
        %v1406 = vsel %vm1398, %v1394, %v1382
        %v1407 = vsub.f32 1.0, %v1405
        %v1408 = vsub.f32 1.0, %v1406
        %v1409 = vmul.f32 %v1399, %v1405
        %v1410 = vmul.f32 %v1400, %v1406
        %v1411 = vadd.f32 %v1409, %v1407
        %v1412 = vadd.f32 %v1410, %v1408
        %s1413 = scalar_lea.vmem %s406, 64 [#allocation13]
        %1414 = vst.msk [vmem:[%s1413] sm:$0xff] %vm477, %v1411
        %1415 = vst.msk [vmem:[%s1413 + $0x8] sm:$0xff] %vm477, %v1412
        %v1416 = vmul.f32 %v1401, %v1405
        %v1417 = vmul.f32 %v1402, %v1406
        %v1418 = vadd.f32 %v1416, %v1407
        %v1419 = vadd.f32 %v1417, %v1408
        %s1420 = scalar_lea.vmem %s406, 80 [#allocation13]
        %1421 = vst.msk [vmem:[%s1420] sm:$0xff] %vm477, %v1418
        %1422 = vst.msk [vmem:[%s1420 + $0x8] sm:$0xff] %vm477, %v1419
        %v1423 = vmul.f32 %v1403, %v1405
        %v1424 = vmul.f32 %v1404, %v1406
        %v1425 = vadd.f32 %v1423, %v1407
        %v1426 = vadd.f32 %v1424, %v1408
        %s1427 = scalar_lea.vmem %s406, 96 [#allocation13]
        %1428 = vst.msk [vmem:[%s1427] sm:$0xff] %vm477, %v1425
        %1429 = vst.msk [vmem:[%s1427 + $0x8] sm:$0xff] %vm477, %v1426
        %s1430 = scalar_lea.vmem %s406, 112 [#allocation13]
        %1431 = vst.msk [vmem:[%s1430] sm:$0xff] %vm477, %v1405
        %1432 = vst.msk [vmem:[%s1430 + $0x8] sm:$0xff] %vm477, %v1406
        %vm1433 = vcmp.eq.f32.partialorder %v1213, 1.0
        %vm1434 = vcmp.eq.f32.partialorder %v1214, 1.0
        %vm1435 = vcmp.lt.f32.partialorder %v1405, 0.5
        %vm1436 = vcmp.lt.f32.partialorder %v1406, 0.5
        %vm1437 = vmand %vm1433, %vm1435
        %vm1438 = vmand %vm1434, %vm1436
        %v1439 = vsel %vm1437, -1.0, %v1213
        %v1440 = vsel %vm1438, -1.0, %v1214
        %v1441 = vld [vmem:[%s476] sm:$0xff]
        %v1442 = vld [vmem:[%s476 + $0x8] sm:$0xff]
        %vm1443 = vcmp.eq.f32.partialorder %v1441, 2.0
        %vm1444 = vcmp.eq.f32.partialorder %v1442, 2.0
        %v1445 = vld [vmem:[%s425] sm:$0xff]
        %v1446 = vld [vmem:[%s425 + $0x8] sm:$0xff]
        %v1447 = vld [vmem:[%s425 + $0x10] sm:$0xff]
        %v1448 = vld [vmem:[%s425 + $0x18] sm:$0xff]
        %v1449 = vld [vmem:[%s425 + $0x20] sm:$0xff]
        %v1450 = vld [vmem:[%s425 + $0x28] sm:$0xff]
        %v1451 = vld [vmem:[%s425 + $0x30] sm:$0xff]
        %v1452 = vld [vmem:[%s425 + $0x38] sm:$0xff]
        %v1453 = vsel %vm1443, 1, 0
        %v1454 = vsel %vm1444, 1, 0
        %vm1455 = vcmp.eq.s32.totalorder %v1453, 1
        %vm1456 = vcmp.eq.s32.totalorder %v1454, 1
        %v1457 = vsel %vm1455, %v1445, 0.0
        %v1458 = vsel %vm1456, %v1446, 0.0
        %v1459 = vsel %vm1455, %v1447, 0.0
        %v1460 = vsel %vm1456, %v1448, 0.0
        %v1461 = vsel %vm1455, %v1449, 0.0
        %v1462 = vsel %vm1456, %v1450, 0.0
        %v1463 = vsel %vm1455, %v1451, 0.0
        %v1464 = vsel %vm1456, %v1452, 0.0
        %v1465 = vld [vmem:[%s548] sm:$0xff]
        %v1466 = vld [vmem:[%s548 + $0x8] sm:$0xff]
        %vm1467 = vcmp.eq.f32.partialorder %v1465, 2.0
        %vm1468 = vcmp.eq.f32.partialorder %v1466, 2.0
        %v1469 = vld [vmem:[%s491] sm:$0xff]
        %v1470 = vld [vmem:[%s491 + $0x8] sm:$0xff]
        %v1471 = vld [vmem:[%s491 + $0x10] sm:$0xff]
        %v1472 = vld [vmem:[%s491 + $0x18] sm:$0xff]
        %v1473 = vld [vmem:[%s491 + $0x20] sm:$0xff]
        %v1474 = vld [vmem:[%s491 + $0x28] sm:$0xff]
        %v1475 = vld [vmem:[%s491 + $0x30] sm:$0xff]
        %v1476 = vld [vmem:[%s491 + $0x38] sm:$0xff]
        %v1477 = vsel %vm1467, 1, 0
        %v1478 = vsel %vm1468, 1, 0
        %vm1479 = vcmp.eq.s32.totalorder %v1477, 1
        %vm1480 = vcmp.eq.s32.totalorder %v1478, 1
        %v1481 = vsel %vm1479, %v1469, %v1457
        %v1482 = vsel %vm1480, %v1470, %v1458
        %v1483 = vsel %vm1479, %v1471, %v1459
        %v1484 = vsel %vm1480, %v1472, %v1460
        %v1485 = vsel %vm1479, %v1473, %v1461
        %v1486 = vsel %vm1480, %v1474, %v1462
        %v1487 = vsel %vm1479, %v1475, %v1463
        %v1488 = vsel %vm1480, %v1476, %v1464
        %v1489 = vld [vmem:[%s619] sm:$0xff]
        %v1490 = vld [vmem:[%s619 + $0x8] sm:$0xff]
        %vm1491 = vcmp.eq.f32.partialorder %v1489, 2.0
        %vm1492 = vcmp.eq.f32.partialorder %v1490, 2.0
        %v1493 = vld [vmem:[%s562] sm:$0xff]
        %v1494 = vld [vmem:[%s562 + $0x8] sm:$0xff]
        %v1495 = vld [vmem:[%s562 + $0x10] sm:$0xff]
        %v1496 = vld [vmem:[%s562 + $0x18] sm:$0xff]
        %v1497 = vld [vmem:[%s562 + $0x20] sm:$0xff]
        %v1498 = vld [vmem:[%s562 + $0x28] sm:$0xff]
        %v1499 = vld [vmem:[%s562 + $0x30] sm:$0xff]
        %v1500 = vld [vmem:[%s562 + $0x38] sm:$0xff]
        %v1501 = vsel %vm1491, 1, 0
        %v1502 = vsel %vm1492, 1, 0
        %vm1503 = vcmp.eq.s32.totalorder %v1501, 1
        %vm1504 = vcmp.eq.s32.totalorder %v1502, 1
        %v1505 = vsel %vm1503, %v1493, %v1481
        %v1506 = vsel %vm1504, %v1494, %v1482
        %v1507 = vsel %vm1503, %v1495, %v1483
        %v1508 = vsel %vm1504, %v1496, %v1484
        %v1509 = vsel %vm1503, %v1497, %v1485
        %v1510 = vsel %vm1504, %v1498, %v1486
        %v1511 = vsel %vm1503, %v1499, %v1487
        %v1512 = vsel %vm1504, %v1500, %v1488
        %v1513 = vld [vmem:[%s690] sm:$0xff]
        %v1514 = vld [vmem:[%s690 + $0x8] sm:$0xff]
        %vm1515 = vcmp.eq.f32.partialorder %v1513, 2.0
        %vm1516 = vcmp.eq.f32.partialorder %v1514, 2.0
        %v1517 = vld [vmem:[%s633] sm:$0xff]
        %v1518 = vld [vmem:[%s633 + $0x8] sm:$0xff]
        %v1519 = vld [vmem:[%s633 + $0x10] sm:$0xff]
        %v1520 = vld [vmem:[%s633 + $0x18] sm:$0xff]
        %v1521 = vld [vmem:[%s633 + $0x20] sm:$0xff]
        %v1522 = vld [vmem:[%s633 + $0x28] sm:$0xff]
        %v1523 = vld [vmem:[%s633 + $0x30] sm:$0xff]
        %v1524 = vld [vmem:[%s633 + $0x38] sm:$0xff]
        %v1525 = vsel %vm1515, 1, 0
        %v1526 = vsel %vm1516, 1, 0
        %vm1527 = vcmp.eq.s32.totalorder %v1525, 1
        %vm1528 = vcmp.eq.s32.totalorder %v1526, 1
        %v1529 = vsel %vm1527, %v1517, %v1505
        %v1530 = vsel %vm1528, %v1518, %v1506
        %v1531 = vsel %vm1527, %v1519, %v1507
        %v1532 = vsel %vm1528, %v1520, %v1508
        %v1533 = vsel %vm1527, %v1521, %v1509
        %v1534 = vsel %vm1528, %v1522, %v1510
        %v1535 = vsel %vm1527, %v1523, %v1511
        %v1536 = vsel %vm1528, %v1524, %v1512
        %v1537 = vld [vmem:[%s761] sm:$0xff]
        %v1538 = vld [vmem:[%s761 + $0x8] sm:$0xff]
        %vm1539 = vcmp.eq.f32.partialorder %v1537, 2.0
        %vm1540 = vcmp.eq.f32.partialorder %v1538, 2.0
        %v1541 = vld [vmem:[%s704] sm:$0xff]
        %v1542 = vld [vmem:[%s704 + $0x8] sm:$0xff]
        %v1543 = vld [vmem:[%s704 + $0x10] sm:$0xff]
        %v1544 = vld [vmem:[%s704 + $0x18] sm:$0xff]
        %v1545 = vld [vmem:[%s704 + $0x20] sm:$0xff]
        %v1546 = vld [vmem:[%s704 + $0x28] sm:$0xff]
        %v1547 = vld [vmem:[%s704 + $0x30] sm:$0xff]
        %v1548 = vld [vmem:[%s704 + $0x38] sm:$0xff]
        %v1549 = vsel %vm1539, 1, 0
        %v1550 = vsel %vm1540, 1, 0
        %vm1551 = vcmp.eq.s32.totalorder %v1549, 1
        %vm1552 = vcmp.eq.s32.totalorder %v1550, 1
        %v1553 = vsel %vm1551, %v1541, %v1529
        %v1554 = vsel %vm1552, %v1542, %v1530
        %v1555 = vsel %vm1551, %v1543, %v1531
        %v1556 = vsel %vm1552, %v1544, %v1532
        %v1557 = vsel %vm1551, %v1545, %v1533
        %v1558 = vsel %vm1552, %v1546, %v1534
        %v1559 = vsel %vm1551, %v1547, %v1535
        %v1560 = vsel %vm1552, %v1548, %v1536
        %v1561 = vld [vmem:[%s832] sm:$0xff]
        %v1562 = vld [vmem:[%s832 + $0x8] sm:$0xff]
        %vm1563 = vcmp.eq.f32.partialorder %v1561, 2.0
        %vm1564 = vcmp.eq.f32.partialorder %v1562, 2.0
        %v1565 = vld [vmem:[%s775] sm:$0xff]
        %v1566 = vld [vmem:[%s775 + $0x8] sm:$0xff]
        %v1567 = vld [vmem:[%s775 + $0x10] sm:$0xff]
        %v1568 = vld [vmem:[%s775 + $0x18] sm:$0xff]
        %v1569 = vld [vmem:[%s775 + $0x20] sm:$0xff]
        %v1570 = vld [vmem:[%s775 + $0x28] sm:$0xff]
        %v1571 = vld [vmem:[%s775 + $0x30] sm:$0xff]
        %v1572 = vld [vmem:[%s775 + $0x38] sm:$0xff]
        %v1573 = vsel %vm1563, 1, 0
        %v1574 = vsel %vm1564, 1, 0
        %vm1575 = vcmp.eq.s32.totalorder %v1573, 1
        %vm1576 = vcmp.eq.s32.totalorder %v1574, 1
        %v1577 = vsel %vm1575, %v1565, %v1553
        %v1578 = vsel %vm1576, %v1566, %v1554
        %v1579 = vsel %vm1575, %v1567, %v1555
        %v1580 = vsel %vm1576, %v1568, %v1556
        %v1581 = vsel %vm1575, %v1569, %v1557
        %v1582 = vsel %vm1576, %v1570, %v1558
        %v1583 = vsel %vm1575, %v1571, %v1559
        %v1584 = vsel %vm1576, %v1572, %v1560
        %v1585 = vld [vmem:[%s903] sm:$0xff]
        %v1586 = vld [vmem:[%s903 + $0x8] sm:$0xff]
        %vm1587 = vcmp.eq.f32.partialorder %v1585, 2.0
        %vm1588 = vcmp.eq.f32.partialorder %v1586, 2.0
        %v1589 = vld [vmem:[%s846] sm:$0xff]
        %v1590 = vld [vmem:[%s846 + $0x8] sm:$0xff]
        %v1591 = vld [vmem:[%s846 + $0x10] sm:$0xff]
        %v1592 = vld [vmem:[%s846 + $0x18] sm:$0xff]
        %v1593 = vld [vmem:[%s846 + $0x20] sm:$0xff]
        %v1594 = vld [vmem:[%s846 + $0x28] sm:$0xff]
        %v1595 = vld [vmem:[%s846 + $0x30] sm:$0xff]
        %v1596 = vld [vmem:[%s846 + $0x38] sm:$0xff]
        %v1597 = vsel %vm1587, 1, 0
        %v1598 = vsel %vm1588, 1, 0
        %vm1599 = vcmp.eq.s32.totalorder %v1597, 1
        %vm1600 = vcmp.eq.s32.totalorder %v1598, 1
        %v1601 = vsel %vm1599, %v1589, %v1577
        %v1602 = vsel %vm1600, %v1590, %v1578
        %v1603 = vsel %vm1599, %v1591, %v1579
        %v1604 = vsel %vm1600, %v1592, %v1580
        %v1605 = vsel %vm1599, %v1593, %v1581
        %v1606 = vsel %vm1600, %v1594, %v1582
        %v1607 = vsel %vm1599, %v1595, %v1583
        %v1608 = vsel %vm1600, %v1596, %v1584
        %v1609 = vld [vmem:[#allocation2] sm:$0xff]
        %v1610 = vld [vmem:[#allocation2 + $0x8] sm:$0xff]
        %vm1611 = vcmp.eq.f32.partialorder %v1609, 2.0
        %vm1612 = vcmp.eq.f32.partialorder %v1610, 2.0
        %v1613 = vld [vmem:[%s335] sm:$0xff]
        %v1614 = vld [vmem:[%s335 + $0x8] sm:$0xff]
        %v1615 = vld [vmem:[%s335 + $0x10] sm:$0xff]
        %v1616 = vld [vmem:[%s335 + $0x18] sm:$0xff]
        %v1617 = vld [vmem:[%s335 + $0x20] sm:$0xff]
        %v1618 = vld [vmem:[%s335 + $0x28] sm:$0xff]
        %v1619 = vld [vmem:[%s335 + $0x30] sm:$0xff]
        %v1620 = vld [vmem:[%s335 + $0x38] sm:$0xff]
        %v1621 = vsel %vm1611, 1, 0
        %v1622 = vsel %vm1612, 1, 0
        %vm1623 = vcmp.eq.s32.totalorder %v1621, 1
        %vm1624 = vcmp.eq.s32.totalorder %v1622, 1
        %v1625 = vsel %vm1623, %v1613, %v1601
        %v1626 = vsel %vm1624, %v1614, %v1602
        %v1627 = vsel %vm1623, %v1615, %v1603
        %v1628 = vsel %vm1624, %v1616, %v1604
        %v1629 = vsel %vm1623, %v1617, %v1605
        %v1630 = vsel %vm1624, %v1618, %v1606
        %v1631 = vsel %vm1623, %v1619, %v1607
        %v1632 = vsel %vm1624, %v1620, %v1608
        %v1633 = vsub.f32 1.0, %v1631
        %v1634 = vsub.f32 1.0, %v1632
        %v1635 = vmul.f32 %v1625, %v1631
        %v1636 = vmul.f32 %v1626, %v1632
        %v1637 = vadd.f32 %v1635, %v1633
        %v1638 = vadd.f32 %v1636, %v1634
        %s1639 = scalar_lea.vmem %s406, 128 [#allocation13]
        %1640 = vst.msk [vmem:[%s1639] sm:$0xff] %vm477, %v1637
        %1641 = vst.msk [vmem:[%s1639 + $0x8] sm:$0xff] %vm477, %v1638
        %v1642 = vmul.f32 %v1627, %v1631
        %v1643 = vmul.f32 %v1628, %v1632
        %v1644 = vadd.f32 %v1642, %v1633
        %v1645 = vadd.f32 %v1643, %v1634
        %s1646 = scalar_lea.vmem %s406, 144 [#allocation13]
        %1647 = vst.msk [vmem:[%s1646] sm:$0xff] %vm477, %v1644
        %1648 = vst.msk [vmem:[%s1646 + $0x8] sm:$0xff] %vm477, %v1645
        %v1649 = vmul.f32 %v1629, %v1631
        %v1650 = vmul.f32 %v1630, %v1632
        %v1651 = vadd.f32 %v1649, %v1633
        %v1652 = vadd.f32 %v1650, %v1634
        %s1653 = scalar_lea.vmem %s406, 160 [#allocation13]
        %1654 = vst.msk [vmem:[%s1653] sm:$0xff] %vm477, %v1651
        %1655 = vst.msk [vmem:[%s1653 + $0x8] sm:$0xff] %vm477, %v1652
        %s1656 = scalar_lea.vmem %s406, 176 [#allocation13]
        %1657 = vst.msk [vmem:[%s1656] sm:$0xff] %vm477, %v1631
        %1658 = vst.msk [vmem:[%s1656 + $0x8] sm:$0xff] %vm477, %v1632
        %vm1659 = vcmp.eq.f32.partialorder %v1439, 2.0
        %vm1660 = vcmp.eq.f32.partialorder %v1440, 2.0
        %vm1661 = vcmp.lt.f32.partialorder %v1631, 0.5
        %vm1662 = vcmp.lt.f32.partialorder %v1632, 0.5
        %vm1663 = vmand %vm1659, %vm1661
        %vm1664 = vmand %vm1660, %vm1662
        %v1665 = vsel %vm1663, -1.0, %v1439
        %v1666 = vsel %vm1664, -1.0, %v1440
        %v1667 = vld [vmem:[%s476] sm:$0xff]
        %v1668 = vld [vmem:[%s476 + $0x8] sm:$0xff]
        %vm1669 = vcmp.eq.f32.partialorder %v1667, 3.0
        %vm1670 = vcmp.eq.f32.partialorder %v1668, 3.0
        %v1671 = vld [vmem:[%s425] sm:$0xff]
        %v1672 = vld [vmem:[%s425 + $0x8] sm:$0xff]
        %v1673 = vld [vmem:[%s425 + $0x10] sm:$0xff]
        %v1674 = vld [vmem:[%s425 + $0x18] sm:$0xff]
        %v1675 = vld [vmem:[%s425 + $0x20] sm:$0xff]
        %v1676 = vld [vmem:[%s425 + $0x28] sm:$0xff]
        %v1677 = vld [vmem:[%s425 + $0x30] sm:$0xff]
        %v1678 = vld [vmem:[%s425 + $0x38] sm:$0xff]
        %v1679 = vsel %vm1669, 1, 0
        %v1680 = vsel %vm1670, 1, 0
        %vm1681 = vcmp.eq.s32.totalorder %v1679, 1
        %vm1682 = vcmp.eq.s32.totalorder %v1680, 1
        %v1683 = vsel %vm1681, %v1671, 0.0
        %v1684 = vsel %vm1682, %v1672, 0.0
        %v1685 = vsel %vm1681, %v1673, 0.0
        %v1686 = vsel %vm1682, %v1674, 0.0
        %v1687 = vsel %vm1681, %v1675, 0.0
        %v1688 = vsel %vm1682, %v1676, 0.0
        %v1689 = vsel %vm1681, %v1677, 0.0
        %v1690 = vsel %vm1682, %v1678, 0.0
        %v1691 = vld [vmem:[%s548] sm:$0xff]
        %v1692 = vld [vmem:[%s548 + $0x8] sm:$0xff]
        %vm1693 = vcmp.eq.f32.partialorder %v1691, 3.0
        %vm1694 = vcmp.eq.f32.partialorder %v1692, 3.0
        %v1695 = vld [vmem:[%s491] sm:$0xff]
        %v1696 = vld [vmem:[%s491 + $0x8] sm:$0xff]
        %v1697 = vld [vmem:[%s491 + $0x10] sm:$0xff]
        %v1698 = vld [vmem:[%s491 + $0x18] sm:$0xff]
        %v1699 = vld [vmem:[%s491 + $0x20] sm:$0xff]
        %v1700 = vld [vmem:[%s491 + $0x28] sm:$0xff]
        %v1701 = vld [vmem:[%s491 + $0x30] sm:$0xff]
        %v1702 = vld [vmem:[%s491 + $0x38] sm:$0xff]
        %v1703 = vsel %vm1693, 1, 0
        %v1704 = vsel %vm1694, 1, 0
        %vm1705 = vcmp.eq.s32.totalorder %v1703, 1
        %vm1706 = vcmp.eq.s32.totalorder %v1704, 1
        %v1707 = vsel %vm1705, %v1695, %v1683
        %v1708 = vsel %vm1706, %v1696, %v1684
        %v1709 = vsel %vm1705, %v1697, %v1685
        %v1710 = vsel %vm1706, %v1698, %v1686
        %v1711 = vsel %vm1705, %v1699, %v1687
        %v1712 = vsel %vm1706, %v1700, %v1688
        %v1713 = vsel %vm1705, %v1701, %v1689
        %v1714 = vsel %vm1706, %v1702, %v1690
        %v1715 = vld [vmem:[%s619] sm:$0xff]
        %v1716 = vld [vmem:[%s619 + $0x8] sm:$0xff]
        %vm1717 = vcmp.eq.f32.partialorder %v1715, 3.0
        %vm1718 = vcmp.eq.f32.partialorder %v1716, 3.0
        %v1719 = vld [vmem:[%s562] sm:$0xff]
        %v1720 = vld [vmem:[%s562 + $0x8] sm:$0xff]
        %v1721 = vld [vmem:[%s562 + $0x10] sm:$0xff]
        %v1722 = vld [vmem:[%s562 + $0x18] sm:$0xff]
        %v1723 = vld [vmem:[%s562 + $0x20] sm:$0xff]
        %v1724 = vld [vmem:[%s562 + $0x28] sm:$0xff]
        %v1725 = vld [vmem:[%s562 + $0x30] sm:$0xff]
        %v1726 = vld [vmem:[%s562 + $0x38] sm:$0xff]
        %v1727 = vsel %vm1717, 1, 0
        %v1728 = vsel %vm1718, 1, 0
        %vm1729 = vcmp.eq.s32.totalorder %v1727, 1
        %vm1730 = vcmp.eq.s32.totalorder %v1728, 1
        %v1731 = vsel %vm1729, %v1719, %v1707
        %v1732 = vsel %vm1730, %v1720, %v1708
        %v1733 = vsel %vm1729, %v1721, %v1709
        %v1734 = vsel %vm1730, %v1722, %v1710
        %v1735 = vsel %vm1729, %v1723, %v1711
        %v1736 = vsel %vm1730, %v1724, %v1712
        %v1737 = vsel %vm1729, %v1725, %v1713
        %v1738 = vsel %vm1730, %v1726, %v1714
        %v1739 = vld [vmem:[%s690] sm:$0xff]
        %v1740 = vld [vmem:[%s690 + $0x8] sm:$0xff]
        %vm1741 = vcmp.eq.f32.partialorder %v1739, 3.0
        %vm1742 = vcmp.eq.f32.partialorder %v1740, 3.0
        %v1743 = vld [vmem:[%s633] sm:$0xff]
        %v1744 = vld [vmem:[%s633 + $0x8] sm:$0xff]
        %v1745 = vld [vmem:[%s633 + $0x10] sm:$0xff]
        %v1746 = vld [vmem:[%s633 + $0x18] sm:$0xff]
        %v1747 = vld [vmem:[%s633 + $0x20] sm:$0xff]
        %v1748 = vld [vmem:[%s633 + $0x28] sm:$0xff]
        %v1749 = vld [vmem:[%s633 + $0x30] sm:$0xff]
        %v1750 = vld [vmem:[%s633 + $0x38] sm:$0xff]
        %v1751 = vsel %vm1741, 1, 0
        %v1752 = vsel %vm1742, 1, 0
        %vm1753 = vcmp.eq.s32.totalorder %v1751, 1
        %vm1754 = vcmp.eq.s32.totalorder %v1752, 1
        %v1755 = vsel %vm1753, %v1743, %v1731
        %v1756 = vsel %vm1754, %v1744, %v1732
        %v1757 = vsel %vm1753, %v1745, %v1733
        %v1758 = vsel %vm1754, %v1746, %v1734
        %v1759 = vsel %vm1753, %v1747, %v1735
        %v1760 = vsel %vm1754, %v1748, %v1736
        %v1761 = vsel %vm1753, %v1749, %v1737
        %v1762 = vsel %vm1754, %v1750, %v1738
        %v1763 = vld [vmem:[%s761] sm:$0xff]
        %v1764 = vld [vmem:[%s761 + $0x8] sm:$0xff]
        %vm1765 = vcmp.eq.f32.partialorder %v1763, 3.0
        %vm1766 = vcmp.eq.f32.partialorder %v1764, 3.0
        %v1767 = vld [vmem:[%s704] sm:$0xff]
        %v1768 = vld [vmem:[%s704 + $0x8] sm:$0xff]
        %v1769 = vld [vmem:[%s704 + $0x10] sm:$0xff]
        %v1770 = vld [vmem:[%s704 + $0x18] sm:$0xff]
        %v1771 = vld [vmem:[%s704 + $0x20] sm:$0xff]
        %v1772 = vld [vmem:[%s704 + $0x28] sm:$0xff]
        %v1773 = vld [vmem:[%s704 + $0x30] sm:$0xff]
        %v1774 = vld [vmem:[%s704 + $0x38] sm:$0xff]
        %v1775 = vsel %vm1765, 1, 0
        %v1776 = vsel %vm1766, 1, 0
        %vm1777 = vcmp.eq.s32.totalorder %v1775, 1
        %vm1778 = vcmp.eq.s32.totalorder %v1776, 1
        %v1779 = vsel %vm1777, %v1767, %v1755
        %v1780 = vsel %vm1778, %v1768, %v1756
        %v1781 = vsel %vm1777, %v1769, %v1757
        %v1782 = vsel %vm1778, %v1770, %v1758
        %v1783 = vsel %vm1777, %v1771, %v1759
        %v1784 = vsel %vm1778, %v1772, %v1760
        %v1785 = vsel %vm1777, %v1773, %v1761
        %v1786 = vsel %vm1778, %v1774, %v1762
        %v1787 = vld [vmem:[%s832] sm:$0xff]
        %v1788 = vld [vmem:[%s832 + $0x8] sm:$0xff]
        %vm1789 = vcmp.eq.f32.partialorder %v1787, 3.0
        %vm1790 = vcmp.eq.f32.partialorder %v1788, 3.0
        %v1791 = vld [vmem:[%s775] sm:$0xff]
        %v1792 = vld [vmem:[%s775 + $0x8] sm:$0xff]
        %v1793 = vld [vmem:[%s775 + $0x10] sm:$0xff]
        %v1794 = vld [vmem:[%s775 + $0x18] sm:$0xff]
        %v1795 = vld [vmem:[%s775 + $0x20] sm:$0xff]
        %v1796 = vld [vmem:[%s775 + $0x28] sm:$0xff]
        %v1797 = vld [vmem:[%s775 + $0x30] sm:$0xff]
        %v1798 = vld [vmem:[%s775 + $0x38] sm:$0xff]
        %v1799 = vsel %vm1789, 1, 0
        %v1800 = vsel %vm1790, 1, 0
        %vm1801 = vcmp.eq.s32.totalorder %v1799, 1
        %vm1802 = vcmp.eq.s32.totalorder %v1800, 1
        %v1803 = vsel %vm1801, %v1791, %v1779
        %v1804 = vsel %vm1802, %v1792, %v1780
        %v1805 = vsel %vm1801, %v1793, %v1781
        %v1806 = vsel %vm1802, %v1794, %v1782
        %v1807 = vsel %vm1801, %v1795, %v1783
        %v1808 = vsel %vm1802, %v1796, %v1784
        %v1809 = vsel %vm1801, %v1797, %v1785
        %v1810 = vsel %vm1802, %v1798, %v1786
        %v1811 = vld [vmem:[%s903] sm:$0xff]
        %v1812 = vld [vmem:[%s903 + $0x8] sm:$0xff]
        %vm1813 = vcmp.eq.f32.partialorder %v1811, 3.0
        %vm1814 = vcmp.eq.f32.partialorder %v1812, 3.0
        %v1815 = vld [vmem:[%s846] sm:$0xff]
        %v1816 = vld [vmem:[%s846 + $0x8] sm:$0xff]
        %v1817 = vld [vmem:[%s846 + $0x10] sm:$0xff]
        %v1818 = vld [vmem:[%s846 + $0x18] sm:$0xff]
        %v1819 = vld [vmem:[%s846 + $0x20] sm:$0xff]
        %v1820 = vld [vmem:[%s846 + $0x28] sm:$0xff]
        %v1821 = vld [vmem:[%s846 + $0x30] sm:$0xff]
        %v1822 = vld [vmem:[%s846 + $0x38] sm:$0xff]
        %v1823 = vsel %vm1813, 1, 0
        %v1824 = vsel %vm1814, 1, 0
        %vm1825 = vcmp.eq.s32.totalorder %v1823, 1
        %vm1826 = vcmp.eq.s32.totalorder %v1824, 1
        %v1827 = vsel %vm1825, %v1815, %v1803
        %v1828 = vsel %vm1826, %v1816, %v1804
        %v1829 = vsel %vm1825, %v1817, %v1805
        %v1830 = vsel %vm1826, %v1818, %v1806
        %v1831 = vsel %vm1825, %v1819, %v1807
        %v1832 = vsel %vm1826, %v1820, %v1808
        %v1833 = vsel %vm1825, %v1821, %v1809
        %v1834 = vsel %vm1826, %v1822, %v1810
        %v1835 = vld [vmem:[#allocation2] sm:$0xff]
        %v1836 = vld [vmem:[#allocation2 + $0x8] sm:$0xff]
        %vm1837 = vcmp.eq.f32.partialorder %v1835, 3.0
        %vm1838 = vcmp.eq.f32.partialorder %v1836, 3.0
        %v1839 = vld [vmem:[%s335] sm:$0xff]
        %v1840 = vld [vmem:[%s335 + $0x8] sm:$0xff]
        %v1841 = vld [vmem:[%s335 + $0x10] sm:$0xff]
        %v1842 = vld [vmem:[%s335 + $0x18] sm:$0xff]
        %v1843 = vld [vmem:[%s335 + $0x20] sm:$0xff]
        %v1844 = vld [vmem:[%s335 + $0x28] sm:$0xff]
        %v1845 = vld [vmem:[%s335 + $0x30] sm:$0xff]
        %v1846 = vld [vmem:[%s335 + $0x38] sm:$0xff]
        %v1847 = vsel %vm1837, 1, 0
        %v1848 = vsel %vm1838, 1, 0
        %vm1849 = vcmp.eq.s32.totalorder %v1847, 1
        %vm1850 = vcmp.eq.s32.totalorder %v1848, 1
        %v1851 = vsel %vm1849, %v1839, %v1827
        %v1852 = vsel %vm1850, %v1840, %v1828
        %v1853 = vsel %vm1849, %v1841, %v1829
        %v1854 = vsel %vm1850, %v1842, %v1830
        %v1855 = vsel %vm1849, %v1843, %v1831
        %v1856 = vsel %vm1850, %v1844, %v1832
        %v1857 = vsel %vm1849, %v1845, %v1833
        %v1858 = vsel %vm1850, %v1846, %v1834
        %v1859 = vsub.f32 1.0, %v1857
        %v1860 = vsub.f32 1.0, %v1858
        %v1861 = vmul.f32 %v1851, %v1857
        %v1862 = vmul.f32 %v1852, %v1858
        %v1863 = vadd.f32 %v1861, %v1859
        %v1864 = vadd.f32 %v1862, %v1860
        %s1865 = scalar_lea.vmem %s406, 192 [#allocation13]
        %1866 = vst.msk [vmem:[%s1865] sm:$0xff] %vm477, %v1863
        %1867 = vst.msk [vmem:[%s1865 + $0x8] sm:$0xff] %vm477, %v1864
        %v1868 = vmul.f32 %v1853, %v1857
        %v1869 = vmul.f32 %v1854, %v1858
        %v1870 = vadd.f32 %v1868, %v1859
        %v1871 = vadd.f32 %v1869, %v1860
        %s1872 = scalar_lea.vmem %s406, 208 [#allocation13]
        %1873 = vst.msk [vmem:[%s1872] sm:$0xff] %vm477, %v1870
        %1874 = vst.msk [vmem:[%s1872 + $0x8] sm:$0xff] %vm477, %v1871
        %v1875 = vmul.f32 %v1855, %v1857
        %v1876 = vmul.f32 %v1856, %v1858
        %v1877 = vadd.f32 %v1875, %v1859
        %v1878 = vadd.f32 %v1876, %v1860
        %s1879 = scalar_lea.vmem %s406, 224 [#allocation13]
        %1880 = vst.msk [vmem:[%s1879] sm:$0xff] %vm477, %v1877
        %1881 = vst.msk [vmem:[%s1879 + $0x8] sm:$0xff] %vm477, %v1878
        %s1882 = scalar_lea.vmem %s406, 240 [#allocation13]
        %1883 = vst.msk [vmem:[%s1882] sm:$0xff] %vm477, %v1857
        %1884 = vst.msk [vmem:[%s1882 + $0x8] sm:$0xff] %vm477, %v1858
        %vm1885 = vcmp.eq.f32.partialorder %v1665, 3.0
        %vm1886 = vcmp.eq.f32.partialorder %v1666, 3.0
        %vm1887 = vcmp.lt.f32.partialorder %v1857, 0.5
        %vm1888 = vcmp.lt.f32.partialorder %v1858, 0.5
        %vm1889 = vmand %vm1885, %vm1887
        %vm1890 = vmand %vm1886, %vm1888
        %v1891 = vsel %vm1889, -1.0, %v1665
        %v1892 = vsel %vm1890, -1.0, %v1666
        %v1893 = vld [vmem:[%s476] sm:$0xff]
        %v1894 = vld [vmem:[%s476 + $0x8] sm:$0xff]
        %vm1895 = vcmp.eq.f32.partialorder %v1893, 4.0
        %vm1896 = vcmp.eq.f32.partialorder %v1894, 4.0
        %v1897 = vld [vmem:[%s425] sm:$0xff]
        %v1898 = vld [vmem:[%s425 + $0x8] sm:$0xff]
        %v1899 = vld [vmem:[%s425 + $0x10] sm:$0xff]
        %v1900 = vld [vmem:[%s425 + $0x18] sm:$0xff]
        %v1901 = vld [vmem:[%s425 + $0x20] sm:$0xff]
        %v1902 = vld [vmem:[%s425 + $0x28] sm:$0xff]
        %v1903 = vld [vmem:[%s425 + $0x30] sm:$0xff]
        %v1904 = vld [vmem:[%s425 + $0x38] sm:$0xff]
        %v1905 = vsel %vm1895, 1, 0
        %v1906 = vsel %vm1896, 1, 0
        %vm1907 = vcmp.eq.s32.totalorder %v1905, 1
        %vm1908 = vcmp.eq.s32.totalorder %v1906, 1
        %v1909 = vsel %vm1907, %v1897, 0.0
        %v1910 = vsel %vm1908, %v1898, 0.0
        %v1911 = vsel %vm1907, %v1899, 0.0
        %v1912 = vsel %vm1908, %v1900, 0.0
        %v1913 = vsel %vm1907, %v1901, 0.0
        %v1914 = vsel %vm1908, %v1902, 0.0
        %v1915 = vsel %vm1907, %v1903, 0.0
        %v1916 = vsel %vm1908, %v1904, 0.0
        %v1917 = vld [vmem:[%s548] sm:$0xff]
        %v1918 = vld [vmem:[%s548 + $0x8] sm:$0xff]
        %vm1919 = vcmp.eq.f32.partialorder %v1917, 4.0
        %vm1920 = vcmp.eq.f32.partialorder %v1918, 4.0
        %v1921 = vld [vmem:[%s491] sm:$0xff]
        %v1922 = vld [vmem:[%s491 + $0x8] sm:$0xff]
        %v1923 = vld [vmem:[%s491 + $0x10] sm:$0xff]
        %v1924 = vld [vmem:[%s491 + $0x18] sm:$0xff]
        %v1925 = vld [vmem:[%s491 + $0x20] sm:$0xff]
        %v1926 = vld [vmem:[%s491 + $0x28] sm:$0xff]
        %v1927 = vld [vmem:[%s491 + $0x30] sm:$0xff]
        %v1928 = vld [vmem:[%s491 + $0x38] sm:$0xff]
        %v1929 = vsel %vm1919, 1, 0
        %v1930 = vsel %vm1920, 1, 0
        %vm1931 = vcmp.eq.s32.totalorder %v1929, 1
        %vm1932 = vcmp.eq.s32.totalorder %v1930, 1
        %v1933 = vsel %vm1931, %v1921, %v1909
        %v1934 = vsel %vm1932, %v1922, %v1910
        %v1935 = vsel %vm1931, %v1923, %v1911
        %v1936 = vsel %vm1932, %v1924, %v1912
        %v1937 = vsel %vm1931, %v1925, %v1913
        %v1938 = vsel %vm1932, %v1926, %v1914
        %v1939 = vsel %vm1931, %v1927, %v1915
        %v1940 = vsel %vm1932, %v1928, %v1916
        %v1941 = vld [vmem:[%s619] sm:$0xff]
        %v1942 = vld [vmem:[%s619 + $0x8] sm:$0xff]
        %vm1943 = vcmp.eq.f32.partialorder %v1941, 4.0
        %vm1944 = vcmp.eq.f32.partialorder %v1942, 4.0
        %v1945 = vld [vmem:[%s562] sm:$0xff]
        %v1946 = vld [vmem:[%s562 + $0x8] sm:$0xff]
        %v1947 = vld [vmem:[%s562 + $0x10] sm:$0xff]
        %v1948 = vld [vmem:[%s562 + $0x18] sm:$0xff]
        %v1949 = vld [vmem:[%s562 + $0x20] sm:$0xff]
        %v1950 = vld [vmem:[%s562 + $0x28] sm:$0xff]
        %v1951 = vld [vmem:[%s562 + $0x30] sm:$0xff]
        %v1952 = vld [vmem:[%s562 + $0x38] sm:$0xff]
        %v1953 = vsel %vm1943, 1, 0
        %v1954 = vsel %vm1944, 1, 0
        %vm1955 = vcmp.eq.s32.totalorder %v1953, 1
        %vm1956 = vcmp.eq.s32.totalorder %v1954, 1
        %v1957 = vsel %vm1955, %v1945, %v1933
        %v1958 = vsel %vm1956, %v1946, %v1934
        %v1959 = vsel %vm1955, %v1947, %v1935
        %v1960 = vsel %vm1956, %v1948, %v1936
        %v1961 = vsel %vm1955, %v1949, %v1937
        %v1962 = vsel %vm1956, %v1950, %v1938
        %v1963 = vsel %vm1955, %v1951, %v1939
        %v1964 = vsel %vm1956, %v1952, %v1940
        %v1965 = vld [vmem:[%s690] sm:$0xff]
        %v1966 = vld [vmem:[%s690 + $0x8] sm:$0xff]
        %vm1967 = vcmp.eq.f32.partialorder %v1965, 4.0
        %vm1968 = vcmp.eq.f32.partialorder %v1966, 4.0
        %v1969 = vld [vmem:[%s633] sm:$0xff]
        %v1970 = vld [vmem:[%s633 + $0x8] sm:$0xff]
        %v1971 = vld [vmem:[%s633 + $0x10] sm:$0xff]
        %v1972 = vld [vmem:[%s633 + $0x18] sm:$0xff]
        %v1973 = vld [vmem:[%s633 + $0x20] sm:$0xff]
        %v1974 = vld [vmem:[%s633 + $0x28] sm:$0xff]
        %v1975 = vld [vmem:[%s633 + $0x30] sm:$0xff]
        %v1976 = vld [vmem:[%s633 + $0x38] sm:$0xff]
        %v1977 = vsel %vm1967, 1, 0
        %v1978 = vsel %vm1968, 1, 0
        %vm1979 = vcmp.eq.s32.totalorder %v1977, 1
        %vm1980 = vcmp.eq.s32.totalorder %v1978, 1
        %v1981 = vsel %vm1979, %v1969, %v1957
        %v1982 = vsel %vm1980, %v1970, %v1958
        %v1983 = vsel %vm1979, %v1971, %v1959
        %v1984 = vsel %vm1980, %v1972, %v1960
        %v1985 = vsel %vm1979, %v1973, %v1961
        %v1986 = vsel %vm1980, %v1974, %v1962
        %v1987 = vsel %vm1979, %v1975, %v1963
        %v1988 = vsel %vm1980, %v1976, %v1964
        %v1989 = vld [vmem:[%s761] sm:$0xff]
        %v1990 = vld [vmem:[%s761 + $0x8] sm:$0xff]
        %vm1991 = vcmp.eq.f32.partialorder %v1989, 4.0
        %vm1992 = vcmp.eq.f32.partialorder %v1990, 4.0
        %v1993 = vld [vmem:[%s704] sm:$0xff]
        %v1994 = vld [vmem:[%s704 + $0x8] sm:$0xff]
        %v1995 = vld [vmem:[%s704 + $0x10] sm:$0xff]
        %v1996 = vld [vmem:[%s704 + $0x18] sm:$0xff]
        %v1997 = vld [vmem:[%s704 + $0x20] sm:$0xff]
        %v1998 = vld [vmem:[%s704 + $0x28] sm:$0xff]
        %v1999 = vld [vmem:[%s704 + $0x30] sm:$0xff]
        %v2000 = vld [vmem:[%s704 + $0x38] sm:$0xff]
        %v2001 = vsel %vm1991, 1, 0
        %v2002 = vsel %vm1992, 1, 0
        %vm2003 = vcmp.eq.s32.totalorder %v2001, 1
        %vm2004 = vcmp.eq.s32.totalorder %v2002, 1
        %v2005 = vsel %vm2003, %v1993, %v1981
        %v2006 = vsel %vm2004, %v1994, %v1982
        %v2007 = vsel %vm2003, %v1995, %v1983
        %v2008 = vsel %vm2004, %v1996, %v1984
        %v2009 = vsel %vm2003, %v1997, %v1985
        %v2010 = vsel %vm2004, %v1998, %v1986
        %v2011 = vsel %vm2003, %v1999, %v1987
        %v2012 = vsel %vm2004, %v2000, %v1988
        %v2013 = vld [vmem:[%s832] sm:$0xff]
        %v2014 = vld [vmem:[%s832 + $0x8] sm:$0xff]
        %vm2015 = vcmp.eq.f32.partialorder %v2013, 4.0
        %vm2016 = vcmp.eq.f32.partialorder %v2014, 4.0
        %v2017 = vld [vmem:[%s775] sm:$0xff]
        %v2018 = vld [vmem:[%s775 + $0x8] sm:$0xff]
        %v2019 = vld [vmem:[%s775 + $0x10] sm:$0xff]
        %v2020 = vld [vmem:[%s775 + $0x18] sm:$0xff]
        %v2021 = vld [vmem:[%s775 + $0x20] sm:$0xff]
        %v2022 = vld [vmem:[%s775 + $0x28] sm:$0xff]
        %v2023 = vld [vmem:[%s775 + $0x30] sm:$0xff]
        %v2024 = vld [vmem:[%s775 + $0x38] sm:$0xff]
        %v2025 = vsel %vm2015, 1, 0
        %v2026 = vsel %vm2016, 1, 0
        %vm2027 = vcmp.eq.s32.totalorder %v2025, 1
        %vm2028 = vcmp.eq.s32.totalorder %v2026, 1
        %v2029 = vsel %vm2027, %v2017, %v2005
        %v2030 = vsel %vm2028, %v2018, %v2006
        %v2031 = vsel %vm2027, %v2019, %v2007
        %v2032 = vsel %vm2028, %v2020, %v2008
        %v2033 = vsel %vm2027, %v2021, %v2009
        %v2034 = vsel %vm2028, %v2022, %v2010
        %v2035 = vsel %vm2027, %v2023, %v2011
        %v2036 = vsel %vm2028, %v2024, %v2012
        %v2037 = vld [vmem:[%s903] sm:$0xff]
        %v2038 = vld [vmem:[%s903 + $0x8] sm:$0xff]
        %vm2039 = vcmp.eq.f32.partialorder %v2037, 4.0
        %vm2040 = vcmp.eq.f32.partialorder %v2038, 4.0
        %v2041 = vld [vmem:[%s846] sm:$0xff]
        %v2042 = vld [vmem:[%s846 + $0x8] sm:$0xff]
        %v2043 = vld [vmem:[%s846 + $0x10] sm:$0xff]
        %v2044 = vld [vmem:[%s846 + $0x18] sm:$0xff]
        %v2045 = vld [vmem:[%s846 + $0x20] sm:$0xff]
        %v2046 = vld [vmem:[%s846 + $0x28] sm:$0xff]
        %v2047 = vld [vmem:[%s846 + $0x30] sm:$0xff]
        %v2048 = vld [vmem:[%s846 + $0x38] sm:$0xff]
        %v2049 = vsel %vm2039, 1, 0
        %v2050 = vsel %vm2040, 1, 0
        %vm2051 = vcmp.eq.s32.totalorder %v2049, 1
        %vm2052 = vcmp.eq.s32.totalorder %v2050, 1
        %v2053 = vsel %vm2051, %v2041, %v2029
        %v2054 = vsel %vm2052, %v2042, %v2030
        %v2055 = vsel %vm2051, %v2043, %v2031
        %v2056 = vsel %vm2052, %v2044, %v2032
        %v2057 = vsel %vm2051, %v2045, %v2033
        %v2058 = vsel %vm2052, %v2046, %v2034
        %v2059 = vsel %vm2051, %v2047, %v2035
        %v2060 = vsel %vm2052, %v2048, %v2036
        %v2061 = vld [vmem:[#allocation2] sm:$0xff]
        %v2062 = vld [vmem:[#allocation2 + $0x8] sm:$0xff]
        %vm2063 = vcmp.eq.f32.partialorder %v2061, 4.0
        %vm2064 = vcmp.eq.f32.partialorder %v2062, 4.0
        %v2065 = vld [vmem:[%s335] sm:$0xff]
        %v2066 = vld [vmem:[%s335 + $0x8] sm:$0xff]
        %v2067 = vld [vmem:[%s335 + $0x10] sm:$0xff]
        %v2068 = vld [vmem:[%s335 + $0x18] sm:$0xff]
        %v2069 = vld [vmem:[%s335 + $0x20] sm:$0xff]
        %v2070 = vld [vmem:[%s335 + $0x28] sm:$0xff]
        %v2071 = vld [vmem:[%s335 + $0x30] sm:$0xff]
        %v2072 = vld [vmem:[%s335 + $0x38] sm:$0xff]
        %v2073 = vsel %vm2063, 1, 0
        %v2074 = vsel %vm2064, 1, 0
        %vm2075 = vcmp.eq.s32.totalorder %v2073, 1
        %vm2076 = vcmp.eq.s32.totalorder %v2074, 1
        %v2077 = vsel %vm2075, %v2065, %v2053
        %v2078 = vsel %vm2076, %v2066, %v2054
        %v2079 = vsel %vm2075, %v2067, %v2055
        %v2080 = vsel %vm2076, %v2068, %v2056
        %v2081 = vsel %vm2075, %v2069, %v2057
        %v2082 = vsel %vm2076, %v2070, %v2058
        %v2083 = vsel %vm2075, %v2071, %v2059
        %v2084 = vsel %vm2076, %v2072, %v2060
        %v2085 = vsub.f32 1.0, %v2083
        %v2086 = vsub.f32 1.0, %v2084
        %v2087 = vmul.f32 %v2077, %v2083
        %v2088 = vmul.f32 %v2078, %v2084
        %v2089 = vadd.f32 %v2087, %v2085
        %v2090 = vadd.f32 %v2088, %v2086
        %s2091 = scalar_lea.vmem %s406, 256 [#allocation13]
        %2092 = vst.msk [vmem:[%s2091] sm:$0xff] %vm477, %v2089
        %2093 = vst.msk [vmem:[%s2091 + $0x8] sm:$0xff] %vm477, %v2090
        %v2094 = vmul.f32 %v2079, %v2083
        %v2095 = vmul.f32 %v2080, %v2084
        %v2096 = vadd.f32 %v2094, %v2085
        %v2097 = vadd.f32 %v2095, %v2086
        %s2098 = scalar_lea.vmem %s406, 272 [#allocation13]
        %2099 = vst.msk [vmem:[%s2098] sm:$0xff] %vm477, %v2096
        %2100 = vst.msk [vmem:[%s2098 + $0x8] sm:$0xff] %vm477, %v2097
        %v2101 = vmul.f32 %v2081, %v2083
        %v2102 = vmul.f32 %v2082, %v2084
        %v2103 = vadd.f32 %v2101, %v2085
        %v2104 = vadd.f32 %v2102, %v2086
        %s2105 = scalar_lea.vmem %s406, 288 [#allocation13]
        %2106 = vst.msk [vmem:[%s2105] sm:$0xff] %vm477, %v2103
        %2107 = vst.msk [vmem:[%s2105 + $0x8] sm:$0xff] %vm477, %v2104
        %s2108 = scalar_lea.vmem %s406, 304 [#allocation13]
        %2109 = vst.msk [vmem:[%s2108] sm:$0xff] %vm477, %v2083
        %2110 = vst.msk [vmem:[%s2108 + $0x8] sm:$0xff] %vm477, %v2084
        %vm2111 = vcmp.eq.f32.partialorder %v1891, 4.0
        %vm2112 = vcmp.eq.f32.partialorder %v1892, 4.0
        %vm2113 = vcmp.lt.f32.partialorder %v2083, 0.5
        %vm2114 = vcmp.lt.f32.partialorder %v2084, 0.5
        %vm2115 = vmand %vm2111, %vm2113
        %vm2116 = vmand %vm2112, %vm2114
        %v2117 = vsel %vm2115, -1.0, %v1891
        %v2118 = vsel %vm2116, -1.0, %v1892
        %v2119 = vld [vmem:[%s476] sm:$0xff]
        %v2120 = vld [vmem:[%s476 + $0x8] sm:$0xff]
        %vm2121 = vcmp.eq.f32.partialorder %v2119, 5.0
        %vm2122 = vcmp.eq.f32.partialorder %v2120, 5.0
        %v2123 = vld [vmem:[%s425] sm:$0xff]
        %v2124 = vld [vmem:[%s425 + $0x8] sm:$0xff]
        %v2125 = vld [vmem:[%s425 + $0x10] sm:$0xff]
        %v2126 = vld [vmem:[%s425 + $0x18] sm:$0xff]
        %v2127 = vld [vmem:[%s425 + $0x20] sm:$0xff]
        %v2128 = vld [vmem:[%s425 + $0x28] sm:$0xff]
        %v2129 = vld [vmem:[%s425 + $0x30] sm:$0xff]
        %v2130 = vld [vmem:[%s425 + $0x38] sm:$0xff]
        %v2131 = vsel %vm2121, 1, 0
        %v2132 = vsel %vm2122, 1, 0
        %vm2133 = vcmp.eq.s32.totalorder %v2131, 1
        %vm2134 = vcmp.eq.s32.totalorder %v2132, 1
        %v2135 = vsel %vm2133, %v2123, 0.0
        %v2136 = vsel %vm2134, %v2124, 0.0
        %v2137 = vsel %vm2133, %v2125, 0.0
        %v2138 = vsel %vm2134, %v2126, 0.0
        %v2139 = vsel %vm2133, %v2127, 0.0
        %v2140 = vsel %vm2134, %v2128, 0.0
        %v2141 = vsel %vm2133, %v2129, 0.0
        %v2142 = vsel %vm2134, %v2130, 0.0
        %v2143 = vld [vmem:[%s548] sm:$0xff]
        %v2144 = vld [vmem:[%s548 + $0x8] sm:$0xff]
        %vm2145 = vcmp.eq.f32.partialorder %v2143, 5.0
        %vm2146 = vcmp.eq.f32.partialorder %v2144, 5.0
        %v2147 = vld [vmem:[%s491] sm:$0xff]
        %v2148 = vld [vmem:[%s491 + $0x8] sm:$0xff]
        %v2149 = vld [vmem:[%s491 + $0x10] sm:$0xff]
        %v2150 = vld [vmem:[%s491 + $0x18] sm:$0xff]
        %v2151 = vld [vmem:[%s491 + $0x20] sm:$0xff]
        %v2152 = vld [vmem:[%s491 + $0x28] sm:$0xff]
        %v2153 = vld [vmem:[%s491 + $0x30] sm:$0xff]
        %v2154 = vld [vmem:[%s491 + $0x38] sm:$0xff]
        %v2155 = vsel %vm2145, 1, 0
        %v2156 = vsel %vm2146, 1, 0
        %vm2157 = vcmp.eq.s32.totalorder %v2155, 1
        %vm2158 = vcmp.eq.s32.totalorder %v2156, 1
        %v2159 = vsel %vm2157, %v2147, %v2135
        %v2160 = vsel %vm2158, %v2148, %v2136
        %v2161 = vsel %vm2157, %v2149, %v2137
        %v2162 = vsel %vm2158, %v2150, %v2138
        %v2163 = vsel %vm2157, %v2151, %v2139
        %v2164 = vsel %vm2158, %v2152, %v2140
        %v2165 = vsel %vm2157, %v2153, %v2141
        %v2166 = vsel %vm2158, %v2154, %v2142
        %v2167 = vld [vmem:[%s619] sm:$0xff]
        %v2168 = vld [vmem:[%s619 + $0x8] sm:$0xff]
        %vm2169 = vcmp.eq.f32.partialorder %v2167, 5.0
        %vm2170 = vcmp.eq.f32.partialorder %v2168, 5.0
        %v2171 = vld [vmem:[%s562] sm:$0xff]
        %v2172 = vld [vmem:[%s562 + $0x8] sm:$0xff]
        %v2173 = vld [vmem:[%s562 + $0x10] sm:$0xff]
        %v2174 = vld [vmem:[%s562 + $0x18] sm:$0xff]
        %v2175 = vld [vmem:[%s562 + $0x20] sm:$0xff]
        %v2176 = vld [vmem:[%s562 + $0x28] sm:$0xff]
        %v2177 = vld [vmem:[%s562 + $0x30] sm:$0xff]
        %v2178 = vld [vmem:[%s562 + $0x38] sm:$0xff]
        %v2179 = vsel %vm2169, 1, 0
        %v2180 = vsel %vm2170, 1, 0
        %vm2181 = vcmp.eq.s32.totalorder %v2179, 1
        %vm2182 = vcmp.eq.s32.totalorder %v2180, 1
        %v2183 = vsel %vm2181, %v2171, %v2159
        %v2184 = vsel %vm2182, %v2172, %v2160
        %v2185 = vsel %vm2181, %v2173, %v2161
        %v2186 = vsel %vm2182, %v2174, %v2162
        %v2187 = vsel %vm2181, %v2175, %v2163
        %v2188 = vsel %vm2182, %v2176, %v2164
        %v2189 = vsel %vm2181, %v2177, %v2165
        %v2190 = vsel %vm2182, %v2178, %v2166
        %v2191 = vld [vmem:[%s690] sm:$0xff]
        %v2192 = vld [vmem:[%s690 + $0x8] sm:$0xff]
        %vm2193 = vcmp.eq.f32.partialorder %v2191, 5.0
        %vm2194 = vcmp.eq.f32.partialorder %v2192, 5.0
        %v2195 = vld [vmem:[%s633] sm:$0xff]
        %v2196 = vld [vmem:[%s633 + $0x8] sm:$0xff]
        %v2197 = vld [vmem:[%s633 + $0x10] sm:$0xff]
        %v2198 = vld [vmem:[%s633 + $0x18] sm:$0xff]
        %v2199 = vld [vmem:[%s633 + $0x20] sm:$0xff]
        %v2200 = vld [vmem:[%s633 + $0x28] sm:$0xff]
        %v2201 = vld [vmem:[%s633 + $0x30] sm:$0xff]
        %v2202 = vld [vmem:[%s633 + $0x38] sm:$0xff]
        %v2203 = vsel %vm2193, 1, 0
        %v2204 = vsel %vm2194, 1, 0
        %vm2205 = vcmp.eq.s32.totalorder %v2203, 1
        %vm2206 = vcmp.eq.s32.totalorder %v2204, 1
        %v2207 = vsel %vm2205, %v2195, %v2183
        %v2208 = vsel %vm2206, %v2196, %v2184
        %v2209 = vsel %vm2205, %v2197, %v2185
        %v2210 = vsel %vm2206, %v2198, %v2186
        %v2211 = vsel %vm2205, %v2199, %v2187
        %v2212 = vsel %vm2206, %v2200, %v2188
        %v2213 = vsel %vm2205, %v2201, %v2189
        %v2214 = vsel %vm2206, %v2202, %v2190
        %v2215 = vld [vmem:[%s761] sm:$0xff]
        %v2216 = vld [vmem:[%s761 + $0x8] sm:$0xff]
        %vm2217 = vcmp.eq.f32.partialorder %v2215, 5.0
        %vm2218 = vcmp.eq.f32.partialorder %v2216, 5.0
        %v2219 = vld [vmem:[%s704] sm:$0xff]
        %v2220 = vld [vmem:[%s704 + $0x8] sm:$0xff]
        %v2221 = vld [vmem:[%s704 + $0x10] sm:$0xff]
        %v2222 = vld [vmem:[%s704 + $0x18] sm:$0xff]
        %v2223 = vld [vmem:[%s704 + $0x20] sm:$0xff]
        %v2224 = vld [vmem:[%s704 + $0x28] sm:$0xff]
        %v2225 = vld [vmem:[%s704 + $0x30] sm:$0xff]
        %v2226 = vld [vmem:[%s704 + $0x38] sm:$0xff]
        %v2227 = vsel %vm2217, 1, 0
        %v2228 = vsel %vm2218, 1, 0
        %vm2229 = vcmp.eq.s32.totalorder %v2227, 1
        %vm2230 = vcmp.eq.s32.totalorder %v2228, 1
        %v2231 = vsel %vm2229, %v2219, %v2207
        %v2232 = vsel %vm2230, %v2220, %v2208
        %v2233 = vsel %vm2229, %v2221, %v2209
        %v2234 = vsel %vm2230, %v2222, %v2210
        %v2235 = vsel %vm2229, %v2223, %v2211
        %v2236 = vsel %vm2230, %v2224, %v2212
        %v2237 = vsel %vm2229, %v2225, %v2213
        %v2238 = vsel %vm2230, %v2226, %v2214
        %v2239 = vld [vmem:[%s832] sm:$0xff]
        %v2240 = vld [vmem:[%s832 + $0x8] sm:$0xff]
        %vm2241 = vcmp.eq.f32.partialorder %v2239, 5.0
        %vm2242 = vcmp.eq.f32.partialorder %v2240, 5.0
        %v2243 = vld [vmem:[%s775] sm:$0xff]
        %v2244 = vld [vmem:[%s775 + $0x8] sm:$0xff]
        %v2245 = vld [vmem:[%s775 + $0x10] sm:$0xff]
        %v2246 = vld [vmem:[%s775 + $0x18] sm:$0xff]
        %v2247 = vld [vmem:[%s775 + $0x20] sm:$0xff]
        %v2248 = vld [vmem:[%s775 + $0x28] sm:$0xff]
        %v2249 = vld [vmem:[%s775 + $0x30] sm:$0xff]
        %v2250 = vld [vmem:[%s775 + $0x38] sm:$0xff]
        %v2251 = vsel %vm2241, 1, 0
        %v2252 = vsel %vm2242, 1, 0
        %vm2253 = vcmp.eq.s32.totalorder %v2251, 1
        %vm2254 = vcmp.eq.s32.totalorder %v2252, 1
        %v2255 = vsel %vm2253, %v2243, %v2231
        %v2256 = vsel %vm2254, %v2244, %v2232
        %v2257 = vsel %vm2253, %v2245, %v2233
        %v2258 = vsel %vm2254, %v2246, %v2234
        %v2259 = vsel %vm2253, %v2247, %v2235
        %v2260 = vsel %vm2254, %v2248, %v2236
        %v2261 = vsel %vm2253, %v2249, %v2237
        %v2262 = vsel %vm2254, %v2250, %v2238
        %v2263 = vld [vmem:[%s903] sm:$0xff]
        %v2264 = vld [vmem:[%s903 + $0x8] sm:$0xff]
        %vm2265 = vcmp.eq.f32.partialorder %v2263, 5.0
        %vm2266 = vcmp.eq.f32.partialorder %v2264, 5.0
        %v2267 = vld [vmem:[%s846] sm:$0xff]
        %v2268 = vld [vmem:[%s846 + $0x8] sm:$0xff]
        %v2269 = vld [vmem:[%s846 + $0x10] sm:$0xff]
        %v2270 = vld [vmem:[%s846 + $0x18] sm:$0xff]
        %v2271 = vld [vmem:[%s846 + $0x20] sm:$0xff]
        %v2272 = vld [vmem:[%s846 + $0x28] sm:$0xff]
        %v2273 = vld [vmem:[%s846 + $0x30] sm:$0xff]
        %v2274 = vld [vmem:[%s846 + $0x38] sm:$0xff]
        %v2275 = vsel %vm2265, 1, 0
        %v2276 = vsel %vm2266, 1, 0
        %vm2277 = vcmp.eq.s32.totalorder %v2275, 1
        %vm2278 = vcmp.eq.s32.totalorder %v2276, 1
        %v2279 = vsel %vm2277, %v2267, %v2255
        %v2280 = vsel %vm2278, %v2268, %v2256
        %v2281 = vsel %vm2277, %v2269, %v2257
        %v2282 = vsel %vm2278, %v2270, %v2258
        %v2283 = vsel %vm2277, %v2271, %v2259
        %v2284 = vsel %vm2278, %v2272, %v2260
        %v2285 = vsel %vm2277, %v2273, %v2261
        %v2286 = vsel %vm2278, %v2274, %v2262
        %v2287 = vld [vmem:[#allocation2] sm:$0xff]
        %v2288 = vld [vmem:[#allocation2 + $0x8] sm:$0xff]
        %vm2289 = vcmp.eq.f32.partialorder %v2287, 5.0
        %vm2290 = vcmp.eq.f32.partialorder %v2288, 5.0
        %v2291 = vld [vmem:[%s335] sm:$0xff]
        %v2292 = vld [vmem:[%s335 + $0x8] sm:$0xff]
        %v2293 = vld [vmem:[%s335 + $0x10] sm:$0xff]
        %v2294 = vld [vmem:[%s335 + $0x18] sm:$0xff]
        %v2295 = vld [vmem:[%s335 + $0x20] sm:$0xff]
        %v2296 = vld [vmem:[%s335 + $0x28] sm:$0xff]
        %v2297 = vld [vmem:[%s335 + $0x30] sm:$0xff]
        %v2298 = vld [vmem:[%s335 + $0x38] sm:$0xff]
        %v2299 = vsel %vm2289, 1, 0
        %v2300 = vsel %vm2290, 1, 0
        %vm2301 = vcmp.eq.s32.totalorder %v2299, 1
        %vm2302 = vcmp.eq.s32.totalorder %v2300, 1
        %v2303 = vsel %vm2301, %v2291, %v2279
        %v2304 = vsel %vm2302, %v2292, %v2280
        %v2305 = vsel %vm2301, %v2293, %v2281
        %v2306 = vsel %vm2302, %v2294, %v2282
        %v2307 = vsel %vm2301, %v2295, %v2283
        %v2308 = vsel %vm2302, %v2296, %v2284
        %v2309 = vsel %vm2301, %v2297, %v2285
        %v2310 = vsel %vm2302, %v2298, %v2286
        %v2311 = vsub.f32 1.0, %v2309
        %v2312 = vsub.f32 1.0, %v2310
        %v2313 = vmul.f32 %v2303, %v2309
        %v2314 = vmul.f32 %v2304, %v2310
        %v2315 = vadd.f32 %v2313, %v2311
        %v2316 = vadd.f32 %v2314, %v2312
        %s2317 = scalar_lea.vmem %s406, 320 [#allocation13]
        %2318 = vst.msk [vmem:[%s2317] sm:$0xff] %vm477, %v2315
        %2319 = vst.msk [vmem:[%s2317 + $0x8] sm:$0xff] %vm477, %v2316
        %v2320 = vmul.f32 %v2305, %v2309
        %v2321 = vmul.f32 %v2306, %v2310
        %v2322 = vadd.f32 %v2320, %v2311
        %v2323 = vadd.f32 %v2321, %v2312
        %s2324 = scalar_lea.vmem %s406, 336 [#allocation13]
        %2325 = vst.msk [vmem:[%s2324] sm:$0xff] %vm477, %v2322
        %2326 = vst.msk [vmem:[%s2324 + $0x8] sm:$0xff] %vm477, %v2323
        %v2327 = vmul.f32 %v2307, %v2309
        %v2328 = vmul.f32 %v2308, %v2310
        %v2329 = vadd.f32 %v2327, %v2311
        %v2330 = vadd.f32 %v2328, %v2312
        %s2331 = scalar_lea.vmem %s406, 352 [#allocation13]
        %2332 = vst.msk [vmem:[%s2331] sm:$0xff] %vm477, %v2329
        %2333 = vst.msk [vmem:[%s2331 + $0x8] sm:$0xff] %vm477, %v2330
        %s2334 = scalar_lea.vmem %s406, 368 [#allocation13]
        %2335 = vst.msk [vmem:[%s2334] sm:$0xff] %vm477, %v2309
        %2336 = vst.msk [vmem:[%s2334 + $0x8] sm:$0xff] %vm477, %v2310
        %vm2337 = vcmp.eq.f32.partialorder %v2117, 5.0
        %vm2338 = vcmp.eq.f32.partialorder %v2118, 5.0
        %vm2339 = vcmp.lt.f32.partialorder %v2309, 0.5
        %vm2340 = vcmp.lt.f32.partialorder %v2310, 0.5
        %vm2341 = vmand %vm2337, %vm2339
        %vm2342 = vmand %vm2338, %vm2340
        %v2343 = vsel %vm2341, -1.0, %v2117
        %v2344 = vsel %vm2342, -1.0, %v2118
        %v2345 = vld [vmem:[%s476] sm:$0xff]
        %v2346 = vld [vmem:[%s476 + $0x8] sm:$0xff]
        %vm2347 = vcmp.eq.f32.partialorder %v2345, 6.0
        %vm2348 = vcmp.eq.f32.partialorder %v2346, 6.0
        %v2349 = vld [vmem:[%s425] sm:$0xff]
        %v2350 = vld [vmem:[%s425 + $0x8] sm:$0xff]
        %v2351 = vld [vmem:[%s425 + $0x10] sm:$0xff]
        %v2352 = vld [vmem:[%s425 + $0x18] sm:$0xff]
        %v2353 = vld [vmem:[%s425 + $0x20] sm:$0xff]
        %v2354 = vld [vmem:[%s425 + $0x28] sm:$0xff]
        %v2355 = vld [vmem:[%s425 + $0x30] sm:$0xff]
        %v2356 = vld [vmem:[%s425 + $0x38] sm:$0xff]
        %v2357 = vsel %vm2347, 1, 0
        %v2358 = vsel %vm2348, 1, 0
        %vm2359 = vcmp.eq.s32.totalorder %v2357, 1
        %vm2360 = vcmp.eq.s32.totalorder %v2358, 1
        %v2361 = vsel %vm2359, %v2349, 0.0
        %v2362 = vsel %vm2360, %v2350, 0.0
        %v2363 = vsel %vm2359, %v2351, 0.0
        %v2364 = vsel %vm2360, %v2352, 0.0
        %v2365 = vsel %vm2359, %v2353, 0.0
        %v2366 = vsel %vm2360, %v2354, 0.0
        %v2367 = vsel %vm2359, %v2355, 0.0
        %v2368 = vsel %vm2360, %v2356, 0.0
        %v2369 = vld [vmem:[%s548] sm:$0xff]
        %v2370 = vld [vmem:[%s548 + $0x8] sm:$0xff]
        %vm2371 = vcmp.eq.f32.partialorder %v2369, 6.0
        %vm2372 = vcmp.eq.f32.partialorder %v2370, 6.0
        %v2373 = vld [vmem:[%s491] sm:$0xff]
        %v2374 = vld [vmem:[%s491 + $0x8] sm:$0xff]
        %v2375 = vld [vmem:[%s491 + $0x10] sm:$0xff]
        %v2376 = vld [vmem:[%s491 + $0x18] sm:$0xff]
        %v2377 = vld [vmem:[%s491 + $0x20] sm:$0xff]
        %v2378 = vld [vmem:[%s491 + $0x28] sm:$0xff]
        %v2379 = vld [vmem:[%s491 + $0x30] sm:$0xff]
        %v2380 = vld [vmem:[%s491 + $0x38] sm:$0xff]
        %v2381 = vsel %vm2371, 1, 0
        %v2382 = vsel %vm2372, 1, 0
        %vm2383 = vcmp.eq.s32.totalorder %v2381, 1
        %vm2384 = vcmp.eq.s32.totalorder %v2382, 1
        %v2385 = vsel %vm2383, %v2373, %v2361
        %v2386 = vsel %vm2384, %v2374, %v2362
        %v2387 = vsel %vm2383, %v2375, %v2363
        %v2388 = vsel %vm2384, %v2376, %v2364
        %v2389 = vsel %vm2383, %v2377, %v2365
        %v2390 = vsel %vm2384, %v2378, %v2366
        %v2391 = vsel %vm2383, %v2379, %v2367
        %v2392 = vsel %vm2384, %v2380, %v2368
        %v2393 = vld [vmem:[%s619] sm:$0xff]
        %v2394 = vld [vmem:[%s619 + $0x8] sm:$0xff]
        %vm2395 = vcmp.eq.f32.partialorder %v2393, 6.0
        %vm2396 = vcmp.eq.f32.partialorder %v2394, 6.0
        %v2397 = vld [vmem:[%s562] sm:$0xff]
        %v2398 = vld [vmem:[%s562 + $0x8] sm:$0xff]
        %v2399 = vld [vmem:[%s562 + $0x10] sm:$0xff]
        %v2400 = vld [vmem:[%s562 + $0x18] sm:$0xff]
        %v2401 = vld [vmem:[%s562 + $0x20] sm:$0xff]
        %v2402 = vld [vmem:[%s562 + $0x28] sm:$0xff]
        %v2403 = vld [vmem:[%s562 + $0x30] sm:$0xff]
        %v2404 = vld [vmem:[%s562 + $0x38] sm:$0xff]
        %v2405 = vsel %vm2395, 1, 0
        %v2406 = vsel %vm2396, 1, 0
        %vm2407 = vcmp.eq.s32.totalorder %v2405, 1
        %vm2408 = vcmp.eq.s32.totalorder %v2406, 1
        %v2409 = vsel %vm2407, %v2397, %v2385
        %v2410 = vsel %vm2408, %v2398, %v2386
        %v2411 = vsel %vm2407, %v2399, %v2387
        %v2412 = vsel %vm2408, %v2400, %v2388
        %v2413 = vsel %vm2407, %v2401, %v2389
        %v2414 = vsel %vm2408, %v2402, %v2390
        %v2415 = vsel %vm2407, %v2403, %v2391
        %v2416 = vsel %vm2408, %v2404, %v2392
        %v2417 = vld [vmem:[%s690] sm:$0xff]
        %v2418 = vld [vmem:[%s690 + $0x8] sm:$0xff]
        %vm2419 = vcmp.eq.f32.partialorder %v2417, 6.0
        %vm2420 = vcmp.eq.f32.partialorder %v2418, 6.0
        %v2421 = vld [vmem:[%s633] sm:$0xff]
        %v2422 = vld [vmem:[%s633 + $0x8] sm:$0xff]
        %v2423 = vld [vmem:[%s633 + $0x10] sm:$0xff]
        %v2424 = vld [vmem:[%s633 + $0x18] sm:$0xff]
        %v2425 = vld [vmem:[%s633 + $0x20] sm:$0xff]
        %v2426 = vld [vmem:[%s633 + $0x28] sm:$0xff]
        %v2427 = vld [vmem:[%s633 + $0x30] sm:$0xff]
        %v2428 = vld [vmem:[%s633 + $0x38] sm:$0xff]
        %v2429 = vsel %vm2419, 1, 0
        %v2430 = vsel %vm2420, 1, 0
        %vm2431 = vcmp.eq.s32.totalorder %v2429, 1
        %vm2432 = vcmp.eq.s32.totalorder %v2430, 1
        %v2433 = vsel %vm2431, %v2421, %v2409
        %v2434 = vsel %vm2432, %v2422, %v2410
        %v2435 = vsel %vm2431, %v2423, %v2411
        %v2436 = vsel %vm2432, %v2424, %v2412
        %v2437 = vsel %vm2431, %v2425, %v2413
        %v2438 = vsel %vm2432, %v2426, %v2414
        %v2439 = vsel %vm2431, %v2427, %v2415
        %v2440 = vsel %vm2432, %v2428, %v2416
        %v2441 = vld [vmem:[%s761] sm:$0xff]
        %v2442 = vld [vmem:[%s761 + $0x8] sm:$0xff]
        %vm2443 = vcmp.eq.f32.partialorder %v2441, 6.0
        %vm2444 = vcmp.eq.f32.partialorder %v2442, 6.0
        %v2445 = vld [vmem:[%s704] sm:$0xff]
        %v2446 = vld [vmem:[%s704 + $0x8] sm:$0xff]
        %v2447 = vld [vmem:[%s704 + $0x10] sm:$0xff]
        %v2448 = vld [vmem:[%s704 + $0x18] sm:$0xff]
        %v2449 = vld [vmem:[%s704 + $0x20] sm:$0xff]
        %v2450 = vld [vmem:[%s704 + $0x28] sm:$0xff]
        %v2451 = vld [vmem:[%s704 + $0x30] sm:$0xff]
        %v2452 = vld [vmem:[%s704 + $0x38] sm:$0xff]
        %v2453 = vsel %vm2443, 1, 0
        %v2454 = vsel %vm2444, 1, 0
        %vm2455 = vcmp.eq.s32.totalorder %v2453, 1
        %vm2456 = vcmp.eq.s32.totalorder %v2454, 1
        %v2457 = vsel %vm2455, %v2445, %v2433
        %v2458 = vsel %vm2456, %v2446, %v2434
        %v2459 = vsel %vm2455, %v2447, %v2435
        %v2460 = vsel %vm2456, %v2448, %v2436
        %v2461 = vsel %vm2455, %v2449, %v2437
        %v2462 = vsel %vm2456, %v2450, %v2438
        %v2463 = vsel %vm2455, %v2451, %v2439
        %v2464 = vsel %vm2456, %v2452, %v2440
        %v2465 = vld [vmem:[%s832] sm:$0xff]
        %v2466 = vld [vmem:[%s832 + $0x8] sm:$0xff]
        %vm2467 = vcmp.eq.f32.partialorder %v2465, 6.0
        %vm2468 = vcmp.eq.f32.partialorder %v2466, 6.0
        %v2469 = vld [vmem:[%s775] sm:$0xff]
        %v2470 = vld [vmem:[%s775 + $0x8] sm:$0xff]
        %v2471 = vld [vmem:[%s775 + $0x10] sm:$0xff]
        %v2472 = vld [vmem:[%s775 + $0x18] sm:$0xff]
        %v2473 = vld [vmem:[%s775 + $0x20] sm:$0xff]
        %v2474 = vld [vmem:[%s775 + $0x28] sm:$0xff]
        %v2475 = vld [vmem:[%s775 + $0x30] sm:$0xff]
        %v2476 = vld [vmem:[%s775 + $0x38] sm:$0xff]
        %v2477 = vsel %vm2467, 1, 0
        %v2478 = vsel %vm2468, 1, 0
        %vm2479 = vcmp.eq.s32.totalorder %v2477, 1
        %vm2480 = vcmp.eq.s32.totalorder %v2478, 1
        %v2481 = vsel %vm2479, %v2469, %v2457
        %v2482 = vsel %vm2480, %v2470, %v2458
        %v2483 = vsel %vm2479, %v2471, %v2459
        %v2484 = vsel %vm2480, %v2472, %v2460
        %v2485 = vsel %vm2479, %v2473, %v2461
        %v2486 = vsel %vm2480, %v2474, %v2462
        %v2487 = vsel %vm2479, %v2475, %v2463
        %v2488 = vsel %vm2480, %v2476, %v2464
        %v2489 = vld [vmem:[%s903] sm:$0xff]
        %v2490 = vld [vmem:[%s903 + $0x8] sm:$0xff]
        %vm2491 = vcmp.eq.f32.partialorder %v2489, 6.0
        %vm2492 = vcmp.eq.f32.partialorder %v2490, 6.0
        %v2493 = vld [vmem:[%s846] sm:$0xff]
        %v2494 = vld [vmem:[%s846 + $0x8] sm:$0xff]
        %v2495 = vld [vmem:[%s846 + $0x10] sm:$0xff]
        %v2496 = vld [vmem:[%s846 + $0x18] sm:$0xff]
        %v2497 = vld [vmem:[%s846 + $0x20] sm:$0xff]
        %v2498 = vld [vmem:[%s846 + $0x28] sm:$0xff]
        %v2499 = vld [vmem:[%s846 + $0x30] sm:$0xff]
        %v2500 = vld [vmem:[%s846 + $0x38] sm:$0xff]
        %v2501 = vsel %vm2491, 1, 0
        %v2502 = vsel %vm2492, 1, 0
        %vm2503 = vcmp.eq.s32.totalorder %v2501, 1
        %vm2504 = vcmp.eq.s32.totalorder %v2502, 1
        %v2505 = vsel %vm2503, %v2493, %v2481
        %v2506 = vsel %vm2504, %v2494, %v2482
        %v2507 = vsel %vm2503, %v2495, %v2483
        %v2508 = vsel %vm2504, %v2496, %v2484
        %v2509 = vsel %vm2503, %v2497, %v2485
        %v2510 = vsel %vm2504, %v2498, %v2486
        %v2511 = vsel %vm2503, %v2499, %v2487
        %v2512 = vsel %vm2504, %v2500, %v2488
        %v2513 = vld [vmem:[#allocation2] sm:$0xff]
        %v2514 = vld [vmem:[#allocation2 + $0x8] sm:$0xff]
        %vm2515 = vcmp.eq.f32.partialorder %v2513, 6.0
        %vm2516 = vcmp.eq.f32.partialorder %v2514, 6.0
        %v2517 = vld [vmem:[%s335] sm:$0xff]
        %v2518 = vld [vmem:[%s335 + $0x8] sm:$0xff]
        %v2519 = vld [vmem:[%s335 + $0x10] sm:$0xff]
        %v2520 = vld [vmem:[%s335 + $0x18] sm:$0xff]
        %v2521 = vld [vmem:[%s335 + $0x20] sm:$0xff]
        %v2522 = vld [vmem:[%s335 + $0x28] sm:$0xff]
        %v2523 = vld [vmem:[%s335 + $0x30] sm:$0xff]
        %v2524 = vld [vmem:[%s335 + $0x38] sm:$0xff]
        %v2525 = vsel %vm2515, 1, 0
        %v2526 = vsel %vm2516, 1, 0
        %vm2527 = vcmp.eq.s32.totalorder %v2525, 1
        %vm2528 = vcmp.eq.s32.totalorder %v2526, 1
        %v2529 = vsel %vm2527, %v2517, %v2505
        %v2530 = vsel %vm2528, %v2518, %v2506
        %v2531 = vsel %vm2527, %v2519, %v2507
        %v2532 = vsel %vm2528, %v2520, %v2508
        %v2533 = vsel %vm2527, %v2521, %v2509
        %v2534 = vsel %vm2528, %v2522, %v2510
        %v2535 = vsel %vm2527, %v2523, %v2511
        %v2536 = vsel %vm2528, %v2524, %v2512
        %v2537 = vsub.f32 1.0, %v2535
        %v2538 = vsub.f32 1.0, %v2536
        %v2539 = vmul.f32 %v2529, %v2535
        %v2540 = vmul.f32 %v2530, %v2536
        %v2541 = vadd.f32 %v2539, %v2537
        %v2542 = vadd.f32 %v2540, %v2538
        %s2543 = scalar_lea.vmem %s406, 384 [#allocation13]
        %2544 = vst.msk [vmem:[%s2543] sm:$0xff] %vm477, %v2541
        %2545 = vst.msk [vmem:[%s2543 + $0x8] sm:$0xff] %vm477, %v2542
        %v2546 = vmul.f32 %v2531, %v2535
        %v2547 = vmul.f32 %v2532, %v2536
        %v2548 = vadd.f32 %v2546, %v2537
        %v2549 = vadd.f32 %v2547, %v2538
        %s2550 = scalar_lea.vmem %s406, 400 [#allocation13]
        %2551 = vst.msk [vmem:[%s2550] sm:$0xff] %vm477, %v2548
        %2552 = vst.msk [vmem:[%s2550 + $0x8] sm:$0xff] %vm477, %v2549
        %v2553 = vmul.f32 %v2533, %v2535
        %v2554 = vmul.f32 %v2534, %v2536
        %v2555 = vadd.f32 %v2553, %v2537
        %v2556 = vadd.f32 %v2554, %v2538
        %s2557 = scalar_lea.vmem %s406, 416 [#allocation13]
        %2558 = vst.msk [vmem:[%s2557] sm:$0xff] %vm477, %v2555
        %2559 = vst.msk [vmem:[%s2557 + $0x8] sm:$0xff] %vm477, %v2556
        %s2560 = scalar_lea.vmem %s406, 432 [#allocation13]
        %2561 = vst.msk [vmem:[%s2560] sm:$0xff] %vm477, %v2535
        %2562 = vst.msk [vmem:[%s2560 + $0x8] sm:$0xff] %vm477, %v2536
        %vm2563 = vcmp.eq.f32.partialorder %v2343, 6.0
        %vm2564 = vcmp.eq.f32.partialorder %v2344, 6.0
        %vm2565 = vcmp.lt.f32.partialorder %v2535, 0.5
        %vm2566 = vcmp.lt.f32.partialorder %v2536, 0.5
        %vm2567 = vmand %vm2563, %vm2565
        %vm2568 = vmand %vm2564, %vm2566
        %v2569 = vsel %vm2567, -1.0, %v2343
        %v2570 = vsel %vm2568, -1.0, %v2344
        %v2571 = vld [vmem:[%s476] sm:$0xff]
        %v2572 = vld [vmem:[%s476 + $0x8] sm:$0xff]
        %vm2573 = vcmp.eq.f32.partialorder %v2571, 7.0
        %vm2574 = vcmp.eq.f32.partialorder %v2572, 7.0
        %v2575 = vld [vmem:[%s425] sm:$0xff]
        %v2576 = vld [vmem:[%s425 + $0x8] sm:$0xff]
        %v2577 = vld [vmem:[%s425 + $0x10] sm:$0xff]
        %v2578 = vld [vmem:[%s425 + $0x18] sm:$0xff]
        %v2579 = vld [vmem:[%s425 + $0x20] sm:$0xff]
        %v2580 = vld [vmem:[%s425 + $0x28] sm:$0xff]
        %v2581 = vld [vmem:[%s425 + $0x30] sm:$0xff]
        %v2582 = vld [vmem:[%s425 + $0x38] sm:$0xff]
        %v2583 = vsel %vm2573, 1, 0
        %v2584 = vsel %vm2574, 1, 0
        %vm2585 = vcmp.eq.s32.totalorder %v2583, 1
        %vm2586 = vcmp.eq.s32.totalorder %v2584, 1
        %v2587 = vsel %vm2585, %v2575, 0.0
        %v2588 = vsel %vm2586, %v2576, 0.0
        %v2589 = vsel %vm2585, %v2577, 0.0
        %v2590 = vsel %vm2586, %v2578, 0.0
        %v2591 = vsel %vm2585, %v2579, 0.0
        %v2592 = vsel %vm2586, %v2580, 0.0
        %v2593 = vsel %vm2585, %v2581, 0.0
        %v2594 = vsel %vm2586, %v2582, 0.0
        %v2595 = vld [vmem:[%s548] sm:$0xff]
        %v2596 = vld [vmem:[%s548 + $0x8] sm:$0xff]
        %vm2597 = vcmp.eq.f32.partialorder %v2595, 7.0
        %vm2598 = vcmp.eq.f32.partialorder %v2596, 7.0
        %v2599 = vld [vmem:[%s491] sm:$0xff]
        %v2600 = vld [vmem:[%s491 + $0x8] sm:$0xff]
        %v2601 = vld [vmem:[%s491 + $0x10] sm:$0xff]
        %v2602 = vld [vmem:[%s491 + $0x18] sm:$0xff]
        %v2603 = vld [vmem:[%s491 + $0x20] sm:$0xff]
        %v2604 = vld [vmem:[%s491 + $0x28] sm:$0xff]
        %v2605 = vld [vmem:[%s491 + $0x30] sm:$0xff]
        %v2606 = vld [vmem:[%s491 + $0x38] sm:$0xff]
        %v2607 = vsel %vm2597, 1, 0
        %v2608 = vsel %vm2598, 1, 0
        %vm2609 = vcmp.eq.s32.totalorder %v2607, 1
        %vm2610 = vcmp.eq.s32.totalorder %v2608, 1
        %v2611 = vsel %vm2609, %v2599, %v2587
        %v2612 = vsel %vm2610, %v2600, %v2588
        %v2613 = vsel %vm2609, %v2601, %v2589
        %v2614 = vsel %vm2610, %v2602, %v2590
        %v2615 = vsel %vm2609, %v2603, %v2591
        %v2616 = vsel %vm2610, %v2604, %v2592
        %v2617 = vsel %vm2609, %v2605, %v2593
        %v2618 = vsel %vm2610, %v2606, %v2594
        %v2619 = vld [vmem:[%s619] sm:$0xff]
        %v2620 = vld [vmem:[%s619 + $0x8] sm:$0xff]
        %vm2621 = vcmp.eq.f32.partialorder %v2619, 7.0
        %vm2622 = vcmp.eq.f32.partialorder %v2620, 7.0
        %v2623 = vld [vmem:[%s562] sm:$0xff]
        %v2624 = vld [vmem:[%s562 + $0x8] sm:$0xff]
        %v2625 = vld [vmem:[%s562 + $0x10] sm:$0xff]
        %v2626 = vld [vmem:[%s562 + $0x18] sm:$0xff]
        %v2627 = vld [vmem:[%s562 + $0x20] sm:$0xff]
        %v2628 = vld [vmem:[%s562 + $0x28] sm:$0xff]
        %v2629 = vld [vmem:[%s562 + $0x30] sm:$0xff]
        %v2630 = vld [vmem:[%s562 + $0x38] sm:$0xff]
        %v2631 = vsel %vm2621, 1, 0
        %v2632 = vsel %vm2622, 1, 0
        %vm2633 = vcmp.eq.s32.totalorder %v2631, 1
        %vm2634 = vcmp.eq.s32.totalorder %v2632, 1
        %v2635 = vsel %vm2633, %v2623, %v2611
        %v2636 = vsel %vm2634, %v2624, %v2612
        %v2637 = vsel %vm2633, %v2625, %v2613
        %v2638 = vsel %vm2634, %v2626, %v2614
        %v2639 = vsel %vm2633, %v2627, %v2615
        %v2640 = vsel %vm2634, %v2628, %v2616
        %v2641 = vsel %vm2633, %v2629, %v2617
        %v2642 = vsel %vm2634, %v2630, %v2618
        %v2643 = vld [vmem:[%s690] sm:$0xff]
        %v2644 = vld [vmem:[%s690 + $0x8] sm:$0xff]
        %vm2645 = vcmp.eq.f32.partialorder %v2643, 7.0
        %vm2646 = vcmp.eq.f32.partialorder %v2644, 7.0
        %v2647 = vld [vmem:[%s633] sm:$0xff]
        %v2648 = vld [vmem:[%s633 + $0x8] sm:$0xff]
        %v2649 = vld [vmem:[%s633 + $0x10] sm:$0xff]
        %v2650 = vld [vmem:[%s633 + $0x18] sm:$0xff]
        %v2651 = vld [vmem:[%s633 + $0x20] sm:$0xff]
        %v2652 = vld [vmem:[%s633 + $0x28] sm:$0xff]
        %v2653 = vld [vmem:[%s633 + $0x30] sm:$0xff]
        %v2654 = vld [vmem:[%s633 + $0x38] sm:$0xff]
        %v2655 = vsel %vm2645, 1, 0
        %v2656 = vsel %vm2646, 1, 0
        %vm2657 = vcmp.eq.s32.totalorder %v2655, 1
        %vm2658 = vcmp.eq.s32.totalorder %v2656, 1
        %v2659 = vsel %vm2657, %v2647, %v2635
        %v2660 = vsel %vm2658, %v2648, %v2636
        %v2661 = vsel %vm2657, %v2649, %v2637
        %v2662 = vsel %vm2658, %v2650, %v2638
        %v2663 = vsel %vm2657, %v2651, %v2639
        %v2664 = vsel %vm2658, %v2652, %v2640
        %v2665 = vsel %vm2657, %v2653, %v2641
        %v2666 = vsel %vm2658, %v2654, %v2642
        %v2667 = vld [vmem:[%s761] sm:$0xff]
        %v2668 = vld [vmem:[%s761 + $0x8] sm:$0xff]
        %vm2669 = vcmp.eq.f32.partialorder %v2667, 7.0
        %vm2670 = vcmp.eq.f32.partialorder %v2668, 7.0
        %v2671 = vld [vmem:[%s704] sm:$0xff]
        %v2672 = vld [vmem:[%s704 + $0x8] sm:$0xff]
        %v2673 = vld [vmem:[%s704 + $0x10] sm:$0xff]
        %v2674 = vld [vmem:[%s704 + $0x18] sm:$0xff]
        %v2675 = vld [vmem:[%s704 + $0x20] sm:$0xff]
        %v2676 = vld [vmem:[%s704 + $0x28] sm:$0xff]
        %v2677 = vld [vmem:[%s704 + $0x30] sm:$0xff]
        %v2678 = vld [vmem:[%s704 + $0x38] sm:$0xff]
        %v2679 = vsel %vm2669, 1, 0
        %v2680 = vsel %vm2670, 1, 0
        %vm2681 = vcmp.eq.s32.totalorder %v2679, 1
        %vm2682 = vcmp.eq.s32.totalorder %v2680, 1
        %v2683 = vsel %vm2681, %v2671, %v2659
        %v2684 = vsel %vm2682, %v2672, %v2660
        %v2685 = vsel %vm2681, %v2673, %v2661
        %v2686 = vsel %vm2682, %v2674, %v2662
        %v2687 = vsel %vm2681, %v2675, %v2663
        %v2688 = vsel %vm2682, %v2676, %v2664
        %v2689 = vsel %vm2681, %v2677, %v2665
        %v2690 = vsel %vm2682, %v2678, %v2666
        %v2691 = vld [vmem:[%s832] sm:$0xff]
        %v2692 = vld [vmem:[%s832 + $0x8] sm:$0xff]
        %vm2693 = vcmp.eq.f32.partialorder %v2691, 7.0
        %vm2694 = vcmp.eq.f32.partialorder %v2692, 7.0
        %v2695 = vld [vmem:[%s775] sm:$0xff]
        %v2696 = vld [vmem:[%s775 + $0x8] sm:$0xff]
        %v2697 = vld [vmem:[%s775 + $0x10] sm:$0xff]
        %v2698 = vld [vmem:[%s775 + $0x18] sm:$0xff]
        %v2699 = vld [vmem:[%s775 + $0x20] sm:$0xff]
        %v2700 = vld [vmem:[%s775 + $0x28] sm:$0xff]
        %v2701 = vld [vmem:[%s775 + $0x30] sm:$0xff]
        %v2702 = vld [vmem:[%s775 + $0x38] sm:$0xff]
        %v2703 = vsel %vm2693, 1, 0
        %v2704 = vsel %vm2694, 1, 0
        %vm2705 = vcmp.eq.s32.totalorder %v2703, 1
        %vm2706 = vcmp.eq.s32.totalorder %v2704, 1
        %v2707 = vsel %vm2705, %v2695, %v2683
        %v2708 = vsel %vm2706, %v2696, %v2684
        %v2709 = vsel %vm2705, %v2697, %v2685
        %v2710 = vsel %vm2706, %v2698, %v2686
        %v2711 = vsel %vm2705, %v2699, %v2687
        %v2712 = vsel %vm2706, %v2700, %v2688
        %v2713 = vsel %vm2705, %v2701, %v2689
        %v2714 = vsel %vm2706, %v2702, %v2690
        %v2715 = vld [vmem:[%s903] sm:$0xff]
        %v2716 = vld [vmem:[%s903 + $0x8] sm:$0xff]
        %vm2717 = vcmp.eq.f32.partialorder %v2715, 7.0
        %vm2718 = vcmp.eq.f32.partialorder %v2716, 7.0
        %v2719 = vld [vmem:[%s846] sm:$0xff]
        %v2720 = vld [vmem:[%s846 + $0x8] sm:$0xff]
        %v2721 = vld [vmem:[%s846 + $0x10] sm:$0xff]
        %v2722 = vld [vmem:[%s846 + $0x18] sm:$0xff]
        %v2723 = vld [vmem:[%s846 + $0x20] sm:$0xff]
        %v2724 = vld [vmem:[%s846 + $0x28] sm:$0xff]
        %v2725 = vld [vmem:[%s846 + $0x30] sm:$0xff]
        %v2726 = vld [vmem:[%s846 + $0x38] sm:$0xff]
        %v2727 = vsel %vm2717, 1, 0
        %v2728 = vsel %vm2718, 1, 0
        %vm2729 = vcmp.eq.s32.totalorder %v2727, 1
        %vm2730 = vcmp.eq.s32.totalorder %v2728, 1
        %v2731 = vsel %vm2729, %v2719, %v2707
        %v2732 = vsel %vm2730, %v2720, %v2708
        %v2733 = vsel %vm2729, %v2721, %v2709
        %v2734 = vsel %vm2730, %v2722, %v2710
        %v2735 = vsel %vm2729, %v2723, %v2711
        %v2736 = vsel %vm2730, %v2724, %v2712
        %v2737 = vsel %vm2729, %v2725, %v2713
        %v2738 = vsel %vm2730, %v2726, %v2714
        %v2739 = vld [vmem:[#allocation2] sm:$0xff]
        %v2740 = vld [vmem:[#allocation2 + $0x8] sm:$0xff]
        %vm2741 = vcmp.eq.f32.partialorder %v2739, 7.0
        %vm2742 = vcmp.eq.f32.partialorder %v2740, 7.0
        %v2743 = vld [vmem:[%s335] sm:$0xff]
        %v2744 = vld [vmem:[%s335 + $0x8] sm:$0xff]
        %v2745 = vld [vmem:[%s335 + $0x10] sm:$0xff]
        %v2746 = vld [vmem:[%s335 + $0x18] sm:$0xff]
        %v2747 = vld [vmem:[%s335 + $0x20] sm:$0xff]
        %v2748 = vld [vmem:[%s335 + $0x28] sm:$0xff]
        %v2749 = vld [vmem:[%s335 + $0x30] sm:$0xff]
        %v2750 = vld [vmem:[%s335 + $0x38] sm:$0xff]
        %v2751 = vsel %vm2741, 1, 0
        %v2752 = vsel %vm2742, 1, 0
        %vm2753 = vcmp.eq.s32.totalorder %v2751, 1
        %vm2754 = vcmp.eq.s32.totalorder %v2752, 1
        %v2755 = vsel %vm2753, %v2743, %v2731
        %v2756 = vsel %vm2754, %v2744, %v2732
        %v2757 = vsel %vm2753, %v2745, %v2733
        %v2758 = vsel %vm2754, %v2746, %v2734
        %v2759 = vsel %vm2753, %v2747, %v2735
        %v2760 = vsel %vm2754, %v2748, %v2736
        %v2761 = vsel %vm2753, %v2749, %v2737
        %v2762 = vsel %vm2754, %v2750, %v2738
        %v2763 = vsub.f32 1.0, %v2761
        %v2764 = vsub.f32 1.0, %v2762
        %v2765 = vmul.f32 %v2755, %v2761
        %v2766 = vmul.f32 %v2756, %v2762
        %v2767 = vadd.f32 %v2765, %v2763
        %v2768 = vadd.f32 %v2766, %v2764
        %s2769 = scalar_lea.vmem %s406, 448 [#allocation13]
        %2770 = vst.msk [vmem:[%s2769] sm:$0xff] %vm477, %v2767
        %2771 = vst.msk [vmem:[%s2769 + $0x8] sm:$0xff] %vm477, %v2768
        %v2772 = vmul.f32 %v2757, %v2761
        %v2773 = vmul.f32 %v2758, %v2762
        %v2774 = vadd.f32 %v2772, %v2763
        %v2775 = vadd.f32 %v2773, %v2764
        %s2776 = scalar_lea.vmem %s406, 464 [#allocation13]
        %2777 = vst.msk [vmem:[%s2776] sm:$0xff] %vm477, %v2774
        %2778 = vst.msk [vmem:[%s2776 + $0x8] sm:$0xff] %vm477, %v2775
        %v2779 = vmul.f32 %v2759, %v2761
        %v2780 = vmul.f32 %v2760, %v2762
        %v2781 = vadd.f32 %v2779, %v2763
        %v2782 = vadd.f32 %v2780, %v2764
        %s2783 = scalar_lea.vmem %s406, 480 [#allocation13]
        %2784 = vst.msk [vmem:[%s2783] sm:$0xff] %vm477, %v2781
        %2785 = vst.msk [vmem:[%s2783 + $0x8] sm:$0xff] %vm477, %v2782
        %s2786 = scalar_lea.vmem %s406, 496 [#allocation13]
        %2787 = vst.msk [vmem:[%s2786] sm:$0xff] %vm477, %v2761
        %2788 = vst.msk [vmem:[%s2786 + $0x8] sm:$0xff] %vm477, %v2762
        %vm2789 = vcmp.eq.f32.partialorder %v2569, 7.0
        %vm2790 = vcmp.eq.f32.partialorder %v2570, 7.0
        %vm2791 = vcmp.lt.f32.partialorder %v2761, 0.5
        %vm2792 = vcmp.lt.f32.partialorder %v2762, 0.5
        %vm2793 = vmand %vm2789, %vm2791
        %vm2794 = vmand %vm2790, %vm2792
        %v2795 = vsel %vm2793, -1.0, %v2569
        %v2796 = vsel %vm2794, -1.0, %v2570
        %v2797 = vcvt.f32.s32.ties.to.even %v2795
        %v2798 = vcvt.f32.s32.ties.to.even %v2796
        %2799 = vst.msk [vmem:[%s399] sm:$0xff] %vm477, %v2797
        %2800 = vst.msk [vmem:[%s399 + $0x8] sm:$0xff] %vm477, %v2798
        %s2801 = sand.u32 %s139, 1
        %s2802 = scalar_lea.sflag [#allocation5], %s2801
        %s2803 = sand.u32 %s139, 1
        %s2804 = smul.addr %s2803, 64
        %s2805 = scalar_lea.vmem [#allocation9], %s2804
        %s2806 = sand.u32 %s33, 1
        %s2807 = scalar_lea.sflag [#allocation11], %s2806
        %s2808 = sand.u32 %s167, 1
        %s2809 = smul.addr %s2808, 16
        %s2810 = scalar_lea.vmem [#allocation10], %s2809
        %s2811 = sand.u32 %s33, 1
        %s2812 = scalar_lea.sflag [#allocation11], %s2811
        %s2813 = sand.u32 %s195, 1
        %s2814 = smul.addr %s2813, 16
        %s2815 = scalar_lea.vmem [#allocation12], %s2814
        %s2816 = sand.u32 %s223, 1
        %s2817 = scalar_lea.sflag [#allocation14], %s2816
        %s2818 = sand.u32 %s223, 1
        %s2819 = smul.addr %s2818, 512
        %s2820 = scalar_lea.vmem [#allocation13], %s2819
        // Predicated region
        $region45: #{alpha_composition_shader_planar.1} parent=31 // pred_check
          %p2821 = pneg %p149
        $region46: #{alpha_composition_shader_planar.1} parent=31 // pred_check_branch
          %2823 = sbr.rel (%p2821) target = $region48
        $region47: #{alpha_composition_shader_planar.1} parent=31 // pred_region
          %s2824 = smul.u32 2, %s38
          %s2826 = ssub.s32 1024, 1024
          %2827 = vsyncadd %s2802, %s2826
          %s2828 = smul.addr %s37, 8
          %s2829 = sadd.s32 %s2824, %s2828
          %s2830 = smul.addr %s2829, 128
          %s2831 = scalar_lea.hbm %s3, %s2830
          %s2832 = sshll.u32 %s2805, 4
          %s2833 = int_to_ptr.vmem [resolvable:$true] %s2832
          %2838 = dma.vmem_to_hbm [thread:$0]  %s2833, 1024, %s2831, %s2802, 128, 128, 8
        $region48: #{alpha_composition_shader_planar.1} parent=31 // pred_fallthru
          _
        // Predicated region
        $region49: #{alpha_composition_shader_planar.1} parent=31 // pred_check
          %p2839 = pneg %p177
        $region50: #{alpha_composition_shader_planar.1} parent=31 // pred_check_branch
          %2841 = sbr.rel (%p2839) target = $region52
        $region51: #{alpha_composition_shader_planar.1} parent=31 // pred_region
          %s2842 = smul.u32 2, %s38
          %s2844 = ssub.s32 256, 256
          %2845 = vsyncadd %s2807, %s2844
          %s2846 = smul.addr %s37, 2
          %s2847 = sadd.s32 %s2842, %s2846
          %s2848 = smul.addr %s2847, 128
          %s2849 = scalar_lea.hbm %s4, %s2848
          %s2850 = sshll.u32 %s2810, 4
          %s2851 = int_to_ptr.vmem [resolvable:$true] %s2850
          %2856 = dma.vmem_to_hbm [thread:$0]  %s2851, 256, %s2849, %s2807, 128, 128, 8
        $region52: #{alpha_composition_shader_planar.1} parent=31 // pred_fallthru
          _
        // Predicated region
        $region53: #{alpha_composition_shader_planar.1} parent=31 // pred_check
          %p2857 = pneg %p205
        $region54: #{alpha_composition_shader_planar.1} parent=31 // pred_check_branch
          %2859 = sbr.rel (%p2857) target = $region56
        $region55: #{alpha_composition_shader_planar.1} parent=31 // pred_region
          %s2860 = smul.u32 2, %s38
          %s2862 = ssub.s32 256, 256
          %2863 = vsyncadd %s2812, %s2862
          %s2864 = smul.addr %s37, 2
          %s2865 = sadd.s32 %s2860, %s2864
          %s2866 = smul.addr %s2865, 128
          %s2867 = scalar_lea.hbm %s5, %s2866
          %s2868 = sshll.u32 %s2815, 4
          %s2869 = int_to_ptr.vmem [resolvable:$true] %s2868
          %2874 = dma.vmem_to_hbm [thread:$0]  %s2869, 256, %s2867, %s2812, 128, 128, 8
        $region56: #{alpha_composition_shader_planar.1} parent=31 // pred_fallthru
          _
        // Predicated region
        $region57: #{alpha_composition_shader_planar.1} parent=31 // pred_check
          %p2875 = pneg %p233
        $region58: #{alpha_composition_shader_planar.1} parent=31 // pred_check_branch
          %2877 = sbr.rel (%p2875) target = $region60
        $region59: #{alpha_composition_shader_planar.1} parent=31 // pred_region
          %s2878 = smul.u32 2, %s38
          %s2880 = ssub.s32 8192, 8192
          %2881 = vsyncadd %s2817, %s2880
          %s2882 = smul.addr %s37, 64
          %s2883 = sadd.s32 %s2878, %s2882
          %s2884 = smul.addr %s2883, 128
          %s2885 = scalar_lea.hbm %s6, %s2884
          %s2886 = sshll.u32 %s2820, 4
          %s2887 = int_to_ptr.vmem [resolvable:$true] %s2886
          %2892 = dma.vmem_to_hbm [thread:$0]  %s2887, 8192, %s2885, %s2817, 128, 128, 8
        $region60: #{alpha_composition_shader_planar.1} parent=31 // pred_fallthru
          _
      $region32: #{alpha_composition_shader_planar.1} parent=5 // pred_fallthru
        _
      %p2893 = scmp.le.s32.totalorder 2, %s28
      // Predicated region
      $region61: #{alpha_composition_shader_planar.1} parent=5 // pred_check
        %p2894 = pneg %p2893
      $region62: #{alpha_composition_shader_planar.1} parent=5 // pred_check_branch
        %2896 = sbr.rel (%p2894) target = $region64
      $region63: #{alpha_composition_shader_planar.1} parent=5 // pred_region
        %s2897 = ssub.s32 %s28, 2
        // Predicated region
        $region65: #{alpha_composition_shader_planar.1} parent=63 // pred_check
          %p2898 = pneg %p155
        $region66: #{alpha_composition_shader_planar.1} parent=63 // pred_check_branch
          %2900 = sbr.rel (%p2898) target = $region68
        $region67: #{alpha_composition_shader_planar.1} parent=63 // pred_region
          %s2901 = sand.u32 %s140, 1
          %s2902 = scalar_lea.sflag [#allocation5], %s2901
          %s2903 = sand.u32 %s140, 1
          %s2904 = smul.addr %s2903, 64
          %s2905 = scalar_lea.vmem [#allocation9], %s2904
          %2906 = dma.done %s2902, 1024
        $region68: #{alpha_composition_shader_planar.1} parent=63 // pred_fallthru
          _
        // Predicated region
        $region69: #{alpha_composition_shader_planar.1} parent=63 // pred_check
          %p2907 = pneg %p183
        $region70: #{alpha_composition_shader_planar.1} parent=63 // pred_check_branch
          %2909 = sbr.rel (%p2907) target = $region72
        $region71: #{alpha_composition_shader_planar.1} parent=63 // pred_region
          %s2910 = sand.u32 %s34, 1
          %s2911 = scalar_lea.sflag [#allocation11], %s2910
          %s2912 = sand.u32 %s168, 1
          %s2913 = smul.addr %s2912, 16
          %s2914 = scalar_lea.vmem [#allocation10], %s2913
          %2915 = dma.done %s2911, 256
        $region72: #{alpha_composition_shader_planar.1} parent=63 // pred_fallthru
          _
        // Predicated region
        $region73: #{alpha_composition_shader_planar.1} parent=63 // pred_check
          %p2916 = pneg %p211
        $region74: #{alpha_composition_shader_planar.1} parent=63 // pred_check_branch
          %2918 = sbr.rel (%p2916) target = $region76
        $region75: #{alpha_composition_shader_planar.1} parent=63 // pred_region
          %s2919 = sand.u32 %s34, 1
          %s2920 = scalar_lea.sflag [#allocation11], %s2919
          %s2921 = sand.u32 %s196, 1
          %s2922 = smul.addr %s2921, 16
          %s2923 = scalar_lea.vmem [#allocation12], %s2922
          %2924 = dma.done %s2920, 256
        $region76: #{alpha_composition_shader_planar.1} parent=63 // pred_fallthru
          _
        // Predicated region
        $region77: #{alpha_composition_shader_planar.1} parent=63 // pred_check
          %p2925 = pneg %p239
        $region78: #{alpha_composition_shader_planar.1} parent=63 // pred_check_branch
          %2927 = sbr.rel (%p2925) target = $region80
        $region79: #{alpha_composition_shader_planar.1} parent=63 // pred_region
          %s2928 = sand.u32 %s224, 1
          %s2929 = scalar_lea.sflag [#allocation14], %s2928
          %s2930 = sand.u32 %s224, 1
          %s2931 = smul.addr %s2930, 512
          %s2932 = scalar_lea.vmem [#allocation13], %s2931
          %2933 = dma.done %s2929, 8192
        $region80: #{alpha_composition_shader_planar.1} parent=63 // pred_fallthru
          _
      $region64: #{alpha_composition_shader_planar.1} parent=5 // pred_fallthru
        _
    $region6: #{alpha_composition_shader_planar.1} parent=1 // loop_footer
      %s32 = sadd.s32 1, %s28
    $region7: #{alpha_composition_shader_planar.1} parent=1 // loop_footer_branch
      %27 = sbr.rel target = $region3
    $region8: #{alpha_composition_shader_planar.1} parent=1 // loop_exit
      _
    %2934 = vsyncpa [#allocation4], 1
    %s2935 = scalar_lea.sflag [#allocation4], 1
    %2936 = vsyncpa %s2935, 1
    %2937 = vsyncpa [#allocation7], 1
    %s2938 = scalar_lea.sflag [#allocation7], 1
    %2939 = vsyncpa %s2938, 1
    %2940 = vsyncpa [#allocation5], 1
    %s2941 = scalar_lea.sflag [#allocation5], 1
    %2942 = vsyncpa %s2941, 1
    %2943 = vsyncpa [#allocation11], 1
    %s2944 = scalar_lea.sflag [#allocation11], 1
    %2945 = vsyncpa %s2944, 1
    %2946 = vsyncpa [#allocation14], 1
    %s2947 = scalar_lea.sflag [#allocation14], 1
    %2948 = vsyncpa %s2947, 1

</llo_original>
